<compile_context>
chip_gen: v7x
topology: tpu7x:2x2x1
jax: 0.10.0
libtpu: 0.0.40
codegen_flags: <defaults>
</compile_context>

<pallas_src>
import numpy as np
import jax
import jax.numpy as jnp
from jax.experimental import pallas as pl
from jax.experimental.pallas import tpu as pltpu


_NB = 4     # images packed on the lane axis per grid step
_RB2 = 48   # sublane rows per conv2 tap block in the stacked gather (mult of 16, >= 36)
_RB3 = 16   # sublane rows per conv3 tap block (mult of 16, >= 4)


# --------------------------------------------------------------------------
# Fused kernel: conv1 -> conv2 -> conv3 -> dense1 -> dense2, NB images/program
# --------------------------------------------------------------------------
def _cnn_fused_kernel(p1_ref, sel2_ref, sel3_ref,
                      w1_ref, b1_ref, w2_ref, b2_ref, w3_ref, b3_ref,
                      wd1_ref, bd1_ref, wd2_ref, bd2_ref, out_ref):
    f32, bf16 = jnp.float32, jnp.bfloat16
    NB = _NB

    # ---- conv1 + ReLU (all NB images at once, block-diag weights) ----------
    # (169, NB*9) @ (NB*9, NB*32) -> (169, NB*32); image i lives in lanes 32i..
    a1 = jnp.dot(p1_ref[0], w1_ref[...], preferred_element_type=f32)
    a1 = jnp.maximum(a1 + b1_ref[...], 0.0).astype(bf16)

    # ---- conv2 + ReLU -------------------------------------------------------
    # One stacked tap-gather matmul (RHS a1 loaded into the MXU once), then 9
    # block-diagonal channel matmuls covering all NB images each.
    p2 = jnp.dot(sel2_ref[...], a1, preferred_element_type=f32).astype(bf16)  # (9*RB2, NB*32)
    acc2 = jnp.zeros((_RB2, NB * 64), f32)
    for t in range(9):
        acc2 = acc2 + jnp.dot(p2[t * _RB2:(t + 1) * _RB2, :], w2_ref[t],
                              preferred_element_type=f32)
    a2 = jnp.maximum(acc2 + b2_ref[...], 0.0).astype(bf16)   # (RB2, NB*64); rows >= 36 unused

    # ---- conv3 + ReLU -------------------------------------------------------
    p3 = jnp.dot(sel3_ref[...], a2, preferred_element_type=f32).astype(bf16)  # (9*RB3, NB*64)
    acc3 = jnp.zeros((_RB3, NB * 128), f32)
    for t in range(9):
        acc3 = acc3 + jnp.dot(p3[t * _RB3:(t + 1) * _RB3, :], w3_ref[t],
                              preferred_element_type=f32)
    a3 = jnp.maximum(acc3 + b3_ref[...], 0.0).astype(bf16)   # (RB3, NB*128); rows >= 4 unused

    # ---- flatten: X[i, s*128 + c] = a3[s, i*128 + c]  (PyTorch order handled
    # by the host-permuted wd1), images move from lanes to sublanes ------------
    x = jnp.concatenate(
        [jnp.concatenate([a3[s:s + 1, i * 128:(i + 1) * 128] for s in range(4)],
                         axis=1)
         for i in range(NB)], axis=0)                          # (NB, 512)

    # ---- dense1 + ReLU ------------------------------------------------------
    # TODO(synk): nn.Dropout(0.2) is identity in inference mode; no RNG mask.
    h = jnp.dot(x, wd1_ref[...], preferred_element_type=f32)   # (NB, 800)
    h = jnp.maximum(h + bd1_ref[...], 0.0).astype(bf16)

    # ---- dense2 (lane-padded logits -> unmasked stores) ---------------------
    logits = jnp.dot(h, wd2_ref[...], preferred_element_type=f32) + bd2_ref[...]
    out_ref[0] = logits.astype(out_ref.dtype)                  # (NB, KP)


# --------------------------------------------------------------------------
# Host-side helpers (one-time, layout-only glue)
# --------------------------------------------------------------------------
def _sel_taps_stacked(h_out, w_out, h_in, w_in, row_blk, n_cols, stride=2, ksize=3):
    """Stacked 0/1 selection matrix: rows [t*row_blk, t*row_blk + h_out*w_out)
    gather tap t's im2col slab; remaining rows of each block are zero."""
    sel = np.zeros((ksize * ksize * row_blk, n_cols), np.float32)
    for kh in range(ksize):
        for kw in range(ksize):
            t = kh * ksize + kw
            for qh in range(h_out):
                for qw in range(w_out):
                    r = (stride * qh + kh) * w_in + (stride * qw + kw)
                    sel[t * row_blk + qh * w_out + qw, r] = 1.0
    return sel


def _const_spec(shape):
    rank = len(shape)
    return pl.BlockSpec(shape, lambda g: (0,) * rank)


def cnn_forward(params, x):
    """Forward pass of the PyTorch CNN; x is NCHW (N, 1, 28, 28)."""
    bf16, f32 = jnp.bfloat16, jnp.float32
    NB = _NB
    N = x.shape[0]
    K = params["wd2"].shape[1]
    KP = ((K + 127) // 128) * 128
    G = -(-N // NB)
    N_pad = G * NB

    # conv1 im2col on the raw 1-channel 28x28 input; NB images packed on lanes.
    x2 = x.reshape(N, 28, 28)
    if N_pad != N:
        x2 = jnp.concatenate([x2, jnp.zeros((N_pad - N, 28, 28), x2.dtype)], 0)
    taps = [x2[:, i:i + 26:2, j:j + 26:2] for i in range(3) for j in range(3)]
    p1 = jnp.stack(taps, axis=-1).reshape(N_pad, 169, 9)
    p1w = (p1.reshape(G, NB, 169, 9).transpose(0, 2, 1, 3)
             .reshape(G, 169, NB * 9).astype(bf16))            # (G, 169, NB*9)

    # Stacked tap-selection matrices (0/1, bf16).
    sel2s = jnp.asarray(_sel_taps_stacked(6, 6, 13, 13, _RB2, 169), dtype=bf16)
    sel3s = jnp.asarray(_sel_taps_stacked(2, 2, 6, 6, _RB3, _RB2), dtype=bf16)

    # Conv weights OIHW -> (tap, Cin, Cout), then block-diag over NB images.
    w1r = jnp.transpose(params["w1"], (2, 3, 1, 0)).reshape(9, 32)
    w2r = jnp.transpose(params["w2"], (2, 3, 1, 0)).reshape(9, 32, 64)
    w3r = jnp.transpose(params["w3"], (2, 3, 1, 0)).reshape(9, 64, 128)
    eye = jnp.eye(NB, dtype=f32)
    w1bd = jnp.kron(eye, w1r).astype(bf16)                                    # (NB*9, NB*32)
    w2bd = jnp.stack([jnp.kron(eye, w2r[t]) for t in range(9)]).astype(bf16)  # (9, NB*32, NB*64)
    w3bd = jnp.stack([jnp.kron(eye, w3r[t]) for t in range(9)]).astype(bf16)  # (9, NB*64, NB*128)

    # wd1 rows (PyTorch NCHW flatten c*4 + h*2 + w) permuted to the kernel's
    # X order (s*128 + c, with s = h*2 + w): (512, 800).
    wd1f = (params["wd1"].reshape(128, 2, 2, 800).transpose(1, 2, 0, 3)
              .reshape(512, 800).astype(bf16))
    wd2p = jnp.pad(params["wd2"], ((0, 0), (0, KP - K))).astype(bf16)         # (800, KP)

    b1t = jnp.tile(params["b1"].reshape(1, 32).astype(f32), (1, NB))          # (1, NB*32)
    b2t = jnp.tile(params["b2"].reshape(1, 64).astype(f32), (1, NB))          # (1, NB*64)
    b3t = jnp.tile(params["b3"].reshape(1, 128).astype(f32), (1, NB))         # (1, NB*128)
    bd1 = params["bd1"].reshape(1, 800).astype(f32)
    bd2 = jnp.pad(params["bd2"].reshape(1, K).astype(f32), ((0, 0), (0, KP - K)))

    operands = (p1w, sel2s, sel3s, w1bd, b1t, w2bd, b2t, w3bd, b3t,
                wd1f, bd1, wd2p, bd2)

    in_specs = [pl.BlockSpec((1, 169, NB * 9), lambda g: (g, 0, 0))]  # per group
    in_specs += [_const_spec(a.shape) for a in operands[1:]]          # resident
    out_specs = pl.BlockSpec((1, NB, KP), lambda g: (g, 0, 0))

    flops_per_group = (
        2 * 169 * (NB * 9) * (NB * 32)
        + 2 * (9 * _RB2) * 169 * (NB * 32)
        + 9 * 2 * _RB2 * (NB * 32) * (NB * 64)
        + 2 * (9 * _RB3) * _RB2 * (NB * 64)
        + 9 * 2 * _RB3 * (NB * 64) * (NB * 128)
        + 2 * NB * 512 * 800
        + 2 * NB * 800 * KP)
    bytes_accessed = int(sum(int(np.prod(a.shape)) * a.dtype.itemsize
                             for a in operands) + G * NB * KP * 4)

    out = pl.pallas_call(
        _cnn_fused_kernel,
        out_shape=jax.ShapeDtypeStruct((G, NB, KP), f32),
        grid=(G,),
        in_specs=in_specs,
        out_specs=out_specs,
        compiler_params=pltpu.CompilerParams(
            dimension_semantics=("parallel",)),
        cost_estimate=pl.CostEstimate(
            flops=int(G * flops_per_group), transcendentals=0,
            bytes_accessed=bytes_accessed),
    )(*operands)
    return out.reshape(N_pad, KP)[:N, :K]


# --------------------------------------------------------------------------
# PyTorch-style parameter init (same layouts as the nn.Module)
# --------------------------------------------------------------------------
def init_params(key, K):
    keys = jax.random.split(key, 10)

    def u(k, shape, fan_in):
        bound = 1.0 / (fan_in ** 0.5)
        return jax.random.uniform(k, shape, jnp.float32, -bound, bound)

    return {
        "w1": u(keys[0], (32, 1, 3, 3), 1 * 9),
        "b1": u(keys[1], (32,), 1 * 9),
        "w2": u(keys[2], (64, 32, 3, 3), 32 * 9),
        "b2": u(keys[3], (64,), 32 * 9),
        "w3": u(keys[4], (128, 64, 3, 3), 64 * 9),
        "b3": u(keys[5], (128,), 64 * 9),
        # dense weights stored (in, out); "in" indexed in PyTorch NCHW order.
        "wd1": u(keys[6], (128 * 2 * 2, 800), 128 * 2 * 2),
        "bd1": u(keys[7], (800,), 128 * 2 * 2),
        "wd2": u(keys[8], (800, 10), 800),
        "bd2": u(keys[9], (10,), 800),
    }


if __name__ == "__main__":
    K = 10  # FashionMNIST has 10 classes
    key = jax.random.PRNGKey(0)
    pkey, xkey = jax.random.split(key)

    params = init_params(pkey, K)
    # Module geometry requires 28x28 single-channel inputs (128*2*2 flatten).
    x = jax.random.normal(xkey, (2, 1, 28, 28), jnp.float32)

    logits = jax.jit(cnn_forward)(params, x)
    jax.block_until_ready(logits)
    assert logits.shape == (2, K), logits.shape
    print("KERNEL_OK")
</pallas_src>

<mosaic_0001>
module attributes {stable_mosaic.version = 11 : i64} {
  func.func @_cnn_fused_kernel(%arg0: i32, %arg1: memref<1x169x36xbf16, #tpu.memory_space<vmem>>, %arg2: memref<432x169xbf16, #tpu.memory_space<vmem>>, %arg3: memref<144x48xbf16, #tpu.memory_space<vmem>>, %arg4: memref<36x128xbf16, #tpu.memory_space<vmem>>, %arg5: memref<1x128xf32, #tpu.memory_space<vmem>>, %arg6: memref<9x128x256xbf16, #tpu.memory_space<vmem>>, %arg7: memref<1x256xf32, #tpu.memory_space<vmem>>, %arg8: memref<9x256x512xbf16, #tpu.memory_space<vmem>>, %arg9: memref<1x512xf32, #tpu.memory_space<vmem>>, %arg10: memref<512x800xbf16, #tpu.memory_space<vmem>>, %arg11: memref<1x800xf32, #tpu.memory_space<vmem>>, %arg12: memref<800x128xbf16, #tpu.memory_space<vmem>>, %arg13: memref<1x128xf32, #tpu.memory_space<vmem>>, %arg14: memref<1x4x128xf32, #tpu.memory_space<vmem>>) attributes {dimension_semantics = [#tpu.dimension_semantics<parallel>], iteration_bounds = array<i64: 1>, scalar_prefetch = 0 : i64, scratch_operands = 0 : i64, tpu.core_type = #tpu.core_type<tc>, window_params = [{transform_indices = @transform_0, window_bounds = array<i64: 1, 169, 36>}, {pipeline_mode = #tpu.pipeline_mode<synchronous>, transform_indices = @transform_1, window_bounds = array<i64: 432, 169>}, {pipeline_mode = #tpu.pipeline_mode<synchronous>, transform_indices = @transform_2, window_bounds = array<i64: 144, 48>}, {pipeline_mode = #tpu.pipeline_mode<synchronous>, transform_indices = @transform_3, window_bounds = array<i64: 36, 128>}, {pipeline_mode = #tpu.pipeline_mode<synchronous>, transform_indices = @transform_4, window_bounds = array<i64: 1, 128>}, {pipeline_mode = #tpu.pipeline_mode<synchronous>, transform_indices = @transform_5, window_bounds = array<i64: 9, 128, 256>}, {pipeline_mode = #tpu.pipeline_mode<synchronous>, transform_indices = @transform_6, window_bounds = array<i64: 1, 256>}, {pipeline_mode = #tpu.pipeline_mode<synchronous>, transform_indices = @transform_7, window_bounds = array<i64: 9, 256, 512>}, {pipeline_mode = #tpu.pipeline_mode<synchronous>, transform_indices = @transform_8, window_bounds = array<i64: 1, 512>}, {pipeline_mode = #tpu.pipeline_mode<synchronous>, transform_indices = @transform_9, window_bounds = array<i64: 512, 800>}, {pipeline_mode = #tpu.pipeline_mode<synchronous>, transform_indices = @transform_10, window_bounds = array<i64: 1, 800>}, {pipeline_mode = #tpu.pipeline_mode<synchronous>, transform_indices = @transform_11, window_bounds = array<i64: 800, 128>}, {pipeline_mode = #tpu.pipeline_mode<synchronous>, transform_indices = @transform_12, window_bounds = array<i64: 1, 128>}, {transform_indices = @transform_13, window_bounds = array<i64: 1, 4, 128>}]} {
    %c0 = arith.constant 0 : index
    %c0_0 = arith.constant 0 : index
    %c0_1 = arith.constant 0 : index
    %0 = vector.load %arg1[%c0, %c0_0, %c0_1] : memref<1x169x36xbf16, #tpu.memory_space<vmem>>, vector<1x169x36xbf16>
    %1 = vector.shape_cast %0 : vector<1x169x36xbf16> to vector<169x36xbf16>
    %c0_2 = arith.constant 0 : index
    %c0_3 = arith.constant 0 : index
    %2 = vector.load %arg4[%c0_2, %c0_3] : memref<36x128xbf16, #tpu.memory_space<vmem>>, vector<36x128xbf16>
    %cst = arith.constant dense<0.000000e+00> : vector<169x128xf32>
    %3 = tpu.matmul %1, %2, %cst {dimension_numbers = #tpu.dot_dimension_numbers<[1], [0], [0], [1], [0, 0, 1, 1], [], []>} : vector<169x36xbf16>, vector<36x128xbf16>, vector<169x128xf32> -> vector<169x128xf32>
    %c0_4 = arith.constant 0 : index
    %c0_5 = arith.constant 0 : index
    %4 = vector.load %arg5[%c0_4, %c0_5] : memref<1x128xf32, #tpu.memory_space<vmem>>, vector<1x128xf32>
    %5 = vector.broadcast %4 : vector<1x128xf32> to vector<169x128xf32>
    %6 = arith.addf %3, %5 : vector<169x128xf32>
    %cst_6 = arith.constant 0.000000e+00 : f32
    %7 = vector.broadcast %cst_6 : f32 to vector<169x128xf32>
    %8 = arith.maximumf %6, %7 : vector<169x128xf32>
    %9 = arith.truncf %8 : vector<169x128xf32> to vector<169x128xbf16>
    %c0_7 = arith.constant 0 : index
    %c0_8 = arith.constant 0 : index
    %10 = vector.load %arg2[%c0_7, %c0_8] : memref<432x169xbf16, #tpu.memory_space<vmem>>, vector<432x169xbf16>
    %cst_9 = arith.constant dense<0.000000e+00> : vector<432x128xf32>
    %11 = tpu.matmul %10, %9, %cst_9 {dimension_numbers = #tpu.dot_dimension_numbers<[1], [0], [0], [1], [0, 0, 1, 1], [], []>} : vector<432x169xbf16>, vector<169x128xbf16>, vector<432x128xf32> -> vector<432x128xf32>
    %12 = arith.truncf %11 : vector<432x128xf32> to vector<432x128xbf16>
    %cst_10 = arith.constant 0.000000e+00 : f32
    %13 = vector.broadcast %cst_10 : f32 to vector<48x256xf32>
    %14 = vector.extract_strided_slice %12 {offsets = [0, 0], sizes = [48, 128], strides = [1, 1]} : vector<432x128xbf16> to vector<48x128xbf16>
    %c0_11 = arith.constant 0 : index
    %c0_12 = arith.constant 0 : index
    %c0_13 = arith.constant 0 : index
    %15 = vector.load %arg6[%c0_11, %c0_12, %c0_13] : memref<9x128x256xbf16, #tpu.memory_space<vmem>>, vector<1x128x256xbf16>
    %16 = vector.shape_cast %15 : vector<1x128x256xbf16> to vector<128x256xbf16>
    %cst_14 = arith.constant dense<0.000000e+00> : vector<48x256xf32>
    %17 = tpu.matmul %14, %16, %cst_14 {dimension_numbers = #tpu.dot_dimension_numbers<[1], [0], [0], [1], [0, 0, 1, 1], [], []>} : vector<48x128xbf16>, vector<128x256xbf16>, vector<48x256xf32> -> vector<48x256xf32>
    %18 = arith.addf %13, %17 : vector<48x256xf32>
    %19 = vector.extract_strided_slice %12 {offsets = [48, 0], sizes = [48, 128], strides = [1, 1]} : vector<432x128xbf16> to vector<48x128xbf16>
    %c1 = arith.constant 1 : index
    %c0_15 = arith.constant 0 : index
    %c0_16 = arith.constant 0 : index
    %20 = vector.load %arg6[%c1, %c0_15, %c0_16] : memref<9x128x256xbf16, #tpu.memory_space<vmem>>, vector<1x128x256xbf16>
    %21 = vector.shape_cast %20 : vector<1x128x256xbf16> to vector<128x256xbf16>
    %cst_17 = arith.constant dense<0.000000e+00> : vector<48x256xf32>
    %22 = tpu.matmul %19, %21, %cst_17 {dimension_numbers = #tpu.dot_dimension_numbers<[1], [0], [0], [1], [0, 0, 1, 1], [], []>} : vector<48x128xbf16>, vector<128x256xbf16>, vector<48x256xf32> -> vector<48x256xf32>
    %23 = arith.addf %18, %22 : vector<48x256xf32>
    %24 = vector.extract_strided_slice %12 {offsets = [96, 0], sizes = [48, 128], strides = [1, 1]} : vector<432x128xbf16> to vector<48x128xbf16>
    %c2 = arith.constant 2 : index
    %c0_18 = arith.constant 0 : index
    %c0_19 = arith.constant 0 : index
    %25 = vector.load %arg6[%c2, %c0_18, %c0_19] : memref<9x128x256xbf16, #tpu.memory_space<vmem>>, vector<1x128x256xbf16>
    %26 = vector.shape_cast %25 : vector<1x128x256xbf16> to vector<128x256xbf16>
    %cst_20 = arith.constant dense<0.000000e+00> : vector<48x256xf32>
    %27 = tpu.matmul %24, %26, %cst_20 {dimension_numbers = #tpu.dot_dimension_numbers<[1], [0], [0], [1], [0, 0, 1, 1], [], []>} : vector<48x128xbf16>, vector<128x256xbf16>, vector<48x256xf32> -> vector<48x256xf32>
    %28 = arith.addf %23, %27 : vector<48x256xf32>
    %29 = vector.extract_strided_slice %12 {offsets = [144, 0], sizes = [48, 128], strides = [1, 1]} : vector<432x128xbf16> to vector<48x128xbf16>
    %c3 = arith.constant 3 : index
    %c0_21 = arith.constant 0 : index
    %c0_22 = arith.constant 0 : index
    %30 = vector.load %arg6[%c3, %c0_21, %c0_22] : memref<9x128x256xbf16, #tpu.memory_space<vmem>>, vector<1x128x256xbf16>
    %31 = vector.shape_cast %30 : vector<1x128x256xbf16> to vector<128x256xbf16>
    %cst_23 = arith.constant dense<0.000000e+00> : vector<48x256xf32>
    %32 = tpu.matmul %29, %31, %cst_23 {dimension_numbers = #tpu.dot_dimension_numbers<[1], [0], [0], [1], [0, 0, 1, 1], [], []>} : vector<48x128xbf16>, vector<128x256xbf16>, vector<48x256xf32> -> vector<48x256xf32>
    %33 = arith.addf %28, %32 : vector<48x256xf32>
    %34 = vector.extract_strided_slice %12 {offsets = [192, 0], sizes = [48, 128], strides = [1, 1]} : vector<432x128xbf16> to vector<48x128xbf16>
    %c4 = arith.constant 4 : index
    %c0_24 = arith.constant 0 : index
    %c0_25 = arith.constant 0 : index
    %35 = vector.load %arg6[%c4, %c0_24, %c0_25] : memref<9x128x256xbf16, #tpu.memory_space<vmem>>, vector<1x128x256xbf16>
    %36 = vector.shape_cast %35 : vector<1x128x256xbf16> to vector<128x256xbf16>
    %cst_26 = arith.constant dense<0.000000e+00> : vector<48x256xf32>
    %37 = tpu.matmul %34, %36, %cst_26 {dimension_numbers = #tpu.dot_dimension_numbers<[1], [0], [0], [1], [0, 0, 1, 1], [], []>} : vector<48x128xbf16>, vector<128x256xbf16>, vector<48x256xf32> -> vector<48x256xf32>
    %38 = arith.addf %33, %37 : vector<48x256xf32>
    %39 = vector.extract_strided_slice %12 {offsets = [240, 0], sizes = [48, 128], strides = [1, 1]} : vector<432x128xbf16> to vector<48x128xbf16>
    %c5 = arith.constant 5 : index
    %c0_27 = arith.constant 0 : index
    %c0_28 = arith.constant 0 : index
    %40 = vector.load %arg6[%c5, %c0_27, %c0_28] : memref<9x128x256xbf16, #tpu.memory_space<vmem>>, vector<1x128x256xbf16>
    %41 = vector.shape_cast %40 : vector<1x128x256xbf16> to vector<128x256xbf16>
    %cst_29 = arith.constant dense<0.000000e+00> : vector<48x256xf32>
    %42 = tpu.matmul %39, %41, %cst_29 {dimension_numbers = #tpu.dot_dimension_numbers<[1], [0], [0], [1], [0, 0, 1, 1], [], []>} : vector<48x128xbf16>, vector<128x256xbf16>, vector<48x256xf32> -> vector<48x256xf32>
    %43 = arith.addf %38, %42 : vector<48x256xf32>
    %44 = vector.extract_strided_slice %12 {offsets = [288, 0], sizes = [48, 128], strides = [1, 1]} : vector<432x128xbf16> to vector<48x128xbf16>
    %c6 = arith.constant 6 : index
    %c0_30 = arith.constant 0 : index
    %c0_31 = arith.constant 0 : index
    %45 = vector.load %arg6[%c6, %c0_30, %c0_31] : memref<9x128x256xbf16, #tpu.memory_space<vmem>>, vector<1x128x256xbf16>
    %46 = vector.shape_cast %45 : vector<1x128x256xbf16> to vector<128x256xbf16>
    %cst_32 = arith.constant dense<0.000000e+00> : vector<48x256xf32>
    %47 = tpu.matmul %44, %46, %cst_32 {dimension_numbers = #tpu.dot_dimension_numbers<[1], [0], [0], [1], [0, 0, 1, 1], [], []>} : vector<48x128xbf16>, vector<128x256xbf16>, vector<48x256xf32> -> vector<48x256xf32>
    %48 = arith.addf %43, %47 : vector<48x256xf32>
    %49 = vector.extract_strided_slice %12 {offsets = [336, 0], sizes = [48, 128], strides = [1, 1]} : vector<432x128xbf16> to vector<48x128xbf16>
    %c7 = arith.constant 7 : index
    %c0_33 = arith.constant 0 : index
    %c0_34 = arith.constant 0 : index
    %50 = vector.load %arg6[%c7, %c0_33, %c0_34] : memref<9x128x256xbf16, #tpu.memory_space<vmem>>, vector<1x128x256xbf16>
    %51 = vector.shape_cast %50 : vector<1x128x256xbf16> to vector<128x256xbf16>
    %cst_35 = arith.constant dense<0.000000e+00> : vector<48x256xf32>
    %52 = tpu.matmul %49, %51, %cst_35 {dimension_numbers = #tpu.dot_dimension_numbers<[1], [0], [0], [1], [0, 0, 1, 1], [], []>} : vector<48x128xbf16>, vector<128x256xbf16>, vector<48x256xf32> -> vector<48x256xf32>
    %53 = arith.addf %48, %52 : vector<48x256xf32>
    %54 = vector.extract_strided_slice %12 {offsets = [384, 0], sizes = [48, 128], strides = [1, 1]} : vector<432x128xbf16> to vector<48x128xbf16>
    %c8 = arith.constant 8 : index
    %c0_36 = arith.constant 0 : index
    %c0_37 = arith.constant 0 : index
    %55 = vector.load %arg6[%c8, %c0_36, %c0_37] : memref<9x128x256xbf16, #tpu.memory_space<vmem>>, vector<1x128x256xbf16>
    %56 = vector.shape_cast %55 : vector<1x128x256xbf16> to vector<128x256xbf16>
    %cst_38 = arith.constant dense<0.000000e+00> : vector<48x256xf32>
    %57 = tpu.matmul %54, %56, %cst_38 {dimension_numbers = #tpu.dot_dimension_numbers<[1], [0], [0], [1], [0, 0, 1, 1], [], []>} : vector<48x128xbf16>, vector<128x256xbf16>, vector<48x256xf32> -> vector<48x256xf32>
    %58 = arith.addf %53, %57 : vector<48x256xf32>
    %c0_39 = arith.constant 0 : index
    %c0_40 = arith.constant 0 : index
    %59 = vector.load %arg7[%c0_39, %c0_40] : memref<1x256xf32, #tpu.memory_space<vmem>>, vector<1x256xf32>
    %60 = vector.broadcast %59 : vector<1x256xf32> to vector<48x256xf32>
    %61 = arith.addf %58, %60 : vector<48x256xf32>
    %cst_41 = arith.constant 0.000000e+00 : f32
    %62 = vector.broadcast %cst_41 : f32 to vector<48x256xf32>
    %63 = arith.maximumf %61, %62 : vector<48x256xf32>
    %64 = arith.truncf %63 : vector<48x256xf32> to vector<48x256xbf16>
    %c0_42 = arith.constant 0 : index
    %c0_43 = arith.constant 0 : index
    %65 = vector.load %arg3[%c0_42, %c0_43] : memref<144x48xbf16, #tpu.memory_space<vmem>>, vector<144x48xbf16>
    %cst_44 = arith.constant dense<0.000000e+00> : vector<144x256xf32>
    %66 = tpu.matmul %65, %64, %cst_44 {dimension_numbers = #tpu.dot_dimension_numbers<[1], [0], [0], [1], [0, 0, 1, 1], [], []>} : vector<144x48xbf16>, vector<48x256xbf16>, vector<144x256xf32> -> vector<144x256xf32>
    %67 = arith.truncf %66 : vector<144x256xf32> to vector<144x256xbf16>
    %cst_45 = arith.constant 0.000000e+00 : f32
    %68 = vector.broadcast %cst_45 : f32 to vector<16x512xf32>
    %69 = vector.extract_strided_slice %67 {offsets = [0, 0], sizes = [16, 256], strides = [1, 1]} : vector<144x256xbf16> to vector<16x256xbf16>
    %c0_46 = arith.constant 0 : index
    %c0_47 = arith.constant 0 : index
    %c0_48 = arith.constant 0 : index
    %70 = vector.load %arg8[%c0_46, %c0_47, %c0_48] : memref<9x256x512xbf16, #tpu.memory_space<vmem>>, vector<1x256x512xbf16>
    %71 = vector.shape_cast %70 : vector<1x256x512xbf16> to vector<256x512xbf16>
    %cst_49 = arith.constant dense<0.000000e+00> : vector<16x512xf32>
    %72 = tpu.matmul %69, %71, %cst_49 {dimension_numbers = #tpu.dot_dimension_numbers<[1], [0], [0], [1], [0, 0, 1, 1], [], []>} : vector<16x256xbf16>, vector<256x512xbf16>, vector<16x512xf32> -> vector<16x512xf32>
    %73 = arith.addf %68, %72 : vector<16x512xf32>
    %74 = vector.extract_strided_slice %67 {offsets = [16, 0], sizes = [16, 256], strides = [1, 1]} : vector<144x256xbf16> to vector<16x256xbf16>
    %c1_50 = arith.constant 1 : index
    %c0_51 = arith.constant 0 : index
    %c0_52 = arith.constant 0 : index
    %75 = vector.load %arg8[%c1_50, %c0_51, %c0_52] : memref<9x256x512xbf16, #tpu.memory_space<vmem>>, vector<1x256x512xbf16>
    %76 = vector.shape_cast %75 : vector<1x256x512xbf16> to vector<256x512xbf16>
    %cst_53 = arith.constant dense<0.000000e+00> : vector<16x512xf32>
    %77 = tpu.matmul %74, %76, %cst_53 {dimension_numbers = #tpu.dot_dimension_numbers<[1], [0], [0], [1], [0, 0, 1, 1], [], []>} : vector<16x256xbf16>, vector<256x512xbf16>, vector<16x512xf32> -> vector<16x512xf32>
    %78 = arith.addf %73, %77 : vector<16x512xf32>
    %79 = vector.extract_strided_slice %67 {offsets = [32, 0], sizes = [16, 256], strides = [1, 1]} : vector<144x256xbf16> to vector<16x256xbf16>
    %c2_54 = arith.constant 2 : index
    %c0_55 = arith.constant 0 : index
    %c0_56 = arith.constant 0 : index
    %80 = vector.load %arg8[%c2_54, %c0_55, %c0_56] : memref<9x256x512xbf16, #tpu.memory_space<vmem>>, vector<1x256x512xbf16>
    %81 = vector.shape_cast %80 : vector<1x256x512xbf16> to vector<256x512xbf16>
    %cst_57 = arith.constant dense<0.000000e+00> : vector<16x512xf32>
    %82 = tpu.matmul %79, %81, %cst_57 {dimension_numbers = #tpu.dot_dimension_numbers<[1], [0], [0], [1], [0, 0, 1, 1], [], []>} : vector<16x256xbf16>, vector<256x512xbf16>, vector<16x512xf32> -> vector<16x512xf32>
    %83 = arith.addf %78, %82 : vector<16x512xf32>
    %84 = vector.extract_strided_slice %67 {offsets = [48, 0], sizes = [16, 256], strides = [1, 1]} : vector<144x256xbf16> to vector<16x256xbf16>
    %c3_58 = arith.constant 3 : index
    %c0_59 = arith.constant 0 : index
    %c0_60 = arith.constant 0 : index
    %85 = vector.load %arg8[%c3_58, %c0_59, %c0_60] : memref<9x256x512xbf16, #tpu.memory_space<vmem>>, vector<1x256x512xbf16>
    %86 = vector.shape_cast %85 : vector<1x256x512xbf16> to vector<256x512xbf16>
    %cst_61 = arith.constant dense<0.000000e+00> : vector<16x512xf32>
    %87 = tpu.matmul %84, %86, %cst_61 {dimension_numbers = #tpu.dot_dimension_numbers<[1], [0], [0], [1], [0, 0, 1, 1], [], []>} : vector<16x256xbf16>, vector<256x512xbf16>, vector<16x512xf32> -> vector<16x512xf32>
    %88 = arith.addf %83, %87 : vector<16x512xf32>
    %89 = vector.extract_strided_slice %67 {offsets = [64, 0], sizes = [16, 256], strides = [1, 1]} : vector<144x256xbf16> to vector<16x256xbf16>
    %c4_62 = arith.constant 4 : index
    %c0_63 = arith.constant 0 : index
    %c0_64 = arith.constant 0 : index
    %90 = vector.load %arg8[%c4_62, %c0_63, %c0_64] : memref<9x256x512xbf16, #tpu.memory_space<vmem>>, vector<1x256x512xbf16>
    %91 = vector.shape_cast %90 : vector<1x256x512xbf16> to vector<256x512xbf16>
    %cst_65 = arith.constant dense<0.000000e+00> : vector<16x512xf32>
    %92 = tpu.matmul %89, %91, %cst_65 {dimension_numbers = #tpu.dot_dimension_numbers<[1], [0], [0], [1], [0, 0, 1, 1], [], []>} : vector<16x256xbf16>, vector<256x512xbf16>, vector<16x512xf32> -> vector<16x512xf32>
    %93 = arith.addf %88, %92 : vector<16x512xf32>
    %94 = vector.extract_strided_slice %67 {offsets = [80, 0], sizes = [16, 256], strides = [1, 1]} : vector<144x256xbf16> to vector<16x256xbf16>
    %c5_66 = arith.constant 5 : index
    %c0_67 = arith.constant 0 : index
    %c0_68 = arith.constant 0 : index
    %95 = vector.load %arg8[%c5_66, %c0_67, %c0_68] : memref<9x256x512xbf16, #tpu.memory_space<vmem>>, vector<1x256x512xbf16>
    %96 = vector.shape_cast %95 : vector<1x256x512xbf16> to vector<256x512xbf16>
    %cst_69 = arith.constant dense<0.000000e+00> : vector<16x512xf32>
    %97 = tpu.matmul %94, %96, %cst_69 {dimension_numbers = #tpu.dot_dimension_numbers<[1], [0], [0], [1], [0, 0, 1, 1], [], []>} : vector<16x256xbf16>, vector<256x512xbf16>, vector<16x512xf32> -> vector<16x512xf32>
    %98 = arith.addf %93, %97 : vector<16x512xf32>
    %99 = vector.extract_strided_slice %67 {offsets = [96, 0], sizes = [16, 256], strides = [1, 1]} : vector<144x256xbf16> to vector<16x256xbf16>
    %c6_70 = arith.constant 6 : index
    %c0_71 = arith.constant 0 : index
    %c0_72 = arith.constant 0 : index
    %100 = vector.load %arg8[%c6_70, %c0_71, %c0_72] : memref<9x256x512xbf16, #tpu.memory_space<vmem>>, vector<1x256x512xbf16>
    %101 = vector.shape_cast %100 : vector<1x256x512xbf16> to vector<256x512xbf16>
    %cst_73 = arith.constant dense<0.000000e+00> : vector<16x512xf32>
    %102 = tpu.matmul %99, %101, %cst_73 {dimension_numbers = #tpu.dot_dimension_numbers<[1], [0], [0], [1], [0, 0, 1, 1], [], []>} : vector<16x256xbf16>, vector<256x512xbf16>, vector<16x512xf32> -> vector<16x512xf32>
    %103 = arith.addf %98, %102 : vector<16x512xf32>
    %104 = vector.extract_strided_slice %67 {offsets = [112, 0], sizes = [16, 256], strides = [1, 1]} : vector<144x256xbf16> to vector<16x256xbf16>
    %c7_74 = arith.constant 7 : index
    %c0_75 = arith.constant 0 : index
    %c0_76 = arith.constant 0 : index
    %105 = vector.load %arg8[%c7_74, %c0_75, %c0_76] : memref<9x256x512xbf16, #tpu.memory_space<vmem>>, vector<1x256x512xbf16>
    %106 = vector.shape_cast %105 : vector<1x256x512xbf16> to vector<256x512xbf16>
    %cst_77 = arith.constant dense<0.000000e+00> : vector<16x512xf32>
    %107 = tpu.matmul %104, %106, %cst_77 {dimension_numbers = #tpu.dot_dimension_numbers<[1], [0], [0], [1], [0, 0, 1, 1], [], []>} : vector<16x256xbf16>, vector<256x512xbf16>, vector<16x512xf32> -> vector<16x512xf32>
    %108 = arith.addf %103, %107 : vector<16x512xf32>
    %109 = vector.extract_strided_slice %67 {offsets = [128, 0], sizes = [16, 256], strides = [1, 1]} : vector<144x256xbf16> to vector<16x256xbf16>
    %c8_78 = arith.constant 8 : index
    %c0_79 = arith.constant 0 : index
    %c0_80 = arith.constant 0 : index
    %110 = vector.load %arg8[%c8_78, %c0_79, %c0_80] : memref<9x256x512xbf16, #tpu.memory_space<vmem>>, vector<1x256x512xbf16>
    %111 = vector.shape_cast %110 : vector<1x256x512xbf16> to vector<256x512xbf16>
    %cst_81 = arith.constant dense<0.000000e+00> : vector<16x512xf32>
    %112 = tpu.matmul %109, %111, %cst_81 {dimension_numbers = #tpu.dot_dimension_numbers<[1], [0], [0], [1], [0, 0, 1, 1], [], []>} : vector<16x256xbf16>, vector<256x512xbf16>, vector<16x512xf32> -> vector<16x512xf32>
    %113 = arith.addf %108, %112 : vector<16x512xf32>
    %c0_82 = arith.constant 0 : index
    %c0_83 = arith.constant 0 : index
    %114 = vector.load %arg9[%c0_82, %c0_83] : memref<1x512xf32, #tpu.memory_space<vmem>>, vector<1x512xf32>
    %115 = vector.broadcast %114 : vector<1x512xf32> to vector<16x512xf32>
    %116 = arith.addf %113, %115 : vector<16x512xf32>
    %cst_84 = arith.constant 0.000000e+00 : f32
    %117 = vector.broadcast %cst_84 : f32 to vector<16x512xf32>
    %118 = arith.maximumf %116, %117 : vector<16x512xf32>
    %119 = arith.truncf %118 : vector<16x512xf32> to vector<16x512xbf16>
    %120 = vector.extract_strided_slice %119 {offsets = [0, 0], sizes = [1, 128], strides = [1, 1]} : vector<16x512xbf16> to vector<1x128xbf16>
    %121 = vector.extract_strided_slice %119 {offsets = [1, 0], sizes = [1, 128], strides = [1, 1]} : vector<16x512xbf16> to vector<1x128xbf16>
    %122 = vector.extract_strided_slice %119 {offsets = [2, 0], sizes = [1, 128], strides = [1, 1]} : vector<16x512xbf16> to vector<1x128xbf16>
    %123 = vector.extract_strided_slice %119 {offsets = [3, 0], sizes = [1, 128], strides = [1, 1]} : vector<16x512xbf16> to vector<1x128xbf16>
    %124 = tpu.concatenate %120, %121, %122, %123 in 1 : vector<1x128xbf16>, vector<1x128xbf16>, vector<1x128xbf16>, vector<1x128xbf16> -> vector<1x512xbf16>
    %125 = vector.extract_strided_slice %119 {offsets = [0, 128], sizes = [1, 128], strides = [1, 1]} : vector<16x512xbf16> to vector<1x128xbf16>
    %126 = vector.extract_strided_slice %119 {offsets = [1, 128], sizes = [1, 128], strides = [1, 1]} : vector<16x512xbf16> to vector<1x128xbf16>
    %127 = vector.extract_strided_slice %119 {offsets = [2, 128], sizes = [1, 128], strides = [1, 1]} : vector<16x512xbf16> to vector<1x128xbf16>
    %128 = vector.extract_strided_slice %119 {offsets = [3, 128], sizes = [1, 128], strides = [1, 1]} : vector<16x512xbf16> to vector<1x128xbf16>
    %129 = tpu.concatenate %125, %126, %127, %128 in 1 : vector<1x128xbf16>, vector<1x128xbf16>, vector<1x128xbf16>, vector<1x128xbf16> -> vector<1x512xbf16>
    %130 = vector.extract_strided_slice %119 {offsets = [0, 256], sizes = [1, 128], strides = [1, 1]} : vector<16x512xbf16> to vector<1x128xbf16>
    %131 = vector.extract_strided_slice %119 {offsets = [1, 256], sizes = [1, 128], strides = [1, 1]} : vector<16x512xbf16> to vector<1x128xbf16>
    %132 = vector.extract_strided_slice %119 {offsets = [2, 256], sizes = [1, 128], strides = [1, 1]} : vector<16x512xbf16> to vector<1x128xbf16>
    %133 = vector.extract_strided_slice %119 {offsets = [3, 256], sizes = [1, 128], strides = [1, 1]} : vector<16x512xbf16> to vector<1x128xbf16>
    %134 = tpu.concatenate %130, %131, %132, %133 in 1 : vector<1x128xbf16>, vector<1x128xbf16>, vector<1x128xbf16>, vector<1x128xbf16> -> vector<1x512xbf16>
    %135 = vector.extract_strided_slice %119 {offsets = [0, 384], sizes = [1, 128], strides = [1, 1]} : vector<16x512xbf16> to vector<1x128xbf16>
    %136 = vector.extract_strided_slice %119 {offsets = [1, 384], sizes = [1, 128], strides = [1, 1]} : vector<16x512xbf16> to vector<1x128xbf16>
    %137 = vector.extract_strided_slice %119 {offsets = [2, 384], sizes = [1, 128], strides = [1, 1]} : vector<16x512xbf16> to vector<1x128xbf16>
    %138 = vector.extract_strided_slice %119 {offsets = [3, 384], sizes = [1, 128], strides = [1, 1]} : vector<16x512xbf16> to vector<1x128xbf16>
    %139 = tpu.concatenate %135, %136, %137, %138 in 1 : vector<1x128xbf16>, vector<1x128xbf16>, vector<1x128xbf16>, vector<1x128xbf16> -> vector<1x512xbf16>
    %140 = tpu.concatenate %124, %129, %134, %139 in 0 : vector<1x512xbf16>, vector<1x512xbf16>, vector<1x512xbf16>, vector<1x512xbf16> -> vector<4x512xbf16>
    %c0_85 = arith.constant 0 : index
    %c0_86 = arith.constant 0 : index
    %141 = vector.load %arg10[%c0_85, %c0_86] : memref<512x800xbf16, #tpu.memory_space<vmem>>, vector<512x800xbf16>
    %cst_87 = arith.constant dense<0.000000e+00> : vector<4x800xf32>
    %142 = tpu.matmul %140, %141, %cst_87 {dimension_numbers = #tpu.dot_dimension_numbers<[1], [0], [0], [1], [0, 0, 1, 1], [], []>} : vector<4x512xbf16>, vector<512x800xbf16>, vector<4x800xf32> -> vector<4x800xf32>
    %c0_88 = arith.constant 0 : index
    %c0_89 = arith.constant 0 : index
    %143 = vector.load %arg11[%c0_88, %c0_89] : memref<1x800xf32, #tpu.memory_space<vmem>>, vector<1x800xf32>
    %144 = vector.broadcast %143 : vector<1x800xf32> to vector<4x800xf32>
    %145 = arith.addf %142, %144 : vector<4x800xf32>
    %cst_90 = arith.constant 0.000000e+00 : f32
    %146 = vector.broadcast %cst_90 : f32 to vector<4x800xf32>
    %147 = arith.maximumf %145, %146 : vector<4x800xf32>
    %148 = arith.truncf %147 : vector<4x800xf32> to vector<4x800xbf16>
    %c0_91 = arith.constant 0 : index
    %c0_92 = arith.constant 0 : index
    %149 = vector.load %arg12[%c0_91, %c0_92] : memref<800x128xbf16, #tpu.memory_space<vmem>>, vector<800x128xbf16>
    %cst_93 = arith.constant dense<0.000000e+00> : vector<4x128xf32>
    %150 = tpu.matmul %148, %149, %cst_93 {dimension_numbers = #tpu.dot_dimension_numbers<[1], [0], [0], [1], [0, 0, 1, 1], [], []>} : vector<4x800xbf16>, vector<800x128xbf16>, vector<4x128xf32> -> vector<4x128xf32>
    %c0_94 = arith.constant 0 : index
    %c0_95 = arith.constant 0 : index
    %151 = vector.load %arg13[%c0_94, %c0_95] : memref<1x128xf32, #tpu.memory_space<vmem>>, vector<1x128xf32>
    %152 = vector.broadcast %151 : vector<1x128xf32> to vector<4x128xf32>
    %153 = arith.addf %150, %152 : vector<4x128xf32>
    %c0_96 = arith.constant 0 : index
    %c0_97 = arith.constant 0 : index
    %c0_98 = arith.constant 0 : index
    %154 = vector.load %arg14[%c0_96, %c0_97, %c0_98] : memref<1x4x128xf32, #tpu.memory_space<vmem>>, vector<1x4x128xf32>
    %155 = vector.shape_cast %154 : vector<1x4x128xf32> to vector<4x128xf32>
    %156 = vector.shape_cast %153 : vector<4x128xf32> to vector<1x4x128xf32>
    tpu.vector_store %arg14[%c0_96, %c0_97, %c0_98], %156 {strides = array<i32>} : memref<1x4x128xf32, #tpu.memory_space<vmem>>, vector<1x4x128xf32>,
    return
  }
  func.func @transform_0(%arg0: i32) -> (i32, i32, i32) {
    %c0_i32 = arith.constant 0 : i32
    %c0_i32_0 = arith.constant 0 : i32
    %c0_i32_1 = arith.constant 0 : i32
    return %arg0, %c0_i32, %c0_i32_0 : i32, i32, i32
  }
  func.func @transform_1(%arg0: i32) -> (i32, i32) {
    %c0_i32 = arith.constant 0 : i32
    %c0_i32_0 = arith.constant 0 : i32
    %c0_i32_1 = arith.constant 0 : i32
    return %c0_i32, %c0_i32_0 : i32, i32
  }
  func.func @transform_2(%arg0: i32) -> (i32, i32) {
    %c0_i32 = arith.constant 0 : i32
    %c0_i32_0 = arith.constant 0 : i32
    %c0_i32_1 = arith.constant 0 : i32
    return %c0_i32, %c0_i32_0 : i32, i32
  }
  func.func @transform_3(%arg0: i32) -> (i32, i32) {
    %c0_i32 = arith.constant 0 : i32
    %c0_i32_0 = arith.constant 0 : i32
    %c0_i32_1 = arith.constant 0 : i32
    return %c0_i32, %c0_i32_0 : i32, i32
  }
  func.func @transform_4(%arg0: i32) -> (i32, i32) {
    %c0_i32 = arith.constant 0 : i32
    %c0_i32_0 = arith.constant 0 : i32
    %c0_i32_1 = arith.constant 0 : i32
    return %c0_i32, %c0_i32_0 : i32, i32
  }
  func.func @transform_5(%arg0: i32) -> (i32, i32, i32) {
    %c0_i32 = arith.constant 0 : i32
    %c0_i32_0 = arith.constant 0 : i32
    %c0_i32_1 = arith.constant 0 : i32
    %c0_i32_2 = arith.constant 0 : i32
    return %c0_i32, %c0_i32_0, %c0_i32_1 : i32, i32, i32
  }
  func.func @transform_6(%arg0: i32) -> (i32, i32) {
    %c0_i32 = arith.constant 0 : i32
    %c0_i32_0 = arith.constant 0 : i32
    %c0_i32_1 = arith.constant 0 : i32
    return %c0_i32, %c0_i32_0 : i32, i32
  }
  func.func @transform_7(%arg0: i32) -> (i32, i32, i32) {
    %c0_i32 = arith.constant 0 : i32
    %c0_i32_0 = arith.constant 0 : i32
    %c0_i32_1 = arith.constant 0 : i32
    %c0_i32_2 = arith.constant 0 : i32
    return %c0_i32, %c0_i32_0, %c0_i32_1 : i32, i32, i32
  }
  func.func @transform_8(%arg0: i32) -> (i32, i32) {
    %c0_i32 = arith.constant 0 : i32
    %c0_i32_0 = arith.constant 0 : i32
    %c0_i32_1 = arith.constant 0 : i32
    return %c0_i32, %c0_i32_0 : i32, i32
  }
  func.func @transform_9(%arg0: i32) -> (i32, i32) {
    %c0_i32 = arith.constant 0 : i32
    %c0_i32_0 = arith.constant 0 : i32
    %c0_i32_1 = arith.constant 0 : i32
    return %c0_i32, %c0_i32_0 : i32, i32
  }
  func.func @transform_10(%arg0: i32) -> (i32, i32) {
    %c0_i32 = arith.constant 0 : i32
    %c0_i32_0 = arith.constant 0 : i32
    %c0_i32_1 = arith.constant 0 : i32
    return %c0_i32, %c0_i32_0 : i32, i32
  }
  func.func @transform_11(%arg0: i32) -> (i32, i32) {
    %c0_i32 = arith.constant 0 : i32
    %c0_i32_0 = arith.constant 0 : i32
    %c0_i32_1 = arith.constant 0 : i32
    return %c0_i32, %c0_i32_0 : i32, i32
  }
  func.func @transform_12(%arg0: i32) -> (i32, i32) {
    %c0_i32 = arith.constant 0 : i32
    %c0_i32_0 = arith.constant 0 : i32
    %c0_i32_1 = arith.constant 0 : i32
    return %c0_i32, %c0_i32_0 : i32, i32
  }
  func.func @transform_13(%arg0: i32) -> (i32, i32, i32) {
    %c0_i32 = arith.constant 0 : i32
    %c0_i32_0 = arith.constant 0 : i32
    %c0_i32_1 = arith.constant 0 : i32
    return %arg0, %c0_i32, %c0_i32_0 : i32, i32, i32
  }
}

</mosaic_0001>

<llo_original>
// kernel: mul.4
$region0: #{mul.4}
  %s0 = inlined_call_operand.vmem [shape: f32[3,3,32], index: 0, kind: input, shape index: {}]
  %s1 = inlined_call_operand.vmem [shape: f32[9,32], index: 1, kind: output, shape index: {}]
  $region1: #{mul.4} parent=0
    #allocation0 [shape = 'u8[12288]{0}', space=vmem, size = 0x3000, scoped, tag = 'scoped mem for input reshape']
    %s3 = sshllo.u32 0, 4
    %s4 = smul.addr 4, 2
    %s5 = scalar_lea.vmem %s0, %s4
    %v6 = vld [vmem:[%s5] sm:%s3]
    %s7 = scalar_lea.vmem [#allocation0], 16
    %8 = vst [vmem:[%s7] sm:%s3] %v6
    %s9 = scalar_lea.vmem %s0, 4
    %v10 = vld [vmem:[%s9] sm:%s3]
    %s11 = scalar_lea.vmem [#allocation0], 8
    %12 = vst [vmem:[%s11] sm:%s3] %v10
    %v13 = vld [vmem:[%s0] sm:%s3]
    %14 = vst [vmem:[#allocation0] sm:%s3] %v13
    %v15 = vld [vmem:[#allocation0] sm:$0x7]
    %vm16 = vcmask 261120
    %17 = vst.msk [vmem:[%s1] sm:$0x7] %vm16, %v15
    %s18 = scalar_lea.vmem [#allocation0], 8
    %v19 = vld [vmem:[%s18] sm:$0x7]
    %vm20 = vcmask 261120
    %s21 = scalar_lea.vmem %s1, 3
    %22 = vst.msk [vmem:[%s21] sm:$0x7] %vm20, %v19
    %s23 = scalar_lea.vmem [#allocation0], 16
    %v24 = vld [vmem:[%s23] sm:$0x7]
    %vm25 = vcmask 261120
    %s26 = scalar_lea.vmem %s1, 6
    %27 = vst.msk [vmem:[%s26] sm:$0x7] %vm25, %v24

// kernel: cnn_forward.1
$region0: #{cnn_forward.1}
  #allocation0 [shape = 'u32[]', space=smem, size = 0x4, offset = 0x4, fixed_abs, tag = 'smem constant byte address 0x4 - core index']
  #allocation1 [shape = 'u32[144,128]{1,0:T(1,128)}', space=vmem, size = 0x12000, scoped, tag = 'internal scratch']
  %s0 = inlined_call_operand.vmem [shape: bf16[1,169,36], index: 0, kind: input, shape index: {}]
  %s1 = inlined_call_operand.vmem [shape: bf16[432,169], index: 1, kind: input, shape index: {}]
  %s2 = inlined_call_operand.vmem [shape: bf16[144,48], index: 2, kind: input, shape index: {}]
  %s3 = inlined_call_operand.vmem [shape: bf16[36,128], index: 3, kind: input, shape index: {}]
  %s4 = inlined_call_operand.vmem [shape: f32[1,128], index: 4, kind: input, shape index: {}]
  %s5 = inlined_call_operand.vmem [shape: bf16[9,128,256], index: 5, kind: input, shape index: {}]
  %s6 = inlined_call_operand.vmem [shape: f32[1,256], index: 6, kind: input, shape index: {}]
  %s7 = inlined_call_operand.vmem [shape: bf16[9,256,512], index: 7, kind: input, shape index: {}]
  %s8 = inlined_call_operand.vmem [shape: f32[1,512], index: 8, kind: input, shape index: {}]
  %s9 = inlined_call_operand.vmem [shape: bf16[512,800], index: 9, kind: input, shape index: {}]
  %s10 = inlined_call_operand.vmem [shape: f32[1,800], index: 10, kind: input, shape index: {}]
  %s11 = inlined_call_operand.vmem [shape: bf16[800,128], index: 11, kind: input, shape index: {}]
  %s12 = inlined_call_operand.vmem [shape: f32[1,128], index: 12, kind: input, shape index: {}]
  %s13 = inlined_call_operand.vmem [shape: f32[1,4,128], index: 13, kind: output, shape index: {}]
  %s14 = sld [smem:[#allocation0]]
  $region62: #{cnn_forward.1} parent=0
    _
  %s16 = ssub.s32 1, %s14
  %s17 = scalar_select 0, %s16, %s14
  // Predicated region
  $region2: #{cnn_forward.1} parent=0 // pred_check
    _
  $region3: #{cnn_forward.1} parent=0 // pred_check_branch
    %19 = sbr.rel (0) target = $region5
  $region4: #{cnn_forward.1} parent=0 // pred_region
    _
  $region5: #{cnn_forward.1} parent=0 // pred_fallthru
    _
  // Predicated region
  $region6: #{cnn_forward.1} parent=0 // pred_check
    _
  $region7: #{cnn_forward.1} parent=0 // pred_check_branch
    %21 = sbr.rel (0) target = $region9
  $region8: #{cnn_forward.1} parent=0 // pred_region
    _
  $region9: #{cnn_forward.1} parent=0 // pred_fallthru
    _
  // Predicated region
  $region10: #{cnn_forward.1} parent=0 // pred_check
    _
  $region11: #{cnn_forward.1} parent=0 // pred_check_branch
    %23 = sbr.rel (0) target = $region13
  $region12: #{cnn_forward.1} parent=0 // pred_region
    _
  $region13: #{cnn_forward.1} parent=0 // pred_fallthru
    _
  // Predicated region
  $region14: #{cnn_forward.1} parent=0 // pred_check
    _
  $region15: #{cnn_forward.1} parent=0 // pred_check_branch
    %25 = sbr.rel (0) target = $region17
  $region16: #{cnn_forward.1} parent=0 // pred_region
    _
  $region17: #{cnn_forward.1} parent=0 // pred_fallthru
    _
  // Predicated region
  $region18: #{cnn_forward.1} parent=0 // pred_check
    _
  $region19: #{cnn_forward.1} parent=0 // pred_check_branch
    %27 = sbr.rel (0) target = $region21
  $region20: #{cnn_forward.1} parent=0 // pred_region
    _
  $region21: #{cnn_forward.1} parent=0 // pred_fallthru
    _
  // Predicated region
  $region22: #{cnn_forward.1} parent=0 // pred_check
    _
  $region23: #{cnn_forward.1} parent=0 // pred_check_branch
    %29 = sbr.rel (0) target = $region25
  $region24: #{cnn_forward.1} parent=0 // pred_region
    _
  $region25: #{cnn_forward.1} parent=0 // pred_fallthru
    _
  // Predicated region
  $region26: #{cnn_forward.1} parent=0 // pred_check
    _
  $region27: #{cnn_forward.1} parent=0 // pred_check_branch
    %31 = sbr.rel (0) target = $region29
  $region28: #{cnn_forward.1} parent=0 // pred_region
    _
  $region29: #{cnn_forward.1} parent=0 // pred_fallthru
    _
  // Predicated region
  $region30: #{cnn_forward.1} parent=0 // pred_check
    _
  $region31: #{cnn_forward.1} parent=0 // pred_check_branch
    %33 = sbr.rel (0) target = $region33
  $region32: #{cnn_forward.1} parent=0 // pred_region
    _
  $region33: #{cnn_forward.1} parent=0 // pred_fallthru
    _
  // Predicated region
  $region34: #{cnn_forward.1} parent=0 // pred_check
    _
  $region35: #{cnn_forward.1} parent=0 // pred_check_branch
    %35 = sbr.rel (0) target = $region37
  $region36: #{cnn_forward.1} parent=0 // pred_region
    _
  $region37: #{cnn_forward.1} parent=0 // pred_fallthru
    _
  // Predicated region
  $region38: #{cnn_forward.1} parent=0 // pred_check
    _
  $region39: #{cnn_forward.1} parent=0 // pred_check_branch
    %37 = sbr.rel (0) target = $region41
  $region40: #{cnn_forward.1} parent=0 // pred_region
    _
  $region41: #{cnn_forward.1} parent=0 // pred_fallthru
    _
  // Predicated region
  $region42: #{cnn_forward.1} parent=0 // pred_check
    _
  $region43: #{cnn_forward.1} parent=0 // pred_check_branch
    %39 = sbr.rel (0) target = $region45
  $region44: #{cnn_forward.1} parent=0 // pred_region
    _
  $region45: #{cnn_forward.1} parent=0 // pred_fallthru
    _
  // Predicated region
  $region46: #{cnn_forward.1} parent=0 // pred_check
    _
  $region47: #{cnn_forward.1} parent=0 // pred_check_branch
    %41 = sbr.rel (0) target = $region49
  $region48: #{cnn_forward.1} parent=0 // pred_region
    _
  $region49: #{cnn_forward.1} parent=0 // pred_fallthru
    _
  // Predicated region
  $region50: #{cnn_forward.1} parent=0 // pred_check
    _
  $region51: #{cnn_forward.1} parent=0 // pred_check_branch
    %43 = sbr.rel (0) target = $region53
  $region52: #{cnn_forward.1} parent=0 // pred_region
    _
  $region53: #{cnn_forward.1} parent=0 // pred_fallthru
    _
  %v45 = vld [vmem:[%s0] sm:$0xf]
  %v46 = vld [vmem:[%s0 + $0x4] sm:$0xf]
  %v47 = vld [vmem:[%s0 + $0x8] sm:$0xf]
  %v48 = vld [vmem:[%s0 + $0xc] sm:$0xf]
  %v49 = vld [vmem:[%s0 + $0x10] sm:$0xf]
  %v50 = vld [vmem:[%s0 + $0x14] sm:$0xf]
  %v51 = vld [vmem:[%s0 + $0x18] sm:$0xf]
  %v52 = vld [vmem:[%s0 + $0x1c] sm:$0xf]
  %v53 = vld [vmem:[%s0 + $0x20] sm:$0xf]
  %v54 = vld [vmem:[%s0 + $0x24] sm:$0xf]
  %v55 = vld [vmem:[%s0 + $0x28] sm:$0xf]
  %v56 = vld [vmem:[%s0 + $0x2c] sm:$0xf]
  %v57 = vld [vmem:[%s0 + $0x30] sm:$0xf]
  %v58 = vld [vmem:[%s0 + $0x34] sm:$0xf]
  %v59 = vld [vmem:[%s0 + $0x38] sm:$0xf]
  %v60 = vld [vmem:[%s0 + $0x3c] sm:$0xf]
  %v61 = vld [vmem:[%s0 + $0x40] sm:$0xf]
  %v62 = vld [vmem:[%s0 + $0x44] sm:$0xf]
  %v63 = vld [vmem:[%s0 + $0x48] sm:$0xf]
  %v64 = vld [vmem:[%s0 + $0x4c] sm:$0xf]
  %v65 = vld [vmem:[%s0 + $0x50] sm:$0xf]
  %v66 = vld [vmem:[%s0 + $0x54] sm:$0x1]
  %v67 = vld [vmem:[%s3] sm:$0xf]
  %v68 = vld [vmem:[%s3 + $0x4] sm:$0xf]
  %v69 = vld [vmem:[%s3 + $0x8] sm:$0xf]
  %v70 = vld [vmem:[%s3 + $0xc] sm:$0xf]
  %v71 = vld [vmem:[%s3 + $0x10] sm:$0x3]
  %v72 = vld [vmem:[%s4] sm:$0x1]
  %v74 = vlaneseq
  %v75 = vshrl.u32 %v74, 7
  %v76 = vsub.s32 0, %v75
  %v77 = vrot.slane %v72, %v76
  %v101 = vunpack.c.l.b16 %v45
  %v102 = vunpack.c.l.b16 %v46
  %v103 = vunpack.c.l.b16 %v47
  %v104 = vunpack.c.l.b16 %v48
  %v105 = vunpack.c.l.b16 %v49
  %v106 = vunpack.c.l.b16 %v50
  %v107 = vunpack.c.l.b16 %v51
  %v108 = vunpack.c.l.b16 %v52
  %v109 = vunpack.c.l.b16 %v53
  %v110 = vunpack.c.l.b16 %v54
  %v111 = vunpack.c.l.b16 %v55
  %v112 = vunpack.c.l.b16 %v56
  %v113 = vunpack.c.l.b16 %v57
  %v114 = vunpack.c.l.b16 %v58
  %v115 = vunpack.c.l.b16 %v59
  %v116 = vunpack.c.l.b16 %v60
  %v117 = vunpack.c.l.b16 %v61
  %v118 = vunpack.c.l.b16 %v62
  %v119 = vunpack.c.l.b16 %v63
  %v120 = vunpack.c.l.b16 %v64
  %v121 = vunpack.c.l.b16 %v65
  %v122 = vunpack.c.l.b16 %v66
  %v123 = vpack.c.b16 %v102, %v101
  %v124 = vpack.c.b16 %v104, %v103
  %v125 = vpack.c.b16 %v106, %v105
  %v126 = vpack.c.b16 %v108, %v107
  %v127 = vpack.c.b16 %v110, %v109
  %v128 = vpack.c.b16 %v112, %v111
  %v129 = vpack.c.b16 %v114, %v113
  %v130 = vpack.c.b16 %v116, %v115
  %v131 = vpack.c.b16 %v118, %v117
  %v132 = vpack.c.b16 %v120, %v119
  %v133 = vpack.c.b16 %v122, %v121
  %v139 = vunpack.c.l.b16 %v67
  %v140 = vunpack.c.l.b16 %v68
  %v141 = vunpack.c.l.b16 %v69
  %v142 = vunpack.c.l.b16 %v70
  %v143 = vunpack.c.l.b16 %v71
  %v144 = vpack.c.b16 %v140, %v139
  %v145 = vpack.c.b16 %v142, %v141
  %v146 = vpack.c.b16 %v143, %v143
  %vm149 = vcmask 293888
  %v151 = vsel %vm149, %v123, 0
  %v154 = vsel %vm149, %v124, 0
  %v157 = vsel %vm149, %v125, 0
  %v160 = vsel %vm149, %v126, 0
  %v163 = vsel %vm149, %v127, 0
  %v166 = vsel %vm149, %v128, 0
  %v169 = vsel %vm149, %v129, 0
  %v172 = vsel %vm149, %v130, 0
  %v175 = vsel %vm149, %v131, 0
  %v178 = vsel %vm149, %v132, 0
  %v181 = vsel %vm149, %v133, 0
  %vm183 = vcmask 1041408
  %v185 = vsel %vm183, %v146, 0
  %187 = vmatprep.subr.bf16.mxu0 0
  %188 = vmatpush1.bf16.msra.mxu0 %v144
  %189 = vmatprep.subr.bf16.mxu0 0
  %190 = vmatpush1.bf16.msra.mxu0 %v145
  %191 = vmatprep.subr.bf16.mxu0 0
  %192 = vmatpush1.bf16.msra.mxu0 %v185
  %193 = vmatprep.subr.bf16.mxu0 0
  %194 = vmatpush1.bf16.msra.mxu0 0
  %195 = vmatprep.subr.bf16.mxu0 0
  %196 = vmatpush1.bf16.msra.mxu0 0
  %197 = vmatprep.subr.bf16.mxu0 0
  %198 = vmatpush1.bf16.msra.mxu0 0
  %199 = vmatprep.subr.bf16.mxu0 0
  %200 = vmatpush1.bf16.msra.mxu0 0
  %201 = vmatprep.subr.bf16.mxu0 0
  %202 = vmatpush1.bf16.msra.mxu0 0
  %203 = vmatprep.subr.bf16.mxu0 0
  %204 = vmatpush1.bf16.msra.mxu0 0
  %205 = vmatprep.subr.bf16.mxu0 0
  %206 = vmatpush1.bf16.msra.mxu0 0
  %207 = vmatprep.subr.bf16.mxu0 0
  %208 = vmatpush1.bf16.msra.mxu0 0
  %209 = vmatprep.subr.bf16.mxu0 0
  %210 = vmatpush1.bf16.msra.mxu0 0
  %211 = vmatprep.subr.bf16.mxu0 0
  %212 = vmatpush1.bf16.msra.mxu0 0
  %213 = vmatprep.subr.bf16.mxu0 0
  %214 = vmatpush1.bf16.msra.mxu0 0
  %215 = vmatprep.subr.bf16.mxu0 0
  %216 = vmatpush1.bf16.msra.mxu0 0
  %217 = vmatprep.subr.bf16.mxu0 0
  %218 = vmatpush1.bf16.msra.mxu0 0
  %219 = vmatprep.mubr.bf16.mxu0 0
  %220 = vmatmul.mubr.bf16.gmra.mrb[0].mxu0 %v151
  %v221 = vpop.f32.mrb[0].mxu0
  %v222 = vadd.f32 %v77, %v221
  %v223 = vpop.f32.mrb[0].mxu0
  %v224 = vpop.f32.mrb[0].mxu0
  %v225 = vadd.f32 %v77, %v224
  %v226 = vpop.f32.mrb[0].mxu0
  %227 = vmatprep.mubr.bf16.mxu0 0
  %228 = vmatmul.mubr.bf16.gmra.mrb[0].mxu0 %v154
  %v229 = vpop.f32.mrb[0].mxu0
  %v230 = vadd.f32 %v77, %v229
  %v231 = vpop.f32.mrb[0].mxu0
  %v232 = vpop.f32.mrb[0].mxu0
  %v233 = vadd.f32 %v77, %v232
  %v234 = vpop.f32.mrb[0].mxu0
  %235 = vmatprep.mubr.bf16.mxu0 0
  %236 = vmatmul.mubr.bf16.gmra.mrb[0].mxu0 %v157
  %v237 = vpop.f32.mrb[0].mxu0
  %v238 = vadd.f32 %v77, %v237
  %v239 = vpop.f32.mrb[0].mxu0
  %v240 = vpop.f32.mrb[0].mxu0
  %v241 = vadd.f32 %v77, %v240
  %v242 = vpop.f32.mrb[0].mxu0
  %243 = vmatprep.mubr.bf16.mxu0 0
  %244 = vmatmul.mubr.bf16.gmra.mrb[0].mxu0 %v160
  %v245 = vpop.f32.mrb[0].mxu0
  %v246 = vadd.f32 %v77, %v245
  %v247 = vpop.f32.mrb[0].mxu0
  %v248 = vpop.f32.mrb[0].mxu0
  %v249 = vadd.f32 %v77, %v248
  %v250 = vpop.f32.mrb[0].mxu0
  %251 = vmatprep.mubr.bf16.mxu0 0
  %252 = vmatmul.mubr.bf16.gmra.mrb[0].mxu0 %v163
  %v253 = vpop.f32.mrb[0].mxu0
  %v254 = vadd.f32 %v77, %v253
  %v255 = vpop.f32.mrb[0].mxu0
  %v256 = vpop.f32.mrb[0].mxu0
  %v257 = vadd.f32 %v77, %v256
  %v258 = vpop.f32.mrb[0].mxu0
  %259 = vmatprep.mubr.bf16.mxu0 0
  %260 = vmatmul.mubr.bf16.gmra.mrb[0].mxu0 %v166
  %v261 = vpop.f32.mrb[0].mxu0
  %v262 = vadd.f32 %v77, %v261
  %v263 = vpop.f32.mrb[0].mxu0
  %v264 = vpop.f32.mrb[0].mxu0
  %v265 = vadd.f32 %v77, %v264
  %v266 = vpop.f32.mrb[0].mxu0
  %267 = vmatprep.mubr.bf16.mxu0 0
  %268 = vmatmul.mubr.bf16.gmra.mrb[0].mxu0 %v169
  %v269 = vpop.f32.mrb[0].mxu0
  %v270 = vadd.f32 %v77, %v269
  %v271 = vpop.f32.mrb[0].mxu0
  %v272 = vpop.f32.mrb[0].mxu0
  %v273 = vadd.f32 %v77, %v272
  %v274 = vpop.f32.mrb[0].mxu0
  %275 = vmatprep.mubr.bf16.mxu0 0
  %276 = vmatmul.mubr.bf16.gmra.mrb[0].mxu0 %v172
  %v277 = vpop.f32.mrb[0].mxu0
  %v278 = vadd.f32 %v77, %v277
  %v279 = vpop.f32.mrb[0].mxu0
  %v280 = vpop.f32.mrb[0].mxu0
  %v281 = vadd.f32 %v77, %v280
  %v282 = vpop.f32.mrb[0].mxu0
  %283 = vmatprep.mubr.bf16.mxu0 0
  %284 = vmatmul.mubr.bf16.gmra.mrb[0].mxu0 %v175
  %v285 = vpop.f32.mrb[0].mxu0
  %v286 = vadd.f32 %v77, %v285
  %v287 = vpop.f32.mrb[0].mxu0
  %v288 = vpop.f32.mrb[0].mxu0
  %v289 = vadd.f32 %v77, %v288
  %v290 = vpop.f32.mrb[0].mxu0
  %291 = vmatprep.mubr.bf16.mxu0 0
  %292 = vmatmul.mubr.bf16.gmra.mrb[0].mxu0 %v178
  %v293 = vpop.f32.mrb[0].mxu0
  %v294 = vadd.f32 %v77, %v293
  %v295 = vpop.f32.mrb[0].mxu0
  %v296 = vpop.f32.mrb[0].mxu0
  %v297 = vadd.f32 %v77, %v296
  %v298 = vpop.f32.mrb[0].mxu0
  %299 = vmatprep.mubr.bf16.mxu0 0
  %300 = vmatmul.mubr.bf16.gmra.mrb[0].mxu0 %v181
  %v301 = vpop.f32.mrb[0].mxu0
  %v302 = vadd.f32 %v77, %v301
  %v303 = vpop.f32.mrb[0].mxu0
  %v304 = vpop.f32.mrb[0].mxu0
  %v305 = vadd.f32 %v77, %v304
  %v306 = vpop.f32.mrb[0].mxu0
  %307 = vdwg.mxu0
  %v308 = vmax.f32 %v222, 0.0
  %v309 = vmax.f32 %v225, 0.0
  %v310 = vmax.f32 %v230, 0.0
  %v311 = vmax.f32 %v233, 0.0
  %v312 = vmax.f32 %v238, 0.0
  %v313 = vmax.f32 %v241, 0.0
  %v314 = vmax.f32 %v246, 0.0
  %v315 = vmax.f32 %v249, 0.0
  %v316 = vmax.f32 %v254, 0.0
  %v317 = vmax.f32 %v257, 0.0
  %v318 = vmax.f32 %v262, 0.0
  %v319 = vmax.f32 %v265, 0.0
  %v320 = vmax.f32 %v270, 0.0
  %v321 = vmax.f32 %v273, 0.0
  %v322 = vmax.f32 %v278, 0.0
  %v323 = vmax.f32 %v281, 0.0
  %v324 = vmax.f32 %v286, 0.0
  %v325 = vmax.f32 %v289, 0.0
  %v326 = vmax.f32 %v294, 0.0
  %v327 = vmax.f32 %v297, 0.0
  %v328 = vmax.f32 %v302, 0.0
  %v329 = vmax.f32 %v305, 0.0
  %v330 = vpack.c.bf16 %v309, %v308
  %v331 = vpack.c.bf16 %v311, %v310
  %v332 = vpack.c.bf16 %v313, %v312
  %v333 = vpack.c.bf16 %v315, %v314
  %v334 = vpack.c.bf16 %v317, %v316
  %v335 = vpack.c.bf16 %v319, %v318
  %v336 = vpack.c.bf16 %v321, %v320
  %v337 = vpack.c.bf16 %v323, %v322
  %v338 = vpack.c.bf16 %v325, %v324
  %v339 = vpack.c.bf16 %v327, %v326
  %v340 = vpack.c.bf16 %v329, %v328
  %v341 = vld [vmem:[%s1] sm:$0xff]
  %v342 = vld [vmem:[%s1 + $0x8] sm:$0xff]
  %v343 = vld [vmem:[%s1 + $0x10] sm:$0xff]
  %v344 = vld [vmem:[%s1 + $0x18] sm:$0xff]
  %v345 = vld [vmem:[%s1 + $0x20] sm:$0xff]
  %v346 = vld [vmem:[%s1 + $0x28] sm:$0xff]
  %v347 = vld [vmem:[%s1 + $0x30] sm:$0xff]
  %v348 = vld [vmem:[%s1 + $0x38] sm:$0xff]
  %v349 = vld [vmem:[%s1 + $0x40] sm:$0xff]
  %v350 = vld [vmem:[%s1 + $0x48] sm:$0xff]
  %v351 = vld [vmem:[%s1 + $0x50] sm:$0xff]
  %v352 = vld [vmem:[%s1 + $0x58] sm:$0xff]
  %v353 = vld [vmem:[%s1 + $0x60] sm:$0xff]
  %v354 = vld [vmem:[%s1 + $0x68] sm:$0xff]
  %v355 = vld [vmem:[%s1 + $0x70] sm:$0xff]
  %v356 = vld [vmem:[%s1 + $0x78] sm:$0xff]
  %v357 = vld [vmem:[%s1 + $0x80] sm:$0xff]
  %v358 = vld [vmem:[%s1 + $0x88] sm:$0xff]
  %v359 = vld [vmem:[%s1 + $0x90] sm:$0xff]
  %v360 = vld [vmem:[%s1 + $0x98] sm:$0xff]
  %v361 = vld [vmem:[%s1 + $0xa0] sm:$0xff]
  %v362 = vld [vmem:[%s1 + $0xa8] sm:$0xff]
  %v363 = vld [vmem:[%s1 + $0xb0] sm:$0xff]
  %v364 = vld [vmem:[%s1 + $0xb8] sm:$0xff]
  %v365 = vld [vmem:[%s1 + $0xc0] sm:$0xff]
  %v366 = vld [vmem:[%s1 + $0xc8] sm:$0xff]
  %v367 = vld [vmem:[%s1 + $0xd0] sm:$0xff]
  %v368 = vld [vmem:[%s1 + $0xd8] sm:$0xff]
  %v369 = vld [vmem:[%s1 + $0xe0] sm:$0xff]
  %v370 = vld [vmem:[%s1 + $0xe8] sm:$0xff]
  %v371 = vld [vmem:[%s1 + $0xf0] sm:$0xff]
  %v372 = vld [vmem:[%s1 + $0xf8] sm:$0xff]
  %v373 = vld [vmem:[%s1 + $0x100] sm:$0xff]
  %v374 = vld [vmem:[%s1 + $0x108] sm:$0xff]
  %v375 = vld [vmem:[%s1 + $0x110] sm:$0xff]
  %v376 = vld [vmem:[%s1 + $0x118] sm:$0xff]
  %v377 = vld [vmem:[%s1 + $0x120] sm:$0xff]
  %v378 = vld [vmem:[%s1 + $0x128] sm:$0xff]
  %v379 = vld [vmem:[%s1 + $0x130] sm:$0xff]
  %v380 = vld [vmem:[%s1 + $0x138] sm:$0xff]
  %v381 = vld [vmem:[%s1 + $0x140] sm:$0xff]
  %v382 = vld [vmem:[%s1 + $0x148] sm:$0xff]
  %v383 = vld [vmem:[%s1 + $0x150] sm:$0xff]
  %v384 = vld [vmem:[%s1 + $0x158] sm:$0xff]
  %v385 = vld [vmem:[%s1 + $0x160] sm:$0xff]
  %v386 = vld [vmem:[%s1 + $0x168] sm:$0xff]
  %v387 = vld [vmem:[%s1 + $0x170] sm:$0xff]
  %v388 = vld [vmem:[%s1 + $0x178] sm:$0xff]
  %v389 = vld [vmem:[%s1 + $0x180] sm:$0xff]
  %v390 = vld [vmem:[%s1 + $0x188] sm:$0xff]
  %v391 = vld [vmem:[%s1 + $0x190] sm:$0xff]
  %v392 = vld [vmem:[%s1 + $0x198] sm:$0xff]
  %v393 = vld [vmem:[%s1 + $0x1a0] sm:$0xff]
  %v394 = vld [vmem:[%s1 + $0x1a8] sm:$0xff]
  %v449 = vunpack.c.l.b16 %v341
  %v450 = vunpack.c.h.b16 %v341
  %v451 = vunpack.c.l.b16 %v342
  %v452 = vunpack.c.h.b16 %v342
  %v453 = vunpack.c.l.b16 %v343
  %v454 = vunpack.c.h.b16 %v343
  %v455 = vunpack.c.l.b16 %v344
  %v456 = vunpack.c.h.b16 %v344
  %v457 = vunpack.c.l.b16 %v345
  %v458 = vunpack.c.h.b16 %v345
  %v459 = vunpack.c.l.b16 %v346
  %v460 = vunpack.c.h.b16 %v346
  %v461 = vunpack.c.l.b16 %v347
  %v462 = vunpack.c.h.b16 %v347
  %v463 = vunpack.c.l.b16 %v348
  %v464 = vunpack.c.h.b16 %v348
  %v465 = vunpack.c.l.b16 %v349
  %v466 = vunpack.c.h.b16 %v349
  %v467 = vunpack.c.l.b16 %v350
  %v468 = vunpack.c.h.b16 %v350
  %v469 = vunpack.c.l.b16 %v351
  %v470 = vunpack.c.h.b16 %v351
  %v471 = vunpack.c.l.b16 %v352
  %v472 = vunpack.c.h.b16 %v352
  %v473 = vunpack.c.l.b16 %v353
  %v474 = vunpack.c.h.b16 %v353
  %v475 = vunpack.c.l.b16 %v354
  %v476 = vunpack.c.h.b16 %v354
  %v477 = vunpack.c.l.b16 %v355
  %v478 = vunpack.c.h.b16 %v355
  %v479 = vunpack.c.l.b16 %v356
  %v480 = vunpack.c.h.b16 %v356
  %v481 = vunpack.c.l.b16 %v357
  %v482 = vunpack.c.h.b16 %v357
  %v483 = vunpack.c.l.b16 %v358
  %v484 = vunpack.c.h.b16 %v358
  %v485 = vunpack.c.l.b16 %v359
  %v486 = vunpack.c.h.b16 %v359
  %v487 = vunpack.c.l.b16 %v360
  %v488 = vunpack.c.h.b16 %v360
  %v489 = vunpack.c.l.b16 %v361
  %v490 = vunpack.c.h.b16 %v361
  %v491 = vunpack.c.l.b16 %v362
  %v492 = vunpack.c.h.b16 %v362
  %v493 = vunpack.c.l.b16 %v363
  %v494 = vunpack.c.h.b16 %v363
  %v495 = vunpack.c.l.b16 %v364
  %v496 = vunpack.c.h.b16 %v364
  %v497 = vunpack.c.l.b16 %v365
  %v498 = vunpack.c.h.b16 %v365
  %v499 = vunpack.c.l.b16 %v366
  %v500 = vunpack.c.h.b16 %v366
  %v501 = vunpack.c.l.b16 %v367
  %v502 = vunpack.c.h.b16 %v367
  %v503 = vunpack.c.l.b16 %v368
  %v504 = vunpack.c.h.b16 %v368
  %v505 = vunpack.c.l.b16 %v369
  %v506 = vunpack.c.h.b16 %v369
  %v507 = vunpack.c.l.b16 %v370
  %v508 = vunpack.c.h.b16 %v370
  %v509 = vunpack.c.l.b16 %v371
  %v510 = vunpack.c.h.b16 %v371
  %v511 = vunpack.c.l.b16 %v372
  %v512 = vunpack.c.h.b16 %v372
  %v513 = vunpack.c.l.b16 %v373
  %v514 = vunpack.c.h.b16 %v373
  %v515 = vunpack.c.l.b16 %v374
  %v516 = vunpack.c.h.b16 %v374
  %v517 = vunpack.c.l.b16 %v375
  %v518 = vunpack.c.h.b16 %v375
  %v519 = vunpack.c.l.b16 %v376
  %v520 = vunpack.c.h.b16 %v376
  %v521 = vunpack.c.l.b16 %v377
  %v522 = vunpack.c.h.b16 %v377
  %v523 = vunpack.c.l.b16 %v378
  %v524 = vunpack.c.h.b16 %v378
  %v525 = vunpack.c.l.b16 %v379
  %v526 = vunpack.c.h.b16 %v379
  %v527 = vunpack.c.l.b16 %v380
  %v528 = vunpack.c.h.b16 %v380
  %v529 = vunpack.c.l.b16 %v381
  %v530 = vunpack.c.h.b16 %v381
  %v531 = vunpack.c.l.b16 %v382
  %v532 = vunpack.c.h.b16 %v382
  %v533 = vunpack.c.l.b16 %v383
  %v534 = vunpack.c.h.b16 %v383
  %v535 = vunpack.c.l.b16 %v384
  %v536 = vunpack.c.h.b16 %v384
  %v537 = vunpack.c.l.b16 %v385
  %v538 = vunpack.c.h.b16 %v385
  %v539 = vunpack.c.l.b16 %v386
  %v540 = vunpack.c.h.b16 %v386
  %v541 = vunpack.c.l.b16 %v387
  %v542 = vunpack.c.h.b16 %v387
  %v543 = vunpack.c.l.b16 %v388
  %v544 = vunpack.c.h.b16 %v388
  %v545 = vunpack.c.l.b16 %v389
  %v546 = vunpack.c.h.b16 %v389
  %v547 = vunpack.c.l.b16 %v390
  %v548 = vunpack.c.h.b16 %v390
  %v549 = vunpack.c.l.b16 %v391
  %v550 = vunpack.c.h.b16 %v391
  %v551 = vunpack.c.l.b16 %v392
  %v552 = vunpack.c.h.b16 %v392
  %v553 = vunpack.c.l.b16 %v393
  %v554 = vunpack.c.h.b16 %v393
  %v555 = vunpack.c.l.b16 %v394
  %v556 = vunpack.c.h.b16 %v394
  %v557 = vpack.c.b16 %v451, %v449
  %v558 = vpack.c.b16 %v452, %v450
  %v559 = vpack.c.b16 %v455, %v453
  %v560 = vpack.c.b16 %v456, %v454
  %v561 = vpack.c.b16 %v459, %v457
  %v562 = vpack.c.b16 %v460, %v458
  %v563 = vpack.c.b16 %v463, %v461
  %v564 = vpack.c.b16 %v464, %v462
  %v565 = vpack.c.b16 %v467, %v465
  %v566 = vpack.c.b16 %v468, %v466
  %v567 = vpack.c.b16 %v471, %v469
  %v568 = vpack.c.b16 %v472, %v470
  %v569 = vpack.c.b16 %v475, %v473
  %v570 = vpack.c.b16 %v476, %v474
  %v571 = vpack.c.b16 %v479, %v477
  %v572 = vpack.c.b16 %v480, %v478
  %v573 = vpack.c.b16 %v483, %v481
  %v574 = vpack.c.b16 %v484, %v482
  %v575 = vpack.c.b16 %v487, %v485
  %v576 = vpack.c.b16 %v488, %v486
  %v577 = vpack.c.b16 %v491, %v489
  %v578 = vpack.c.b16 %v492, %v490
  %v579 = vpack.c.b16 %v495, %v493
  %v580 = vpack.c.b16 %v496, %v494
  %v581 = vpack.c.b16 %v499, %v497
  %v582 = vpack.c.b16 %v500, %v498
  %v583 = vpack.c.b16 %v503, %v501
  %v584 = vpack.c.b16 %v504, %v502
  %v585 = vpack.c.b16 %v507, %v505
  %v586 = vpack.c.b16 %v508, %v506
  %v587 = vpack.c.b16 %v511, %v509
  %v588 = vpack.c.b16 %v512, %v510
  %v589 = vpack.c.b16 %v515, %v513
  %v590 = vpack.c.b16 %v516, %v514
  %v591 = vpack.c.b16 %v519, %v517
  %v592 = vpack.c.b16 %v520, %v518
  %v593 = vpack.c.b16 %v523, %v521
  %v594 = vpack.c.b16 %v524, %v522
  %v595 = vpack.c.b16 %v527, %v525
  %v596 = vpack.c.b16 %v528, %v526
  %v597 = vpack.c.b16 %v531, %v529
  %v598 = vpack.c.b16 %v532, %v530
  %v599 = vpack.c.b16 %v535, %v533
  %v600 = vpack.c.b16 %v536, %v534
  %v601 = vpack.c.b16 %v539, %v537
  %v602 = vpack.c.b16 %v540, %v538
  %v603 = vpack.c.b16 %v543, %v541
  %v604 = vpack.c.b16 %v544, %v542
  %v605 = vpack.c.b16 %v547, %v545
  %v606 = vpack.c.b16 %v548, %v546
  %v607 = vpack.c.b16 %v551, %v549
  %v608 = vpack.c.b16 %v552, %v550
  %v609 = vpack.c.b16 %v555, %v553
  %v610 = vpack.c.b16 %v556, %v554
  %vm638 = vcmask 334848
  %v640 = vsel %vm638, %v558, 0
  %v643 = vsel %vm638, %v560, 0
  %v646 = vsel %vm638, %v562, 0
  %v649 = vsel %vm638, %v564, 0
  %v652 = vsel %vm638, %v566, 0
  %v655 = vsel %vm638, %v568, 0
  %v658 = vsel %vm638, %v570, 0
  %v661 = vsel %vm638, %v572, 0
  %v664 = vsel %vm638, %v574, 0
  %v667 = vsel %vm638, %v576, 0
  %v670 = vsel %vm638, %v578, 0
  %v673 = vsel %vm638, %v580, 0
  %v676 = vsel %vm638, %v582, 0
  %v679 = vsel %vm638, %v584, 0
  %v682 = vsel %vm638, %v586, 0
  %v685 = vsel %vm638, %v588, 0
  %v688 = vsel %vm638, %v590, 0
  %v691 = vsel %vm638, %v592, 0
  %v694 = vsel %vm638, %v594, 0
  %v697 = vsel %vm638, %v596, 0
  %v700 = vsel %vm638, %v598, 0
  %v703 = vsel %vm638, %v600, 0
  %v706 = vsel %vm638, %v602, 0
  %v709 = vsel %vm638, %v604, 0
  %v712 = vsel %vm638, %v606, 0
  %v715 = vsel %vm638, %v608, 0
  %v718 = vsel %vm638, %v610, 0
  %vm720 = vcmask 1043456
  %vm721 = vcmask 1044480
  %v722 = vsel %vm720, 4294967295, 65535
  %v723 = vsel %vm721, %v722, 0
  %v725 = vand.u32 %v340, %v723
  %727 = vmatprep.subr.bf16.mxu0 0
  %728 = vmatpush1.bf16.msra.mxu0 %v330
  %729 = vmatprep.subr.bf16.mxu0 0
  %730 = vmatpush1.bf16.msra.mxu0 %v331
  %731 = vmatprep.subr.bf16.mxu0 0
  %732 = vmatpush1.bf16.msra.mxu0 %v332
  %733 = vmatprep.subr.bf16.mxu0 0
  %734 = vmatpush1.bf16.msra.mxu0 %v333
  %735 = vmatprep.subr.bf16.mxu0 0
  %736 = vmatpush1.bf16.msra.mxu0 %v334
  %737 = vmatprep.subr.bf16.mxu0 0
  %738 = vmatpush1.bf16.msra.mxu0 %v335
  %739 = vmatprep.subr.bf16.mxu0 0
  %740 = vmatpush1.bf16.msra.mxu0 %v336
  %741 = vmatprep.subr.bf16.mxu0 0
  %742 = vmatpush1.bf16.msra.mxu0 %v337
  %743 = vmatprep.subr.bf16.mxu0 0
  %744 = vmatpush1.bf16.msra.mxu0 %v338
  %745 = vmatprep.subr.bf16.mxu0 0
  %746 = vmatpush1.bf16.msra.mxu0 %v339
  %747 = vmatprep.subr.bf16.mxu0 0
  %748 = vmatpush1.bf16.msra.mxu0 %v725
  %749 = vmatprep.subr.bf16.mxu0 0
  %750 = vmatpush1.bf16.msra.mxu0 0
  %751 = vmatprep.subr.bf16.mxu0 0
  %752 = vmatpush1.bf16.msra.mxu0 0
  %753 = vmatprep.subr.bf16.mxu0 0
  %754 = vmatpush1.bf16.msra.mxu0 0
  %755 = vmatprep.subr.bf16.mxu0 0
  %756 = vmatpush1.bf16.msra.mxu0 0
  %757 = vmatprep.subr.bf16.mxu0 0
  %758 = vmatpush1.bf16.msra.mxu0 0
  %759 = vmatprep.mubr.bf16.mxu0 %v640
  %760 = vmatmul.mubr.bf16.gmra.mrb[0].mxu0 %v557
  %v761 = vpop.f32.mrb[0].mxu0
  %v762 = vadd.f32 0.0, %v761
  %v763 = vpop.f32.mrb[0].mxu0
  %v764 = vpop.f32.mrb[0].mxu0
  %v765 = vadd.f32 0.0, %v764
  %v766 = vpop.f32.mrb[0].mxu0
  %767 = vmatprep.mubr.bf16.mxu0 %v643
  %768 = vmatmul.mubr.bf16.gmra.mrb[0].mxu0 %v559
  %v769 = vpop.f32.mrb[0].mxu0
  %v770 = vadd.f32 0.0, %v769
  %v771 = vpop.f32.mrb[0].mxu0
  %v772 = vpop.f32.mrb[0].mxu0
  %v773 = vadd.f32 0.0, %v772
  %v774 = vpop.f32.mrb[0].mxu0
  %775 = vmatprep.mubr.bf16.mxu0 %v646
  %776 = vmatmul.mubr.bf16.gmra.mrb[0].mxu0 %v561
  %v777 = vpop.f32.mrb[0].mxu0
  %v778 = vadd.f32 0.0, %v777
  %v779 = vpop.f32.mrb[0].mxu0
  %v780 = vpop.f32.mrb[0].mxu0
  %v781 = vadd.f32 0.0, %v780
  %v782 = vpop.f32.mrb[0].mxu0
  %783 = vmatprep.mubr.bf16.mxu0 %v649
  %784 = vmatmul.mubr.bf16.gmra.mrb[0].mxu0 %v563
  %v785 = vpop.f32.mrb[0].mxu0
  %v786 = vadd.f32 0.0, %v785
  %v787 = vpop.f32.mrb[0].mxu0
  %v788 = vpop.f32.mrb[0].mxu0
  %v789 = vadd.f32 0.0, %v788
  %v790 = vpop.f32.mrb[0].mxu0
  %791 = vmatprep.mubr.bf16.mxu0 %v652
  %792 = vmatmul.mubr.bf16.gmra.mrb[0].mxu0 %v565
  %v793 = vpop.f32.mrb[0].mxu0
  %v794 = vadd.f32 0.0, %v793
  %v795 = vpop.f32.mrb[0].mxu0
  %v796 = vpop.f32.mrb[0].mxu0
  %v797 = vadd.f32 0.0, %v796
  %v798 = vpop.f32.mrb[0].mxu0
  %799 = vmatprep.mubr.bf16.mxu0 %v655
  %800 = vmatmul.mubr.bf16.gmra.mrb[0].mxu0 %v567
  %v801 = vpop.f32.mrb[0].mxu0
  %v802 = vadd.f32 0.0, %v801
  %v803 = vpop.f32.mrb[0].mxu0
  %v804 = vpop.f32.mrb[0].mxu0
  %v805 = vadd.f32 0.0, %v804
  %v806 = vpop.f32.mrb[0].mxu0
  %807 = vmatprep.mubr.bf16.mxu0 %v658
  %808 = vmatmul.mubr.bf16.gmra.mrb[0].mxu0 %v569
  %v809 = vpop.f32.mrb[0].mxu0
  %v810 = vadd.f32 0.0, %v809
  %v811 = vpop.f32.mrb[0].mxu0
  %v812 = vpop.f32.mrb[0].mxu0
  %v813 = vadd.f32 0.0, %v812
  %v814 = vpop.f32.mrb[0].mxu0
  %815 = vmatprep.mubr.bf16.mxu0 %v661
  %816 = vmatmul.mubr.bf16.gmra.mrb[0].mxu0 %v571
  %v817 = vpop.f32.mrb[0].mxu0
  %v818 = vadd.f32 0.0, %v817
  %v819 = vpop.f32.mrb[0].mxu0
  %v820 = vpop.f32.mrb[0].mxu0
  %v821 = vadd.f32 0.0, %v820
  %v822 = vpop.f32.mrb[0].mxu0
  %823 = vmatprep.mubr.bf16.mxu0 %v664
  %824 = vmatmul.mubr.bf16.gmra.mrb[0].mxu0 %v573
  %v825 = vpop.f32.mrb[0].mxu0
  %v826 = vadd.f32 0.0, %v825
  %v827 = vpop.f32.mrb[0].mxu0
  %v828 = vpop.f32.mrb[0].mxu0
  %v829 = vadd.f32 0.0, %v828
  %v830 = vpop.f32.mrb[0].mxu0
  %831 = vmatprep.mubr.bf16.mxu0 %v667
  %832 = vmatmul.mubr.bf16.gmra.mrb[0].mxu0 %v575
  %v833 = vpop.f32.mrb[0].mxu0
  %v834 = vadd.f32 0.0, %v833
  %v835 = vpop.f32.mrb[0].mxu0
  %v836 = vpop.f32.mrb[0].mxu0
  %v837 = vadd.f32 0.0, %v836
  %v838 = vpop.f32.mrb[0].mxu0
  %839 = vmatprep.mubr.bf16.mxu0 %v670
  %840 = vmatmul.mubr.bf16.gmra.mrb[0].mxu0 %v577
  %v841 = vpop.f32.mrb[0].mxu0
  %v842 = vadd.f32 0.0, %v841
  %v843 = vpop.f32.mrb[0].mxu0
  %v844 = vpop.f32.mrb[0].mxu0
  %v845 = vadd.f32 0.0, %v844
  %v846 = vpop.f32.mrb[0].mxu0
  %847 = vmatprep.mubr.bf16.mxu0 %v673
  %848 = vmatmul.mubr.bf16.gmra.mrb[0].mxu0 %v579
  %v849 = vpop.f32.mrb[0].mxu0
  %v850 = vadd.f32 0.0, %v849
  %v851 = vpop.f32.mrb[0].mxu0
  %v852 = vpop.f32.mrb[0].mxu0
  %v853 = vadd.f32 0.0, %v852
  %v854 = vpop.f32.mrb[0].mxu0
  %855 = vmatprep.mubr.bf16.mxu0 %v676
  %856 = vmatmul.mubr.bf16.gmra.mrb[0].mxu0 %v581
  %v857 = vpop.f32.mrb[0].mxu0
  %v858 = vadd.f32 0.0, %v857
  %v859 = vpop.f32.mrb[0].mxu0
  %v860 = vpop.f32.mrb[0].mxu0
  %v861 = vadd.f32 0.0, %v860
  %v862 = vpop.f32.mrb[0].mxu0
  %863 = vmatprep.mubr.bf16.mxu0 %v679
  %864 = vmatmul.mubr.bf16.gmra.mrb[0].mxu0 %v583
  %v865 = vpop.f32.mrb[0].mxu0
  %v866 = vadd.f32 0.0, %v865
  %v867 = vpop.f32.mrb[0].mxu0
  %v868 = vpop.f32.mrb[0].mxu0
  %v869 = vadd.f32 0.0, %v868
  %v870 = vpop.f32.mrb[0].mxu0
  %871 = vmatprep.mubr.bf16.mxu0 %v682
  %872 = vmatmul.mubr.bf16.gmra.mrb[0].mxu0 %v585
  %v873 = vpop.f32.mrb[0].mxu0
  %v874 = vadd.f32 0.0, %v873
  %v875 = vpop.f32.mrb[0].mxu0
  %v876 = vpop.f32.mrb[0].mxu0
  %v877 = vadd.f32 0.0, %v876
  %v878 = vpop.f32.mrb[0].mxu0
  %879 = vmatprep.mubr.bf16.mxu0 %v685
  %880 = vmatmul.mubr.bf16.gmra.mrb[0].mxu0 %v587
  %v881 = vpop.f32.mrb[0].mxu0
  %v882 = vadd.f32 0.0, %v881
  %v883 = vpop.f32.mrb[0].mxu0
  %v884 = vpop.f32.mrb[0].mxu0
  %v885 = vadd.f32 0.0, %v884
  %v886 = vpop.f32.mrb[0].mxu0
  %887 = vmatprep.mubr.bf16.mxu0 %v688
  %888 = vmatmul.mubr.bf16.gmra.mrb[0].mxu0 %v589
  %v889 = vpop.f32.mrb[0].mxu0
  %v890 = vadd.f32 0.0, %v889
  %v891 = vpop.f32.mrb[0].mxu0
  %v892 = vpop.f32.mrb[0].mxu0
  %v893 = vadd.f32 0.0, %v892
  %v894 = vpop.f32.mrb[0].mxu0
  %895 = vmatprep.mubr.bf16.mxu0 %v691
  %896 = vmatmul.mubr.bf16.gmra.mrb[0].mxu0 %v591
  %v897 = vpop.f32.mrb[0].mxu0
  %v898 = vadd.f32 0.0, %v897
  %v899 = vpop.f32.mrb[0].mxu0
  %v900 = vpop.f32.mrb[0].mxu0
  %v901 = vadd.f32 0.0, %v900
  %v902 = vpop.f32.mrb[0].mxu0
  %903 = vmatprep.mubr.bf16.mxu0 %v694
  %904 = vmatmul.mubr.bf16.gmra.mrb[0].mxu0 %v593
  %v905 = vpop.f32.mrb[0].mxu0
  %v906 = vadd.f32 0.0, %v905
  %v907 = vpop.f32.mrb[0].mxu0
  %v908 = vpop.f32.mrb[0].mxu0
  %v909 = vadd.f32 0.0, %v908
  %v910 = vpop.f32.mrb[0].mxu0
  %911 = vmatprep.mubr.bf16.mxu0 %v697
  %912 = vmatmul.mubr.bf16.gmra.mrb[0].mxu0 %v595
  %v913 = vpop.f32.mrb[0].mxu0
  %v914 = vadd.f32 0.0, %v913
  %v915 = vpop.f32.mrb[0].mxu0
  %v916 = vpop.f32.mrb[0].mxu0
  %v917 = vadd.f32 0.0, %v916
  %v918 = vpop.f32.mrb[0].mxu0
  %919 = vmatprep.mubr.bf16.mxu0 %v700
  %920 = vmatmul.mubr.bf16.gmra.mrb[0].mxu0 %v597
  %v921 = vpop.f32.mrb[0].mxu0
  %v922 = vadd.f32 0.0, %v921
  %v923 = vpop.f32.mrb[0].mxu0
  %v924 = vpop.f32.mrb[0].mxu0
  %v925 = vadd.f32 0.0, %v924
  %v926 = vpop.f32.mrb[0].mxu0
  %927 = vmatprep.mubr.bf16.mxu0 %v703
  %928 = vmatmul.mubr.bf16.gmra.mrb[0].mxu0 %v599
  %v929 = vpop.f32.mrb[0].mxu0
  %v930 = vadd.f32 0.0, %v929
  %v931 = vpop.f32.mrb[0].mxu0
  %v932 = vpop.f32.mrb[0].mxu0
  %v933 = vadd.f32 0.0, %v932
  %v934 = vpop.f32.mrb[0].mxu0
  %935 = vmatprep.mubr.bf16.mxu0 %v706
  %936 = vmatmul.mubr.bf16.gmra.mrb[0].mxu0 %v601
  %v937 = vpop.f32.mrb[0].mxu0
  %v938 = vadd.f32 0.0, %v937
  %v939 = vpop.f32.mrb[0].mxu0
  %v940 = vpop.f32.mrb[0].mxu0
  %v941 = vadd.f32 0.0, %v940
  %v942 = vpop.f32.mrb[0].mxu0
  %943 = vmatprep.mubr.bf16.mxu0 %v709
  %944 = vmatmul.mubr.bf16.gmra.mrb[0].mxu0 %v603
  %v945 = vpop.f32.mrb[0].mxu0
  %v946 = vadd.f32 0.0, %v945
  %v947 = vpop.f32.mrb[0].mxu0
  %v948 = vpop.f32.mrb[0].mxu0
  %v949 = vadd.f32 0.0, %v948
  %v950 = vpop.f32.mrb[0].mxu0
  %951 = vmatprep.mubr.bf16.mxu0 %v712
  %952 = vmatmul.mubr.bf16.gmra.mrb[0].mxu0 %v605
  %v953 = vpop.f32.mrb[0].mxu0
  %v954 = vadd.f32 0.0, %v953
  %v955 = vpop.f32.mrb[0].mxu0
  %v956 = vpop.f32.mrb[0].mxu0
  %v957 = vadd.f32 0.0, %v956
  %v958 = vpop.f32.mrb[0].mxu0
  %959 = vmatprep.mubr.bf16.mxu0 %v715
  %960 = vmatmul.mubr.bf16.gmra.mrb[0].mxu0 %v607
  %v961 = vpop.f32.mrb[0].mxu0
  %v962 = vadd.f32 0.0, %v961
  %v963 = vpop.f32.mrb[0].mxu0
  %v964 = vpop.f32.mrb[0].mxu0
  %v965 = vadd.f32 0.0, %v964
  %v966 = vpop.f32.mrb[0].mxu0
  %967 = vmatprep.mubr.bf16.mxu0 %v718
  %968 = vmatmul.mubr.bf16.gmra.mrb[0].mxu0 %v609
  %v969 = vpop.f32.mrb[0].mxu0
  %v970 = vadd.f32 0.0, %v969
  %v971 = vpop.f32.mrb[0].mxu0
  %v972 = vpop.f32.mrb[0].mxu0
  %v973 = vadd.f32 0.0, %v972
  %v974 = vpop.f32.mrb[0].mxu0
  %975 = vdwg.mxu0
  %v976 = vpack.c.bf16 %v765, %v762
  %v977 = vpack.c.bf16 %v773, %v770
  %v978 = vpack.c.bf16 %v781, %v778
  %v979 = vpack.c.bf16 %v789, %v786
  %v980 = vpack.c.bf16 %v797, %v794
  %v981 = vpack.c.bf16 %v805, %v802
  %v982 = vpack.c.bf16 %v813, %v810
  %v983 = vpack.c.bf16 %v821, %v818
  %v984 = vpack.c.bf16 %v829, %v826
  %v985 = vpack.c.bf16 %v837, %v834
  %v986 = vpack.c.bf16 %v845, %v842
  %v987 = vpack.c.bf16 %v853, %v850
  %v988 = vpack.c.bf16 %v861, %v858
  %v989 = vpack.c.bf16 %v869, %v866
  %v990 = vpack.c.bf16 %v877, %v874
  %v991 = vpack.c.bf16 %v885, %v882
  %v992 = vpack.c.bf16 %v893, %v890
  %v993 = vpack.c.bf16 %v901, %v898
  %v994 = vpack.c.bf16 %v909, %v906
  %v995 = vpack.c.bf16 %v917, %v914
  %v996 = vpack.c.bf16 %v925, %v922
  %v997 = vpack.c.bf16 %v933, %v930
  %v998 = vpack.c.bf16 %v941, %v938
  %v999 = vpack.c.bf16 %v949, %v946
  %v1000 = vpack.c.bf16 %v957, %v954
  %v1001 = vpack.c.bf16 %v965, %v962
  %v1002 = vpack.c.bf16 %v973, %v970
  %v1003 = vld [vmem:[%s5] sm:$0xff]
  %v1004 = vld [vmem:[%s5 + $0x8] sm:$0xff]
  %v1005 = vld [vmem:[%s5 + $0x10] sm:$0xff]
  %v1006 = vld [vmem:[%s5 + $0x18] sm:$0xff]
  %v1007 = vld [vmem:[%s5 + $0x20] sm:$0xff]
  %v1008 = vld [vmem:[%s5 + $0x28] sm:$0xff]
  %v1009 = vld [vmem:[%s5 + $0x30] sm:$0xff]
  %v1010 = vld [vmem:[%s5 + $0x38] sm:$0xff]
  %v1011 = vld [vmem:[%s5 + $0x40] sm:$0xff]
  %v1012 = vld [vmem:[%s5 + $0x48] sm:$0xff]
  %v1013 = vld [vmem:[%s5 + $0x50] sm:$0xff]
  %v1014 = vld [vmem:[%s5 + $0x58] sm:$0xff]
  %v1015 = vld [vmem:[%s5 + $0x60] sm:$0xff]
  %v1016 = vld [vmem:[%s5 + $0x68] sm:$0xff]
  %v1017 = vld [vmem:[%s5 + $0x70] sm:$0xff]
  %v1018 = vld [vmem:[%s5 + $0x78] sm:$0xff]
  %s1019 = scalar_lea.vmem %s5, 128
  %v1020 = vld [vmem:[%s1019] sm:$0xff]
  %v1021 = vld [vmem:[%s1019 + $0x8] sm:$0xff]
  %v1022 = vld [vmem:[%s1019 + $0x10] sm:$0xff]
  %v1023 = vld [vmem:[%s1019 + $0x18] sm:$0xff]
  %v1024 = vld [vmem:[%s1019 + $0x20] sm:$0xff]
  %v1025 = vld [vmem:[%s1019 + $0x28] sm:$0xff]
  %v1026 = vld [vmem:[%s1019 + $0x30] sm:$0xff]
  %v1027 = vld [vmem:[%s1019 + $0x38] sm:$0xff]
  %v1028 = vld [vmem:[%s1019 + $0x40] sm:$0xff]
  %v1029 = vld [vmem:[%s1019 + $0x48] sm:$0xff]
  %v1030 = vld [vmem:[%s1019 + $0x50] sm:$0xff]
  %v1031 = vld [vmem:[%s1019 + $0x58] sm:$0xff]
  %v1032 = vld [vmem:[%s1019 + $0x60] sm:$0xff]
  %v1033 = vld [vmem:[%s1019 + $0x68] sm:$0xff]
  %v1034 = vld [vmem:[%s1019 + $0x70] sm:$0xff]
  %v1035 = vld [vmem:[%s1019 + $0x78] sm:$0xff]
  %v1052 = vunpack.c.l.b16 %v1020
  %v1053 = vunpack.c.h.b16 %v1020
  %v1054 = vunpack.c.l.b16 %v1021
  %v1055 = vunpack.c.h.b16 %v1021
  %v1056 = vunpack.c.l.b16 %v1022
  %v1057 = vunpack.c.h.b16 %v1022
  %v1058 = vunpack.c.l.b16 %v1023
  %v1059 = vunpack.c.h.b16 %v1023
  %v1060 = vunpack.c.l.b16 %v1024
  %v1061 = vunpack.c.h.b16 %v1024
  %v1062 = vunpack.c.l.b16 %v1025
  %v1063 = vunpack.c.h.b16 %v1025
  %v1064 = vunpack.c.l.b16 %v1026
  %v1065 = vunpack.c.h.b16 %v1026
  %v1066 = vunpack.c.l.b16 %v1027
  %v1067 = vunpack.c.h.b16 %v1027
  %v1068 = vunpack.c.l.b16 %v1028
  %v1069 = vunpack.c.h.b16 %v1028
  %v1070 = vunpack.c.l.b16 %v1029
  %v1071 = vunpack.c.h.b16 %v1029
  %v1072 = vunpack.c.l.b16 %v1030
  %v1073 = vunpack.c.h.b16 %v1030
  %v1074 = vunpack.c.l.b16 %v1031
  %v1075 = vunpack.c.h.b16 %v1031
  %v1076 = vunpack.c.l.b16 %v1032
  %v1077 = vunpack.c.h.b16 %v1032
  %v1078 = vunpack.c.l.b16 %v1033
  %v1079 = vunpack.c.h.b16 %v1033
  %v1080 = vunpack.c.l.b16 %v1034
  %v1081 = vunpack.c.h.b16 %v1034
  %v1082 = vunpack.c.l.b16 %v1035
  %v1083 = vunpack.c.h.b16 %v1035
  %v1084 = vpack.c.b16 %v1054, %v1052
  %v1085 = vpack.c.b16 %v1055, %v1053
  %v1086 = vpack.c.b16 %v1058, %v1056
  %v1087 = vpack.c.b16 %v1059, %v1057
  %v1088 = vpack.c.b16 %v1062, %v1060
  %v1089 = vpack.c.b16 %v1063, %v1061
  %v1090 = vpack.c.b16 %v1066, %v1064
  %v1091 = vpack.c.b16 %v1067, %v1065
  %v1092 = vpack.c.b16 %v1070, %v1068
  %v1093 = vpack.c.b16 %v1071, %v1069
  %v1094 = vpack.c.b16 %v1074, %v1072
  %v1095 = vpack.c.b16 %v1075, %v1073
  %v1096 = vpack.c.b16 %v1078, %v1076
  %v1097 = vpack.c.b16 %v1079, %v1077
  %v1098 = vpack.c.b16 %v1082, %v1080
  %v1099 = vpack.c.b16 %v1083, %v1081
  %1116 = vmatprep.subr.bf16.mxu0 %v1085
  %1117 = vmatpush1.bf16.msra.mxu0 %v1084
  %1118 = vmatprep.subr.bf16.mxu0 %v1087
  %1119 = vmatpush1.bf16.msra.mxu0 %v1086
  %1120 = vmatprep.subr.bf16.mxu0 %v1089
  %1121 = vmatpush1.bf16.msra.mxu0 %v1088
  %1122 = vmatprep.subr.bf16.mxu0 %v1091
  %1123 = vmatpush1.bf16.msra.mxu0 %v1090
  %1124 = vmatprep.subr.bf16.mxu0 %v1093
  %1125 = vmatpush1.bf16.msra.mxu0 %v1092
  %1126 = vmatprep.subr.bf16.mxu0 %v1095
  %1127 = vmatpush1.bf16.msra.mxu0 %v1094
  %1128 = vmatprep.subr.bf16.mxu0 %v1097
  %1129 = vmatpush1.bf16.msra.mxu0 %v1096
  %1130 = vmatprep.subr.bf16.mxu0 %v1099
  %1131 = vmatpush1.bf16.msra.mxu0 %v1098
  %1132 = vmatprep.subr.bf16.mxu0 0
  %1133 = vmatpush1.bf16.msra.mxu0 0
  %1134 = vmatprep.subr.bf16.mxu0 0
  %1135 = vmatpush1.bf16.msra.mxu0 0
  %1136 = vmatprep.subr.bf16.mxu0 0
  %1137 = vmatpush1.bf16.msra.mxu0 0
  %1138 = vmatprep.subr.bf16.mxu0 0
  %1139 = vmatpush1.bf16.msra.mxu0 0
  %1140 = vmatprep.subr.bf16.mxu0 0
  %1141 = vmatpush1.bf16.msra.mxu0 0
  %1142 = vmatprep.subr.bf16.mxu0 0
  %1143 = vmatpush1.bf16.msra.mxu0 0
  %1144 = vmatprep.subr.bf16.mxu0 0
  %1145 = vmatpush1.bf16.msra.mxu0 0
  %1146 = vmatprep.subr.bf16.mxu0 0
  %1147 = vmatpush1.bf16.msra.mxu0 0
  %1148 = vmatprep.mubr.bf16.mxu0 0
  %1149 = vmatmul.mubr.bf16.gmra.mrb[0].mxu0 %v979
  %v1150 = vpop.f32.mrb[0].mxu0
  %v1151 = vadd.f32 0.0, %v1150
  %v1152 = vpop.f32.mrb[0].mxu0
  %v1153 = vadd.f32 0.0, %v1152
  %v1154 = vpop.f32.mrb[0].mxu0
  %v1155 = vadd.f32 0.0, %v1154
  %v1156 = vpop.f32.mrb[0].mxu0
  %v1157 = vadd.f32 0.0, %v1156
  %1158 = vmatprep.mubr.bf16.mxu0 0
  %1159 = vmatmul.mubr.bf16.gmra.mrb[0].mxu0 %v980
  %v1160 = vpop.f32.mrb[0].mxu0
  %v1161 = vadd.f32 0.0, %v1160
  %v1162 = vpop.f32.mrb[0].mxu0
  %v1163 = vadd.f32 0.0, %v1162
  %v1164 = vpop.f32.mrb[0].mxu0
  %v1165 = vadd.f32 0.0, %v1164
  %v1166 = vpop.f32.mrb[0].mxu0
  %v1167 = vadd.f32 0.0, %v1166
  %1168 = vmatprep.mubr.bf16.mxu0 0
  %1169 = vmatmul.mubr.bf16.gmra.mrb[0].mxu0 %v981
  %v1170 = vpop.f32.mrb[0].mxu0
  %v1171 = vadd.f32 0.0, %v1170
  %v1172 = vpop.f32.mrb[0].mxu0
  %v1173 = vadd.f32 0.0, %v1172
  %v1174 = vpop.f32.mrb[0].mxu0
  %v1175 = vadd.f32 0.0, %v1174
  %v1176 = vpop.f32.mrb[0].mxu0
  %v1177 = vadd.f32 0.0, %v1176
  %1178 = vdwg.mxu0
  %v1195 = vunpack.c.l.b16 %v1003
  %v1196 = vunpack.c.h.b16 %v1003
  %v1197 = vunpack.c.l.b16 %v1004
  %v1198 = vunpack.c.h.b16 %v1004
  %v1199 = vunpack.c.l.b16 %v1005
  %v1200 = vunpack.c.h.b16 %v1005
  %v1201 = vunpack.c.l.b16 %v1006
  %v1202 = vunpack.c.h.b16 %v1006
  %v1203 = vunpack.c.l.b16 %v1007
  %v1204 = vunpack.c.h.b16 %v1007
  %v1205 = vunpack.c.l.b16 %v1008
  %v1206 = vunpack.c.h.b16 %v1008
  %v1207 = vunpack.c.l.b16 %v1009
  %v1208 = vunpack.c.h.b16 %v1009
  %v1209 = vunpack.c.l.b16 %v1010
  %v1210 = vunpack.c.h.b16 %v1010
  %v1211 = vunpack.c.l.b16 %v1011
  %v1212 = vunpack.c.h.b16 %v1011
  %v1213 = vunpack.c.l.b16 %v1012
  %v1214 = vunpack.c.h.b16 %v1012
  %v1215 = vunpack.c.l.b16 %v1013
  %v1216 = vunpack.c.h.b16 %v1013
  %v1217 = vunpack.c.l.b16 %v1014
  %v1218 = vunpack.c.h.b16 %v1014
  %v1219 = vunpack.c.l.b16 %v1015
  %v1220 = vunpack.c.h.b16 %v1015
  %v1221 = vunpack.c.l.b16 %v1016
  %v1222 = vunpack.c.h.b16 %v1016
  %v1223 = vunpack.c.l.b16 %v1017
  %v1224 = vunpack.c.h.b16 %v1017
  %v1225 = vunpack.c.l.b16 %v1018
  %v1226 = vunpack.c.h.b16 %v1018
  %v1227 = vpack.c.b16 %v1197, %v1195
  %v1228 = vpack.c.b16 %v1198, %v1196
  %v1229 = vpack.c.b16 %v1201, %v1199
  %v1230 = vpack.c.b16 %v1202, %v1200
  %v1231 = vpack.c.b16 %v1205, %v1203
  %v1232 = vpack.c.b16 %v1206, %v1204
  %v1233 = vpack.c.b16 %v1209, %v1207
  %v1234 = vpack.c.b16 %v1210, %v1208
  %v1235 = vpack.c.b16 %v1213, %v1211
  %v1236 = vpack.c.b16 %v1214, %v1212
  %v1237 = vpack.c.b16 %v1217, %v1215
  %v1238 = vpack.c.b16 %v1218, %v1216
  %v1239 = vpack.c.b16 %v1221, %v1219
  %v1240 = vpack.c.b16 %v1222, %v1220
  %v1241 = vpack.c.b16 %v1225, %v1223
  %v1242 = vpack.c.b16 %v1226, %v1224
  %1259 = vmatprep.subr.bf16.mxu0 %v1228
  %1260 = vmatpush1.bf16.msra.mxu0 %v1227
  %1261 = vmatprep.subr.bf16.mxu0 %v1230
  %1262 = vmatpush1.bf16.msra.mxu0 %v1229
  %1263 = vmatprep.subr.bf16.mxu0 %v1232
  %1264 = vmatpush1.bf16.msra.mxu0 %v1231
  %1265 = vmatprep.subr.bf16.mxu0 %v1234
  %1266 = vmatpush1.bf16.msra.mxu0 %v1233
  %1267 = vmatprep.subr.bf16.mxu0 %v1236
  %1268 = vmatpush1.bf16.msra.mxu0 %v1235
  %1269 = vmatprep.subr.bf16.mxu0 %v1238
  %1270 = vmatpush1.bf16.msra.mxu0 %v1237
  %1271 = vmatprep.subr.bf16.mxu0 %v1240
  %1272 = vmatpush1.bf16.msra.mxu0 %v1239
  %1273 = vmatprep.subr.bf16.mxu0 %v1242
  %1274 = vmatpush1.bf16.msra.mxu0 %v1241
  %1275 = vmatprep.subr.bf16.mxu0 0
  %1276 = vmatpush1.bf16.msra.mxu0 0
  %1277 = vmatprep.subr.bf16.mxu0 0
  %1278 = vmatpush1.bf16.msra.mxu0 0
  %1279 = vmatprep.subr.bf16.mxu0 0
  %1280 = vmatpush1.bf16.msra.mxu0 0
  %1281 = vmatprep.subr.bf16.mxu0 0
  %1282 = vmatpush1.bf16.msra.mxu0 0
  %1283 = vmatprep.subr.bf16.mxu0 0
  %1284 = vmatpush1.bf16.msra.mxu0 0
  %1285 = vmatprep.subr.bf16.mxu0 0
  %1286 = vmatpush1.bf16.msra.mxu0 0
  %1287 = vmatprep.subr.bf16.mxu0 0
  %1288 = vmatpush1.bf16.msra.mxu0 0
  %1289 = vmatprep.subr.bf16.mxu0 0
  %1290 = vmatpush1.bf16.msra.mxu0 0
  %1291 = vmatprep.mubr.bf16.mxu0 0
  %1292 = vmatmul.mubr.bf16.gmra.mrb[0].mxu0 %v976
  %v1293 = vpop.f32.mrb[0].mxu0
  %v1294 = vadd.f32 %v1151, %v1293
  %v1295 = vpop.f32.mrb[0].mxu0
  %v1296 = vadd.f32 %v1153, %v1295
  %v1297 = vpop.f32.mrb[0].mxu0
  %v1298 = vadd.f32 %v1155, %v1297
  %v1299 = vpop.f32.mrb[0].mxu0
  %v1300 = vadd.f32 %v1157, %v1299
  %1301 = vmatprep.mubr.bf16.mxu0 0
  %1302 = vmatmul.mubr.bf16.gmra.mrb[0].mxu0 %v977
  %v1303 = vpop.f32.mrb[0].mxu0
  %v1304 = vadd.f32 %v1161, %v1303
  %v1305 = vpop.f32.mrb[0].mxu0
  %v1306 = vadd.f32 %v1163, %v1305
  %v1307 = vpop.f32.mrb[0].mxu0
  %v1308 = vadd.f32 %v1165, %v1307
  %v1309 = vpop.f32.mrb[0].mxu0
  %v1310 = vadd.f32 %v1167, %v1309
  %1311 = vmatprep.mubr.bf16.mxu0 0
  %1312 = vmatmul.mubr.bf16.gmra.mrb[0].mxu0 %v978
  %v1313 = vpop.f32.mrb[0].mxu0
  %v1314 = vadd.f32 %v1171, %v1313
  %v1315 = vpop.f32.mrb[0].mxu0
  %v1316 = vadd.f32 %v1173, %v1315
  %v1317 = vpop.f32.mrb[0].mxu0
  %v1318 = vadd.f32 %v1175, %v1317
  %v1319 = vpop.f32.mrb[0].mxu0
  %v1320 = vadd.f32 %v1177, %v1319
  %1321 = vdwg.mxu0
  %s1322 = scalar_lea.vmem %s5, 256
  %v1323 = vld [vmem:[%s1322] sm:$0xff]
  %v1324 = vld [vmem:[%s1322 + $0x8] sm:$0xff]
  %v1325 = vld [vmem:[%s1322 + $0x10] sm:$0xff]
  %v1326 = vld [vmem:[%s1322 + $0x18] sm:$0xff]
  %v1327 = vld [vmem:[%s1322 + $0x20] sm:$0xff]
  %v1328 = vld [vmem:[%s1322 + $0x28] sm:$0xff]
  %v1329 = vld [vmem:[%s1322 + $0x30] sm:$0xff]
  %v1330 = vld [vmem:[%s1322 + $0x38] sm:$0xff]
  %v1331 = vld [vmem:[%s1322 + $0x40] sm:$0xff]
  %v1332 = vld [vmem:[%s1322 + $0x48] sm:$0xff]
  %v1333 = vld [vmem:[%s1322 + $0x50] sm:$0xff]
  %v1334 = vld [vmem:[%s1322 + $0x58] sm:$0xff]
  %v1335 = vld [vmem:[%s1322 + $0x60] sm:$0xff]
  %v1336 = vld [vmem:[%s1322 + $0x68] sm:$0xff]
  %v1337 = vld [vmem:[%s1322 + $0x70] sm:$0xff]
  %v1338 = vld [vmem:[%s1322 + $0x78] sm:$0xff]
  %v1355 = vunpack.c.l.b16 %v1323
  %v1356 = vunpack.c.h.b16 %v1323
  %v1357 = vunpack.c.l.b16 %v1324
  %v1358 = vunpack.c.h.b16 %v1324
  %v1359 = vunpack.c.l.b16 %v1325
  %v1360 = vunpack.c.h.b16 %v1325
  %v1361 = vunpack.c.l.b16 %v1326
  %v1362 = vunpack.c.h.b16 %v1326
  %v1363 = vunpack.c.l.b16 %v1327
  %v1364 = vunpack.c.h.b16 %v1327
  %v1365 = vunpack.c.l.b16 %v1328
  %v1366 = vunpack.c.h.b16 %v1328
  %v1367 = vunpack.c.l.b16 %v1329
  %v1368 = vunpack.c.h.b16 %v1329
  %v1369 = vunpack.c.l.b16 %v1330
  %v1370 = vunpack.c.h.b16 %v1330
  %v1371 = vunpack.c.l.b16 %v1331
  %v1372 = vunpack.c.h.b16 %v1331
  %v1373 = vunpack.c.l.b16 %v1332
  %v1374 = vunpack.c.h.b16 %v1332
  %v1375 = vunpack.c.l.b16 %v1333
  %v1376 = vunpack.c.h.b16 %v1333
  %v1377 = vunpack.c.l.b16 %v1334
  %v1378 = vunpack.c.h.b16 %v1334
  %v1379 = vunpack.c.l.b16 %v1335
  %v1380 = vunpack.c.h.b16 %v1335
  %v1381 = vunpack.c.l.b16 %v1336
  %v1382 = vunpack.c.h.b16 %v1336
  %v1383 = vunpack.c.l.b16 %v1337
  %v1384 = vunpack.c.h.b16 %v1337
  %v1385 = vunpack.c.l.b16 %v1338
  %v1386 = vunpack.c.h.b16 %v1338
  %v1387 = vpack.c.b16 %v1357, %v1355
  %v1388 = vpack.c.b16 %v1358, %v1356
  %v1389 = vpack.c.b16 %v1361, %v1359
  %v1390 = vpack.c.b16 %v1362, %v1360
  %v1391 = vpack.c.b16 %v1365, %v1363
  %v1392 = vpack.c.b16 %v1366, %v1364
  %v1393 = vpack.c.b16 %v1369, %v1367
  %v1394 = vpack.c.b16 %v1370, %v1368
  %v1395 = vpack.c.b16 %v1373, %v1371
  %v1396 = vpack.c.b16 %v1374, %v1372
  %v1397 = vpack.c.b16 %v1377, %v1375
  %v1398 = vpack.c.b16 %v1378, %v1376
  %v1399 = vpack.c.b16 %v1381, %v1379
  %v1400 = vpack.c.b16 %v1382, %v1380
  %v1401 = vpack.c.b16 %v1385, %v1383
  %v1402 = vpack.c.b16 %v1386, %v1384
  %1419 = vmatprep.subr.bf16.mxu0 %v1388
  %1420 = vmatpush1.bf16.msra.mxu0 %v1387
  %1421 = vmatprep.subr.bf16.mxu0 %v1390
  %1422 = vmatpush1.bf16.msra.mxu0 %v1389
  %1423 = vmatprep.subr.bf16.mxu0 %v1392
  %1424 = vmatpush1.bf16.msra.mxu0 %v1391
  %1425 = vmatprep.subr.bf16.mxu0 %v1394
  %1426 = vmatpush1.bf16.msra.mxu0 %v1393
  %1427 = vmatprep.subr.bf16.mxu0 %v1396
  %1428 = vmatpush1.bf16.msra.mxu0 %v1395
  %1429 = vmatprep.subr.bf16.mxu0 %v1398
  %1430 = vmatpush1.bf16.msra.mxu0 %v1397
  %1431 = vmatprep.subr.bf16.mxu0 %v1400
  %1432 = vmatpush1.bf16.msra.mxu0 %v1399
  %1433 = vmatprep.subr.bf16.mxu0 %v1402
  %1434 = vmatpush1.bf16.msra.mxu0 %v1401
  %1435 = vmatprep.subr.bf16.mxu0 0
  %1436 = vmatpush1.bf16.msra.mxu0 0
  %1437 = vmatprep.subr.bf16.mxu0 0
  %1438 = vmatpush1.bf16.msra.mxu0 0
  %1439 = vmatprep.subr.bf16.mxu0 0
  %1440 = vmatpush1.bf16.msra.mxu0 0
  %1441 = vmatprep.subr.bf16.mxu0 0
  %1442 = vmatpush1.bf16.msra.mxu0 0
  %1443 = vmatprep.subr.bf16.mxu0 0
  %1444 = vmatpush1.bf16.msra.mxu0 0
  %1445 = vmatprep.subr.bf16.mxu0 0
  %1446 = vmatpush1.bf16.msra.mxu0 0
  %1447 = vmatprep.subr.bf16.mxu0 0
  %1448 = vmatpush1.bf16.msra.mxu0 0
  %1449 = vmatprep.subr.bf16.mxu0 0
  %1450 = vmatpush1.bf16.msra.mxu0 0
  %1451 = vmatprep.mubr.bf16.mxu0 0
  %1452 = vmatmul.mubr.bf16.gmra.mrb[0].mxu0 %v982
  %v1453 = vpop.f32.mrb[0].mxu0
  %v1454 = vadd.f32 0.0, %v1453
  %v1455 = vpop.f32.mrb[0].mxu0
  %v1456 = vadd.f32 0.0, %v1455
  %v1457 = vpop.f32.mrb[0].mxu0
  %v1458 = vadd.f32 0.0, %v1457
  %v1459 = vpop.f32.mrb[0].mxu0
  %v1460 = vadd.f32 0.0, %v1459
  %1461 = vmatprep.mubr.bf16.mxu0 0
  %1462 = vmatmul.mubr.bf16.gmra.mrb[0].mxu0 %v983
  %v1463 = vpop.f32.mrb[0].mxu0
  %v1464 = vadd.f32 0.0, %v1463
  %v1465 = vpop.f32.mrb[0].mxu0
  %v1466 = vadd.f32 0.0, %v1465
  %v1467 = vpop.f32.mrb[0].mxu0
  %v1468 = vadd.f32 0.0, %v1467
  %v1469 = vpop.f32.mrb[0].mxu0
  %v1470 = vadd.f32 0.0, %v1469
  %1471 = vmatprep.mubr.bf16.mxu0 0
  %1472 = vmatmul.mubr.bf16.gmra.mrb[0].mxu0 %v984
  %v1473 = vpop.f32.mrb[0].mxu0
  %v1474 = vadd.f32 0.0, %v1473
  %v1475 = vpop.f32.mrb[0].mxu0
  %v1476 = vadd.f32 0.0, %v1475
  %v1477 = vpop.f32.mrb[0].mxu0
  %v1478 = vadd.f32 0.0, %v1477
  %v1479 = vpop.f32.mrb[0].mxu0
  %v1480 = vadd.f32 0.0, %v1479
  %1481 = vdwg.mxu0
  %v1482 = vadd.f32 %v1294, %v1454
  %v1483 = vadd.f32 %v1296, %v1456
  %v1484 = vadd.f32 %v1298, %v1458
  %v1485 = vadd.f32 %v1300, %v1460
  %v1486 = vadd.f32 %v1304, %v1464
  %v1487 = vadd.f32 %v1306, %v1466
  %v1488 = vadd.f32 %v1308, %v1468
  %v1489 = vadd.f32 %v1310, %v1470
  %v1490 = vadd.f32 %v1314, %v1474
  %v1491 = vadd.f32 %v1316, %v1476
  %v1492 = vadd.f32 %v1318, %v1478
  %v1493 = vadd.f32 %v1320, %v1480
  %s1494 = scalar_lea.vmem %s5, 384
  %v1495 = vld [vmem:[%s1494] sm:$0xff]
  %v1496 = vld [vmem:[%s1494 + $0x8] sm:$0xff]
  %v1497 = vld [vmem:[%s1494 + $0x10] sm:$0xff]
  %v1498 = vld [vmem:[%s1494 + $0x18] sm:$0xff]
  %v1499 = vld [vmem:[%s1494 + $0x20] sm:$0xff]
  %v1500 = vld [vmem:[%s1494 + $0x28] sm:$0xff]
  %v1501 = vld [vmem:[%s1494 + $0x30] sm:$0xff]
  %v1502 = vld [vmem:[%s1494 + $0x38] sm:$0xff]
  %v1503 = vld [vmem:[%s1494 + $0x40] sm:$0xff]
  %v1504 = vld [vmem:[%s1494 + $0x48] sm:$0xff]
  %v1505 = vld [vmem:[%s1494 + $0x50] sm:$0xff]
  %v1506 = vld [vmem:[%s1494 + $0x58] sm:$0xff]
  %v1507 = vld [vmem:[%s1494 + $0x60] sm:$0xff]
  %v1508 = vld [vmem:[%s1494 + $0x68] sm:$0xff]
  %v1509 = vld [vmem:[%s1494 + $0x70] sm:$0xff]
  %v1510 = vld [vmem:[%s1494 + $0x78] sm:$0xff]
  %v1527 = vunpack.c.l.b16 %v1495
  %v1528 = vunpack.c.h.b16 %v1495
  %v1529 = vunpack.c.l.b16 %v1496
  %v1530 = vunpack.c.h.b16 %v1496
  %v1531 = vunpack.c.l.b16 %v1497
  %v1532 = vunpack.c.h.b16 %v1497
  %v1533 = vunpack.c.l.b16 %v1498
  %v1534 = vunpack.c.h.b16 %v1498
  %v1535 = vunpack.c.l.b16 %v1499
  %v1536 = vunpack.c.h.b16 %v1499
  %v1537 = vunpack.c.l.b16 %v1500
  %v1538 = vunpack.c.h.b16 %v1500
  %v1539 = vunpack.c.l.b16 %v1501
  %v1540 = vunpack.c.h.b16 %v1501
  %v1541 = vunpack.c.l.b16 %v1502
  %v1542 = vunpack.c.h.b16 %v1502
  %v1543 = vunpack.c.l.b16 %v1503
  %v1544 = vunpack.c.h.b16 %v1503
  %v1545 = vunpack.c.l.b16 %v1504
  %v1546 = vunpack.c.h.b16 %v1504
  %v1547 = vunpack.c.l.b16 %v1505
  %v1548 = vunpack.c.h.b16 %v1505
  %v1549 = vunpack.c.l.b16 %v1506
  %v1550 = vunpack.c.h.b16 %v1506
  %v1551 = vunpack.c.l.b16 %v1507
  %v1552 = vunpack.c.h.b16 %v1507
  %v1553 = vunpack.c.l.b16 %v1508
  %v1554 = vunpack.c.h.b16 %v1508
  %v1555 = vunpack.c.l.b16 %v1509
  %v1556 = vunpack.c.h.b16 %v1509
  %v1557 = vunpack.c.l.b16 %v1510
  %v1558 = vunpack.c.h.b16 %v1510
  %v1559 = vpack.c.b16 %v1529, %v1527
  %v1560 = vpack.c.b16 %v1530, %v1528
  %v1561 = vpack.c.b16 %v1533, %v1531
  %v1562 = vpack.c.b16 %v1534, %v1532
  %v1563 = vpack.c.b16 %v1537, %v1535
  %v1564 = vpack.c.b16 %v1538, %v1536
  %v1565 = vpack.c.b16 %v1541, %v1539
  %v1566 = vpack.c.b16 %v1542, %v1540
  %v1567 = vpack.c.b16 %v1545, %v1543
  %v1568 = vpack.c.b16 %v1546, %v1544
  %v1569 = vpack.c.b16 %v1549, %v1547
  %v1570 = vpack.c.b16 %v1550, %v1548
  %v1571 = vpack.c.b16 %v1553, %v1551
  %v1572 = vpack.c.b16 %v1554, %v1552
  %v1573 = vpack.c.b16 %v1557, %v1555
  %v1574 = vpack.c.b16 %v1558, %v1556
  %1591 = vmatprep.subr.bf16.mxu0 %v1560
  %1592 = vmatpush1.bf16.msra.mxu0 %v1559
  %1593 = vmatprep.subr.bf16.mxu0 %v1562
  %1594 = vmatpush1.bf16.msra.mxu0 %v1561
  %1595 = vmatprep.subr.bf16.mxu0 %v1564
  %1596 = vmatpush1.bf16.msra.mxu0 %v1563
  %1597 = vmatprep.subr.bf16.mxu0 %v1566
  %1598 = vmatpush1.bf16.msra.mxu0 %v1565
  %1599 = vmatprep.subr.bf16.mxu0 %v1568
  %1600 = vmatpush1.bf16.msra.mxu0 %v1567
  %1601 = vmatprep.subr.bf16.mxu0 %v1570
  %1602 = vmatpush1.bf16.msra.mxu0 %v1569
  %1603 = vmatprep.subr.bf16.mxu0 %v1572
  %1604 = vmatpush1.bf16.msra.mxu0 %v1571
  %1605 = vmatprep.subr.bf16.mxu0 %v1574
  %1606 = vmatpush1.bf16.msra.mxu0 %v1573
  %1607 = vmatprep.subr.bf16.mxu0 0
  %1608 = vmatpush1.bf16.msra.mxu0 0
  %1609 = vmatprep.subr.bf16.mxu0 0
  %1610 = vmatpush1.bf16.msra.mxu0 0
  %1611 = vmatprep.subr.bf16.mxu0 0
  %1612 = vmatpush1.bf16.msra.mxu0 0
  %1613 = vmatprep.subr.bf16.mxu0 0
  %1614 = vmatpush1.bf16.msra.mxu0 0
  %1615 = vmatprep.subr.bf16.mxu0 0
  %1616 = vmatpush1.bf16.msra.mxu0 0
  %1617 = vmatprep.subr.bf16.mxu0 0
  %1618 = vmatpush1.bf16.msra.mxu0 0
  %1619 = vmatprep.subr.bf16.mxu0 0
  %1620 = vmatpush1.bf16.msra.mxu0 0
  %1621 = vmatprep.subr.bf16.mxu0 0
  %1622 = vmatpush1.bf16.msra.mxu0 0
  %1623 = vmatprep.mubr.bf16.mxu0 0
  %1624 = vmatmul.mubr.bf16.gmra.mrb[0].mxu0 %v985
  %v1625 = vpop.f32.mrb[0].mxu0
  %v1626 = vadd.f32 0.0, %v1625
  %v1627 = vpop.f32.mrb[0].mxu0
  %v1628 = vadd.f32 0.0, %v1627
  %v1629 = vpop.f32.mrb[0].mxu0
  %v1630 = vadd.f32 0.0, %v1629
  %v1631 = vpop.f32.mrb[0].mxu0
  %v1632 = vadd.f32 0.0, %v1631
  %1633 = vmatprep.mubr.bf16.mxu0 0
  %1634 = vmatmul.mubr.bf16.gmra.mrb[0].mxu0 %v986
  %v1635 = vpop.f32.mrb[0].mxu0
  %v1636 = vadd.f32 0.0, %v1635
  %v1637 = vpop.f32.mrb[0].mxu0
  %v1638 = vadd.f32 0.0, %v1637
  %v1639 = vpop.f32.mrb[0].mxu0
  %v1640 = vadd.f32 0.0, %v1639
  %v1641 = vpop.f32.mrb[0].mxu0
  %v1642 = vadd.f32 0.0, %v1641
  %1643 = vmatprep.mubr.bf16.mxu0 0
  %1644 = vmatmul.mubr.bf16.gmra.mrb[0].mxu0 %v987
  %v1645 = vpop.f32.mrb[0].mxu0
  %v1646 = vadd.f32 0.0, %v1645
  %v1647 = vpop.f32.mrb[0].mxu0
  %v1648 = vadd.f32 0.0, %v1647
  %v1649 = vpop.f32.mrb[0].mxu0
  %v1650 = vadd.f32 0.0, %v1649
  %v1651 = vpop.f32.mrb[0].mxu0
  %v1652 = vadd.f32 0.0, %v1651
  %1653 = vdwg.mxu0
  %v1654 = vadd.f32 %v1482, %v1626
  %v1655 = vadd.f32 %v1483, %v1628
  %v1656 = vadd.f32 %v1484, %v1630
  %v1657 = vadd.f32 %v1485, %v1632
  %v1658 = vadd.f32 %v1486, %v1636
  %v1659 = vadd.f32 %v1487, %v1638
  %v1660 = vadd.f32 %v1488, %v1640
  %v1661 = vadd.f32 %v1489, %v1642
  %v1662 = vadd.f32 %v1490, %v1646
  %v1663 = vadd.f32 %v1491, %v1648
  %v1664 = vadd.f32 %v1492, %v1650
  %v1665 = vadd.f32 %v1493, %v1652
  %s1666 = scalar_lea.vmem %s5, 512
  %v1667 = vld [vmem:[%s1666] sm:$0xff]
  %v1668 = vld [vmem:[%s1666 + $0x8] sm:$0xff]
  %v1669 = vld [vmem:[%s1666 + $0x10] sm:$0xff]
  %v1670 = vld [vmem:[%s1666 + $0x18] sm:$0xff]
  %v1671 = vld [vmem:[%s1666 + $0x20] sm:$0xff]
  %v1672 = vld [vmem:[%s1666 + $0x28] sm:$0xff]
  %v1673 = vld [vmem:[%s1666 + $0x30] sm:$0xff]
  %v1674 = vld [vmem:[%s1666 + $0x38] sm:$0xff]
  %v1675 = vld [vmem:[%s1666 + $0x40] sm:$0xff]
  %v1676 = vld [vmem:[%s1666 + $0x48] sm:$0xff]
  %v1677 = vld [vmem:[%s1666 + $0x50] sm:$0xff]
  %v1678 = vld [vmem:[%s1666 + $0x58] sm:$0xff]
  %v1679 = vld [vmem:[%s1666 + $0x60] sm:$0xff]
  %v1680 = vld [vmem:[%s1666 + $0x68] sm:$0xff]
  %v1681 = vld [vmem:[%s1666 + $0x70] sm:$0xff]
  %v1682 = vld [vmem:[%s1666 + $0x78] sm:$0xff]
  %v1699 = vunpack.c.l.b16 %v1667
  %v1700 = vunpack.c.h.b16 %v1667
  %v1701 = vunpack.c.l.b16 %v1668
  %v1702 = vunpack.c.h.b16 %v1668
  %v1703 = vunpack.c.l.b16 %v1669
  %v1704 = vunpack.c.h.b16 %v1669
  %v1705 = vunpack.c.l.b16 %v1670
  %v1706 = vunpack.c.h.b16 %v1670
  %v1707 = vunpack.c.l.b16 %v1671
  %v1708 = vunpack.c.h.b16 %v1671
  %v1709 = vunpack.c.l.b16 %v1672
  %v1710 = vunpack.c.h.b16 %v1672
  %v1711 = vunpack.c.l.b16 %v1673
  %v1712 = vunpack.c.h.b16 %v1673
  %v1713 = vunpack.c.l.b16 %v1674
  %v1714 = vunpack.c.h.b16 %v1674
  %v1715 = vunpack.c.l.b16 %v1675
  %v1716 = vunpack.c.h.b16 %v1675
  %v1717 = vunpack.c.l.b16 %v1676
  %v1718 = vunpack.c.h.b16 %v1676
  %v1719 = vunpack.c.l.b16 %v1677
  %v1720 = vunpack.c.h.b16 %v1677
  %v1721 = vunpack.c.l.b16 %v1678
  %v1722 = vunpack.c.h.b16 %v1678
  %v1723 = vunpack.c.l.b16 %v1679
  %v1724 = vunpack.c.h.b16 %v1679
  %v1725 = vunpack.c.l.b16 %v1680
  %v1726 = vunpack.c.h.b16 %v1680
  %v1727 = vunpack.c.l.b16 %v1681
  %v1728 = vunpack.c.h.b16 %v1681
  %v1729 = vunpack.c.l.b16 %v1682
  %v1730 = vunpack.c.h.b16 %v1682
  %v1731 = vpack.c.b16 %v1701, %v1699
  %v1732 = vpack.c.b16 %v1702, %v1700
  %v1733 = vpack.c.b16 %v1705, %v1703
  %v1734 = vpack.c.b16 %v1706, %v1704
  %v1735 = vpack.c.b16 %v1709, %v1707
  %v1736 = vpack.c.b16 %v1710, %v1708
  %v1737 = vpack.c.b16 %v1713, %v1711
  %v1738 = vpack.c.b16 %v1714, %v1712
  %v1739 = vpack.c.b16 %v1717, %v1715
  %v1740 = vpack.c.b16 %v1718, %v1716
  %v1741 = vpack.c.b16 %v1721, %v1719
  %v1742 = vpack.c.b16 %v1722, %v1720
  %v1743 = vpack.c.b16 %v1725, %v1723
  %v1744 = vpack.c.b16 %v1726, %v1724
  %v1745 = vpack.c.b16 %v1729, %v1727
  %v1746 = vpack.c.b16 %v1730, %v1728
  %1763 = vmatprep.subr.bf16.mxu0 %v1732
  %1764 = vmatpush1.bf16.msra.mxu0 %v1731
  %1765 = vmatprep.subr.bf16.mxu0 %v1734
  %1766 = vmatpush1.bf16.msra.mxu0 %v1733
  %1767 = vmatprep.subr.bf16.mxu0 %v1736
  %1768 = vmatpush1.bf16.msra.mxu0 %v1735
  %1769 = vmatprep.subr.bf16.mxu0 %v1738
  %1770 = vmatpush1.bf16.msra.mxu0 %v1737
  %1771 = vmatprep.subr.bf16.mxu0 %v1740
  %1772 = vmatpush1.bf16.msra.mxu0 %v1739
  %1773 = vmatprep.subr.bf16.mxu0 %v1742
  %1774 = vmatpush1.bf16.msra.mxu0 %v1741
  %1775 = vmatprep.subr.bf16.mxu0 %v1744
  %1776 = vmatpush1.bf16.msra.mxu0 %v1743
  %1777 = vmatprep.subr.bf16.mxu0 %v1746
  %1778 = vmatpush1.bf16.msra.mxu0 %v1745
  %1779 = vmatprep.subr.bf16.mxu0 0
  %1780 = vmatpush1.bf16.msra.mxu0 0
  %1781 = vmatprep.subr.bf16.mxu0 0
  %1782 = vmatpush1.bf16.msra.mxu0 0
  %1783 = vmatprep.subr.bf16.mxu0 0
  %1784 = vmatpush1.bf16.msra.mxu0 0
  %1785 = vmatprep.subr.bf16.mxu0 0
  %1786 = vmatpush1.bf16.msra.mxu0 0
  %1787 = vmatprep.subr.bf16.mxu0 0
  %1788 = vmatpush1.bf16.msra.mxu0 0
  %1789 = vmatprep.subr.bf16.mxu0 0
  %1790 = vmatpush1.bf16.msra.mxu0 0
  %1791 = vmatprep.subr.bf16.mxu0 0
  %1792 = vmatpush1.bf16.msra.mxu0 0
  %1793 = vmatprep.subr.bf16.mxu0 0
  %1794 = vmatpush1.bf16.msra.mxu0 0
  %1795 = vmatprep.mubr.bf16.mxu0 0
  %1796 = vmatmul.mubr.bf16.gmra.mrb[0].mxu0 %v988
  %v1797 = vpop.f32.mrb[0].mxu0
  %v1798 = vadd.f32 0.0, %v1797
  %v1799 = vpop.f32.mrb[0].mxu0
  %v1800 = vadd.f32 0.0, %v1799
  %v1801 = vpop.f32.mrb[0].mxu0
  %v1802 = vadd.f32 0.0, %v1801
  %v1803 = vpop.f32.mrb[0].mxu0
  %v1804 = vadd.f32 0.0, %v1803
  %1805 = vmatprep.mubr.bf16.mxu0 0
  %1806 = vmatmul.mubr.bf16.gmra.mrb[0].mxu0 %v989
  %v1807 = vpop.f32.mrb[0].mxu0
  %v1808 = vadd.f32 0.0, %v1807
  %v1809 = vpop.f32.mrb[0].mxu0
  %v1810 = vadd.f32 0.0, %v1809
  %v1811 = vpop.f32.mrb[0].mxu0
  %v1812 = vadd.f32 0.0, %v1811
  %v1813 = vpop.f32.mrb[0].mxu0
  %v1814 = vadd.f32 0.0, %v1813
  %1815 = vmatprep.mubr.bf16.mxu0 0
  %1816 = vmatmul.mubr.bf16.gmra.mrb[0].mxu0 %v990
  %v1817 = vpop.f32.mrb[0].mxu0
  %v1818 = vadd.f32 0.0, %v1817
  %v1819 = vpop.f32.mrb[0].mxu0
  %v1820 = vadd.f32 0.0, %v1819
  %v1821 = vpop.f32.mrb[0].mxu0
  %v1822 = vadd.f32 0.0, %v1821
  %v1823 = vpop.f32.mrb[0].mxu0
  %v1824 = vadd.f32 0.0, %v1823
  %1825 = vdwg.mxu0
  %v1826 = vadd.f32 %v1654, %v1798
  %v1827 = vadd.f32 %v1655, %v1800
  %v1828 = vadd.f32 %v1656, %v1802
  %v1829 = vadd.f32 %v1657, %v1804
  %v1830 = vadd.f32 %v1658, %v1808
  %v1831 = vadd.f32 %v1659, %v1810
  %v1832 = vadd.f32 %v1660, %v1812
  %v1833 = vadd.f32 %v1661, %v1814
  %v1834 = vadd.f32 %v1662, %v1818
  %v1835 = vadd.f32 %v1663, %v1820
  %v1836 = vadd.f32 %v1664, %v1822
  %v1837 = vadd.f32 %v1665, %v1824
  %s1838 = scalar_lea.vmem %s5, 640
  %v1839 = vld [vmem:[%s1838] sm:$0xff]
  %v1840 = vld [vmem:[%s1838 + $0x8] sm:$0xff]
  %v1841 = vld [vmem:[%s1838 + $0x10] sm:$0xff]
  %v1842 = vld [vmem:[%s1838 + $0x18] sm:$0xff]
  %v1843 = vld [vmem:[%s1838 + $0x20] sm:$0xff]
  %v1844 = vld [vmem:[%s1838 + $0x28] sm:$0xff]
  %v1845 = vld [vmem:[%s1838 + $0x30] sm:$0xff]
  %v1846 = vld [vmem:[%s1838 + $0x38] sm:$0xff]
  %v1847 = vld [vmem:[%s1838 + $0x40] sm:$0xff]
  %v1848 = vld [vmem:[%s1838 + $0x48] sm:$0xff]
  %v1849 = vld [vmem:[%s1838 + $0x50] sm:$0xff]
  %v1850 = vld [vmem:[%s1838 + $0x58] sm:$0xff]
  %v1851 = vld [vmem:[%s1838 + $0x60] sm:$0xff]
  %v1852 = vld [vmem:[%s1838 + $0x68] sm:$0xff]
  %v1853 = vld [vmem:[%s1838 + $0x70] sm:$0xff]
  %v1854 = vld [vmem:[%s1838 + $0x78] sm:$0xff]
  %v1871 = vunpack.c.l.b16 %v1839
  %v1872 = vunpack.c.h.b16 %v1839
  %v1873 = vunpack.c.l.b16 %v1840
  %v1874 = vunpack.c.h.b16 %v1840
  %v1875 = vunpack.c.l.b16 %v1841
  %v1876 = vunpack.c.h.b16 %v1841
  %v1877 = vunpack.c.l.b16 %v1842
  %v1878 = vunpack.c.h.b16 %v1842
  %v1879 = vunpack.c.l.b16 %v1843
  %v1880 = vunpack.c.h.b16 %v1843
  %v1881 = vunpack.c.l.b16 %v1844
  %v1882 = vunpack.c.h.b16 %v1844
  %v1883 = vunpack.c.l.b16 %v1845
  %v1884 = vunpack.c.h.b16 %v1845
  %v1885 = vunpack.c.l.b16 %v1846
  %v1886 = vunpack.c.h.b16 %v1846
  %v1887 = vunpack.c.l.b16 %v1847
  %v1888 = vunpack.c.h.b16 %v1847
  %v1889 = vunpack.c.l.b16 %v1848
  %v1890 = vunpack.c.h.b16 %v1848
  %v1891 = vunpack.c.l.b16 %v1849
  %v1892 = vunpack.c.h.b16 %v1849
  %v1893 = vunpack.c.l.b16 %v1850
  %v1894 = vunpack.c.h.b16 %v1850
  %v1895 = vunpack.c.l.b16 %v1851
  %v1896 = vunpack.c.h.b16 %v1851
  %v1897 = vunpack.c.l.b16 %v1852
  %v1898 = vunpack.c.h.b16 %v1852
  %v1899 = vunpack.c.l.b16 %v1853
  %v1900 = vunpack.c.h.b16 %v1853
  %v1901 = vunpack.c.l.b16 %v1854
  %v1902 = vunpack.c.h.b16 %v1854
  %v1903 = vpack.c.b16 %v1873, %v1871
  %v1904 = vpack.c.b16 %v1874, %v1872
  %v1905 = vpack.c.b16 %v1877, %v1875
  %v1906 = vpack.c.b16 %v1878, %v1876
  %v1907 = vpack.c.b16 %v1881, %v1879
  %v1908 = vpack.c.b16 %v1882, %v1880
  %v1909 = vpack.c.b16 %v1885, %v1883
  %v1910 = vpack.c.b16 %v1886, %v1884
  %v1911 = vpack.c.b16 %v1889, %v1887
  %v1912 = vpack.c.b16 %v1890, %v1888
  %v1913 = vpack.c.b16 %v1893, %v1891
  %v1914 = vpack.c.b16 %v1894, %v1892
  %v1915 = vpack.c.b16 %v1897, %v1895
  %v1916 = vpack.c.b16 %v1898, %v1896
  %v1917 = vpack.c.b16 %v1901, %v1899
  %v1918 = vpack.c.b16 %v1902, %v1900
  %1935 = vmatprep.subr.bf16.mxu0 %v1904
  %1936 = vmatpush1.bf16.msra.mxu0 %v1903
  %1937 = vmatprep.subr.bf16.mxu0 %v1906
  %1938 = vmatpush1.bf16.msra.mxu0 %v1905
  %1939 = vmatprep.subr.bf16.mxu0 %v1908
  %1940 = vmatpush1.bf16.msra.mxu0 %v1907
  %1941 = vmatprep.subr.bf16.mxu0 %v1910
  %1942 = vmatpush1.bf16.msra.mxu0 %v1909
  %1943 = vmatprep.subr.bf16.mxu0 %v1912
  %1944 = vmatpush1.bf16.msra.mxu0 %v1911
  %1945 = vmatprep.subr.bf16.mxu0 %v1914
  %1946 = vmatpush1.bf16.msra.mxu0 %v1913
  %1947 = vmatprep.subr.bf16.mxu0 %v1916
  %1948 = vmatpush1.bf16.msra.mxu0 %v1915
  %1949 = vmatprep.subr.bf16.mxu0 %v1918
  %1950 = vmatpush1.bf16.msra.mxu0 %v1917
  %1951 = vmatprep.subr.bf16.mxu0 0
  %1952 = vmatpush1.bf16.msra.mxu0 0
  %1953 = vmatprep.subr.bf16.mxu0 0
  %1954 = vmatpush1.bf16.msra.mxu0 0
  %1955 = vmatprep.subr.bf16.mxu0 0
  %1956 = vmatpush1.bf16.msra.mxu0 0
  %1957 = vmatprep.subr.bf16.mxu0 0
  %1958 = vmatpush1.bf16.msra.mxu0 0
  %1959 = vmatprep.subr.bf16.mxu0 0
  %1960 = vmatpush1.bf16.msra.mxu0 0
  %1961 = vmatprep.subr.bf16.mxu0 0
  %1962 = vmatpush1.bf16.msra.mxu0 0
  %1963 = vmatprep.subr.bf16.mxu0 0
  %1964 = vmatpush1.bf16.msra.mxu0 0
  %1965 = vmatprep.subr.bf16.mxu0 0
  %1966 = vmatpush1.bf16.msra.mxu0 0
  %1967 = vmatprep.mubr.bf16.mxu0 0
  %1968 = vmatmul.mubr.bf16.gmra.mrb[0].mxu0 %v991
  %v1969 = vpop.f32.mrb[0].mxu0
  %v1970 = vadd.f32 0.0, %v1969
  %v1971 = vpop.f32.mrb[0].mxu0
  %v1972 = vadd.f32 0.0, %v1971
  %v1973 = vpop.f32.mrb[0].mxu0
  %v1974 = vadd.f32 0.0, %v1973
  %v1975 = vpop.f32.mrb[0].mxu0
  %v1976 = vadd.f32 0.0, %v1975
  %1977 = vmatprep.mubr.bf16.mxu0 0
  %1978 = vmatmul.mubr.bf16.gmra.mrb[0].mxu0 %v992
  %v1979 = vpop.f32.mrb[0].mxu0
  %v1980 = vadd.f32 0.0, %v1979
  %v1981 = vpop.f32.mrb[0].mxu0
  %v1982 = vadd.f32 0.0, %v1981
  %v1983 = vpop.f32.mrb[0].mxu0
  %v1984 = vadd.f32 0.0, %v1983
  %v1985 = vpop.f32.mrb[0].mxu0
  %v1986 = vadd.f32 0.0, %v1985
  %1987 = vmatprep.mubr.bf16.mxu0 0
  %1988 = vmatmul.mubr.bf16.gmra.mrb[0].mxu0 %v993
  %v1989 = vpop.f32.mrb[0].mxu0
  %v1990 = vadd.f32 0.0, %v1989
  %v1991 = vpop.f32.mrb[0].mxu0
  %v1992 = vadd.f32 0.0, %v1991
  %v1993 = vpop.f32.mrb[0].mxu0
  %v1994 = vadd.f32 0.0, %v1993
  %v1995 = vpop.f32.mrb[0].mxu0
  %v1996 = vadd.f32 0.0, %v1995
  %1997 = vdwg.mxu0
  %v1998 = vadd.f32 %v1826, %v1970
  %v1999 = vadd.f32 %v1827, %v1972
  %v2000 = vadd.f32 %v1828, %v1974
  %v2001 = vadd.f32 %v1829, %v1976
  %v2002 = vadd.f32 %v1830, %v1980
  %v2003 = vadd.f32 %v1831, %v1982
  %v2004 = vadd.f32 %v1832, %v1984
  %v2005 = vadd.f32 %v1833, %v1986
  %v2006 = vadd.f32 %v1834, %v1990
  %v2007 = vadd.f32 %v1835, %v1992
  %v2008 = vadd.f32 %v1836, %v1994
  %v2009 = vadd.f32 %v1837, %v1996
  %s2010 = scalar_lea.vmem %s5, 768
  %v2011 = vld [vmem:[%s2010] sm:$0xff]
  %v2012 = vld [vmem:[%s2010 + $0x8] sm:$0xff]
  %v2013 = vld [vmem:[%s2010 + $0x10] sm:$0xff]
  %v2014 = vld [vmem:[%s2010 + $0x18] sm:$0xff]
  %v2015 = vld [vmem:[%s2010 + $0x20] sm:$0xff]
  %v2016 = vld [vmem:[%s2010 + $0x28] sm:$0xff]
  %v2017 = vld [vmem:[%s2010 + $0x30] sm:$0xff]
  %v2018 = vld [vmem:[%s2010 + $0x38] sm:$0xff]
  %v2019 = vld [vmem:[%s2010 + $0x40] sm:$0xff]
  %v2020 = vld [vmem:[%s2010 + $0x48] sm:$0xff]
  %v2021 = vld [vmem:[%s2010 + $0x50] sm:$0xff]
  %v2022 = vld [vmem:[%s2010 + $0x58] sm:$0xff]
  %v2023 = vld [vmem:[%s2010 + $0x60] sm:$0xff]
  %v2024 = vld [vmem:[%s2010 + $0x68] sm:$0xff]
  %v2025 = vld [vmem:[%s2010 + $0x70] sm:$0xff]
  %v2026 = vld [vmem:[%s2010 + $0x78] sm:$0xff]
  %v2043 = vunpack.c.l.b16 %v2011
  %v2044 = vunpack.c.h.b16 %v2011
  %v2045 = vunpack.c.l.b16 %v2012
  %v2046 = vunpack.c.h.b16 %v2012
  %v2047 = vunpack.c.l.b16 %v2013
  %v2048 = vunpack.c.h.b16 %v2013
  %v2049 = vunpack.c.l.b16 %v2014
  %v2050 = vunpack.c.h.b16 %v2014
  %v2051 = vunpack.c.l.b16 %v2015
  %v2052 = vunpack.c.h.b16 %v2015
  %v2053 = vunpack.c.l.b16 %v2016
  %v2054 = vunpack.c.h.b16 %v2016
  %v2055 = vunpack.c.l.b16 %v2017
  %v2056 = vunpack.c.h.b16 %v2017
  %v2057 = vunpack.c.l.b16 %v2018
  %v2058 = vunpack.c.h.b16 %v2018
  %v2059 = vunpack.c.l.b16 %v2019
  %v2060 = vunpack.c.h.b16 %v2019
  %v2061 = vunpack.c.l.b16 %v2020
  %v2062 = vunpack.c.h.b16 %v2020
  %v2063 = vunpack.c.l.b16 %v2021
  %v2064 = vunpack.c.h.b16 %v2021
  %v2065 = vunpack.c.l.b16 %v2022
  %v2066 = vunpack.c.h.b16 %v2022
  %v2067 = vunpack.c.l.b16 %v2023
  %v2068 = vunpack.c.h.b16 %v2023
  %v2069 = vunpack.c.l.b16 %v2024
  %v2070 = vunpack.c.h.b16 %v2024
  %v2071 = vunpack.c.l.b16 %v2025
  %v2072 = vunpack.c.h.b16 %v2025
  %v2073 = vunpack.c.l.b16 %v2026
  %v2074 = vunpack.c.h.b16 %v2026
  %v2075 = vpack.c.b16 %v2045, %v2043
  %v2076 = vpack.c.b16 %v2046, %v2044
  %v2077 = vpack.c.b16 %v2049, %v2047
  %v2078 = vpack.c.b16 %v2050, %v2048
  %v2079 = vpack.c.b16 %v2053, %v2051
  %v2080 = vpack.c.b16 %v2054, %v2052
  %v2081 = vpack.c.b16 %v2057, %v2055
  %v2082 = vpack.c.b16 %v2058, %v2056
  %v2083 = vpack.c.b16 %v2061, %v2059
  %v2084 = vpack.c.b16 %v2062, %v2060
  %v2085 = vpack.c.b16 %v2065, %v2063
  %v2086 = vpack.c.b16 %v2066, %v2064
  %v2087 = vpack.c.b16 %v2069, %v2067
  %v2088 = vpack.c.b16 %v2070, %v2068
  %v2089 = vpack.c.b16 %v2073, %v2071
  %v2090 = vpack.c.b16 %v2074, %v2072
  %2107 = vmatprep.subr.bf16.mxu0 %v2076
  %2108 = vmatpush1.bf16.msra.mxu0 %v2075
  %2109 = vmatprep.subr.bf16.mxu0 %v2078
  %2110 = vmatpush1.bf16.msra.mxu0 %v2077
  %2111 = vmatprep.subr.bf16.mxu0 %v2080
  %2112 = vmatpush1.bf16.msra.mxu0 %v2079
  %2113 = vmatprep.subr.bf16.mxu0 %v2082
  %2114 = vmatpush1.bf16.msra.mxu0 %v2081
  %2115 = vmatprep.subr.bf16.mxu0 %v2084
  %2116 = vmatpush1.bf16.msra.mxu0 %v2083
  %2117 = vmatprep.subr.bf16.mxu0 %v2086
  %2118 = vmatpush1.bf16.msra.mxu0 %v2085
  %2119 = vmatprep.subr.bf16.mxu0 %v2088
  %2120 = vmatpush1.bf16.msra.mxu0 %v2087
  %2121 = vmatprep.subr.bf16.mxu0 %v2090
  %2122 = vmatpush1.bf16.msra.mxu0 %v2089
  %2123 = vmatprep.subr.bf16.mxu0 0
  %2124 = vmatpush1.bf16.msra.mxu0 0
  %2125 = vmatprep.subr.bf16.mxu0 0
  %2126 = vmatpush1.bf16.msra.mxu0 0
  %2127 = vmatprep.subr.bf16.mxu0 0
  %2128 = vmatpush1.bf16.msra.mxu0 0
  %2129 = vmatprep.subr.bf16.mxu0 0
  %2130 = vmatpush1.bf16.msra.mxu0 0
  %2131 = vmatprep.subr.bf16.mxu0 0
  %2132 = vmatpush1.bf16.msra.mxu0 0
  %2133 = vmatprep.subr.bf16.mxu0 0
  %2134 = vmatpush1.bf16.msra.mxu0 0
  %2135 = vmatprep.subr.bf16.mxu0 0
  %2136 = vmatpush1.bf16.msra.mxu0 0
  %2137 = vmatprep.subr.bf16.mxu0 0
  %2138 = vmatpush1.bf16.msra.mxu0 0
  %2139 = vmatprep.mubr.bf16.mxu0 0
  %2140 = vmatmul.mubr.bf16.gmra.mrb[0].mxu0 %v994
  %v2141 = vpop.f32.mrb[0].mxu0
  %v2142 = vadd.f32 0.0, %v2141
  %v2143 = vpop.f32.mrb[0].mxu0
  %v2144 = vadd.f32 0.0, %v2143
  %v2145 = vpop.f32.mrb[0].mxu0
  %v2146 = vadd.f32 0.0, %v2145
  %v2147 = vpop.f32.mrb[0].mxu0
  %v2148 = vadd.f32 0.0, %v2147
  %2149 = vmatprep.mubr.bf16.mxu0 0
  %2150 = vmatmul.mubr.bf16.gmra.mrb[0].mxu0 %v995
  %v2151 = vpop.f32.mrb[0].mxu0
  %v2152 = vadd.f32 0.0, %v2151
  %v2153 = vpop.f32.mrb[0].mxu0
  %v2154 = vadd.f32 0.0, %v2153
  %v2155 = vpop.f32.mrb[0].mxu0
  %v2156 = vadd.f32 0.0, %v2155
  %v2157 = vpop.f32.mrb[0].mxu0
  %v2158 = vadd.f32 0.0, %v2157
  %2159 = vmatprep.mubr.bf16.mxu0 0
  %2160 = vmatmul.mubr.bf16.gmra.mrb[0].mxu0 %v996
  %v2161 = vpop.f32.mrb[0].mxu0
  %v2162 = vadd.f32 0.0, %v2161
  %v2163 = vpop.f32.mrb[0].mxu0
  %v2164 = vadd.f32 0.0, %v2163
  %v2165 = vpop.f32.mrb[0].mxu0
  %v2166 = vadd.f32 0.0, %v2165
  %v2167 = vpop.f32.mrb[0].mxu0
  %v2168 = vadd.f32 0.0, %v2167
  %2169 = vdwg.mxu0
  %v2170 = vadd.f32 %v1998, %v2142
  %v2171 = vadd.f32 %v1999, %v2144
  %v2172 = vadd.f32 %v2000, %v2146
  %v2173 = vadd.f32 %v2001, %v2148
  %v2174 = vadd.f32 %v2002, %v2152
  %v2175 = vadd.f32 %v2003, %v2154
  %v2176 = vadd.f32 %v2004, %v2156
  %v2177 = vadd.f32 %v2005, %v2158
  %v2178 = vadd.f32 %v2006, %v2162
  %v2179 = vadd.f32 %v2007, %v2164
  %v2180 = vadd.f32 %v2008, %v2166
  %v2181 = vadd.f32 %v2009, %v2168
  %s2182 = scalar_lea.vmem %s5, 896
  %v2183 = vld [vmem:[%s2182] sm:$0xff]
  %v2184 = vld [vmem:[%s2182 + $0x8] sm:$0xff]
  %v2185 = vld [vmem:[%s2182 + $0x10] sm:$0xff]
  %v2186 = vld [vmem:[%s2182 + $0x18] sm:$0xff]
  %v2187 = vld [vmem:[%s2182 + $0x20] sm:$0xff]
  %v2188 = vld [vmem:[%s2182 + $0x28] sm:$0xff]
  %v2189 = vld [vmem:[%s2182 + $0x30] sm:$0xff]
  %v2190 = vld [vmem:[%s2182 + $0x38] sm:$0xff]
  %v2191 = vld [vmem:[%s2182 + $0x40] sm:$0xff]
  %v2192 = vld [vmem:[%s2182 + $0x48] sm:$0xff]
  %v2193 = vld [vmem:[%s2182 + $0x50] sm:$0xff]
  %v2194 = vld [vmem:[%s2182 + $0x58] sm:$0xff]
  %v2195 = vld [vmem:[%s2182 + $0x60] sm:$0xff]
  %v2196 = vld [vmem:[%s2182 + $0x68] sm:$0xff]
  %v2197 = vld [vmem:[%s2182 + $0x70] sm:$0xff]
  %v2198 = vld [vmem:[%s2182 + $0x78] sm:$0xff]
  %v2215 = vunpack.c.l.b16 %v2183
  %v2216 = vunpack.c.h.b16 %v2183
  %v2217 = vunpack.c.l.b16 %v2184
  %v2218 = vunpack.c.h.b16 %v2184
  %v2219 = vunpack.c.l.b16 %v2185
  %v2220 = vunpack.c.h.b16 %v2185
  %v2221 = vunpack.c.l.b16 %v2186
  %v2222 = vunpack.c.h.b16 %v2186
  %v2223 = vunpack.c.l.b16 %v2187
  %v2224 = vunpack.c.h.b16 %v2187
  %v2225 = vunpack.c.l.b16 %v2188
  %v2226 = vunpack.c.h.b16 %v2188
  %v2227 = vunpack.c.l.b16 %v2189
  %v2228 = vunpack.c.h.b16 %v2189
  %v2229 = vunpack.c.l.b16 %v2190
  %v2230 = vunpack.c.h.b16 %v2190
  %v2231 = vunpack.c.l.b16 %v2191
  %v2232 = vunpack.c.h.b16 %v2191
  %v2233 = vunpack.c.l.b16 %v2192
  %v2234 = vunpack.c.h.b16 %v2192
  %v2235 = vunpack.c.l.b16 %v2193
  %v2236 = vunpack.c.h.b16 %v2193
  %v2237 = vunpack.c.l.b16 %v2194
  %v2238 = vunpack.c.h.b16 %v2194
  %v2239 = vunpack.c.l.b16 %v2195
  %v2240 = vunpack.c.h.b16 %v2195
  %v2241 = vunpack.c.l.b16 %v2196
  %v2242 = vunpack.c.h.b16 %v2196
  %v2243 = vunpack.c.l.b16 %v2197
  %v2244 = vunpack.c.h.b16 %v2197
  %v2245 = vunpack.c.l.b16 %v2198
  %v2246 = vunpack.c.h.b16 %v2198
  %v2247 = vpack.c.b16 %v2217, %v2215
  %v2248 = vpack.c.b16 %v2218, %v2216
  %v2249 = vpack.c.b16 %v2221, %v2219
  %v2250 = vpack.c.b16 %v2222, %v2220
  %v2251 = vpack.c.b16 %v2225, %v2223
  %v2252 = vpack.c.b16 %v2226, %v2224
  %v2253 = vpack.c.b16 %v2229, %v2227
  %v2254 = vpack.c.b16 %v2230, %v2228
  %v2255 = vpack.c.b16 %v2233, %v2231
  %v2256 = vpack.c.b16 %v2234, %v2232
  %v2257 = vpack.c.b16 %v2237, %v2235
  %v2258 = vpack.c.b16 %v2238, %v2236
  %v2259 = vpack.c.b16 %v2241, %v2239
  %v2260 = vpack.c.b16 %v2242, %v2240
  %v2261 = vpack.c.b16 %v2245, %v2243
  %v2262 = vpack.c.b16 %v2246, %v2244
  %2279 = vmatprep.subr.bf16.mxu0 %v2248
  %2280 = vmatpush1.bf16.msra.mxu0 %v2247
  %2281 = vmatprep.subr.bf16.mxu0 %v2250
  %2282 = vmatpush1.bf16.msra.mxu0 %v2249
  %2283 = vmatprep.subr.bf16.mxu0 %v2252
  %2284 = vmatpush1.bf16.msra.mxu0 %v2251
  %2285 = vmatprep.subr.bf16.mxu0 %v2254
  %2286 = vmatpush1.bf16.msra.mxu0 %v2253
  %2287 = vmatprep.subr.bf16.mxu0 %v2256
  %2288 = vmatpush1.bf16.msra.mxu0 %v2255
  %2289 = vmatprep.subr.bf16.mxu0 %v2258
  %2290 = vmatpush1.bf16.msra.mxu0 %v2257
  %2291 = vmatprep.subr.bf16.mxu0 %v2260
  %2292 = vmatpush1.bf16.msra.mxu0 %v2259
  %2293 = vmatprep.subr.bf16.mxu0 %v2262
  %2294 = vmatpush1.bf16.msra.mxu0 %v2261
  %2295 = vmatprep.subr.bf16.mxu0 0
  %2296 = vmatpush1.bf16.msra.mxu0 0
  %2297 = vmatprep.subr.bf16.mxu0 0
  %2298 = vmatpush1.bf16.msra.mxu0 0
  %2299 = vmatprep.subr.bf16.mxu0 0
  %2300 = vmatpush1.bf16.msra.mxu0 0
  %2301 = vmatprep.subr.bf16.mxu0 0
  %2302 = vmatpush1.bf16.msra.mxu0 0
  %2303 = vmatprep.subr.bf16.mxu0 0
  %2304 = vmatpush1.bf16.msra.mxu0 0
  %2305 = vmatprep.subr.bf16.mxu0 0
  %2306 = vmatpush1.bf16.msra.mxu0 0
  %2307 = vmatprep.subr.bf16.mxu0 0
  %2308 = vmatpush1.bf16.msra.mxu0 0
  %2309 = vmatprep.subr.bf16.mxu0 0
  %2310 = vmatpush1.bf16.msra.mxu0 0
  %2311 = vmatprep.mubr.bf16.mxu0 0
  %2312 = vmatmul.mubr.bf16.gmra.mrb[0].mxu0 %v997
  %v2313 = vpop.f32.mrb[0].mxu0
  %v2314 = vadd.f32 0.0, %v2313
  %v2315 = vpop.f32.mrb[0].mxu0
  %v2316 = vadd.f32 0.0, %v2315
  %v2317 = vpop.f32.mrb[0].mxu0
  %v2318 = vadd.f32 0.0, %v2317
  %v2319 = vpop.f32.mrb[0].mxu0
  %v2320 = vadd.f32 0.0, %v2319
  %2321 = vmatprep.mubr.bf16.mxu0 0
  %2322 = vmatmul.mubr.bf16.gmra.mrb[0].mxu0 %v998
  %v2323 = vpop.f32.mrb[0].mxu0
  %v2324 = vadd.f32 0.0, %v2323
  %v2325 = vpop.f32.mrb[0].mxu0
  %v2326 = vadd.f32 0.0, %v2325
  %v2327 = vpop.f32.mrb[0].mxu0
  %v2328 = vadd.f32 0.0, %v2327
  %v2329 = vpop.f32.mrb[0].mxu0
  %v2330 = vadd.f32 0.0, %v2329
  %2331 = vmatprep.mubr.bf16.mxu0 0
  %2332 = vmatmul.mubr.bf16.gmra.mrb[0].mxu0 %v999
  %v2333 = vpop.f32.mrb[0].mxu0
  %v2334 = vadd.f32 0.0, %v2333
  %v2335 = vpop.f32.mrb[0].mxu0
  %v2336 = vadd.f32 0.0, %v2335
  %v2337 = vpop.f32.mrb[0].mxu0
  %v2338 = vadd.f32 0.0, %v2337
  %v2339 = vpop.f32.mrb[0].mxu0
  %v2340 = vadd.f32 0.0, %v2339
  %2341 = vdwg.mxu0
  %v2342 = vadd.f32 %v2170, %v2314
  %v2343 = vadd.f32 %v2171, %v2316
  %v2344 = vadd.f32 %v2172, %v2318
  %v2345 = vadd.f32 %v2173, %v2320
  %v2346 = vadd.f32 %v2174, %v2324
  %v2347 = vadd.f32 %v2175, %v2326
  %v2348 = vadd.f32 %v2176, %v2328
  %v2349 = vadd.f32 %v2177, %v2330
  %v2350 = vadd.f32 %v2178, %v2334
  %v2351 = vadd.f32 %v2179, %v2336
  %v2352 = vadd.f32 %v2180, %v2338
  %v2353 = vadd.f32 %v2181, %v2340
  %s2354 = scalar_lea.vmem %s5, 1024
  %v2355 = vld [vmem:[%s2354] sm:$0xff]
  %v2356 = vld [vmem:[%s2354 + $0x8] sm:$0xff]
  %v2357 = vld [vmem:[%s2354 + $0x10] sm:$0xff]
  %v2358 = vld [vmem:[%s2354 + $0x18] sm:$0xff]
  %v2359 = vld [vmem:[%s2354 + $0x20] sm:$0xff]
  %v2360 = vld [vmem:[%s2354 + $0x28] sm:$0xff]
  %v2361 = vld [vmem:[%s2354 + $0x30] sm:$0xff]
  %v2362 = vld [vmem:[%s2354 + $0x38] sm:$0xff]
  %v2363 = vld [vmem:[%s2354 + $0x40] sm:$0xff]
  %v2364 = vld [vmem:[%s2354 + $0x48] sm:$0xff]
  %v2365 = vld [vmem:[%s2354 + $0x50] sm:$0xff]
  %v2366 = vld [vmem:[%s2354 + $0x58] sm:$0xff]
  %v2367 = vld [vmem:[%s2354 + $0x60] sm:$0xff]
  %v2368 = vld [vmem:[%s2354 + $0x68] sm:$0xff]
  %v2369 = vld [vmem:[%s2354 + $0x70] sm:$0xff]
  %v2370 = vld [vmem:[%s2354 + $0x78] sm:$0xff]
  %v2387 = vunpack.c.l.b16 %v2355
  %v2388 = vunpack.c.h.b16 %v2355
  %v2389 = vunpack.c.l.b16 %v2356
  %v2390 = vunpack.c.h.b16 %v2356
  %v2391 = vunpack.c.l.b16 %v2357
  %v2392 = vunpack.c.h.b16 %v2357
  %v2393 = vunpack.c.l.b16 %v2358
  %v2394 = vunpack.c.h.b16 %v2358
  %v2395 = vunpack.c.l.b16 %v2359
  %v2396 = vunpack.c.h.b16 %v2359
  %v2397 = vunpack.c.l.b16 %v2360
  %v2398 = vunpack.c.h.b16 %v2360
  %v2399 = vunpack.c.l.b16 %v2361
  %v2400 = vunpack.c.h.b16 %v2361
  %v2401 = vunpack.c.l.b16 %v2362
  %v2402 = vunpack.c.h.b16 %v2362
  %v2403 = vunpack.c.l.b16 %v2363
  %v2404 = vunpack.c.h.b16 %v2363
  %v2405 = vunpack.c.l.b16 %v2364
  %v2406 = vunpack.c.h.b16 %v2364
  %v2407 = vunpack.c.l.b16 %v2365
  %v2408 = vunpack.c.h.b16 %v2365
  %v2409 = vunpack.c.l.b16 %v2366
  %v2410 = vunpack.c.h.b16 %v2366
  %v2411 = vunpack.c.l.b16 %v2367
  %v2412 = vunpack.c.h.b16 %v2367
  %v2413 = vunpack.c.l.b16 %v2368
  %v2414 = vunpack.c.h.b16 %v2368
  %v2415 = vunpack.c.l.b16 %v2369
  %v2416 = vunpack.c.h.b16 %v2369
  %v2417 = vunpack.c.l.b16 %v2370
  %v2418 = vunpack.c.h.b16 %v2370
  %v2419 = vpack.c.b16 %v2389, %v2387
  %v2420 = vpack.c.b16 %v2390, %v2388
  %v2421 = vpack.c.b16 %v2393, %v2391
  %v2422 = vpack.c.b16 %v2394, %v2392
  %v2423 = vpack.c.b16 %v2397, %v2395
  %v2424 = vpack.c.b16 %v2398, %v2396
  %v2425 = vpack.c.b16 %v2401, %v2399
  %v2426 = vpack.c.b16 %v2402, %v2400
  %v2427 = vpack.c.b16 %v2405, %v2403
  %v2428 = vpack.c.b16 %v2406, %v2404
  %v2429 = vpack.c.b16 %v2409, %v2407
  %v2430 = vpack.c.b16 %v2410, %v2408
  %v2431 = vpack.c.b16 %v2413, %v2411
  %v2432 = vpack.c.b16 %v2414, %v2412
  %v2433 = vpack.c.b16 %v2417, %v2415
  %v2434 = vpack.c.b16 %v2418, %v2416
  %2451 = vmatprep.subr.bf16.mxu0 %v2420
  %2452 = vmatpush1.bf16.msra.mxu0 %v2419
  %2453 = vmatprep.subr.bf16.mxu0 %v2422
  %2454 = vmatpush1.bf16.msra.mxu0 %v2421
  %2455 = vmatprep.subr.bf16.mxu0 %v2424
  %2456 = vmatpush1.bf16.msra.mxu0 %v2423
  %2457 = vmatprep.subr.bf16.mxu0 %v2426
  %2458 = vmatpush1.bf16.msra.mxu0 %v2425
  %2459 = vmatprep.subr.bf16.mxu0 %v2428
  %2460 = vmatpush1.bf16.msra.mxu0 %v2427
  %2461 = vmatprep.subr.bf16.mxu0 %v2430
  %2462 = vmatpush1.bf16.msra.mxu0 %v2429
  %2463 = vmatprep.subr.bf16.mxu0 %v2432
  %2464 = vmatpush1.bf16.msra.mxu0 %v2431
  %2465 = vmatprep.subr.bf16.mxu0 %v2434
  %2466 = vmatpush1.bf16.msra.mxu0 %v2433
  %2467 = vmatprep.subr.bf16.mxu0 0
  %2468 = vmatpush1.bf16.msra.mxu0 0
  %2469 = vmatprep.subr.bf16.mxu0 0
  %2470 = vmatpush1.bf16.msra.mxu0 0
  %2471 = vmatprep.subr.bf16.mxu0 0
  %2472 = vmatpush1.bf16.msra.mxu0 0
  %2473 = vmatprep.subr.bf16.mxu0 0
  %2474 = vmatpush1.bf16.msra.mxu0 0
  %2475 = vmatprep.subr.bf16.mxu0 0
  %2476 = vmatpush1.bf16.msra.mxu0 0
  %2477 = vmatprep.subr.bf16.mxu0 0
  %2478 = vmatpush1.bf16.msra.mxu0 0
  %2479 = vmatprep.subr.bf16.mxu0 0
  %2480 = vmatpush1.bf16.msra.mxu0 0
  %2481 = vmatprep.subr.bf16.mxu0 0
  %2482 = vmatpush1.bf16.msra.mxu0 0
  %2483 = vmatprep.mubr.bf16.mxu0 0
  %2484 = vmatmul.mubr.bf16.gmra.mrb[0].mxu0 %v1000
  %v2485 = vpop.f32.mrb[0].mxu0
  %v2486 = vadd.f32 0.0, %v2485
  %v2487 = vpop.f32.mrb[0].mxu0
  %v2488 = vadd.f32 0.0, %v2487
  %v2489 = vpop.f32.mrb[0].mxu0
  %v2490 = vadd.f32 0.0, %v2489
  %v2491 = vpop.f32.mrb[0].mxu0
  %v2492 = vadd.f32 0.0, %v2491
  %2493 = vmatprep.mubr.bf16.mxu0 0
  %2494 = vmatmul.mubr.bf16.gmra.mrb[0].mxu0 %v1001
  %v2495 = vpop.f32.mrb[0].mxu0
  %v2496 = vadd.f32 0.0, %v2495
  %v2497 = vpop.f32.mrb[0].mxu0
  %v2498 = vadd.f32 0.0, %v2497
  %v2499 = vpop.f32.mrb[0].mxu0
  %v2500 = vadd.f32 0.0, %v2499
  %v2501 = vpop.f32.mrb[0].mxu0
  %v2502 = vadd.f32 0.0, %v2501
  %2503 = vmatprep.mubr.bf16.mxu0 0
  %2504 = vmatmul.mubr.bf16.gmra.mrb[0].mxu0 %v1002
  %v2505 = vpop.f32.mrb[0].mxu0
  %v2506 = vadd.f32 0.0, %v2505
  %v2507 = vpop.f32.mrb[0].mxu0
  %v2508 = vadd.f32 0.0, %v2507
  %v2509 = vpop.f32.mrb[0].mxu0
  %v2510 = vadd.f32 0.0, %v2509
  %v2511 = vpop.f32.mrb[0].mxu0
  %v2512 = vadd.f32 0.0, %v2511
  %2513 = vdwg.mxu0
  %v2514 = vadd.f32 %v2342, %v2486
  %v2515 = vadd.f32 %v2343, %v2488
  %v2516 = vadd.f32 %v2344, %v2490
  %v2517 = vadd.f32 %v2345, %v2492
  %v2518 = vadd.f32 %v2346, %v2496
  %v2519 = vadd.f32 %v2347, %v2498
  %v2520 = vadd.f32 %v2348, %v2500
  %v2521 = vadd.f32 %v2349, %v2502
  %v2522 = vadd.f32 %v2350, %v2506
  %v2523 = vadd.f32 %v2351, %v2508
  %v2524 = vadd.f32 %v2352, %v2510
  %v2525 = vadd.f32 %v2353, %v2512
  %v2526 = vld [vmem:[%s6] sm:$0x3]
  %v2528 = vlaneseq
  %v2529 = vshrl.u32 %v2528, 7
  %v2530 = vsub.s32 0, %v2529
  %v2531 = vrot.slane %v2526, %v2530
  %v2532 = vlaneseq
  %v2533 = vshrl.u32 %v2532, 7
  %v2534 = vsub.s32 1, %v2533
  %v2535 = vrot.slane %v2526, %v2534
  %v2538 = vadd.f32 %v2514, %v2531
  %v2539 = vadd.f32 %v2515, %v2535
  %v2540 = vadd.f32 %v2516, %v2531
  %v2541 = vadd.f32 %v2517, %v2535
  %v2542 = vadd.f32 %v2518, %v2531
  %v2543 = vadd.f32 %v2519, %v2535
  %v2544 = vadd.f32 %v2520, %v2531
  %v2545 = vadd.f32 %v2521, %v2535
  %v2546 = vadd.f32 %v2522, %v2531
  %v2547 = vadd.f32 %v2523, %v2535
  %v2548 = vadd.f32 %v2524, %v2531
  %v2549 = vadd.f32 %v2525, %v2535
  %v2550 = vmax.f32 %v2538, 0.0
  %v2551 = vmax.f32 %v2539, 0.0
  %v2552 = vmax.f32 %v2540, 0.0
  %v2553 = vmax.f32 %v2541, 0.0
  %v2554 = vmax.f32 %v2542, 0.0
  %v2555 = vmax.f32 %v2543, 0.0
  %v2556 = vmax.f32 %v2544, 0.0
  %v2557 = vmax.f32 %v2545, 0.0
  %v2558 = vmax.f32 %v2546, 0.0
  %v2559 = vmax.f32 %v2547, 0.0
  %v2560 = vmax.f32 %v2548, 0.0
  %v2561 = vmax.f32 %v2549, 0.0
  %v2562 = vpack.c.bf16 %v2552, %v2550
  %v2563 = vpack.c.bf16 %v2553, %v2551
  %v2564 = vpack.c.bf16 %v2556, %v2554
  %v2565 = vpack.c.bf16 %v2557, %v2555
  %v2566 = vpack.c.bf16 %v2560, %v2558
  %v2567 = vpack.c.bf16 %v2561, %v2559
  %v2568 = vld [vmem:[%s2] sm:$0xf]
  %v2569 = vld [vmem:[%s2 + $0x4] sm:$0xf]
  %v2570 = vld [vmem:[%s2 + $0x8] sm:$0xf]
  %v2571 = vld [vmem:[%s2 + $0xc] sm:$0xf]
  %v2572 = vld [vmem:[%s2 + $0x10] sm:$0xf]
  %v2573 = vld [vmem:[%s2 + $0x14] sm:$0xf]
  %v2574 = vld [vmem:[%s2 + $0x18] sm:$0xf]
  %v2575 = vld [vmem:[%s2 + $0x1c] sm:$0xf]
  %v2576 = vld [vmem:[%s2 + $0x20] sm:$0xf]
  %v2577 = vld [vmem:[%s2 + $0x24] sm:$0xf]
  %v2578 = vld [vmem:[%s2 + $0x28] sm:$0xf]
  %v2579 = vld [vmem:[%s2 + $0x2c] sm:$0xf]
  %v2580 = vld [vmem:[%s2 + $0x30] sm:$0xf]
  %v2581 = vld [vmem:[%s2 + $0x34] sm:$0xf]
  %v2582 = vld [vmem:[%s2 + $0x38] sm:$0xf]
  %v2583 = vld [vmem:[%s2 + $0x3c] sm:$0xf]
  %v2584 = vld [vmem:[%s2 + $0x40] sm:$0xf]
  %v2585 = vld [vmem:[%s2 + $0x44] sm:$0xf]
  %v2604 = vunpack.c.l.b16 %v2568
  %v2605 = vunpack.c.l.b16 %v2569
  %v2606 = vunpack.c.l.b16 %v2570
  %v2607 = vunpack.c.l.b16 %v2571
  %v2608 = vunpack.c.l.b16 %v2572
  %v2609 = vunpack.c.l.b16 %v2573
  %v2610 = vunpack.c.l.b16 %v2574
  %v2611 = vunpack.c.l.b16 %v2575
  %v2612 = vunpack.c.l.b16 %v2576
  %v2613 = vunpack.c.l.b16 %v2577
  %v2614 = vunpack.c.l.b16 %v2578
  %v2615 = vunpack.c.l.b16 %v2579
  %v2616 = vunpack.c.l.b16 %v2580
  %v2617 = vunpack.c.l.b16 %v2581
  %v2618 = vunpack.c.l.b16 %v2582
  %v2619 = vunpack.c.l.b16 %v2583
  %v2620 = vunpack.c.l.b16 %v2584
  %v2621 = vunpack.c.l.b16 %v2585
  %v2622 = vpack.c.b16 %v2605, %v2604
  %v2623 = vpack.c.b16 %v2607, %v2606
  %v2624 = vpack.c.b16 %v2609, %v2608
  %v2625 = vpack.c.b16 %v2611, %v2610
  %v2626 = vpack.c.b16 %v2613, %v2612
  %v2627 = vpack.c.b16 %v2615, %v2614
  %v2628 = vpack.c.b16 %v2617, %v2616
  %v2629 = vpack.c.b16 %v2619, %v2618
  %v2630 = vpack.c.b16 %v2621, %v2620
  %vm2631 = vcmask 392192
  %v2633 = vsel %vm2631, %v2622, 0
  %v2636 = vsel %vm2631, %v2623, 0
  %v2639 = vsel %vm2631, %v2624, 0
  %v2642 = vsel %vm2631, %v2625, 0
  %v2645 = vsel %vm2631, %v2626, 0
  %v2648 = vsel %vm2631, %v2627, 0
  %v2651 = vsel %vm2631, %v2628, 0
  %v2654 = vsel %vm2631, %v2629, 0
  %v2657 = vsel %vm2631, %v2630, 0
  %2659 = vmatprep.subr.bf16.mxu0 %v2563
  %2660 = vmatpush1.bf16.msra.mxu0 %v2562
  %2661 = vmatprep.subr.bf16.mxu0 %v2565
  %2662 = vmatpush1.bf16.msra.mxu0 %v2564
  %2663 = vmatprep.subr.bf16.mxu0 %v2567
  %2664 = vmatpush1.bf16.msra.mxu0 %v2566
  %2665 = vmatprep.subr.bf16.mxu0 0
  %2666 = vmatpush1.bf16.msra.mxu0 0
  %2667 = vmatprep.subr.bf16.mxu0 0
  %2668 = vmatpush1.bf16.msra.mxu0 0
  %2669 = vmatprep.subr.bf16.mxu0 0
  %2670 = vmatpush1.bf16.msra.mxu0 0
  %2671 = vmatprep.subr.bf16.mxu0 0
  %2672 = vmatpush1.bf16.msra.mxu0 0
  %2673 = vmatprep.subr.bf16.mxu0 0
  %2674 = vmatpush1.bf16.msra.mxu0 0
  %2675 = vmatprep.subr.bf16.mxu0 0
  %2676 = vmatpush1.bf16.msra.mxu0 0
  %2677 = vmatprep.subr.bf16.mxu0 0
  %2678 = vmatpush1.bf16.msra.mxu0 0
  %2679 = vmatprep.subr.bf16.mxu0 0
  %2680 = vmatpush1.bf16.msra.mxu0 0
  %2681 = vmatprep.subr.bf16.mxu0 0
  %2682 = vmatpush1.bf16.msra.mxu0 0
  %2683 = vmatprep.subr.bf16.mxu0 0
  %2684 = vmatpush1.bf16.msra.mxu0 0
  %2685 = vmatprep.subr.bf16.mxu0 0
  %2686 = vmatpush1.bf16.msra.mxu0 0
  %2687 = vmatprep.subr.bf16.mxu0 0
  %2688 = vmatpush1.bf16.msra.mxu0 0
  %2689 = vmatprep.subr.bf16.mxu0 0
  %2690 = vmatpush1.bf16.msra.mxu0 0
  %2691 = vmatprep.mubr.bf16.mxu0 0
  %2692 = vmatmul.mubr.bf16.gmra.mrb[0].mxu0 %v2633
  %v2693 = vpop.f32.mrb[0].mxu0
  %v2694 = vadd.f32 0.0, %v2693
  %v2695 = vpop.f32.mrb[0].mxu0
  %v2696 = vadd.f32 0.0, %v2695
  %v2697 = vpop.f32.mrb[0].mxu0
  %v2698 = vadd.f32 0.0, %v2697
  %v2699 = vpop.f32.mrb[0].mxu0
  %v2700 = vadd.f32 0.0, %v2699
  %2701 = vmatprep.mubr.bf16.mxu0 0
  %2702 = vmatmul.mubr.bf16.gmra.mrb[0].mxu0 %v2636
  %v2703 = vpop.f32.mrb[0].mxu0
  %v2704 = vadd.f32 0.0, %v2703
  %v2705 = vpop.f32.mrb[0].mxu0
  %v2706 = vadd.f32 0.0, %v2705
  %v2707 = vpop.f32.mrb[0].mxu0
  %v2708 = vadd.f32 0.0, %v2707
  %v2709 = vpop.f32.mrb[0].mxu0
  %v2710 = vadd.f32 0.0, %v2709
  %2711 = vmatprep.mubr.bf16.mxu0 0
  %2712 = vmatmul.mubr.bf16.gmra.mrb[0].mxu0 %v2639
  %v2713 = vpop.f32.mrb[0].mxu0
  %v2714 = vadd.f32 0.0, %v2713
  %v2715 = vpop.f32.mrb[0].mxu0
  %v2716 = vadd.f32 0.0, %v2715
  %v2717 = vpop.f32.mrb[0].mxu0
  %v2718 = vadd.f32 0.0, %v2717
  %v2719 = vpop.f32.mrb[0].mxu0
  %v2720 = vadd.f32 0.0, %v2719
  %2721 = vmatprep.mubr.bf16.mxu0 0
  %2722 = vmatmul.mubr.bf16.gmra.mrb[0].mxu0 %v2642
  %v2723 = vpop.f32.mrb[0].mxu0
  %v2724 = vadd.f32 0.0, %v2723
  %v2725 = vpop.f32.mrb[0].mxu0
  %v2726 = vadd.f32 0.0, %v2725
  %v2727 = vpop.f32.mrb[0].mxu0
  %v2728 = vadd.f32 0.0, %v2727
  %v2729 = vpop.f32.mrb[0].mxu0
  %v2730 = vadd.f32 0.0, %v2729
  %2731 = vmatprep.mubr.bf16.mxu0 0
  %2732 = vmatmul.mubr.bf16.gmra.mrb[0].mxu0 %v2645
  %v2733 = vpop.f32.mrb[0].mxu0
  %v2734 = vadd.f32 0.0, %v2733
  %v2735 = vpop.f32.mrb[0].mxu0
  %v2736 = vadd.f32 0.0, %v2735
  %v2737 = vpop.f32.mrb[0].mxu0
  %v2738 = vadd.f32 0.0, %v2737
  %v2739 = vpop.f32.mrb[0].mxu0
  %v2740 = vadd.f32 0.0, %v2739
  %2741 = vmatprep.mubr.bf16.mxu0 0
  %2742 = vmatmul.mubr.bf16.gmra.mrb[0].mxu0 %v2648
  %v2743 = vpop.f32.mrb[0].mxu0
  %v2744 = vadd.f32 0.0, %v2743
  %v2745 = vpop.f32.mrb[0].mxu0
  %v2746 = vadd.f32 0.0, %v2745
  %v2747 = vpop.f32.mrb[0].mxu0
  %v2748 = vadd.f32 0.0, %v2747
  %v2749 = vpop.f32.mrb[0].mxu0
  %v2750 = vadd.f32 0.0, %v2749
  %2751 = vmatprep.mubr.bf16.mxu0 0
  %2752 = vmatmul.mubr.bf16.gmra.mrb[0].mxu0 %v2651
  %v2753 = vpop.f32.mrb[0].mxu0
  %v2754 = vadd.f32 0.0, %v2753
  %v2755 = vpop.f32.mrb[0].mxu0
  %v2756 = vadd.f32 0.0, %v2755
  %v2757 = vpop.f32.mrb[0].mxu0
  %v2758 = vadd.f32 0.0, %v2757
  %v2759 = vpop.f32.mrb[0].mxu0
  %v2760 = vadd.f32 0.0, %v2759
  %2761 = vmatprep.mubr.bf16.mxu0 0
  %2762 = vmatmul.mubr.bf16.gmra.mrb[0].mxu0 %v2654
  %v2763 = vpop.f32.mrb[0].mxu0
  %v2764 = vadd.f32 0.0, %v2763
  %v2765 = vpop.f32.mrb[0].mxu0
  %v2766 = vadd.f32 0.0, %v2765
  %v2767 = vpop.f32.mrb[0].mxu0
  %v2768 = vadd.f32 0.0, %v2767
  %v2769 = vpop.f32.mrb[0].mxu0
  %v2770 = vadd.f32 0.0, %v2769
  %2771 = vmatprep.mubr.bf16.mxu0 0
  %2772 = vmatmul.mubr.bf16.gmra.mrb[0].mxu0 %v2657
  %v2773 = vpop.f32.mrb[0].mxu0
  %v2774 = vadd.f32 0.0, %v2773
  %v2775 = vpop.f32.mrb[0].mxu0
  %v2776 = vadd.f32 0.0, %v2775
  %v2777 = vpop.f32.mrb[0].mxu0
  %v2778 = vadd.f32 0.0, %v2777
  %v2779 = vpop.f32.mrb[0].mxu0
  %v2780 = vadd.f32 0.0, %v2779
  %2781 = vdwg.mxu0
  %v2782 = vpack.c.bf16 %v2698, %v2694
  %v2783 = vpack.c.bf16 %v2700, %v2696
  %v2784 = vpack.c.bf16 %v2708, %v2704
  %v2785 = vpack.c.bf16 %v2710, %v2706
  %v2786 = vpack.c.bf16 %v2718, %v2714
  %v2787 = vpack.c.bf16 %v2720, %v2716
  %v2788 = vpack.c.bf16 %v2728, %v2724
  %v2789 = vpack.c.bf16 %v2730, %v2726
  %v2790 = vpack.c.bf16 %v2738, %v2734
  %v2791 = vpack.c.bf16 %v2740, %v2736
  %v2792 = vpack.c.bf16 %v2748, %v2744
  %v2793 = vpack.c.bf16 %v2750, %v2746
  %v2794 = vpack.c.bf16 %v2758, %v2754
  %v2795 = vpack.c.bf16 %v2760, %v2756
  %v2796 = vpack.c.bf16 %v2768, %v2764
  %v2797 = vpack.c.bf16 %v2770, %v2766
  %v2798 = vpack.c.bf16 %v2778, %v2774
  %v2799 = vpack.c.bf16 %v2780, %v2776
  %v2800 = vld [vmem:[%s7] sm:$0xff]
  %v2801 = vld [vmem:[%s7 + $0x8] sm:$0xff]
  %v2802 = vld [vmem:[%s7 + $0x10] sm:$0xff]
  %v2803 = vld [vmem:[%s7 + $0x18] sm:$0xff]
  %v2804 = vld [vmem:[%s7 + $0x20] sm:$0xff]
  %v2805 = vld [vmem:[%s7 + $0x28] sm:$0xff]
  %v2806 = vld [vmem:[%s7 + $0x30] sm:$0xff]
  %v2807 = vld [vmem:[%s7 + $0x38] sm:$0xff]
  %v2808 = vld [vmem:[%s7 + $0x40] sm:$0xff]
  %v2809 = vld [vmem:[%s7 + $0x48] sm:$0xff]
  %v2810 = vld [vmem:[%s7 + $0x50] sm:$0xff]
  %v2811 = vld [vmem:[%s7 + $0x58] sm:$0xff]
  %v2812 = vld [vmem:[%s7 + $0x60] sm:$0xff]
  %v2813 = vld [vmem:[%s7 + $0x68] sm:$0xff]
  %v2814 = vld [vmem:[%s7 + $0x70] sm:$0xff]
  %v2815 = vld [vmem:[%s7 + $0x78] sm:$0xff]
  %v2816 = vld [vmem:[%s7 + $0x80] sm:$0xff]
  %v2817 = vld [vmem:[%s7 + $0x88] sm:$0xff]
  %v2818 = vld [vmem:[%s7 + $0x90] sm:$0xff]
  %v2819 = vld [vmem:[%s7 + $0x98] sm:$0xff]
  %v2820 = vld [vmem:[%s7 + $0xa0] sm:$0xff]
  %v2821 = vld [vmem:[%s7 + $0xa8] sm:$0xff]
  %v2822 = vld [vmem:[%s7 + $0xb0] sm:$0xff]
  %v2823 = vld [vmem:[%s7 + $0xb8] sm:$0xff]
  %v2824 = vld [vmem:[%s7 + $0xc0] sm:$0xff]
  %v2825 = vld [vmem:[%s7 + $0xc8] sm:$0xff]
  %v2826 = vld [vmem:[%s7 + $0xd0] sm:$0xff]
  %v2827 = vld [vmem:[%s7 + $0xd8] sm:$0xff]
  %v2828 = vld [vmem:[%s7 + $0xe0] sm:$0xff]
  %v2829 = vld [vmem:[%s7 + $0xe8] sm:$0xff]
  %v2830 = vld [vmem:[%s7 + $0xf0] sm:$0xff]
  %v2831 = vld [vmem:[%s7 + $0xf8] sm:$0xff]
  %v2832 = vld [vmem:[%s7 + $0x100] sm:$0xff]
  %v2833 = vld [vmem:[%s7 + $0x108] sm:$0xff]
  %v2834 = vld [vmem:[%s7 + $0x110] sm:$0xff]
  %v2835 = vld [vmem:[%s7 + $0x118] sm:$0xff]
  %v2836 = vld [vmem:[%s7 + $0x120] sm:$0xff]
  %v2837 = vld [vmem:[%s7 + $0x128] sm:$0xff]
  %v2838 = vld [vmem:[%s7 + $0x130] sm:$0xff]
  %v2839 = vld [vmem:[%s7 + $0x138] sm:$0xff]
  %v2840 = vld [vmem:[%s7 + $0x140] sm:$0xff]
  %v2841 = vld [vmem:[%s7 + $0x148] sm:$0xff]
  %v2842 = vld [vmem:[%s7 + $0x150] sm:$0xff]
  %v2843 = vld [vmem:[%s7 + $0x158] sm:$0xff]
  %v2844 = vld [vmem:[%s7 + $0x160] sm:$0xff]
  %v2845 = vld [vmem:[%s7 + $0x168] sm:$0xff]
  %v2846 = vld [vmem:[%s7 + $0x170] sm:$0xff]
  %v2847 = vld [vmem:[%s7 + $0x178] sm:$0xff]
  %v2848 = vld [vmem:[%s7 + $0x180] sm:$0xff]
  %v2849 = vld [vmem:[%s7 + $0x188] sm:$0xff]
  %v2850 = vld [vmem:[%s7 + $0x190] sm:$0xff]
  %v2851 = vld [vmem:[%s7 + $0x198] sm:$0xff]
  %v2852 = vld [vmem:[%s7 + $0x1a0] sm:$0xff]
  %v2853 = vld [vmem:[%s7 + $0x1a8] sm:$0xff]
  %v2854 = vld [vmem:[%s7 + $0x1b0] sm:$0xff]
  %v2855 = vld [vmem:[%s7 + $0x1b8] sm:$0xff]
  %v2856 = vld [vmem:[%s7 + $0x1c0] sm:$0xff]
  %v2857 = vld [vmem:[%s7 + $0x1c8] sm:$0xff]
  %v2858 = vld [vmem:[%s7 + $0x1d0] sm:$0xff]
  %v2859 = vld [vmem:[%s7 + $0x1d8] sm:$0xff]
  %v2860 = vld [vmem:[%s7 + $0x1e0] sm:$0xff]
  %v2861 = vld [vmem:[%s7 + $0x1e8] sm:$0xff]
  %v2862 = vld [vmem:[%s7 + $0x1f0] sm:$0xff]
  %v2863 = vld [vmem:[%s7 + $0x1f8] sm:$0xff]
  %s2864 = scalar_lea.vmem %s7, 512
  %v2865 = vld [vmem:[%s2864] sm:$0xff]
  %v2866 = vld [vmem:[%s2864 + $0x8] sm:$0xff]
  %v2867 = vld [vmem:[%s2864 + $0x10] sm:$0xff]
  %v2868 = vld [vmem:[%s2864 + $0x18] sm:$0xff]
  %v2869 = vld [vmem:[%s2864 + $0x20] sm:$0xff]
  %v2870 = vld [vmem:[%s2864 + $0x28] sm:$0xff]
  %v2871 = vld [vmem:[%s2864 + $0x30] sm:$0xff]
  %v2872 = vld [vmem:[%s2864 + $0x38] sm:$0xff]
  %v2873 = vld [vmem:[%s2864 + $0x40] sm:$0xff]
  %v2874 = vld [vmem:[%s2864 + $0x48] sm:$0xff]
  %v2875 = vld [vmem:[%s2864 + $0x50] sm:$0xff]
  %v2876 = vld [vmem:[%s2864 + $0x58] sm:$0xff]
  %v2877 = vld [vmem:[%s2864 + $0x60] sm:$0xff]
  %v2878 = vld [vmem:[%s2864 + $0x68] sm:$0xff]
  %v2879 = vld [vmem:[%s2864 + $0x70] sm:$0xff]
  %v2880 = vld [vmem:[%s2864 + $0x78] sm:$0xff]
  %v2881 = vld [vmem:[%s2864 + $0x80] sm:$0xff]
  %v2882 = vld [vmem:[%s2864 + $0x88] sm:$0xff]
  %v2883 = vld [vmem:[%s2864 + $0x90] sm:$0xff]
  %v2884 = vld [vmem:[%s2864 + $0x98] sm:$0xff]
  %v2885 = vld [vmem:[%s2864 + $0xa0] sm:$0xff]
  %v2886 = vld [vmem:[%s2864 + $0xa8] sm:$0xff]
  %v2887 = vld [vmem:[%s2864 + $0xb0] sm:$0xff]
  %v2888 = vld [vmem:[%s2864 + $0xb8] sm:$0xff]
  %v2889 = vld [vmem:[%s2864 + $0xc0] sm:$0xff]
  %v2890 = vld [vmem:[%s2864 + $0xc8] sm:$0xff]
  %v2891 = vld [vmem:[%s2864 + $0xd0] sm:$0xff]
  %v2892 = vld [vmem:[%s2864 + $0xd8] sm:$0xff]
  %v2893 = vld [vmem:[%s2864 + $0xe0] sm:$0xff]
  %v2894 = vld [vmem:[%s2864 + $0xe8] sm:$0xff]
  %v2895 = vld [vmem:[%s2864 + $0xf0] sm:$0xff]
  %v2896 = vld [vmem:[%s2864 + $0xf8] sm:$0xff]
  %v2897 = vld [vmem:[%s2864 + $0x100] sm:$0xff]
  %v2898 = vld [vmem:[%s2864 + $0x108] sm:$0xff]
  %v2899 = vld [vmem:[%s2864 + $0x110] sm:$0xff]
  %v2900 = vld [vmem:[%s2864 + $0x118] sm:$0xff]
  %v2901 = vld [vmem:[%s2864 + $0x120] sm:$0xff]
  %v2902 = vld [vmem:[%s2864 + $0x128] sm:$0xff]
  %v2903 = vld [vmem:[%s2864 + $0x130] sm:$0xff]
  %v2904 = vld [vmem:[%s2864 + $0x138] sm:$0xff]
  %v2905 = vld [vmem:[%s2864 + $0x140] sm:$0xff]
  %v2906 = vld [vmem:[%s2864 + $0x148] sm:$0xff]
  %v2907 = vld [vmem:[%s2864 + $0x150] sm:$0xff]
  %v2908 = vld [vmem:[%s2864 + $0x158] sm:$0xff]
  %v2909 = vld [vmem:[%s2864 + $0x160] sm:$0xff]
  %v2910 = vld [vmem:[%s2864 + $0x168] sm:$0xff]
  %v2911 = vld [vmem:[%s2864 + $0x170] sm:$0xff]
  %v2912 = vld [vmem:[%s2864 + $0x178] sm:$0xff]
  %v2913 = vld [vmem:[%s2864 + $0x180] sm:$0xff]
  %v2914 = vld [vmem:[%s2864 + $0x188] sm:$0xff]
  %v2915 = vld [vmem:[%s2864 + $0x190] sm:$0xff]
  %v2916 = vld [vmem:[%s2864 + $0x198] sm:$0xff]
  %v2917 = vld [vmem:[%s2864 + $0x1a0] sm:$0xff]
  %v2918 = vld [vmem:[%s2864 + $0x1a8] sm:$0xff]
  %v2919 = vld [vmem:[%s2864 + $0x1b0] sm:$0xff]
  %v2920 = vld [vmem:[%s2864 + $0x1b8] sm:$0xff]
  %v2921 = vld [vmem:[%s2864 + $0x1c0] sm:$0xff]
  %v2922 = vld [vmem:[%s2864 + $0x1c8] sm:$0xff]
  %v2923 = vld [vmem:[%s2864 + $0x1d0] sm:$0xff]
  %v2924 = vld [vmem:[%s2864 + $0x1d8] sm:$0xff]
  %v2925 = vld [vmem:[%s2864 + $0x1e0] sm:$0xff]
  %v2926 = vld [vmem:[%s2864 + $0x1e8] sm:$0xff]
  %v2927 = vld [vmem:[%s2864 + $0x1f0] sm:$0xff]
  %v2928 = vld [vmem:[%s2864 + $0x1f8] sm:$0xff]
  %v2993 = vunpack.c.l.b16 %v2865
  %v2994 = vunpack.c.h.b16 %v2865
  %v2995 = vunpack.c.l.b16 %v2866
  %v2996 = vunpack.c.h.b16 %v2866
  %v2997 = vunpack.c.l.b16 %v2867
  %v2998 = vunpack.c.h.b16 %v2867
  %v2999 = vunpack.c.l.b16 %v2868
  %v3000 = vunpack.c.h.b16 %v2868
  %v3001 = vunpack.c.l.b16 %v2869
  %v3002 = vunpack.c.h.b16 %v2869
  %v3003 = vunpack.c.l.b16 %v2870
  %v3004 = vunpack.c.h.b16 %v2870
  %v3005 = vunpack.c.l.b16 %v2871
  %v3006 = vunpack.c.h.b16 %v2871
  %v3007 = vunpack.c.l.b16 %v2872
  %v3008 = vunpack.c.h.b16 %v2872
  %v3009 = vunpack.c.l.b16 %v2873
  %v3010 = vunpack.c.h.b16 %v2873
  %v3011 = vunpack.c.l.b16 %v2874
  %v3012 = vunpack.c.h.b16 %v2874
  %v3013 = vunpack.c.l.b16 %v2875
  %v3014 = vunpack.c.h.b16 %v2875
  %v3015 = vunpack.c.l.b16 %v2876
  %v3016 = vunpack.c.h.b16 %v2876
  %v3017 = vunpack.c.l.b16 %v2877
  %v3018 = vunpack.c.h.b16 %v2877
  %v3019 = vunpack.c.l.b16 %v2878
  %v3020 = vunpack.c.h.b16 %v2878
  %v3021 = vunpack.c.l.b16 %v2879
  %v3022 = vunpack.c.h.b16 %v2879
  %v3023 = vunpack.c.l.b16 %v2880
  %v3024 = vunpack.c.h.b16 %v2880
  %v3025 = vunpack.c.l.b16 %v2881
  %v3026 = vunpack.c.h.b16 %v2881
  %v3027 = vunpack.c.l.b16 %v2882
  %v3028 = vunpack.c.h.b16 %v2882
  %v3029 = vunpack.c.l.b16 %v2883
  %v3030 = vunpack.c.h.b16 %v2883
  %v3031 = vunpack.c.l.b16 %v2884
  %v3032 = vunpack.c.h.b16 %v2884
  %v3033 = vunpack.c.l.b16 %v2885
  %v3034 = vunpack.c.h.b16 %v2885
  %v3035 = vunpack.c.l.b16 %v2886
  %v3036 = vunpack.c.h.b16 %v2886
  %v3037 = vunpack.c.l.b16 %v2887
  %v3038 = vunpack.c.h.b16 %v2887
  %v3039 = vunpack.c.l.b16 %v2888
  %v3040 = vunpack.c.h.b16 %v2888
  %v3041 = vunpack.c.l.b16 %v2889
  %v3042 = vunpack.c.h.b16 %v2889
  %v3043 = vunpack.c.l.b16 %v2890
  %v3044 = vunpack.c.h.b16 %v2890
  %v3045 = vunpack.c.l.b16 %v2891
  %v3046 = vunpack.c.h.b16 %v2891
  %v3047 = vunpack.c.l.b16 %v2892
  %v3048 = vunpack.c.h.b16 %v2892
  %v3049 = vunpack.c.l.b16 %v2893
  %v3050 = vunpack.c.h.b16 %v2893
  %v3051 = vunpack.c.l.b16 %v2894
  %v3052 = vunpack.c.h.b16 %v2894
  %v3053 = vunpack.c.l.b16 %v2895
  %v3054 = vunpack.c.h.b16 %v2895
  %v3055 = vunpack.c.l.b16 %v2896
  %v3056 = vunpack.c.h.b16 %v2896
  %v3057 = vunpack.c.l.b16 %v2897
  %v3058 = vunpack.c.h.b16 %v2897
  %v3059 = vunpack.c.l.b16 %v2898
  %v3060 = vunpack.c.h.b16 %v2898
  %v3061 = vunpack.c.l.b16 %v2899
  %v3062 = vunpack.c.h.b16 %v2899
  %v3063 = vunpack.c.l.b16 %v2900
  %v3064 = vunpack.c.h.b16 %v2900
  %v3065 = vunpack.c.l.b16 %v2901
  %v3066 = vunpack.c.h.b16 %v2901
  %v3067 = vunpack.c.l.b16 %v2902
  %v3068 = vunpack.c.h.b16 %v2902
  %v3069 = vunpack.c.l.b16 %v2903
  %v3070 = vunpack.c.h.b16 %v2903
  %v3071 = vunpack.c.l.b16 %v2904
  %v3072 = vunpack.c.h.b16 %v2904
  %v3073 = vunpack.c.l.b16 %v2905
  %v3074 = vunpack.c.h.b16 %v2905
  %v3075 = vunpack.c.l.b16 %v2906
  %v3076 = vunpack.c.h.b16 %v2906
  %v3077 = vunpack.c.l.b16 %v2907
  %v3078 = vunpack.c.h.b16 %v2907
  %v3079 = vunpack.c.l.b16 %v2908
  %v3080 = vunpack.c.h.b16 %v2908
  %v3081 = vunpack.c.l.b16 %v2909
  %v3082 = vunpack.c.h.b16 %v2909
  %v3083 = vunpack.c.l.b16 %v2910
  %v3084 = vunpack.c.h.b16 %v2910
  %v3085 = vunpack.c.l.b16 %v2911
  %v3086 = vunpack.c.h.b16 %v2911
  %v3087 = vunpack.c.l.b16 %v2912
  %v3088 = vunpack.c.h.b16 %v2912
  %v3089 = vunpack.c.l.b16 %v2913
  %v3090 = vunpack.c.h.b16 %v2913
  %v3091 = vunpack.c.l.b16 %v2914
  %v3092 = vunpack.c.h.b16 %v2914
  %v3093 = vunpack.c.l.b16 %v2915
  %v3094 = vunpack.c.h.b16 %v2915
  %v3095 = vunpack.c.l.b16 %v2916
  %v3096 = vunpack.c.h.b16 %v2916
  %v3097 = vunpack.c.l.b16 %v2917
  %v3098 = vunpack.c.h.b16 %v2917
  %v3099 = vunpack.c.l.b16 %v2918
  %v3100 = vunpack.c.h.b16 %v2918
  %v3101 = vunpack.c.l.b16 %v2919
  %v3102 = vunpack.c.h.b16 %v2919
  %v3103 = vunpack.c.l.b16 %v2920
  %v3104 = vunpack.c.h.b16 %v2920
  %v3105 = vunpack.c.l.b16 %v2921
  %v3106 = vunpack.c.h.b16 %v2921
  %v3107 = vunpack.c.l.b16 %v2922
  %v3108 = vunpack.c.h.b16 %v2922
  %v3109 = vunpack.c.l.b16 %v2923
  %v3110 = vunpack.c.h.b16 %v2923
  %v3111 = vunpack.c.l.b16 %v2924
  %v3112 = vunpack.c.h.b16 %v2924
  %v3113 = vunpack.c.l.b16 %v2925
  %v3114 = vunpack.c.h.b16 %v2925
  %v3115 = vunpack.c.l.b16 %v2926
  %v3116 = vunpack.c.h.b16 %v2926
  %v3117 = vunpack.c.l.b16 %v2927
  %v3118 = vunpack.c.h.b16 %v2927
  %v3119 = vunpack.c.l.b16 %v2928
  %v3120 = vunpack.c.h.b16 %v2928
  %v3121 = vpack.c.b16 %v2997, %v2993
  %v3122 = vpack.c.b16 %v2998, %v2994
  %v3123 = vpack.c.b16 %v2999, %v2995
  %v3124 = vpack.c.b16 %v3000, %v2996
  %v3125 = vpack.c.b16 %v3005, %v3001
  %v3126 = vpack.c.b16 %v3006, %v3002
  %v3127 = vpack.c.b16 %v3007, %v3003
  %v3128 = vpack.c.b16 %v3008, %v3004
  %v3129 = vpack.c.b16 %v3013, %v3009
  %v3130 = vpack.c.b16 %v3014, %v3010
  %v3131 = vpack.c.b16 %v3015, %v3011
  %v3132 = vpack.c.b16 %v3016, %v3012
  %v3133 = vpack.c.b16 %v3021, %v3017
  %v3134 = vpack.c.b16 %v3022, %v3018
  %v3135 = vpack.c.b16 %v3023, %v3019
  %v3136 = vpack.c.b16 %v3024, %v3020
  %v3137 = vpack.c.b16 %v3029, %v3025
  %v3138 = vpack.c.b16 %v3030, %v3026
  %v3139 = vpack.c.b16 %v3031, %v3027
  %v3140 = vpack.c.b16 %v3032, %v3028
  %v3141 = vpack.c.b16 %v3037, %v3033
  %v3142 = vpack.c.b16 %v3038, %v3034
  %v3143 = vpack.c.b16 %v3039, %v3035
  %v3144 = vpack.c.b16 %v3040, %v3036
  %v3145 = vpack.c.b16 %v3045, %v3041
  %v3146 = vpack.c.b16 %v3046, %v3042
  %v3147 = vpack.c.b16 %v3047, %v3043
  %v3148 = vpack.c.b16 %v3048, %v3044
  %v3149 = vpack.c.b16 %v3053, %v3049
  %v3150 = vpack.c.b16 %v3054, %v3050
  %v3151 = vpack.c.b16 %v3055, %v3051
  %v3152 = vpack.c.b16 %v3056, %v3052
  %v3153 = vpack.c.b16 %v3061, %v3057
  %v3154 = vpack.c.b16 %v3062, %v3058
  %v3155 = vpack.c.b16 %v3063, %v3059
  %v3156 = vpack.c.b16 %v3064, %v3060
  %v3157 = vpack.c.b16 %v3069, %v3065
  %v3158 = vpack.c.b16 %v3070, %v3066
  %v3159 = vpack.c.b16 %v3071, %v3067
  %v3160 = vpack.c.b16 %v3072, %v3068
  %v3161 = vpack.c.b16 %v3077, %v3073
  %v3162 = vpack.c.b16 %v3078, %v3074
  %v3163 = vpack.c.b16 %v3079, %v3075
  %v3164 = vpack.c.b16 %v3080, %v3076
  %v3165 = vpack.c.b16 %v3085, %v3081
  %v3166 = vpack.c.b16 %v3086, %v3082
  %v3167 = vpack.c.b16 %v3087, %v3083
  %v3168 = vpack.c.b16 %v3088, %v3084
  %v3169 = vpack.c.b16 %v3093, %v3089
  %v3170 = vpack.c.b16 %v3094, %v3090
  %v3171 = vpack.c.b16 %v3095, %v3091
  %v3172 = vpack.c.b16 %v3096, %v3092
  %v3173 = vpack.c.b16 %v3101, %v3097
  %v3174 = vpack.c.b16 %v3102, %v3098
  %v3175 = vpack.c.b16 %v3103, %v3099
  %v3176 = vpack.c.b16 %v3104, %v3100
  %v3177 = vpack.c.b16 %v3109, %v3105
  %v3178 = vpack.c.b16 %v3110, %v3106
  %v3179 = vpack.c.b16 %v3111, %v3107
  %v3180 = vpack.c.b16 %v3112, %v3108
  %v3181 = vpack.c.b16 %v3117, %v3113
  %v3182 = vpack.c.b16 %v3118, %v3114
  %v3183 = vpack.c.b16 %v3119, %v3115
  %v3184 = vpack.c.b16 %v3120, %v3116
  %3249 = vmatprep.subr.bf16.mxu0 %v3122
  %3250 = vmatpush1.bf16.msra.mxu0 %v3121
  %3251 = vmatprep.subr.bf16.mxu0 %v3126
  %3252 = vmatpush1.bf16.msra.mxu0 %v3125
  %3253 = vmatprep.subr.bf16.mxu0 %v3130
  %3254 = vmatpush1.bf16.msra.mxu0 %v3129
  %3255 = vmatprep.subr.bf16.mxu0 %v3134
  %3256 = vmatpush1.bf16.msra.mxu0 %v3133
  %3257 = vmatprep.subr.bf16.mxu0 %v3138
  %3258 = vmatpush1.bf16.msra.mxu0 %v3137
  %3259 = vmatprep.subr.bf16.mxu0 %v3142
  %3260 = vmatpush1.bf16.msra.mxu0 %v3141
  %3261 = vmatprep.subr.bf16.mxu0 %v3146
  %3262 = vmatpush1.bf16.msra.mxu0 %v3145
  %3263 = vmatprep.subr.bf16.mxu0 %v3150
  %3264 = vmatpush1.bf16.msra.mxu0 %v3149
  %3265 = vmatprep.subr.bf16.mxu0 %v3154
  %3266 = vmatpush1.bf16.msra.mxu0 %v3153
  %3267 = vmatprep.subr.bf16.mxu0 %v3158
  %3268 = vmatpush1.bf16.msra.mxu0 %v3157
  %3269 = vmatprep.subr.bf16.mxu0 %v3162
  %3270 = vmatpush1.bf16.msra.mxu0 %v3161
  %3271 = vmatprep.subr.bf16.mxu0 %v3166
  %3272 = vmatpush1.bf16.msra.mxu0 %v3165
  %3273 = vmatprep.subr.bf16.mxu0 %v3170
  %3274 = vmatpush1.bf16.msra.mxu0 %v3169
  %3275 = vmatprep.subr.bf16.mxu0 %v3174
  %3276 = vmatpush1.bf16.msra.mxu0 %v3173
  %3277 = vmatprep.subr.bf16.mxu0 %v3178
  %3278 = vmatpush1.bf16.msra.mxu0 %v3177
  %3279 = vmatprep.subr.bf16.mxu0 %v3182
  %3280 = vmatpush1.bf16.msra.mxu0 %v3181
  %3281 = vmatprep.mubr.bf16.mxu0 %v2785
  %3282 = vmatmul.mubr.bf16.gmra.mrb[0].mxu0 %v2784
  %v3283 = vpop.f32.mrb[0].mxu0
  %v3284 = vadd.f32 0.0, %v3283
  %v3285 = vpop.f32.mrb[0].mxu0
  %v3286 = vadd.f32 0.0, %v3285
  %v3287 = vpop.f32.mrb[0].mxu0
  %v3288 = vadd.f32 0.0, %v3287
  %v3289 = vpop.f32.mrb[0].mxu0
  %v3290 = vadd.f32 0.0, %v3289
  %3291 = vdwg.mxu0
  %3292 = vmatprep.subr.bf16.mxu0 %v3124
  %3293 = vmatpush1.bf16.msra.mxu0 %v3123
  %3294 = vmatprep.subr.bf16.mxu0 %v3128
  %3295 = vmatpush1.bf16.msra.mxu0 %v3127
  %3296 = vmatprep.subr.bf16.mxu0 %v3132
  %3297 = vmatpush1.bf16.msra.mxu0 %v3131
  %3298 = vmatprep.subr.bf16.mxu0 %v3136
  %3299 = vmatpush1.bf16.msra.mxu0 %v3135
  %3300 = vmatprep.subr.bf16.mxu0 %v3140
  %3301 = vmatpush1.bf16.msra.mxu0 %v3139
  %3302 = vmatprep.subr.bf16.mxu0 %v3144
  %3303 = vmatpush1.bf16.msra.mxu0 %v3143
  %3304 = vmatprep.subr.bf16.mxu0 %v3148
  %3305 = vmatpush1.bf16.msra.mxu0 %v3147
  %3306 = vmatprep.subr.bf16.mxu0 %v3152
  %3307 = vmatpush1.bf16.msra.mxu0 %v3151
  %3308 = vmatprep.subr.bf16.mxu0 %v3156
  %3309 = vmatpush1.bf16.msra.mxu0 %v3155
  %3310 = vmatprep.subr.bf16.mxu0 %v3160
  %3311 = vmatpush1.bf16.msra.mxu0 %v3159
  %3312 = vmatprep.subr.bf16.mxu0 %v3164
  %3313 = vmatpush1.bf16.msra.mxu0 %v3163
  %3314 = vmatprep.subr.bf16.mxu0 %v3168
  %3315 = vmatpush1.bf16.msra.mxu0 %v3167
  %3316 = vmatprep.subr.bf16.mxu0 %v3172
  %3317 = vmatpush1.bf16.msra.mxu0 %v3171
  %3318 = vmatprep.subr.bf16.mxu0 %v3176
  %3319 = vmatpush1.bf16.msra.mxu0 %v3175
  %3320 = vmatprep.subr.bf16.mxu0 %v3180
  %3321 = vmatpush1.bf16.msra.mxu0 %v3179
  %3322 = vmatprep.subr.bf16.mxu0 %v3184
  %3323 = vmatpush1.bf16.msra.mxu0 %v3183
  %3324 = vmatprep.mubr.bf16.mxu0 %v2785
  %3325 = vmatmul.mubr.bf16.gmra.mrb[0].mxu0 %v2784
  %v3326 = vpop.f32.mrb[0].mxu0
  %v3327 = vadd.f32 0.0, %v3326
  %v3328 = vpop.f32.mrb[0].mxu0
  %v3329 = vadd.f32 0.0, %v3328
  %v3330 = vpop.f32.mrb[0].mxu0
  %v3331 = vadd.f32 0.0, %v3330
  %v3332 = vpop.f32.mrb[0].mxu0
  %v3333 = vadd.f32 0.0, %v3332
  %3334 = vdwg.mxu0
  %v3399 = vunpack.c.l.b16 %v2800
  %v3400 = vunpack.c.h.b16 %v2800
  %v3401 = vunpack.c.l.b16 %v2801
  %v3402 = vunpack.c.h.b16 %v2801
  %v3403 = vunpack.c.l.b16 %v2802
  %v3404 = vunpack.c.h.b16 %v2802
  %v3405 = vunpack.c.l.b16 %v2803
  %v3406 = vunpack.c.h.b16 %v2803
  %v3407 = vunpack.c.l.b16 %v2804
  %v3408 = vunpack.c.h.b16 %v2804
  %v3409 = vunpack.c.l.b16 %v2805
  %v3410 = vunpack.c.h.b16 %v2805
  %v3411 = vunpack.c.l.b16 %v2806
  %v3412 = vunpack.c.h.b16 %v2806
  %v3413 = vunpack.c.l.b16 %v2807
  %v3414 = vunpack.c.h.b16 %v2807
  %v3415 = vunpack.c.l.b16 %v2808
  %v3416 = vunpack.c.h.b16 %v2808
  %v3417 = vunpack.c.l.b16 %v2809
  %v3418 = vunpack.c.h.b16 %v2809
  %v3419 = vunpack.c.l.b16 %v2810
  %v3420 = vunpack.c.h.b16 %v2810
  %v3421 = vunpack.c.l.b16 %v2811
  %v3422 = vunpack.c.h.b16 %v2811
  %v3423 = vunpack.c.l.b16 %v2812
  %v3424 = vunpack.c.h.b16 %v2812
  %v3425 = vunpack.c.l.b16 %v2813
  %v3426 = vunpack.c.h.b16 %v2813
  %v3427 = vunpack.c.l.b16 %v2814
  %v3428 = vunpack.c.h.b16 %v2814
  %v3429 = vunpack.c.l.b16 %v2815
  %v3430 = vunpack.c.h.b16 %v2815
  %v3431 = vunpack.c.l.b16 %v2816
  %v3432 = vunpack.c.h.b16 %v2816
  %v3433 = vunpack.c.l.b16 %v2817
  %v3434 = vunpack.c.h.b16 %v2817
  %v3435 = vunpack.c.l.b16 %v2818
  %v3436 = vunpack.c.h.b16 %v2818
  %v3437 = vunpack.c.l.b16 %v2819
  %v3438 = vunpack.c.h.b16 %v2819
  %v3439 = vunpack.c.l.b16 %v2820
  %v3440 = vunpack.c.h.b16 %v2820
  %v3441 = vunpack.c.l.b16 %v2821
  %v3442 = vunpack.c.h.b16 %v2821
  %v3443 = vunpack.c.l.b16 %v2822
  %v3444 = vunpack.c.h.b16 %v2822
  %v3445 = vunpack.c.l.b16 %v2823
  %v3446 = vunpack.c.h.b16 %v2823
  %v3447 = vunpack.c.l.b16 %v2824
  %v3448 = vunpack.c.h.b16 %v2824
  %v3449 = vunpack.c.l.b16 %v2825
  %v3450 = vunpack.c.h.b16 %v2825
  %v3451 = vunpack.c.l.b16 %v2826
  %v3452 = vunpack.c.h.b16 %v2826
  %v3453 = vunpack.c.l.b16 %v2827
  %v3454 = vunpack.c.h.b16 %v2827
  %v3455 = vunpack.c.l.b16 %v2828
  %v3456 = vunpack.c.h.b16 %v2828
  %v3457 = vunpack.c.l.b16 %v2829
  %v3458 = vunpack.c.h.b16 %v2829
  %v3459 = vunpack.c.l.b16 %v2830
  %v3460 = vunpack.c.h.b16 %v2830
  %v3461 = vunpack.c.l.b16 %v2831
  %v3462 = vunpack.c.h.b16 %v2831
  %v3463 = vunpack.c.l.b16 %v2832
  %v3464 = vunpack.c.h.b16 %v2832
  %v3465 = vunpack.c.l.b16 %v2833
  %v3466 = vunpack.c.h.b16 %v2833
  %v3467 = vunpack.c.l.b16 %v2834
  %v3468 = vunpack.c.h.b16 %v2834
  %v3469 = vunpack.c.l.b16 %v2835
  %v3470 = vunpack.c.h.b16 %v2835
  %v3471 = vunpack.c.l.b16 %v2836
  %v3472 = vunpack.c.h.b16 %v2836
  %v3473 = vunpack.c.l.b16 %v2837
  %v3474 = vunpack.c.h.b16 %v2837
  %v3475 = vunpack.c.l.b16 %v2838
  %v3476 = vunpack.c.h.b16 %v2838
  %v3477 = vunpack.c.l.b16 %v2839
  %v3478 = vunpack.c.h.b16 %v2839
  %v3479 = vunpack.c.l.b16 %v2840
  %v3480 = vunpack.c.h.b16 %v2840
  %v3481 = vunpack.c.l.b16 %v2841
  %v3482 = vunpack.c.h.b16 %v2841
  %v3483 = vunpack.c.l.b16 %v2842
  %v3484 = vunpack.c.h.b16 %v2842
  %v3485 = vunpack.c.l.b16 %v2843
  %v3486 = vunpack.c.h.b16 %v2843
  %v3487 = vunpack.c.l.b16 %v2844
  %v3488 = vunpack.c.h.b16 %v2844
  %v3489 = vunpack.c.l.b16 %v2845
  %v3490 = vunpack.c.h.b16 %v2845
  %v3491 = vunpack.c.l.b16 %v2846
  %v3492 = vunpack.c.h.b16 %v2846
  %v3493 = vunpack.c.l.b16 %v2847
  %v3494 = vunpack.c.h.b16 %v2847
  %v3495 = vunpack.c.l.b16 %v2848
  %v3496 = vunpack.c.h.b16 %v2848
  %v3497 = vunpack.c.l.b16 %v2849
  %v3498 = vunpack.c.h.b16 %v2849
  %v3499 = vunpack.c.l.b16 %v2850
  %v3500 = vunpack.c.h.b16 %v2850
  %v3501 = vunpack.c.l.b16 %v2851
  %v3502 = vunpack.c.h.b16 %v2851
  %v3503 = vunpack.c.l.b16 %v2852
  %v3504 = vunpack.c.h.b16 %v2852
  %v3505 = vunpack.c.l.b16 %v2853
  %v3506 = vunpack.c.h.b16 %v2853
  %v3507 = vunpack.c.l.b16 %v2854
  %v3508 = vunpack.c.h.b16 %v2854
  %v3509 = vunpack.c.l.b16 %v2855
  %v3510 = vunpack.c.h.b16 %v2855
  %v3511 = vunpack.c.l.b16 %v2856
  %v3512 = vunpack.c.h.b16 %v2856
  %v3513 = vunpack.c.l.b16 %v2857
  %v3514 = vunpack.c.h.b16 %v2857
  %v3515 = vunpack.c.l.b16 %v2858
  %v3516 = vunpack.c.h.b16 %v2858
  %v3517 = vunpack.c.l.b16 %v2859
  %v3518 = vunpack.c.h.b16 %v2859
  %v3519 = vunpack.c.l.b16 %v2860
  %v3520 = vunpack.c.h.b16 %v2860
  %v3521 = vunpack.c.l.b16 %v2861
  %v3522 = vunpack.c.h.b16 %v2861
  %v3523 = vunpack.c.l.b16 %v2862
  %v3524 = vunpack.c.h.b16 %v2862
  %v3525 = vunpack.c.l.b16 %v2863
  %v3526 = vunpack.c.h.b16 %v2863
  %v3527 = vpack.c.b16 %v3403, %v3399
  %v3528 = vpack.c.b16 %v3404, %v3400
  %v3529 = vpack.c.b16 %v3405, %v3401
  %v3530 = vpack.c.b16 %v3406, %v3402
  %v3531 = vpack.c.b16 %v3411, %v3407
  %v3532 = vpack.c.b16 %v3412, %v3408
  %v3533 = vpack.c.b16 %v3413, %v3409
  %v3534 = vpack.c.b16 %v3414, %v3410
  %v3535 = vpack.c.b16 %v3419, %v3415
  %v3536 = vpack.c.b16 %v3420, %v3416
  %v3537 = vpack.c.b16 %v3421, %v3417
  %v3538 = vpack.c.b16 %v3422, %v3418
  %v3539 = vpack.c.b16 %v3427, %v3423
  %v3540 = vpack.c.b16 %v3428, %v3424
  %v3541 = vpack.c.b16 %v3429, %v3425
  %v3542 = vpack.c.b16 %v3430, %v3426
  %v3543 = vpack.c.b16 %v3435, %v3431
  %v3544 = vpack.c.b16 %v3436, %v3432
  %v3545 = vpack.c.b16 %v3437, %v3433
  %v3546 = vpack.c.b16 %v3438, %v3434
  %v3547 = vpack.c.b16 %v3443, %v3439
  %v3548 = vpack.c.b16 %v3444, %v3440
  %v3549 = vpack.c.b16 %v3445, %v3441
  %v3550 = vpack.c.b16 %v3446, %v3442
  %v3551 = vpack.c.b16 %v3451, %v3447
  %v3552 = vpack.c.b16 %v3452, %v3448
  %v3553 = vpack.c.b16 %v3453, %v3449
  %v3554 = vpack.c.b16 %v3454, %v3450
  %v3555 = vpack.c.b16 %v3459, %v3455
  %v3556 = vpack.c.b16 %v3460, %v3456
  %v3557 = vpack.c.b16 %v3461, %v3457
  %v3558 = vpack.c.b16 %v3462, %v3458
  %v3559 = vpack.c.b16 %v3467, %v3463
  %v3560 = vpack.c.b16 %v3468, %v3464
  %v3561 = vpack.c.b16 %v3469, %v3465
  %v3562 = vpack.c.b16 %v3470, %v3466
  %v3563 = vpack.c.b16 %v3475, %v3471
  %v3564 = vpack.c.b16 %v3476, %v3472
  %v3565 = vpack.c.b16 %v3477, %v3473
  %v3566 = vpack.c.b16 %v3478, %v3474
  %v3567 = vpack.c.b16 %v3483, %v3479
  %v3568 = vpack.c.b16 %v3484, %v3480
  %v3569 = vpack.c.b16 %v3485, %v3481
  %v3570 = vpack.c.b16 %v3486, %v3482
  %v3571 = vpack.c.b16 %v3491, %v3487
  %v3572 = vpack.c.b16 %v3492, %v3488
  %v3573 = vpack.c.b16 %v3493, %v3489
  %v3574 = vpack.c.b16 %v3494, %v3490
  %v3575 = vpack.c.b16 %v3499, %v3495
  %v3576 = vpack.c.b16 %v3500, %v3496
  %v3577 = vpack.c.b16 %v3501, %v3497
  %v3578 = vpack.c.b16 %v3502, %v3498
  %v3579 = vpack.c.b16 %v3507, %v3503
  %v3580 = vpack.c.b16 %v3508, %v3504
  %v3581 = vpack.c.b16 %v3509, %v3505
  %v3582 = vpack.c.b16 %v3510, %v3506
  %v3583 = vpack.c.b16 %v3515, %v3511
  %v3584 = vpack.c.b16 %v3516, %v3512
  %v3585 = vpack.c.b16 %v3517, %v3513
  %v3586 = vpack.c.b16 %v3518, %v3514
  %v3587 = vpack.c.b16 %v3523, %v3519
  %v3588 = vpack.c.b16 %v3524, %v3520
  %v3589 = vpack.c.b16 %v3525, %v3521
  %v3590 = vpack.c.b16 %v3526, %v3522
  %3655 = vmatprep.subr.bf16.mxu0 %v3528
  %3656 = vmatpush1.bf16.msra.mxu0 %v3527
  %3657 = vmatprep.subr.bf16.mxu0 %v3532
  %3658 = vmatpush1.bf16.msra.mxu0 %v3531
  %3659 = vmatprep.subr.bf16.mxu0 %v3536
  %3660 = vmatpush1.bf16.msra.mxu0 %v3535
  %3661 = vmatprep.subr.bf16.mxu0 %v3540
  %3662 = vmatpush1.bf16.msra.mxu0 %v3539
  %3663 = vmatprep.subr.bf16.mxu0 %v3544
  %3664 = vmatpush1.bf16.msra.mxu0 %v3543
  %3665 = vmatprep.subr.bf16.mxu0 %v3548
  %3666 = vmatpush1.bf16.msra.mxu0 %v3547
  %3667 = vmatprep.subr.bf16.mxu0 %v3552
  %3668 = vmatpush1.bf16.msra.mxu0 %v3551
  %3669 = vmatprep.subr.bf16.mxu0 %v3556
  %3670 = vmatpush1.bf16.msra.mxu0 %v3555
  %3671 = vmatprep.subr.bf16.mxu0 %v3560
  %3672 = vmatpush1.bf16.msra.mxu0 %v3559
  %3673 = vmatprep.subr.bf16.mxu0 %v3564
  %3674 = vmatpush1.bf16.msra.mxu0 %v3563
  %3675 = vmatprep.subr.bf16.mxu0 %v3568
  %3676 = vmatpush1.bf16.msra.mxu0 %v3567
  %3677 = vmatprep.subr.bf16.mxu0 %v3572
  %3678 = vmatpush1.bf16.msra.mxu0 %v3571
  %3679 = vmatprep.subr.bf16.mxu0 %v3576
  %3680 = vmatpush1.bf16.msra.mxu0 %v3575
  %3681 = vmatprep.subr.bf16.mxu0 %v3580
  %3682 = vmatpush1.bf16.msra.mxu0 %v3579
  %3683 = vmatprep.subr.bf16.mxu0 %v3584
  %3684 = vmatpush1.bf16.msra.mxu0 %v3583
  %3685 = vmatprep.subr.bf16.mxu0 %v3588
  %3686 = vmatpush1.bf16.msra.mxu0 %v3587
  %3687 = vmatprep.mubr.bf16.mxu0 %v2783
  %3688 = vmatmul.mubr.bf16.gmra.mrb[0].mxu0 %v2782
  %v3689 = vpop.f32.mrb[0].mxu0
  %v3690 = vadd.f32 %v3284, %v3689
  %v3691 = vpop.f32.mrb[0].mxu0
  %v3692 = vadd.f32 %v3286, %v3691
  %v3693 = vpop.f32.mrb[0].mxu0
  %v3694 = vadd.f32 %v3288, %v3693
  %v3695 = vpop.f32.mrb[0].mxu0
  %v3696 = vadd.f32 %v3290, %v3695
  %3697 = vdwg.mxu0
  %3698 = vmatprep.subr.bf16.mxu0 %v3530
  %3699 = vmatpush1.bf16.msra.mxu0 %v3529
  %3700 = vmatprep.subr.bf16.mxu0 %v3534
  %3701 = vmatpush1.bf16.msra.mxu0 %v3533
  %3702 = vmatprep.subr.bf16.mxu0 %v3538
  %3703 = vmatpush1.bf16.msra.mxu0 %v3537
  %3704 = vmatprep.subr.bf16.mxu0 %v3542
  %3705 = vmatpush1.bf16.msra.mxu0 %v3541
  %3706 = vmatprep.subr.bf16.mxu0 %v3546
  %3707 = vmatpush1.bf16.msra.mxu0 %v3545
  %3708 = vmatprep.subr.bf16.mxu0 %v3550
  %3709 = vmatpush1.bf16.msra.mxu0 %v3549
  %3710 = vmatprep.subr.bf16.mxu0 %v3554
  %3711 = vmatpush1.bf16.msra.mxu0 %v3553
  %3712 = vmatprep.subr.bf16.mxu0 %v3558
  %3713 = vmatpush1.bf16.msra.mxu0 %v3557
  %3714 = vmatprep.subr.bf16.mxu0 %v3562
  %3715 = vmatpush1.bf16.msra.mxu0 %v3561
  %3716 = vmatprep.subr.bf16.mxu0 %v3566
  %3717 = vmatpush1.bf16.msra.mxu0 %v3565
  %3718 = vmatprep.subr.bf16.mxu0 %v3570
  %3719 = vmatpush1.bf16.msra.mxu0 %v3569
  %3720 = vmatprep.subr.bf16.mxu0 %v3574
  %3721 = vmatpush1.bf16.msra.mxu0 %v3573
  %3722 = vmatprep.subr.bf16.mxu0 %v3578
  %3723 = vmatpush1.bf16.msra.mxu0 %v3577
  %3724 = vmatprep.subr.bf16.mxu0 %v3582
  %3725 = vmatpush1.bf16.msra.mxu0 %v3581
  %3726 = vmatprep.subr.bf16.mxu0 %v3586
  %3727 = vmatpush1.bf16.msra.mxu0 %v3585
  %3728 = vmatprep.subr.bf16.mxu0 %v3590
  %3729 = vmatpush1.bf16.msra.mxu0 %v3589
  %3730 = vmatprep.mubr.bf16.mxu0 %v2783
  %3731 = vmatmul.mubr.bf16.gmra.mrb[0].mxu0 %v2782
  %v3732 = vpop.f32.mrb[0].mxu0
  %v3733 = vadd.f32 %v3327, %v3732
  %v3734 = vpop.f32.mrb[0].mxu0
  %v3735 = vadd.f32 %v3329, %v3734
  %v3736 = vpop.f32.mrb[0].mxu0
  %v3737 = vadd.f32 %v3331, %v3736
  %v3738 = vpop.f32.mrb[0].mxu0
  %v3739 = vadd.f32 %v3333, %v3738
  %3740 = vdwg.mxu0
  %s3741 = scalar_lea.vmem %s7, 1024
  %v3742 = vld [vmem:[%s3741] sm:$0xff]
  %v3743 = vld [vmem:[%s3741 + $0x8] sm:$0xff]
  %v3744 = vld [vmem:[%s3741 + $0x10] sm:$0xff]
  %v3745 = vld [vmem:[%s3741 + $0x18] sm:$0xff]
  %v3746 = vld [vmem:[%s3741 + $0x20] sm:$0xff]
  %v3747 = vld [vmem:[%s3741 + $0x28] sm:$0xff]
  %v3748 = vld [vmem:[%s3741 + $0x30] sm:$0xff]
  %v3749 = vld [vmem:[%s3741 + $0x38] sm:$0xff]
  %v3750 = vld [vmem:[%s3741 + $0x40] sm:$0xff]
  %v3751 = vld [vmem:[%s3741 + $0x48] sm:$0xff]
  %v3752 = vld [vmem:[%s3741 + $0x50] sm:$0xff]
  %v3753 = vld [vmem:[%s3741 + $0x58] sm:$0xff]
  %v3754 = vld [vmem:[%s3741 + $0x60] sm:$0xff]
  %v3755 = vld [vmem:[%s3741 + $0x68] sm:$0xff]
  %v3756 = vld [vmem:[%s3741 + $0x70] sm:$0xff]
  %v3757 = vld [vmem:[%s3741 + $0x78] sm:$0xff]
  %v3758 = vld [vmem:[%s3741 + $0x80] sm:$0xff]
  %v3759 = vld [vmem:[%s3741 + $0x88] sm:$0xff]
  %v3760 = vld [vmem:[%s3741 + $0x90] sm:$0xff]
  %v3761 = vld [vmem:[%s3741 + $0x98] sm:$0xff]
  %v3762 = vld [vmem:[%s3741 + $0xa0] sm:$0xff]
  %v3763 = vld [vmem:[%s3741 + $0xa8] sm:$0xff]
  %v3764 = vld [vmem:[%s3741 + $0xb0] sm:$0xff]
  %v3765 = vld [vmem:[%s3741 + $0xb8] sm:$0xff]
  %v3766 = vld [vmem:[%s3741 + $0xc0] sm:$0xff]
  %v3767 = vld [vmem:[%s3741 + $0xc8] sm:$0xff]
  %v3768 = vld [vmem:[%s3741 + $0xd0] sm:$0xff]
  %v3769 = vld [vmem:[%s3741 + $0xd8] sm:$0xff]
  %v3770 = vld [vmem:[%s3741 + $0xe0] sm:$0xff]
  %v3771 = vld [vmem:[%s3741 + $0xe8] sm:$0xff]
  %v3772 = vld [vmem:[%s3741 + $0xf0] sm:$0xff]
  %v3773 = vld [vmem:[%s3741 + $0xf8] sm:$0xff]
  %v3774 = vld [vmem:[%s3741 + $0x100] sm:$0xff]
  %v3775 = vld [vmem:[%s3741 + $0x108] sm:$0xff]
  %v3776 = vld [vmem:[%s3741 + $0x110] sm:$0xff]
  %v3777 = vld [vmem:[%s3741 + $0x118] sm:$0xff]
  %v3778 = vld [vmem:[%s3741 + $0x120] sm:$0xff]
  %v3779 = vld [vmem:[%s3741 + $0x128] sm:$0xff]
  %v3780 = vld [vmem:[%s3741 + $0x130] sm:$0xff]
  %v3781 = vld [vmem:[%s3741 + $0x138] sm:$0xff]
  %v3782 = vld [vmem:[%s3741 + $0x140] sm:$0xff]
  %v3783 = vld [vmem:[%s3741 + $0x148] sm:$0xff]
  %v3784 = vld [vmem:[%s3741 + $0x150] sm:$0xff]
  %v3785 = vld [vmem:[%s3741 + $0x158] sm:$0xff]
  %v3786 = vld [vmem:[%s3741 + $0x160] sm:$0xff]
  %v3787 = vld [vmem:[%s3741 + $0x168] sm:$0xff]
  %v3788 = vld [vmem:[%s3741 + $0x170] sm:$0xff]
  %v3789 = vld [vmem:[%s3741 + $0x178] sm:$0xff]
  %v3790 = vld [vmem:[%s3741 + $0x180] sm:$0xff]
  %v3791 = vld [vmem:[%s3741 + $0x188] sm:$0xff]
  %v3792 = vld [vmem:[%s3741 + $0x190] sm:$0xff]
  %v3793 = vld [vmem:[%s3741 + $0x198] sm:$0xff]
  %v3794 = vld [vmem:[%s3741 + $0x1a0] sm:$0xff]
  %v3795 = vld [vmem:[%s3741 + $0x1a8] sm:$0xff]
  %v3796 = vld [vmem:[%s3741 + $0x1b0] sm:$0xff]
  %v3797 = vld [vmem:[%s3741 + $0x1b8] sm:$0xff]
  %v3798 = vld [vmem:[%s3741 + $0x1c0] sm:$0xff]
  %v3799 = vld [vmem:[%s3741 + $0x1c8] sm:$0xff]
  %v3800 = vld [vmem:[%s3741 + $0x1d0] sm:$0xff]
  %v3801 = vld [vmem:[%s3741 + $0x1d8] sm:$0xff]
  %v3802 = vld [vmem:[%s3741 + $0x1e0] sm:$0xff]
  %v3803 = vld [vmem:[%s3741 + $0x1e8] sm:$0xff]
  %v3804 = vld [vmem:[%s3741 + $0x1f0] sm:$0xff]
  %v3805 = vld [vmem:[%s3741 + $0x1f8] sm:$0xff]
  %v3870 = vunpack.c.l.b16 %v3742
  %v3871 = vunpack.c.h.b16 %v3742
  %v3872 = vunpack.c.l.b16 %v3743
  %v3873 = vunpack.c.h.b16 %v3743
  %v3874 = vunpack.c.l.b16 %v3744
  %v3875 = vunpack.c.h.b16 %v3744
  %v3876 = vunpack.c.l.b16 %v3745
  %v3877 = vunpack.c.h.b16 %v3745
  %v3878 = vunpack.c.l.b16 %v3746
  %v3879 = vunpack.c.h.b16 %v3746
  %v3880 = vunpack.c.l.b16 %v3747
  %v3881 = vunpack.c.h.b16 %v3747
  %v3882 = vunpack.c.l.b16 %v3748
  %v3883 = vunpack.c.h.b16 %v3748
  %v3884 = vunpack.c.l.b16 %v3749
  %v3885 = vunpack.c.h.b16 %v3749
  %v3886 = vunpack.c.l.b16 %v3750
  %v3887 = vunpack.c.h.b16 %v3750
  %v3888 = vunpack.c.l.b16 %v3751
  %v3889 = vunpack.c.h.b16 %v3751
  %v3890 = vunpack.c.l.b16 %v3752
  %v3891 = vunpack.c.h.b16 %v3752
  %v3892 = vunpack.c.l.b16 %v3753
  %v3893 = vunpack.c.h.b16 %v3753
  %v3894 = vunpack.c.l.b16 %v3754
  %v3895 = vunpack.c.h.b16 %v3754
  %v3896 = vunpack.c.l.b16 %v3755
  %v3897 = vunpack.c.h.b16 %v3755
  %v3898 = vunpack.c.l.b16 %v3756
  %v3899 = vunpack.c.h.b16 %v3756
  %v3900 = vunpack.c.l.b16 %v3757
  %v3901 = vunpack.c.h.b16 %v3757
  %v3902 = vunpack.c.l.b16 %v3758
  %v3903 = vunpack.c.h.b16 %v3758
  %v3904 = vunpack.c.l.b16 %v3759
  %v3905 = vunpack.c.h.b16 %v3759
  %v3906 = vunpack.c.l.b16 %v3760
  %v3907 = vunpack.c.h.b16 %v3760
  %v3908 = vunpack.c.l.b16 %v3761
  %v3909 = vunpack.c.h.b16 %v3761
  %v3910 = vunpack.c.l.b16 %v3762
  %v3911 = vunpack.c.h.b16 %v3762
  %v3912 = vunpack.c.l.b16 %v3763
  %v3913 = vunpack.c.h.b16 %v3763
  %v3914 = vunpack.c.l.b16 %v3764
  %v3915 = vunpack.c.h.b16 %v3764
  %v3916 = vunpack.c.l.b16 %v3765
  %v3917 = vunpack.c.h.b16 %v3765
  %v3918 = vunpack.c.l.b16 %v3766
  %v3919 = vunpack.c.h.b16 %v3766
  %v3920 = vunpack.c.l.b16 %v3767
  %v3921 = vunpack.c.h.b16 %v3767
  %v3922 = vunpack.c.l.b16 %v3768
  %v3923 = vunpack.c.h.b16 %v3768
  %v3924 = vunpack.c.l.b16 %v3769
  %v3925 = vunpack.c.h.b16 %v3769
  %v3926 = vunpack.c.l.b16 %v3770
  %v3927 = vunpack.c.h.b16 %v3770
  %v3928 = vunpack.c.l.b16 %v3771
  %v3929 = vunpack.c.h.b16 %v3771
  %v3930 = vunpack.c.l.b16 %v3772
  %v3931 = vunpack.c.h.b16 %v3772
  %v3932 = vunpack.c.l.b16 %v3773
  %v3933 = vunpack.c.h.b16 %v3773
  %v3934 = vunpack.c.l.b16 %v3774
  %v3935 = vunpack.c.h.b16 %v3774
  %v3936 = vunpack.c.l.b16 %v3775
  %v3937 = vunpack.c.h.b16 %v3775
  %v3938 = vunpack.c.l.b16 %v3776
  %v3939 = vunpack.c.h.b16 %v3776
  %v3940 = vunpack.c.l.b16 %v3777
  %v3941 = vunpack.c.h.b16 %v3777
  %v3942 = vunpack.c.l.b16 %v3778
  %v3943 = vunpack.c.h.b16 %v3778
  %v3944 = vunpack.c.l.b16 %v3779
  %v3945 = vunpack.c.h.b16 %v3779
  %v3946 = vunpack.c.l.b16 %v3780
  %v3947 = vunpack.c.h.b16 %v3780
  %v3948 = vunpack.c.l.b16 %v3781
  %v3949 = vunpack.c.h.b16 %v3781
  %v3950 = vunpack.c.l.b16 %v3782
  %v3951 = vunpack.c.h.b16 %v3782
  %v3952 = vunpack.c.l.b16 %v3783
  %v3953 = vunpack.c.h.b16 %v3783
  %v3954 = vunpack.c.l.b16 %v3784
  %v3955 = vunpack.c.h.b16 %v3784
  %v3956 = vunpack.c.l.b16 %v3785
  %v3957 = vunpack.c.h.b16 %v3785
  %v3958 = vunpack.c.l.b16 %v3786
  %v3959 = vunpack.c.h.b16 %v3786
  %v3960 = vunpack.c.l.b16 %v3787
  %v3961 = vunpack.c.h.b16 %v3787
  %v3962 = vunpack.c.l.b16 %v3788
  %v3963 = vunpack.c.h.b16 %v3788
  %v3964 = vunpack.c.l.b16 %v3789
  %v3965 = vunpack.c.h.b16 %v3789
  %v3966 = vunpack.c.l.b16 %v3790
  %v3967 = vunpack.c.h.b16 %v3790
  %v3968 = vunpack.c.l.b16 %v3791
  %v3969 = vunpack.c.h.b16 %v3791
  %v3970 = vunpack.c.l.b16 %v3792
  %v3971 = vunpack.c.h.b16 %v3792
  %v3972 = vunpack.c.l.b16 %v3793
  %v3973 = vunpack.c.h.b16 %v3793
  %v3974 = vunpack.c.l.b16 %v3794
  %v3975 = vunpack.c.h.b16 %v3794
  %v3976 = vunpack.c.l.b16 %v3795
  %v3977 = vunpack.c.h.b16 %v3795
  %v3978 = vunpack.c.l.b16 %v3796
  %v3979 = vunpack.c.h.b16 %v3796
  %v3980 = vunpack.c.l.b16 %v3797
  %v3981 = vunpack.c.h.b16 %v3797
  %v3982 = vunpack.c.l.b16 %v3798
  %v3983 = vunpack.c.h.b16 %v3798
  %v3984 = vunpack.c.l.b16 %v3799
  %v3985 = vunpack.c.h.b16 %v3799
  %v3986 = vunpack.c.l.b16 %v3800
  %v3987 = vunpack.c.h.b16 %v3800
  %v3988 = vunpack.c.l.b16 %v3801
  %v3989 = vunpack.c.h.b16 %v3801
  %v3990 = vunpack.c.l.b16 %v3802
  %v3991 = vunpack.c.h.b16 %v3802
  %v3992 = vunpack.c.l.b16 %v3803
  %v3993 = vunpack.c.h.b16 %v3803
  %v3994 = vunpack.c.l.b16 %v3804
  %v3995 = vunpack.c.h.b16 %v3804
  %v3996 = vunpack.c.l.b16 %v3805
  %v3997 = vunpack.c.h.b16 %v3805
  %v3998 = vpack.c.b16 %v3874, %v3870
  %v3999 = vpack.c.b16 %v3875, %v3871
  %v4000 = vpack.c.b16 %v3876, %v3872
  %v4001 = vpack.c.b16 %v3877, %v3873
  %v4002 = vpack.c.b16 %v3882, %v3878
  %v4003 = vpack.c.b16 %v3883, %v3879
  %v4004 = vpack.c.b16 %v3884, %v3880
  %v4005 = vpack.c.b16 %v3885, %v3881
  %v4006 = vpack.c.b16 %v3890, %v3886
  %v4007 = vpack.c.b16 %v3891, %v3887
  %v4008 = vpack.c.b16 %v3892, %v3888
  %v4009 = vpack.c.b16 %v3893, %v3889
  %v4010 = vpack.c.b16 %v3898, %v3894
  %v4011 = vpack.c.b16 %v3899, %v3895
  %v4012 = vpack.c.b16 %v3900, %v3896
  %v4013 = vpack.c.b16 %v3901, %v3897
  %v4014 = vpack.c.b16 %v3906, %v3902
  %v4015 = vpack.c.b16 %v3907, %v3903
  %v4016 = vpack.c.b16 %v3908, %v3904
  %v4017 = vpack.c.b16 %v3909, %v3905
  %v4018 = vpack.c.b16 %v3914, %v3910
  %v4019 = vpack.c.b16 %v3915, %v3911
  %v4020 = vpack.c.b16 %v3916, %v3912
  %v4021 = vpack.c.b16 %v3917, %v3913
  %v4022 = vpack.c.b16 %v3922, %v3918
  %v4023 = vpack.c.b16 %v3923, %v3919
  %v4024 = vpack.c.b16 %v3924, %v3920
  %v4025 = vpack.c.b16 %v3925, %v3921
  %v4026 = vpack.c.b16 %v3930, %v3926
  %v4027 = vpack.c.b16 %v3931, %v3927
  %v4028 = vpack.c.b16 %v3932, %v3928
  %v4029 = vpack.c.b16 %v3933, %v3929
  %v4030 = vpack.c.b16 %v3938, %v3934
  %v4031 = vpack.c.b16 %v3939, %v3935
  %v4032 = vpack.c.b16 %v3940, %v3936
  %v4033 = vpack.c.b16 %v3941, %v3937
  %v4034 = vpack.c.b16 %v3946, %v3942
  %v4035 = vpack.c.b16 %v3947, %v3943
  %v4036 = vpack.c.b16 %v3948, %v3944
  %v4037 = vpack.c.b16 %v3949, %v3945
  %v4038 = vpack.c.b16 %v3954, %v3950
  %v4039 = vpack.c.b16 %v3955, %v3951
  %v4040 = vpack.c.b16 %v3956, %v3952
  %v4041 = vpack.c.b16 %v3957, %v3953
  %v4042 = vpack.c.b16 %v3962, %v3958
  %v4043 = vpack.c.b16 %v3963, %v3959
  %v4044 = vpack.c.b16 %v3964, %v3960
  %v4045 = vpack.c.b16 %v3965, %v3961
  %v4046 = vpack.c.b16 %v3970, %v3966
  %v4047 = vpack.c.b16 %v3971, %v3967
  %v4048 = vpack.c.b16 %v3972, %v3968
  %v4049 = vpack.c.b16 %v3973, %v3969
  %v4050 = vpack.c.b16 %v3978, %v3974
  %v4051 = vpack.c.b16 %v3979, %v3975
  %v4052 = vpack.c.b16 %v3980, %v3976
  %v4053 = vpack.c.b16 %v3981, %v3977
  %v4054 = vpack.c.b16 %v3986, %v3982
  %v4055 = vpack.c.b16 %v3987, %v3983
  %v4056 = vpack.c.b16 %v3988, %v3984
  %v4057 = vpack.c.b16 %v3989, %v3985
  %v4058 = vpack.c.b16 %v3994, %v3990
  %v4059 = vpack.c.b16 %v3995, %v3991
  %v4060 = vpack.c.b16 %v3996, %v3992
  %v4061 = vpack.c.b16 %v3997, %v3993
  %4126 = vmatprep.subr.bf16.mxu0 %v3999
  %4127 = vmatpush1.bf16.msra.mxu0 %v3998
  %4128 = vmatprep.subr.bf16.mxu0 %v4003
  %4129 = vmatpush1.bf16.msra.mxu0 %v4002
  %4130 = vmatprep.subr.bf16.mxu0 %v4007
  %4131 = vmatpush1.bf16.msra.mxu0 %v4006
  %4132 = vmatprep.subr.bf16.mxu0 %v4011
  %4133 = vmatpush1.bf16.msra.mxu0 %v4010
  %4134 = vmatprep.subr.bf16.mxu0 %v4015
  %4135 = vmatpush1.bf16.msra.mxu0 %v4014
  %4136 = vmatprep.subr.bf16.mxu0 %v4019
  %4137 = vmatpush1.bf16.msra.mxu0 %v4018
  %4138 = vmatprep.subr.bf16.mxu0 %v4023
  %4139 = vmatpush1.bf16.msra.mxu0 %v4022
  %4140 = vmatprep.subr.bf16.mxu0 %v4027
  %4141 = vmatpush1.bf16.msra.mxu0 %v4026
  %4142 = vmatprep.subr.bf16.mxu0 %v4031
  %4143 = vmatpush1.bf16.msra.mxu0 %v4030
  %4144 = vmatprep.subr.bf16.mxu0 %v4035
  %4145 = vmatpush1.bf16.msra.mxu0 %v4034
  %4146 = vmatprep.subr.bf16.mxu0 %v4039
  %4147 = vmatpush1.bf16.msra.mxu0 %v4038
  %4148 = vmatprep.subr.bf16.mxu0 %v4043
  %4149 = vmatpush1.bf16.msra.mxu0 %v4042
  %4150 = vmatprep.subr.bf16.mxu0 %v4047
  %4151 = vmatpush1.bf16.msra.mxu0 %v4046
  %4152 = vmatprep.subr.bf16.mxu0 %v4051
  %4153 = vmatpush1.bf16.msra.mxu0 %v4050
  %4154 = vmatprep.subr.bf16.mxu0 %v4055
  %4155 = vmatpush1.bf16.msra.mxu0 %v4054
  %4156 = vmatprep.subr.bf16.mxu0 %v4059
  %4157 = vmatpush1.bf16.msra.mxu0 %v4058
  %4158 = vmatprep.mubr.bf16.mxu0 %v2787
  %4159 = vmatmul.mubr.bf16.gmra.mrb[0].mxu0 %v2786
  %v4160 = vpop.f32.mrb[0].mxu0
  %v4161 = vadd.f32 0.0, %v4160
  %v4162 = vpop.f32.mrb[0].mxu0
  %v4163 = vadd.f32 0.0, %v4162
  %v4164 = vpop.f32.mrb[0].mxu0
  %v4165 = vadd.f32 0.0, %v4164
  %v4166 = vpop.f32.mrb[0].mxu0
  %v4167 = vadd.f32 0.0, %v4166
  %4168 = vdwg.mxu0
  %4169 = vmatprep.subr.bf16.mxu0 %v4001
  %4170 = vmatpush1.bf16.msra.mxu0 %v4000
  %4171 = vmatprep.subr.bf16.mxu0 %v4005
  %4172 = vmatpush1.bf16.msra.mxu0 %v4004
  %4173 = vmatprep.subr.bf16.mxu0 %v4009
  %4174 = vmatpush1.bf16.msra.mxu0 %v4008
  %4175 = vmatprep.subr.bf16.mxu0 %v4013
  %4176 = vmatpush1.bf16.msra.mxu0 %v4012
  %4177 = vmatprep.subr.bf16.mxu0 %v4017
  %4178 = vmatpush1.bf16.msra.mxu0 %v4016
  %4179 = vmatprep.subr.bf16.mxu0 %v4021
  %4180 = vmatpush1.bf16.msra.mxu0 %v4020
  %4181 = vmatprep.subr.bf16.mxu0 %v4025
  %4182 = vmatpush1.bf16.msra.mxu0 %v4024
  %4183 = vmatprep.subr.bf16.mxu0 %v4029
  %4184 = vmatpush1.bf16.msra.mxu0 %v4028
  %4185 = vmatprep.subr.bf16.mxu0 %v4033
  %4186 = vmatpush1.bf16.msra.mxu0 %v4032
  %4187 = vmatprep.subr.bf16.mxu0 %v4037
  %4188 = vmatpush1.bf16.msra.mxu0 %v4036
  %4189 = vmatprep.subr.bf16.mxu0 %v4041
  %4190 = vmatpush1.bf16.msra.mxu0 %v4040
  %4191 = vmatprep.subr.bf16.mxu0 %v4045
  %4192 = vmatpush1.bf16.msra.mxu0 %v4044
  %4193 = vmatprep.subr.bf16.mxu0 %v4049
  %4194 = vmatpush1.bf16.msra.mxu0 %v4048
  %4195 = vmatprep.subr.bf16.mxu0 %v4053
  %4196 = vmatpush1.bf16.msra.mxu0 %v4052
  %4197 = vmatprep.subr.bf16.mxu0 %v4057
  %4198 = vmatpush1.bf16.msra.mxu0 %v4056
  %4199 = vmatprep.subr.bf16.mxu0 %v4061
  %4200 = vmatpush1.bf16.msra.mxu0 %v4060
  %4201 = vmatprep.mubr.bf16.mxu0 %v2787
  %4202 = vmatmul.mubr.bf16.gmra.mrb[0].mxu0 %v2786
  %v4203 = vpop.f32.mrb[0].mxu0
  %v4204 = vadd.f32 0.0, %v4203
  %v4205 = vpop.f32.mrb[0].mxu0
  %v4206 = vadd.f32 0.0, %v4205
  %v4207 = vpop.f32.mrb[0].mxu0
  %v4208 = vadd.f32 0.0, %v4207
  %v4209 = vpop.f32.mrb[0].mxu0
  %v4210 = vadd.f32 0.0, %v4209
  %4211 = vdwg.mxu0
  %v4212 = vadd.f32 %v3690, %v4161
  %v4213 = vadd.f32 %v3692, %v4163
  %v4214 = vadd.f32 %v3733, %v4204
  %v4215 = vadd.f32 %v3735, %v4206
  %v4216 = vadd.f32 %v3694, %v4165
  %v4217 = vadd.f32 %v3696, %v4167
  %v4218 = vadd.f32 %v3737, %v4208
  %v4219 = vadd.f32 %v3739, %v4210
  %s4220 = scalar_lea.vmem %s7, 1536
  %v4221 = vld [vmem:[%s4220] sm:$0xff]
  %v4222 = vld [vmem:[%s4220 + $0x8] sm:$0xff]
  %v4223 = vld [vmem:[%s4220 + $0x10] sm:$0xff]
  %v4224 = vld [vmem:[%s4220 + $0x18] sm:$0xff]
  %v4225 = vld [vmem:[%s4220 + $0x20] sm:$0xff]
  %v4226 = vld [vmem:[%s4220 + $0x28] sm:$0xff]
  %v4227 = vld [vmem:[%s4220 + $0x30] sm:$0xff]
  %v4228 = vld [vmem:[%s4220 + $0x38] sm:$0xff]
  %v4229 = vld [vmem:[%s4220 + $0x40] sm:$0xff]
  %v4230 = vld [vmem:[%s4220 + $0x48] sm:$0xff]
  %v4231 = vld [vmem:[%s4220 + $0x50] sm:$0xff]
  %v4232 = vld [vmem:[%s4220 + $0x58] sm:$0xff]
  %v4233 = vld [vmem:[%s4220 + $0x60] sm:$0xff]
  %v4234 = vld [vmem:[%s4220 + $0x68] sm:$0xff]
  %v4235 = vld [vmem:[%s4220 + $0x70] sm:$0xff]
  %v4236 = vld [vmem:[%s4220 + $0x78] sm:$0xff]
  %v4237 = vld [vmem:[%s4220 + $0x80] sm:$0xff]
  %v4238 = vld [vmem:[%s4220 + $0x88] sm:$0xff]
  %v4239 = vld [vmem:[%s4220 + $0x90] sm:$0xff]
  %v4240 = vld [vmem:[%s4220 + $0x98] sm:$0xff]
  %v4241 = vld [vmem:[%s4220 + $0xa0] sm:$0xff]
  %v4242 = vld [vmem:[%s4220 + $0xa8] sm:$0xff]
  %v4243 = vld [vmem:[%s4220 + $0xb0] sm:$0xff]
  %v4244 = vld [vmem:[%s4220 + $0xb8] sm:$0xff]
  %v4245 = vld [vmem:[%s4220 + $0xc0] sm:$0xff]
  %v4246 = vld [vmem:[%s4220 + $0xc8] sm:$0xff]
  %v4247 = vld [vmem:[%s4220 + $0xd0] sm:$0xff]
  %v4248 = vld [vmem:[%s4220 + $0xd8] sm:$0xff]
  %v4249 = vld [vmem:[%s4220 + $0xe0] sm:$0xff]
  %v4250 = vld [vmem:[%s4220 + $0xe8] sm:$0xff]
  %v4251 = vld [vmem:[%s4220 + $0xf0] sm:$0xff]
  %v4252 = vld [vmem:[%s4220 + $0xf8] sm:$0xff]
  %v4253 = vld [vmem:[%s4220 + $0x100] sm:$0xff]
  %v4254 = vld [vmem:[%s4220 + $0x108] sm:$0xff]
  %v4255 = vld [vmem:[%s4220 + $0x110] sm:$0xff]
  %v4256 = vld [vmem:[%s4220 + $0x118] sm:$0xff]
  %v4257 = vld [vmem:[%s4220 + $0x120] sm:$0xff]
  %v4258 = vld [vmem:[%s4220 + $0x128] sm:$0xff]
  %v4259 = vld [vmem:[%s4220 + $0x130] sm:$0xff]
  %v4260 = vld [vmem:[%s4220 + $0x138] sm:$0xff]
  %v4261 = vld [vmem:[%s4220 + $0x140] sm:$0xff]
  %v4262 = vld [vmem:[%s4220 + $0x148] sm:$0xff]
  %v4263 = vld [vmem:[%s4220 + $0x150] sm:$0xff]
  %v4264 = vld [vmem:[%s4220 + $0x158] sm:$0xff]
  %v4265 = vld [vmem:[%s4220 + $0x160] sm:$0xff]
  %v4266 = vld [vmem:[%s4220 + $0x168] sm:$0xff]
  %v4267 = vld [vmem:[%s4220 + $0x170] sm:$0xff]
  %v4268 = vld [vmem:[%s4220 + $0x178] sm:$0xff]
  %v4269 = vld [vmem:[%s4220 + $0x180] sm:$0xff]
  %v4270 = vld [vmem:[%s4220 + $0x188] sm:$0xff]
  %v4271 = vld [vmem:[%s4220 + $0x190] sm:$0xff]
  %v4272 = vld [vmem:[%s4220 + $0x198] sm:$0xff]
  %v4273 = vld [vmem:[%s4220 + $0x1a0] sm:$0xff]
  %v4274 = vld [vmem:[%s4220 + $0x1a8] sm:$0xff]
  %v4275 = vld [vmem:[%s4220 + $0x1b0] sm:$0xff]
  %v4276 = vld [vmem:[%s4220 + $0x1b8] sm:$0xff]
  %v4277 = vld [vmem:[%s4220 + $0x1c0] sm:$0xff]
  %v4278 = vld [vmem:[%s4220 + $0x1c8] sm:$0xff]
  %v4279 = vld [vmem:[%s4220 + $0x1d0] sm:$0xff]
  %v4280 = vld [vmem:[%s4220 + $0x1d8] sm:$0xff]
  %v4281 = vld [vmem:[%s4220 + $0x1e0] sm:$0xff]
  %v4282 = vld [vmem:[%s4220 + $0x1e8] sm:$0xff]
  %v4283 = vld [vmem:[%s4220 + $0x1f0] sm:$0xff]
  %v4284 = vld [vmem:[%s4220 + $0x1f8] sm:$0xff]
  %v4349 = vunpack.c.l.b16 %v4221
  %v4350 = vunpack.c.h.b16 %v4221
  %v4351 = vunpack.c.l.b16 %v4222
  %v4352 = vunpack.c.h.b16 %v4222
  %v4353 = vunpack.c.l.b16 %v4223
  %v4354 = vunpack.c.h.b16 %v4223
  %v4355 = vunpack.c.l.b16 %v4224
  %v4356 = vunpack.c.h.b16 %v4224
  %v4357 = vunpack.c.l.b16 %v4225
  %v4358 = vunpack.c.h.b16 %v4225
  %v4359 = vunpack.c.l.b16 %v4226
  %v4360 = vunpack.c.h.b16 %v4226
  %v4361 = vunpack.c.l.b16 %v4227
  %v4362 = vunpack.c.h.b16 %v4227
  %v4363 = vunpack.c.l.b16 %v4228
  %v4364 = vunpack.c.h.b16 %v4228
  %v4365 = vunpack.c.l.b16 %v4229
  %v4366 = vunpack.c.h.b16 %v4229
  %v4367 = vunpack.c.l.b16 %v4230
  %v4368 = vunpack.c.h.b16 %v4230
  %v4369 = vunpack.c.l.b16 %v4231
  %v4370 = vunpack.c.h.b16 %v4231
  %v4371 = vunpack.c.l.b16 %v4232
  %v4372 = vunpack.c.h.b16 %v4232
  %v4373 = vunpack.c.l.b16 %v4233
  %v4374 = vunpack.c.h.b16 %v4233
  %v4375 = vunpack.c.l.b16 %v4234
  %v4376 = vunpack.c.h.b16 %v4234
  %v4377 = vunpack.c.l.b16 %v4235
  %v4378 = vunpack.c.h.b16 %v4235
  %v4379 = vunpack.c.l.b16 %v4236
  %v4380 = vunpack.c.h.b16 %v4236
  %v4381 = vunpack.c.l.b16 %v4237
  %v4382 = vunpack.c.h.b16 %v4237
  %v4383 = vunpack.c.l.b16 %v4238
  %v4384 = vunpack.c.h.b16 %v4238
  %v4385 = vunpack.c.l.b16 %v4239
  %v4386 = vunpack.c.h.b16 %v4239
  %v4387 = vunpack.c.l.b16 %v4240
  %v4388 = vunpack.c.h.b16 %v4240
  %v4389 = vunpack.c.l.b16 %v4241
  %v4390 = vunpack.c.h.b16 %v4241
  %v4391 = vunpack.c.l.b16 %v4242
  %v4392 = vunpack.c.h.b16 %v4242
  %v4393 = vunpack.c.l.b16 %v4243
  %v4394 = vunpack.c.h.b16 %v4243
  %v4395 = vunpack.c.l.b16 %v4244
  %v4396 = vunpack.c.h.b16 %v4244
  %v4397 = vunpack.c.l.b16 %v4245
  %v4398 = vunpack.c.h.b16 %v4245
  %v4399 = vunpack.c.l.b16 %v4246
  %v4400 = vunpack.c.h.b16 %v4246
  %v4401 = vunpack.c.l.b16 %v4247
  %v4402 = vunpack.c.h.b16 %v4247
  %v4403 = vunpack.c.l.b16 %v4248
  %v4404 = vunpack.c.h.b16 %v4248
  %v4405 = vunpack.c.l.b16 %v4249
  %v4406 = vunpack.c.h.b16 %v4249
  %v4407 = vunpack.c.l.b16 %v4250
  %v4408 = vunpack.c.h.b16 %v4250
  %v4409 = vunpack.c.l.b16 %v4251
  %v4410 = vunpack.c.h.b16 %v4251
  %v4411 = vunpack.c.l.b16 %v4252
  %v4412 = vunpack.c.h.b16 %v4252
  %v4413 = vunpack.c.l.b16 %v4253
  %v4414 = vunpack.c.h.b16 %v4253
  %v4415 = vunpack.c.l.b16 %v4254
  %v4416 = vunpack.c.h.b16 %v4254
  %v4417 = vunpack.c.l.b16 %v4255
  %v4418 = vunpack.c.h.b16 %v4255
  %v4419 = vunpack.c.l.b16 %v4256
  %v4420 = vunpack.c.h.b16 %v4256
  %v4421 = vunpack.c.l.b16 %v4257
  %v4422 = vunpack.c.h.b16 %v4257
  %v4423 = vunpack.c.l.b16 %v4258
  %v4424 = vunpack.c.h.b16 %v4258
  %v4425 = vunpack.c.l.b16 %v4259
  %v4426 = vunpack.c.h.b16 %v4259
  %v4427 = vunpack.c.l.b16 %v4260
  %v4428 = vunpack.c.h.b16 %v4260
  %v4429 = vunpack.c.l.b16 %v4261
  %v4430 = vunpack.c.h.b16 %v4261
  %v4431 = vunpack.c.l.b16 %v4262
  %v4432 = vunpack.c.h.b16 %v4262
  %v4433 = vunpack.c.l.b16 %v4263
  %v4434 = vunpack.c.h.b16 %v4263
  %v4435 = vunpack.c.l.b16 %v4264
  %v4436 = vunpack.c.h.b16 %v4264
  %v4437 = vunpack.c.l.b16 %v4265
  %v4438 = vunpack.c.h.b16 %v4265
  %v4439 = vunpack.c.l.b16 %v4266
  %v4440 = vunpack.c.h.b16 %v4266
  %v4441 = vunpack.c.l.b16 %v4267
  %v4442 = vunpack.c.h.b16 %v4267
  %v4443 = vunpack.c.l.b16 %v4268
  %v4444 = vunpack.c.h.b16 %v4268
  %v4445 = vunpack.c.l.b16 %v4269
  %v4446 = vunpack.c.h.b16 %v4269
  %v4447 = vunpack.c.l.b16 %v4270
  %v4448 = vunpack.c.h.b16 %v4270
  %v4449 = vunpack.c.l.b16 %v4271
  %v4450 = vunpack.c.h.b16 %v4271
  %v4451 = vunpack.c.l.b16 %v4272
  %v4452 = vunpack.c.h.b16 %v4272
  %v4453 = vunpack.c.l.b16 %v4273
  %v4454 = vunpack.c.h.b16 %v4273
  %v4455 = vunpack.c.l.b16 %v4274
  %v4456 = vunpack.c.h.b16 %v4274
  %v4457 = vunpack.c.l.b16 %v4275
  %v4458 = vunpack.c.h.b16 %v4275
  %v4459 = vunpack.c.l.b16 %v4276
  %v4460 = vunpack.c.h.b16 %v4276
  %v4461 = vunpack.c.l.b16 %v4277
  %v4462 = vunpack.c.h.b16 %v4277
  %v4463 = vunpack.c.l.b16 %v4278
  %v4464 = vunpack.c.h.b16 %v4278
  %v4465 = vunpack.c.l.b16 %v4279
  %v4466 = vunpack.c.h.b16 %v4279
  %v4467 = vunpack.c.l.b16 %v4280
  %v4468 = vunpack.c.h.b16 %v4280
  %v4469 = vunpack.c.l.b16 %v4281
  %v4470 = vunpack.c.h.b16 %v4281
  %v4471 = vunpack.c.l.b16 %v4282
  %v4472 = vunpack.c.h.b16 %v4282
  %v4473 = vunpack.c.l.b16 %v4283
  %v4474 = vunpack.c.h.b16 %v4283
  %v4475 = vunpack.c.l.b16 %v4284
  %v4476 = vunpack.c.h.b16 %v4284
  %v4477 = vpack.c.b16 %v4353, %v4349
  %v4478 = vpack.c.b16 %v4354, %v4350
  %v4479 = vpack.c.b16 %v4355, %v4351
  %v4480 = vpack.c.b16 %v4356, %v4352
  %v4481 = vpack.c.b16 %v4361, %v4357
  %v4482 = vpack.c.b16 %v4362, %v4358
  %v4483 = vpack.c.b16 %v4363, %v4359
  %v4484 = vpack.c.b16 %v4364, %v4360
  %v4485 = vpack.c.b16 %v4369, %v4365
  %v4486 = vpack.c.b16 %v4370, %v4366
  %v4487 = vpack.c.b16 %v4371, %v4367
  %v4488 = vpack.c.b16 %v4372, %v4368
  %v4489 = vpack.c.b16 %v4377, %v4373
  %v4490 = vpack.c.b16 %v4378, %v4374
  %v4491 = vpack.c.b16 %v4379, %v4375
  %v4492 = vpack.c.b16 %v4380, %v4376
  %v4493 = vpack.c.b16 %v4385, %v4381
  %v4494 = vpack.c.b16 %v4386, %v4382
  %v4495 = vpack.c.b16 %v4387, %v4383
  %v4496 = vpack.c.b16 %v4388, %v4384
  %v4497 = vpack.c.b16 %v4393, %v4389
  %v4498 = vpack.c.b16 %v4394, %v4390
  %v4499 = vpack.c.b16 %v4395, %v4391
  %v4500 = vpack.c.b16 %v4396, %v4392
  %v4501 = vpack.c.b16 %v4401, %v4397
  %v4502 = vpack.c.b16 %v4402, %v4398
  %v4503 = vpack.c.b16 %v4403, %v4399
  %v4504 = vpack.c.b16 %v4404, %v4400
  %v4505 = vpack.c.b16 %v4409, %v4405
  %v4506 = vpack.c.b16 %v4410, %v4406
  %v4507 = vpack.c.b16 %v4411, %v4407
  %v4508 = vpack.c.b16 %v4412, %v4408
  %v4509 = vpack.c.b16 %v4417, %v4413
  %v4510 = vpack.c.b16 %v4418, %v4414
  %v4511 = vpack.c.b16 %v4419, %v4415
  %v4512 = vpack.c.b16 %v4420, %v4416
  %v4513 = vpack.c.b16 %v4425, %v4421
  %v4514 = vpack.c.b16 %v4426, %v4422
  %v4515 = vpack.c.b16 %v4427, %v4423
  %v4516 = vpack.c.b16 %v4428, %v4424
  %v4517 = vpack.c.b16 %v4433, %v4429
  %v4518 = vpack.c.b16 %v4434, %v4430
  %v4519 = vpack.c.b16 %v4435, %v4431
  %v4520 = vpack.c.b16 %v4436, %v4432
  %v4521 = vpack.c.b16 %v4441, %v4437
  %v4522 = vpack.c.b16 %v4442, %v4438
  %v4523 = vpack.c.b16 %v4443, %v4439
  %v4524 = vpack.c.b16 %v4444, %v4440
  %v4525 = vpack.c.b16 %v4449, %v4445
  %v4526 = vpack.c.b16 %v4450, %v4446
  %v4527 = vpack.c.b16 %v4451, %v4447
  %v4528 = vpack.c.b16 %v4452, %v4448
  %v4529 = vpack.c.b16 %v4457, %v4453
  %v4530 = vpack.c.b16 %v4458, %v4454
  %v4531 = vpack.c.b16 %v4459, %v4455
  %v4532 = vpack.c.b16 %v4460, %v4456
  %v4533 = vpack.c.b16 %v4465, %v4461
  %v4534 = vpack.c.b16 %v4466, %v4462
  %v4535 = vpack.c.b16 %v4467, %v4463
  %v4536 = vpack.c.b16 %v4468, %v4464
  %v4537 = vpack.c.b16 %v4473, %v4469
  %v4538 = vpack.c.b16 %v4474, %v4470
  %v4539 = vpack.c.b16 %v4475, %v4471
  %v4540 = vpack.c.b16 %v4476, %v4472
  %4605 = vmatprep.subr.bf16.mxu0 %v4478
  %4606 = vmatpush1.bf16.msra.mxu0 %v4477
  %4607 = vmatprep.subr.bf16.mxu0 %v4482
  %4608 = vmatpush1.bf16.msra.mxu0 %v4481
  %4609 = vmatprep.subr.bf16.mxu0 %v4486
  %4610 = vmatpush1.bf16.msra.mxu0 %v4485
  %4611 = vmatprep.subr.bf16.mxu0 %v4490
  %4612 = vmatpush1.bf16.msra.mxu0 %v4489
  %4613 = vmatprep.subr.bf16.mxu0 %v4494
  %4614 = vmatpush1.bf16.msra.mxu0 %v4493
  %4615 = vmatprep.subr.bf16.mxu0 %v4498
  %4616 = vmatpush1.bf16.msra.mxu0 %v4497
  %4617 = vmatprep.subr.bf16.mxu0 %v4502
  %4618 = vmatpush1.bf16.msra.mxu0 %v4501
  %4619 = vmatprep.subr.bf16.mxu0 %v4506
  %4620 = vmatpush1.bf16.msra.mxu0 %v4505
  %4621 = vmatprep.subr.bf16.mxu0 %v4510
  %4622 = vmatpush1.bf16.msra.mxu0 %v4509
  %4623 = vmatprep.subr.bf16.mxu0 %v4514
  %4624 = vmatpush1.bf16.msra.mxu0 %v4513
  %4625 = vmatprep.subr.bf16.mxu0 %v4518
  %4626 = vmatpush1.bf16.msra.mxu0 %v4517
  %4627 = vmatprep.subr.bf16.mxu0 %v4522
  %4628 = vmatpush1.bf16.msra.mxu0 %v4521
  %4629 = vmatprep.subr.bf16.mxu0 %v4526
  %4630 = vmatpush1.bf16.msra.mxu0 %v4525
  %4631 = vmatprep.subr.bf16.mxu0 %v4530
  %4632 = vmatpush1.bf16.msra.mxu0 %v4529
  %4633 = vmatprep.subr.bf16.mxu0 %v4534
  %4634 = vmatpush1.bf16.msra.mxu0 %v4533
  %4635 = vmatprep.subr.bf16.mxu0 %v4538
  %4636 = vmatpush1.bf16.msra.mxu0 %v4537
  %4637 = vmatprep.mubr.bf16.mxu0 %v2789
  %4638 = vmatmul.mubr.bf16.gmra.mrb[0].mxu0 %v2788
  %v4639 = vpop.f32.mrb[0].mxu0
  %v4640 = vadd.f32 0.0, %v4639
  %v4641 = vpop.f32.mrb[0].mxu0
  %v4642 = vadd.f32 0.0, %v4641
  %v4643 = vpop.f32.mrb[0].mxu0
  %v4644 = vadd.f32 0.0, %v4643
  %v4645 = vpop.f32.mrb[0].mxu0
  %v4646 = vadd.f32 0.0, %v4645
  %4647 = vdwg.mxu0
  %4648 = vmatprep.subr.bf16.mxu0 %v4480
  %4649 = vmatpush1.bf16.msra.mxu0 %v4479
  %4650 = vmatprep.subr.bf16.mxu0 %v4484
  %4651 = vmatpush1.bf16.msra.mxu0 %v4483
  %4652 = vmatprep.subr.bf16.mxu0 %v4488
  %4653 = vmatpush1.bf16.msra.mxu0 %v4487
  %4654 = vmatprep.subr.bf16.mxu0 %v4492
  %4655 = vmatpush1.bf16.msra.mxu0 %v4491
  %4656 = vmatprep.subr.bf16.mxu0 %v4496
  %4657 = vmatpush1.bf16.msra.mxu0 %v4495
  %4658 = vmatprep.subr.bf16.mxu0 %v4500
  %4659 = vmatpush1.bf16.msra.mxu0 %v4499
  %4660 = vmatprep.subr.bf16.mxu0 %v4504
  %4661 = vmatpush1.bf16.msra.mxu0 %v4503
  %4662 = vmatprep.subr.bf16.mxu0 %v4508
  %4663 = vmatpush1.bf16.msra.mxu0 %v4507
  %4664 = vmatprep.subr.bf16.mxu0 %v4512
  %4665 = vmatpush1.bf16.msra.mxu0 %v4511
  %4666 = vmatprep.subr.bf16.mxu0 %v4516
  %4667 = vmatpush1.bf16.msra.mxu0 %v4515
  %4668 = vmatprep.subr.bf16.mxu0 %v4520
  %4669 = vmatpush1.bf16.msra.mxu0 %v4519
  %4670 = vmatprep.subr.bf16.mxu0 %v4524
  %4671 = vmatpush1.bf16.msra.mxu0 %v4523
  %4672 = vmatprep.subr.bf16.mxu0 %v4528
  %4673 = vmatpush1.bf16.msra.mxu0 %v4527
  %4674 = vmatprep.subr.bf16.mxu0 %v4532
  %4675 = vmatpush1.bf16.msra.mxu0 %v4531
  %4676 = vmatprep.subr.bf16.mxu0 %v4536
  %4677 = vmatpush1.bf16.msra.mxu0 %v4535
  %4678 = vmatprep.subr.bf16.mxu0 %v4540
  %4679 = vmatpush1.bf16.msra.mxu0 %v4539
  %4680 = vmatprep.mubr.bf16.mxu0 %v2789
  %4681 = vmatmul.mubr.bf16.gmra.mrb[0].mxu0 %v2788
  %v4682 = vpop.f32.mrb[0].mxu0
  %v4683 = vadd.f32 0.0, %v4682
  %v4684 = vpop.f32.mrb[0].mxu0
  %v4685 = vadd.f32 0.0, %v4684
  %v4686 = vpop.f32.mrb[0].mxu0
  %v4687 = vadd.f32 0.0, %v4686
  %v4688 = vpop.f32.mrb[0].mxu0
  %v4689 = vadd.f32 0.0, %v4688
  %4690 = vdwg.mxu0
  %v4691 = vadd.f32 %v4212, %v4640
  %v4692 = vadd.f32 %v4213, %v4642
  %v4693 = vadd.f32 %v4214, %v4683
  %v4694 = vadd.f32 %v4215, %v4685
  %v4695 = vadd.f32 %v4216, %v4644
  %v4696 = vadd.f32 %v4217, %v4646
  %v4697 = vadd.f32 %v4218, %v4687
  %v4698 = vadd.f32 %v4219, %v4689
  %s4699 = scalar_lea.vmem %s7, 2048
  %v4700 = vld [vmem:[%s4699] sm:$0xff]
  %v4701 = vld [vmem:[%s4699 + $0x8] sm:$0xff]
  %v4702 = vld [vmem:[%s4699 + $0x10] sm:$0xff]
  %v4703 = vld [vmem:[%s4699 + $0x18] sm:$0xff]
  %v4704 = vld [vmem:[%s4699 + $0x20] sm:$0xff]
  %v4705 = vld [vmem:[%s4699 + $0x28] sm:$0xff]
  %v4706 = vld [vmem:[%s4699 + $0x30] sm:$0xff]
  %v4707 = vld [vmem:[%s4699 + $0x38] sm:$0xff]
  %v4708 = vld [vmem:[%s4699 + $0x40] sm:$0xff]
  %v4709 = vld [vmem:[%s4699 + $0x48] sm:$0xff]
  %v4710 = vld [vmem:[%s4699 + $0x50] sm:$0xff]
  %v4711 = vld [vmem:[%s4699 + $0x58] sm:$0xff]
  %v4712 = vld [vmem:[%s4699 + $0x60] sm:$0xff]
  %v4713 = vld [vmem:[%s4699 + $0x68] sm:$0xff]
  %v4714 = vld [vmem:[%s4699 + $0x70] sm:$0xff]
  %v4715 = vld [vmem:[%s4699 + $0x78] sm:$0xff]
  %v4716 = vld [vmem:[%s4699 + $0x80] sm:$0xff]
  %v4717 = vld [vmem:[%s4699 + $0x88] sm:$0xff]
  %v4718 = vld [vmem:[%s4699 + $0x90] sm:$0xff]
  %v4719 = vld [vmem:[%s4699 + $0x98] sm:$0xff]
  %v4720 = vld [vmem:[%s4699 + $0xa0] sm:$0xff]
  %v4721 = vld [vmem:[%s4699 + $0xa8] sm:$0xff]
  %v4722 = vld [vmem:[%s4699 + $0xb0] sm:$0xff]
  %v4723 = vld [vmem:[%s4699 + $0xb8] sm:$0xff]
  %v4724 = vld [vmem:[%s4699 + $0xc0] sm:$0xff]
  %v4725 = vld [vmem:[%s4699 + $0xc8] sm:$0xff]
  %v4726 = vld [vmem:[%s4699 + $0xd0] sm:$0xff]
  %v4727 = vld [vmem:[%s4699 + $0xd8] sm:$0xff]
  %v4728 = vld [vmem:[%s4699 + $0xe0] sm:$0xff]
  %v4729 = vld [vmem:[%s4699 + $0xe8] sm:$0xff]
  %v4730 = vld [vmem:[%s4699 + $0xf0] sm:$0xff]
  %v4731 = vld [vmem:[%s4699 + $0xf8] sm:$0xff]
  %v4732 = vld [vmem:[%s4699 + $0x100] sm:$0xff]
  %v4733 = vld [vmem:[%s4699 + $0x108] sm:$0xff]
  %v4734 = vld [vmem:[%s4699 + $0x110] sm:$0xff]
  %v4735 = vld [vmem:[%s4699 + $0x118] sm:$0xff]
  %v4736 = vld [vmem:[%s4699 + $0x120] sm:$0xff]
  %v4737 = vld [vmem:[%s4699 + $0x128] sm:$0xff]
  %v4738 = vld [vmem:[%s4699 + $0x130] sm:$0xff]
  %v4739 = vld [vmem:[%s4699 + $0x138] sm:$0xff]
  %v4740 = vld [vmem:[%s4699 + $0x140] sm:$0xff]
  %v4741 = vld [vmem:[%s4699 + $0x148] sm:$0xff]
  %v4742 = vld [vmem:[%s4699 + $0x150] sm:$0xff]
  %v4743 = vld [vmem:[%s4699 + $0x158] sm:$0xff]
  %v4744 = vld [vmem:[%s4699 + $0x160] sm:$0xff]
  %v4745 = vld [vmem:[%s4699 + $0x168] sm:$0xff]
  %v4746 = vld [vmem:[%s4699 + $0x170] sm:$0xff]
  %v4747 = vld [vmem:[%s4699 + $0x178] sm:$0xff]
  %v4748 = vld [vmem:[%s4699 + $0x180] sm:$0xff]
  %v4749 = vld [vmem:[%s4699 + $0x188] sm:$0xff]
  %v4750 = vld [vmem:[%s4699 + $0x190] sm:$0xff]
  %v4751 = vld [vmem:[%s4699 + $0x198] sm:$0xff]
  %v4752 = vld [vmem:[%s4699 + $0x1a0] sm:$0xff]
  %v4753 = vld [vmem:[%s4699 + $0x1a8] sm:$0xff]
  %v4754 = vld [vmem:[%s4699 + $0x1b0] sm:$0xff]
  %v4755 = vld [vmem:[%s4699 + $0x1b8] sm:$0xff]
  %v4756 = vld [vmem:[%s4699 + $0x1c0] sm:$0xff]
  %v4757 = vld [vmem:[%s4699 + $0x1c8] sm:$0xff]
  %v4758 = vld [vmem:[%s4699 + $0x1d0] sm:$0xff]
  %v4759 = vld [vmem:[%s4699 + $0x1d8] sm:$0xff]
  %v4760 = vld [vmem:[%s4699 + $0x1e0] sm:$0xff]
  %v4761 = vld [vmem:[%s4699 + $0x1e8] sm:$0xff]
  %v4762 = vld [vmem:[%s4699 + $0x1f0] sm:$0xff]
  %v4763 = vld [vmem:[%s4699 + $0x1f8] sm:$0xff]
  %v4828 = vunpack.c.l.b16 %v4700
  %v4829 = vunpack.c.h.b16 %v4700
  %v4830 = vunpack.c.l.b16 %v4701
  %v4831 = vunpack.c.h.b16 %v4701
  %v4832 = vunpack.c.l.b16 %v4702
  %v4833 = vunpack.c.h.b16 %v4702
  %v4834 = vunpack.c.l.b16 %v4703
  %v4835 = vunpack.c.h.b16 %v4703
  %v4836 = vunpack.c.l.b16 %v4704
  %v4837 = vunpack.c.h.b16 %v4704
  %v4838 = vunpack.c.l.b16 %v4705
  %v4839 = vunpack.c.h.b16 %v4705
  %v4840 = vunpack.c.l.b16 %v4706
  %v4841 = vunpack.c.h.b16 %v4706
  %v4842 = vunpack.c.l.b16 %v4707
  %v4843 = vunpack.c.h.b16 %v4707
  %v4844 = vunpack.c.l.b16 %v4708
  %v4845 = vunpack.c.h.b16 %v4708
  %v4846 = vunpack.c.l.b16 %v4709
  %v4847 = vunpack.c.h.b16 %v4709
  %v4848 = vunpack.c.l.b16 %v4710
  %v4849 = vunpack.c.h.b16 %v4710
  %v4850 = vunpack.c.l.b16 %v4711
  %v4851 = vunpack.c.h.b16 %v4711
  %v4852 = vunpack.c.l.b16 %v4712
  %v4853 = vunpack.c.h.b16 %v4712
  %v4854 = vunpack.c.l.b16 %v4713
  %v4855 = vunpack.c.h.b16 %v4713
  %v4856 = vunpack.c.l.b16 %v4714
  %v4857 = vunpack.c.h.b16 %v4714
  %v4858 = vunpack.c.l.b16 %v4715
  %v4859 = vunpack.c.h.b16 %v4715
  %v4860 = vunpack.c.l.b16 %v4716
  %v4861 = vunpack.c.h.b16 %v4716
  %v4862 = vunpack.c.l.b16 %v4717
  %v4863 = vunpack.c.h.b16 %v4717
  %v4864 = vunpack.c.l.b16 %v4718
  %v4865 = vunpack.c.h.b16 %v4718
  %v4866 = vunpack.c.l.b16 %v4719
  %v4867 = vunpack.c.h.b16 %v4719
  %v4868 = vunpack.c.l.b16 %v4720
  %v4869 = vunpack.c.h.b16 %v4720
  %v4870 = vunpack.c.l.b16 %v4721
  %v4871 = vunpack.c.h.b16 %v4721
  %v4872 = vunpack.c.l.b16 %v4722
  %v4873 = vunpack.c.h.b16 %v4722
  %v4874 = vunpack.c.l.b16 %v4723
  %v4875 = vunpack.c.h.b16 %v4723
  %v4876 = vunpack.c.l.b16 %v4724
  %v4877 = vunpack.c.h.b16 %v4724
  %v4878 = vunpack.c.l.b16 %v4725
  %v4879 = vunpack.c.h.b16 %v4725
  %v4880 = vunpack.c.l.b16 %v4726
  %v4881 = vunpack.c.h.b16 %v4726
  %v4882 = vunpack.c.l.b16 %v4727
  %v4883 = vunpack.c.h.b16 %v4727
  %v4884 = vunpack.c.l.b16 %v4728
  %v4885 = vunpack.c.h.b16 %v4728
  %v4886 = vunpack.c.l.b16 %v4729
  %v4887 = vunpack.c.h.b16 %v4729
  %v4888 = vunpack.c.l.b16 %v4730
  %v4889 = vunpack.c.h.b16 %v4730
  %v4890 = vunpack.c.l.b16 %v4731
  %v4891 = vunpack.c.h.b16 %v4731
  %v4892 = vunpack.c.l.b16 %v4732
  %v4893 = vunpack.c.h.b16 %v4732
  %v4894 = vunpack.c.l.b16 %v4733
  %v4895 = vunpack.c.h.b16 %v4733
  %v4896 = vunpack.c.l.b16 %v4734
  %v4897 = vunpack.c.h.b16 %v4734
  %v4898 = vunpack.c.l.b16 %v4735
  %v4899 = vunpack.c.h.b16 %v4735
  %v4900 = vunpack.c.l.b16 %v4736
  %v4901 = vunpack.c.h.b16 %v4736
  %v4902 = vunpack.c.l.b16 %v4737
  %v4903 = vunpack.c.h.b16 %v4737
  %v4904 = vunpack.c.l.b16 %v4738
  %v4905 = vunpack.c.h.b16 %v4738
  %v4906 = vunpack.c.l.b16 %v4739
  %v4907 = vunpack.c.h.b16 %v4739
  %v4908 = vunpack.c.l.b16 %v4740
  %v4909 = vunpack.c.h.b16 %v4740
  %v4910 = vunpack.c.l.b16 %v4741
  %v4911 = vunpack.c.h.b16 %v4741
  %v4912 = vunpack.c.l.b16 %v4742
  %v4913 = vunpack.c.h.b16 %v4742
  %v4914 = vunpack.c.l.b16 %v4743
  %v4915 = vunpack.c.h.b16 %v4743
  %v4916 = vunpack.c.l.b16 %v4744
  %v4917 = vunpack.c.h.b16 %v4744
  %v4918 = vunpack.c.l.b16 %v4745
  %v4919 = vunpack.c.h.b16 %v4745
  %v4920 = vunpack.c.l.b16 %v4746
  %v4921 = vunpack.c.h.b16 %v4746
  %v4922 = vunpack.c.l.b16 %v4747
  %v4923 = vunpack.c.h.b16 %v4747
  %v4924 = vunpack.c.l.b16 %v4748
  %v4925 = vunpack.c.h.b16 %v4748
  %v4926 = vunpack.c.l.b16 %v4749
  %v4927 = vunpack.c.h.b16 %v4749
  %v4928 = vunpack.c.l.b16 %v4750
  %v4929 = vunpack.c.h.b16 %v4750
  %v4930 = vunpack.c.l.b16 %v4751
  %v4931 = vunpack.c.h.b16 %v4751
  %v4932 = vunpack.c.l.b16 %v4752
  %v4933 = vunpack.c.h.b16 %v4752
  %v4934 = vunpack.c.l.b16 %v4753
  %v4935 = vunpack.c.h.b16 %v4753
  %v4936 = vunpack.c.l.b16 %v4754
  %v4937 = vunpack.c.h.b16 %v4754
  %v4938 = vunpack.c.l.b16 %v4755
  %v4939 = vunpack.c.h.b16 %v4755
  %v4940 = vunpack.c.l.b16 %v4756
  %v4941 = vunpack.c.h.b16 %v4756
  %v4942 = vunpack.c.l.b16 %v4757
  %v4943 = vunpack.c.h.b16 %v4757
  %v4944 = vunpack.c.l.b16 %v4758
  %v4945 = vunpack.c.h.b16 %v4758
  %v4946 = vunpack.c.l.b16 %v4759
  %v4947 = vunpack.c.h.b16 %v4759
  %v4948 = vunpack.c.l.b16 %v4760
  %v4949 = vunpack.c.h.b16 %v4760
  %v4950 = vunpack.c.l.b16 %v4761
  %v4951 = vunpack.c.h.b16 %v4761
  %v4952 = vunpack.c.l.b16 %v4762
  %v4953 = vunpack.c.h.b16 %v4762
  %v4954 = vunpack.c.l.b16 %v4763
  %v4955 = vunpack.c.h.b16 %v4763
  %v4956 = vpack.c.b16 %v4832, %v4828
  %v4957 = vpack.c.b16 %v4833, %v4829
  %v4958 = vpack.c.b16 %v4834, %v4830
  %v4959 = vpack.c.b16 %v4835, %v4831
  %v4960 = vpack.c.b16 %v4840, %v4836
  %v4961 = vpack.c.b16 %v4841, %v4837
  %v4962 = vpack.c.b16 %v4842, %v4838
  %v4963 = vpack.c.b16 %v4843, %v4839
  %v4964 = vpack.c.b16 %v4848, %v4844
  %v4965 = vpack.c.b16 %v4849, %v4845
  %v4966 = vpack.c.b16 %v4850, %v4846
  %v4967 = vpack.c.b16 %v4851, %v4847
  %v4968 = vpack.c.b16 %v4856, %v4852
  %v4969 = vpack.c.b16 %v4857, %v4853
  %v4970 = vpack.c.b16 %v4858, %v4854
  %v4971 = vpack.c.b16 %v4859, %v4855
  %v4972 = vpack.c.b16 %v4864, %v4860
  %v4973 = vpack.c.b16 %v4865, %v4861
  %v4974 = vpack.c.b16 %v4866, %v4862
  %v4975 = vpack.c.b16 %v4867, %v4863
  %v4976 = vpack.c.b16 %v4872, %v4868
  %v4977 = vpack.c.b16 %v4873, %v4869
  %v4978 = vpack.c.b16 %v4874, %v4870
  %v4979 = vpack.c.b16 %v4875, %v4871
  %v4980 = vpack.c.b16 %v4880, %v4876
  %v4981 = vpack.c.b16 %v4881, %v4877
  %v4982 = vpack.c.b16 %v4882, %v4878
  %v4983 = vpack.c.b16 %v4883, %v4879
  %v4984 = vpack.c.b16 %v4888, %v4884
  %v4985 = vpack.c.b16 %v4889, %v4885
  %v4986 = vpack.c.b16 %v4890, %v4886
  %v4987 = vpack.c.b16 %v4891, %v4887
  %v4988 = vpack.c.b16 %v4896, %v4892
  %v4989 = vpack.c.b16 %v4897, %v4893
  %v4990 = vpack.c.b16 %v4898, %v4894
  %v4991 = vpack.c.b16 %v4899, %v4895
  %v4992 = vpack.c.b16 %v4904, %v4900
  %v4993 = vpack.c.b16 %v4905, %v4901
  %v4994 = vpack.c.b16 %v4906, %v4902
  %v4995 = vpack.c.b16 %v4907, %v4903
  %v4996 = vpack.c.b16 %v4912, %v4908
  %v4997 = vpack.c.b16 %v4913, %v4909
  %v4998 = vpack.c.b16 %v4914, %v4910
  %v4999 = vpack.c.b16 %v4915, %v4911
  %v5000 = vpack.c.b16 %v4920, %v4916
  %v5001 = vpack.c.b16 %v4921, %v4917
  %v5002 = vpack.c.b16 %v4922, %v4918
  %v5003 = vpack.c.b16 %v4923, %v4919
  %v5004 = vpack.c.b16 %v4928, %v4924
  %v5005 = vpack.c.b16 %v4929, %v4925
  %v5006 = vpack.c.b16 %v4930, %v4926
  %v5007 = vpack.c.b16 %v4931, %v4927
  %v5008 = vpack.c.b16 %v4936, %v4932
  %v5009 = vpack.c.b16 %v4937, %v4933
  %v5010 = vpack.c.b16 %v4938, %v4934
  %v5011 = vpack.c.b16 %v4939, %v4935
  %v5012 = vpack.c.b16 %v4944, %v4940
  %v5013 = vpack.c.b16 %v4945, %v4941
  %v5014 = vpack.c.b16 %v4946, %v4942
  %v5015 = vpack.c.b16 %v4947, %v4943
  %v5016 = vpack.c.b16 %v4952, %v4948
  %v5017 = vpack.c.b16 %v4953, %v4949
  %v5018 = vpack.c.b16 %v4954, %v4950
  %v5019 = vpack.c.b16 %v4955, %v4951
  %5084 = vmatprep.subr.bf16.mxu0 %v4957
  %5085 = vmatpush1.bf16.msra.mxu0 %v4956
  %5086 = vmatprep.subr.bf16.mxu0 %v4961
  %5087 = vmatpush1.bf16.msra.mxu0 %v4960
  %5088 = vmatprep.subr.bf16.mxu0 %v4965
  %5089 = vmatpush1.bf16.msra.mxu0 %v4964
  %5090 = vmatprep.subr.bf16.mxu0 %v4969
  %5091 = vmatpush1.bf16.msra.mxu0 %v4968
  %5092 = vmatprep.subr.bf16.mxu0 %v4973
  %5093 = vmatpush1.bf16.msra.mxu0 %v4972
  %5094 = vmatprep.subr.bf16.mxu0 %v4977
  %5095 = vmatpush1.bf16.msra.mxu0 %v4976
  %5096 = vmatprep.subr.bf16.mxu0 %v4981
  %5097 = vmatpush1.bf16.msra.mxu0 %v4980
  %5098 = vmatprep.subr.bf16.mxu0 %v4985
  %5099 = vmatpush1.bf16.msra.mxu0 %v4984
  %5100 = vmatprep.subr.bf16.mxu0 %v4989
  %5101 = vmatpush1.bf16.msra.mxu0 %v4988
  %5102 = vmatprep.subr.bf16.mxu0 %v4993
  %5103 = vmatpush1.bf16.msra.mxu0 %v4992
  %5104 = vmatprep.subr.bf16.mxu0 %v4997
  %5105 = vmatpush1.bf16.msra.mxu0 %v4996
  %5106 = vmatprep.subr.bf16.mxu0 %v5001
  %5107 = vmatpush1.bf16.msra.mxu0 %v5000
  %5108 = vmatprep.subr.bf16.mxu0 %v5005
  %5109 = vmatpush1.bf16.msra.mxu0 %v5004
  %5110 = vmatprep.subr.bf16.mxu0 %v5009
  %5111 = vmatpush1.bf16.msra.mxu0 %v5008
  %5112 = vmatprep.subr.bf16.mxu0 %v5013
  %5113 = vmatpush1.bf16.msra.mxu0 %v5012
  %5114 = vmatprep.subr.bf16.mxu0 %v5017
  %5115 = vmatpush1.bf16.msra.mxu0 %v5016
  %5116 = vmatprep.mubr.bf16.mxu0 %v2791
  %5117 = vmatmul.mubr.bf16.gmra.mrb[0].mxu0 %v2790
  %v5118 = vpop.f32.mrb[0].mxu0
  %v5119 = vadd.f32 0.0, %v5118
  %v5120 = vpop.f32.mrb[0].mxu0
  %v5121 = vadd.f32 0.0, %v5120
  %v5122 = vpop.f32.mrb[0].mxu0
  %v5123 = vadd.f32 0.0, %v5122
  %v5124 = vpop.f32.mrb[0].mxu0
  %v5125 = vadd.f32 0.0, %v5124
  %5126 = vdwg.mxu0
  %5127 = vmatprep.subr.bf16.mxu0 %v4959
  %5128 = vmatpush1.bf16.msra.mxu0 %v4958
  %5129 = vmatprep.subr.bf16.mxu0 %v4963
  %5130 = vmatpush1.bf16.msra.mxu0 %v4962
  %5131 = vmatprep.subr.bf16.mxu0 %v4967
  %5132 = vmatpush1.bf16.msra.mxu0 %v4966
  %5133 = vmatprep.subr.bf16.mxu0 %v4971
  %5134 = vmatpush1.bf16.msra.mxu0 %v4970
  %5135 = vmatprep.subr.bf16.mxu0 %v4975
  %5136 = vmatpush1.bf16.msra.mxu0 %v4974
  %5137 = vmatprep.subr.bf16.mxu0 %v4979
  %5138 = vmatpush1.bf16.msra.mxu0 %v4978
  %5139 = vmatprep.subr.bf16.mxu0 %v4983
  %5140 = vmatpush1.bf16.msra.mxu0 %v4982
  %5141 = vmatprep.subr.bf16.mxu0 %v4987
  %5142 = vmatpush1.bf16.msra.mxu0 %v4986
  %5143 = vmatprep.subr.bf16.mxu0 %v4991
  %5144 = vmatpush1.bf16.msra.mxu0 %v4990
  %5145 = vmatprep.subr.bf16.mxu0 %v4995
  %5146 = vmatpush1.bf16.msra.mxu0 %v4994
  %5147 = vmatprep.subr.bf16.mxu0 %v4999
  %5148 = vmatpush1.bf16.msra.mxu0 %v4998
  %5149 = vmatprep.subr.bf16.mxu0 %v5003
  %5150 = vmatpush1.bf16.msra.mxu0 %v5002
  %5151 = vmatprep.subr.bf16.mxu0 %v5007
  %5152 = vmatpush1.bf16.msra.mxu0 %v5006
  %5153 = vmatprep.subr.bf16.mxu0 %v5011
  %5154 = vmatpush1.bf16.msra.mxu0 %v5010
  %5155 = vmatprep.subr.bf16.mxu0 %v5015
  %5156 = vmatpush1.bf16.msra.mxu0 %v5014
  %5157 = vmatprep.subr.bf16.mxu0 %v5019
  %5158 = vmatpush1.bf16.msra.mxu0 %v5018
  %5159 = vmatprep.mubr.bf16.mxu0 %v2791
  %5160 = vmatmul.mubr.bf16.gmra.mrb[0].mxu0 %v2790
  %v5161 = vpop.f32.mrb[0].mxu0
  %v5162 = vadd.f32 0.0, %v5161
  %v5163 = vpop.f32.mrb[0].mxu0
  %v5164 = vadd.f32 0.0, %v5163
  %v5165 = vpop.f32.mrb[0].mxu0
  %v5166 = vadd.f32 0.0, %v5165
  %v5167 = vpop.f32.mrb[0].mxu0
  %v5168 = vadd.f32 0.0, %v5167
  %5169 = vdwg.mxu0
  %v5170 = vadd.f32 %v4691, %v5119
  %v5171 = vadd.f32 %v4692, %v5121
  %v5172 = vadd.f32 %v4693, %v5162
  %v5173 = vadd.f32 %v4694, %v5164
  %v5174 = vadd.f32 %v4695, %v5123
  %v5175 = vadd.f32 %v4696, %v5125
  %v5176 = vadd.f32 %v4697, %v5166
  %v5177 = vadd.f32 %v4698, %v5168
  %s5178 = scalar_lea.vmem %s7, 2560
  %v5179 = vld [vmem:[%s5178] sm:$0xff]
  %v5180 = vld [vmem:[%s5178 + $0x8] sm:$0xff]
  %v5181 = vld [vmem:[%s5178 + $0x10] sm:$0xff]
  %v5182 = vld [vmem:[%s5178 + $0x18] sm:$0xff]
  %v5183 = vld [vmem:[%s5178 + $0x20] sm:$0xff]
  %v5184 = vld [vmem:[%s5178 + $0x28] sm:$0xff]
  %v5185 = vld [vmem:[%s5178 + $0x30] sm:$0xff]
  %v5186 = vld [vmem:[%s5178 + $0x38] sm:$0xff]
  %v5187 = vld [vmem:[%s5178 + $0x40] sm:$0xff]
  %v5188 = vld [vmem:[%s5178 + $0x48] sm:$0xff]
  %v5189 = vld [vmem:[%s5178 + $0x50] sm:$0xff]
  %v5190 = vld [vmem:[%s5178 + $0x58] sm:$0xff]
  %v5191 = vld [vmem:[%s5178 + $0x60] sm:$0xff]
  %v5192 = vld [vmem:[%s5178 + $0x68] sm:$0xff]
  %v5193 = vld [vmem:[%s5178 + $0x70] sm:$0xff]
  %v5194 = vld [vmem:[%s5178 + $0x78] sm:$0xff]
  %v5195 = vld [vmem:[%s5178 + $0x80] sm:$0xff]
  %v5196 = vld [vmem:[%s5178 + $0x88] sm:$0xff]
  %v5197 = vld [vmem:[%s5178 + $0x90] sm:$0xff]
  %v5198 = vld [vmem:[%s5178 + $0x98] sm:$0xff]
  %v5199 = vld [vmem:[%s5178 + $0xa0] sm:$0xff]
  %v5200 = vld [vmem:[%s5178 + $0xa8] sm:$0xff]
  %v5201 = vld [vmem:[%s5178 + $0xb0] sm:$0xff]
  %v5202 = vld [vmem:[%s5178 + $0xb8] sm:$0xff]
  %v5203 = vld [vmem:[%s5178 + $0xc0] sm:$0xff]
  %v5204 = vld [vmem:[%s5178 + $0xc8] sm:$0xff]
  %v5205 = vld [vmem:[%s5178 + $0xd0] sm:$0xff]
  %v5206 = vld [vmem:[%s5178 + $0xd8] sm:$0xff]
  %v5207 = vld [vmem:[%s5178 + $0xe0] sm:$0xff]
  %v5208 = vld [vmem:[%s5178 + $0xe8] sm:$0xff]
  %v5209 = vld [vmem:[%s5178 + $0xf0] sm:$0xff]
  %v5210 = vld [vmem:[%s5178 + $0xf8] sm:$0xff]
  %v5211 = vld [vmem:[%s5178 + $0x100] sm:$0xff]
  %v5212 = vld [vmem:[%s5178 + $0x108] sm:$0xff]
  %v5213 = vld [vmem:[%s5178 + $0x110] sm:$0xff]
  %v5214 = vld [vmem:[%s5178 + $0x118] sm:$0xff]
  %v5215 = vld [vmem:[%s5178 + $0x120] sm:$0xff]
  %v5216 = vld [vmem:[%s5178 + $0x128] sm:$0xff]
  %v5217 = vld [vmem:[%s5178 + $0x130] sm:$0xff]
  %v5218 = vld [vmem:[%s5178 + $0x138] sm:$0xff]
  %v5219 = vld [vmem:[%s5178 + $0x140] sm:$0xff]
  %v5220 = vld [vmem:[%s5178 + $0x148] sm:$0xff]
  %v5221 = vld [vmem:[%s5178 + $0x150] sm:$0xff]
  %v5222 = vld [vmem:[%s5178 + $0x158] sm:$0xff]
  %v5223 = vld [vmem:[%s5178 + $0x160] sm:$0xff]
  %v5224 = vld [vmem:[%s5178 + $0x168] sm:$0xff]
  %v5225 = vld [vmem:[%s5178 + $0x170] sm:$0xff]
  %v5226 = vld [vmem:[%s5178 + $0x178] sm:$0xff]
  %v5227 = vld [vmem:[%s5178 + $0x180] sm:$0xff]
  %v5228 = vld [vmem:[%s5178 + $0x188] sm:$0xff]
  %v5229 = vld [vmem:[%s5178 + $0x190] sm:$0xff]
  %v5230 = vld [vmem:[%s5178 + $0x198] sm:$0xff]
  %v5231 = vld [vmem:[%s5178 + $0x1a0] sm:$0xff]
  %v5232 = vld [vmem:[%s5178 + $0x1a8] sm:$0xff]
  %v5233 = vld [vmem:[%s5178 + $0x1b0] sm:$0xff]
  %v5234 = vld [vmem:[%s5178 + $0x1b8] sm:$0xff]
  %v5235 = vld [vmem:[%s5178 + $0x1c0] sm:$0xff]
  %v5236 = vld [vmem:[%s5178 + $0x1c8] sm:$0xff]
  %v5237 = vld [vmem:[%s5178 + $0x1d0] sm:$0xff]
  %v5238 = vld [vmem:[%s5178 + $0x1d8] sm:$0xff]
  %v5239 = vld [vmem:[%s5178 + $0x1e0] sm:$0xff]
  %v5240 = vld [vmem:[%s5178 + $0x1e8] sm:$0xff]
  %v5241 = vld [vmem:[%s5178 + $0x1f0] sm:$0xff]
  %v5242 = vld [vmem:[%s5178 + $0x1f8] sm:$0xff]
  %v5307 = vunpack.c.l.b16 %v5179
  %v5308 = vunpack.c.h.b16 %v5179
  %v5309 = vunpack.c.l.b16 %v5180
  %v5310 = vunpack.c.h.b16 %v5180
  %v5311 = vunpack.c.l.b16 %v5181
  %v5312 = vunpack.c.h.b16 %v5181
  %v5313 = vunpack.c.l.b16 %v5182
  %v5314 = vunpack.c.h.b16 %v5182
  %v5315 = vunpack.c.l.b16 %v5183
  %v5316 = vunpack.c.h.b16 %v5183
  %v5317 = vunpack.c.l.b16 %v5184
  %v5318 = vunpack.c.h.b16 %v5184
  %v5319 = vunpack.c.l.b16 %v5185
  %v5320 = vunpack.c.h.b16 %v5185
  %v5321 = vunpack.c.l.b16 %v5186
  %v5322 = vunpack.c.h.b16 %v5186
  %v5323 = vunpack.c.l.b16 %v5187
  %v5324 = vunpack.c.h.b16 %v5187
  %v5325 = vunpack.c.l.b16 %v5188
  %v5326 = vunpack.c.h.b16 %v5188
  %v5327 = vunpack.c.l.b16 %v5189
  %v5328 = vunpack.c.h.b16 %v5189
  %v5329 = vunpack.c.l.b16 %v5190
  %v5330 = vunpack.c.h.b16 %v5190
  %v5331 = vunpack.c.l.b16 %v5191
  %v5332 = vunpack.c.h.b16 %v5191
  %v5333 = vunpack.c.l.b16 %v5192
  %v5334 = vunpack.c.h.b16 %v5192
  %v5335 = vunpack.c.l.b16 %v5193
  %v5336 = vunpack.c.h.b16 %v5193
  %v5337 = vunpack.c.l.b16 %v5194
  %v5338 = vunpack.c.h.b16 %v5194
  %v5339 = vunpack.c.l.b16 %v5195
  %v5340 = vunpack.c.h.b16 %v5195
  %v5341 = vunpack.c.l.b16 %v5196
  %v5342 = vunpack.c.h.b16 %v5196
  %v5343 = vunpack.c.l.b16 %v5197
  %v5344 = vunpack.c.h.b16 %v5197
  %v5345 = vunpack.c.l.b16 %v5198
  %v5346 = vunpack.c.h.b16 %v5198
  %v5347 = vunpack.c.l.b16 %v5199
  %v5348 = vunpack.c.h.b16 %v5199
  %v5349 = vunpack.c.l.b16 %v5200
  %v5350 = vunpack.c.h.b16 %v5200
  %v5351 = vunpack.c.l.b16 %v5201
  %v5352 = vunpack.c.h.b16 %v5201
  %v5353 = vunpack.c.l.b16 %v5202
  %v5354 = vunpack.c.h.b16 %v5202
  %v5355 = vunpack.c.l.b16 %v5203
  %v5356 = vunpack.c.h.b16 %v5203
  %v5357 = vunpack.c.l.b16 %v5204
  %v5358 = vunpack.c.h.b16 %v5204
  %v5359 = vunpack.c.l.b16 %v5205
  %v5360 = vunpack.c.h.b16 %v5205
  %v5361 = vunpack.c.l.b16 %v5206
  %v5362 = vunpack.c.h.b16 %v5206
  %v5363 = vunpack.c.l.b16 %v5207
  %v5364 = vunpack.c.h.b16 %v5207
  %v5365 = vunpack.c.l.b16 %v5208
  %v5366 = vunpack.c.h.b16 %v5208
  %v5367 = vunpack.c.l.b16 %v5209
  %v5368 = vunpack.c.h.b16 %v5209
  %v5369 = vunpack.c.l.b16 %v5210
  %v5370 = vunpack.c.h.b16 %v5210
  %v5371 = vunpack.c.l.b16 %v5211
  %v5372 = vunpack.c.h.b16 %v5211
  %v5373 = vunpack.c.l.b16 %v5212
  %v5374 = vunpack.c.h.b16 %v5212
  %v5375 = vunpack.c.l.b16 %v5213
  %v5376 = vunpack.c.h.b16 %v5213
  %v5377 = vunpack.c.l.b16 %v5214
  %v5378 = vunpack.c.h.b16 %v5214
  %v5379 = vunpack.c.l.b16 %v5215
  %v5380 = vunpack.c.h.b16 %v5215
  %v5381 = vunpack.c.l.b16 %v5216
  %v5382 = vunpack.c.h.b16 %v5216
  %v5383 = vunpack.c.l.b16 %v5217
  %v5384 = vunpack.c.h.b16 %v5217
  %v5385 = vunpack.c.l.b16 %v5218
  %v5386 = vunpack.c.h.b16 %v5218
  %v5387 = vunpack.c.l.b16 %v5219
  %v5388 = vunpack.c.h.b16 %v5219
  %v5389 = vunpack.c.l.b16 %v5220
  %v5390 = vunpack.c.h.b16 %v5220
  %v5391 = vunpack.c.l.b16 %v5221
  %v5392 = vunpack.c.h.b16 %v5221
  %v5393 = vunpack.c.l.b16 %v5222
  %v5394 = vunpack.c.h.b16 %v5222
  %v5395 = vunpack.c.l.b16 %v5223
  %v5396 = vunpack.c.h.b16 %v5223
  %v5397 = vunpack.c.l.b16 %v5224
  %v5398 = vunpack.c.h.b16 %v5224
  %v5399 = vunpack.c.l.b16 %v5225
  %v5400 = vunpack.c.h.b16 %v5225
  %v5401 = vunpack.c.l.b16 %v5226
  %v5402 = vunpack.c.h.b16 %v5226
  %v5403 = vunpack.c.l.b16 %v5227
  %v5404 = vunpack.c.h.b16 %v5227
  %v5405 = vunpack.c.l.b16 %v5228
  %v5406 = vunpack.c.h.b16 %v5228
  %v5407 = vunpack.c.l.b16 %v5229
  %v5408 = vunpack.c.h.b16 %v5229
  %v5409 = vunpack.c.l.b16 %v5230
  %v5410 = vunpack.c.h.b16 %v5230
  %v5411 = vunpack.c.l.b16 %v5231
  %v5412 = vunpack.c.h.b16 %v5231
  %v5413 = vunpack.c.l.b16 %v5232
  %v5414 = vunpack.c.h.b16 %v5232
  %v5415 = vunpack.c.l.b16 %v5233
  %v5416 = vunpack.c.h.b16 %v5233
  %v5417 = vunpack.c.l.b16 %v5234
  %v5418 = vunpack.c.h.b16 %v5234
  %v5419 = vunpack.c.l.b16 %v5235
  %v5420 = vunpack.c.h.b16 %v5235
  %v5421 = vunpack.c.l.b16 %v5236
  %v5422 = vunpack.c.h.b16 %v5236
  %v5423 = vunpack.c.l.b16 %v5237
  %v5424 = vunpack.c.h.b16 %v5237
  %v5425 = vunpack.c.l.b16 %v5238
  %v5426 = vunpack.c.h.b16 %v5238
  %v5427 = vunpack.c.l.b16 %v5239
  %v5428 = vunpack.c.h.b16 %v5239
  %v5429 = vunpack.c.l.b16 %v5240
  %v5430 = vunpack.c.h.b16 %v5240
  %v5431 = vunpack.c.l.b16 %v5241
  %v5432 = vunpack.c.h.b16 %v5241
  %v5433 = vunpack.c.l.b16 %v5242
  %v5434 = vunpack.c.h.b16 %v5242
  %v5435 = vpack.c.b16 %v5311, %v5307
  %v5436 = vpack.c.b16 %v5312, %v5308
  %v5437 = vpack.c.b16 %v5313, %v5309
  %v5438 = vpack.c.b16 %v5314, %v5310
  %v5439 = vpack.c.b16 %v5319, %v5315
  %v5440 = vpack.c.b16 %v5320, %v5316
  %v5441 = vpack.c.b16 %v5321, %v5317
  %v5442 = vpack.c.b16 %v5322, %v5318
  %v5443 = vpack.c.b16 %v5327, %v5323
  %v5444 = vpack.c.b16 %v5328, %v5324
  %v5445 = vpack.c.b16 %v5329, %v5325
  %v5446 = vpack.c.b16 %v5330, %v5326
  %v5447 = vpack.c.b16 %v5335, %v5331
  %v5448 = vpack.c.b16 %v5336, %v5332
  %v5449 = vpack.c.b16 %v5337, %v5333
  %v5450 = vpack.c.b16 %v5338, %v5334
  %v5451 = vpack.c.b16 %v5343, %v5339
  %v5452 = vpack.c.b16 %v5344, %v5340
  %v5453 = vpack.c.b16 %v5345, %v5341
  %v5454 = vpack.c.b16 %v5346, %v5342
  %v5455 = vpack.c.b16 %v5351, %v5347
  %v5456 = vpack.c.b16 %v5352, %v5348
  %v5457 = vpack.c.b16 %v5353, %v5349
  %v5458 = vpack.c.b16 %v5354, %v5350
  %v5459 = vpack.c.b16 %v5359, %v5355
  %v5460 = vpack.c.b16 %v5360, %v5356
  %v5461 = vpack.c.b16 %v5361, %v5357
  %v5462 = vpack.c.b16 %v5362, %v5358
  %v5463 = vpack.c.b16 %v5367, %v5363
  %v5464 = vpack.c.b16 %v5368, %v5364
  %v5465 = vpack.c.b16 %v5369, %v5365
  %v5466 = vpack.c.b16 %v5370, %v5366
  %v5467 = vpack.c.b16 %v5375, %v5371
  %v5468 = vpack.c.b16 %v5376, %v5372
  %v5469 = vpack.c.b16 %v5377, %v5373
  %v5470 = vpack.c.b16 %v5378, %v5374
  %v5471 = vpack.c.b16 %v5383, %v5379
  %v5472 = vpack.c.b16 %v5384, %v5380
  %v5473 = vpack.c.b16 %v5385, %v5381
  %v5474 = vpack.c.b16 %v5386, %v5382
  %v5475 = vpack.c.b16 %v5391, %v5387
  %v5476 = vpack.c.b16 %v5392, %v5388
  %v5477 = vpack.c.b16 %v5393, %v5389
  %v5478 = vpack.c.b16 %v5394, %v5390
  %v5479 = vpack.c.b16 %v5399, %v5395
  %v5480 = vpack.c.b16 %v5400, %v5396
  %v5481 = vpack.c.b16 %v5401, %v5397
  %v5482 = vpack.c.b16 %v5402, %v5398
  %v5483 = vpack.c.b16 %v5407, %v5403
  %v5484 = vpack.c.b16 %v5408, %v5404
  %v5485 = vpack.c.b16 %v5409, %v5405
  %v5486 = vpack.c.b16 %v5410, %v5406
  %v5487 = vpack.c.b16 %v5415, %v5411
  %v5488 = vpack.c.b16 %v5416, %v5412
  %v5489 = vpack.c.b16 %v5417, %v5413
  %v5490 = vpack.c.b16 %v5418, %v5414
  %v5491 = vpack.c.b16 %v5423, %v5419
  %v5492 = vpack.c.b16 %v5424, %v5420
  %v5493 = vpack.c.b16 %v5425, %v5421
  %v5494 = vpack.c.b16 %v5426, %v5422
  %v5495 = vpack.c.b16 %v5431, %v5427
  %v5496 = vpack.c.b16 %v5432, %v5428
  %v5497 = vpack.c.b16 %v5433, %v5429
  %v5498 = vpack.c.b16 %v5434, %v5430
  %5563 = vmatprep.subr.bf16.mxu0 %v5436
  %5564 = vmatpush1.bf16.msra.mxu0 %v5435
  %5565 = vmatprep.subr.bf16.mxu0 %v5440
  %5566 = vmatpush1.bf16.msra.mxu0 %v5439
  %5567 = vmatprep.subr.bf16.mxu0 %v5444
  %5568 = vmatpush1.bf16.msra.mxu0 %v5443
  %5569 = vmatprep.subr.bf16.mxu0 %v5448
  %5570 = vmatpush1.bf16.msra.mxu0 %v5447
  %5571 = vmatprep.subr.bf16.mxu0 %v5452
  %5572 = vmatpush1.bf16.msra.mxu0 %v5451
  %5573 = vmatprep.subr.bf16.mxu0 %v5456
  %5574 = vmatpush1.bf16.msra.mxu0 %v5455
  %5575 = vmatprep.subr.bf16.mxu0 %v5460
  %5576 = vmatpush1.bf16.msra.mxu0 %v5459
  %5577 = vmatprep.subr.bf16.mxu0 %v5464
  %5578 = vmatpush1.bf16.msra.mxu0 %v5463
  %5579 = vmatprep.subr.bf16.mxu0 %v5468
  %5580 = vmatpush1.bf16.msra.mxu0 %v5467
  %5581 = vmatprep.subr.bf16.mxu0 %v5472
  %5582 = vmatpush1.bf16.msra.mxu0 %v5471
  %5583 = vmatprep.subr.bf16.mxu0 %v5476
  %5584 = vmatpush1.bf16.msra.mxu0 %v5475
  %5585 = vmatprep.subr.bf16.mxu0 %v5480
  %5586 = vmatpush1.bf16.msra.mxu0 %v5479
  %5587 = vmatprep.subr.bf16.mxu0 %v5484
  %5588 = vmatpush1.bf16.msra.mxu0 %v5483
  %5589 = vmatprep.subr.bf16.mxu0 %v5488
  %5590 = vmatpush1.bf16.msra.mxu0 %v5487
  %5591 = vmatprep.subr.bf16.mxu0 %v5492
  %5592 = vmatpush1.bf16.msra.mxu0 %v5491
  %5593 = vmatprep.subr.bf16.mxu0 %v5496
  %5594 = vmatpush1.bf16.msra.mxu0 %v5495
  %5595 = vmatprep.mubr.bf16.mxu0 %v2793
  %5596 = vmatmul.mubr.bf16.gmra.mrb[0].mxu0 %v2792
  %v5597 = vpop.f32.mrb[0].mxu0
  %v5598 = vadd.f32 0.0, %v5597
  %v5599 = vpop.f32.mrb[0].mxu0
  %v5600 = vadd.f32 0.0, %v5599
  %v5601 = vpop.f32.mrb[0].mxu0
  %v5602 = vadd.f32 0.0, %v5601
  %v5603 = vpop.f32.mrb[0].mxu0
  %v5604 = vadd.f32 0.0, %v5603
  %5605 = vdwg.mxu0
  %5606 = vmatprep.subr.bf16.mxu0 %v5438
  %5607 = vmatpush1.bf16.msra.mxu0 %v5437
  %5608 = vmatprep.subr.bf16.mxu0 %v5442
  %5609 = vmatpush1.bf16.msra.mxu0 %v5441
  %5610 = vmatprep.subr.bf16.mxu0 %v5446
  %5611 = vmatpush1.bf16.msra.mxu0 %v5445
  %5612 = vmatprep.subr.bf16.mxu0 %v5450
  %5613 = vmatpush1.bf16.msra.mxu0 %v5449
  %5614 = vmatprep.subr.bf16.mxu0 %v5454
  %5615 = vmatpush1.bf16.msra.mxu0 %v5453
  %5616 = vmatprep.subr.bf16.mxu0 %v5458
  %5617 = vmatpush1.bf16.msra.mxu0 %v5457
  %5618 = vmatprep.subr.bf16.mxu0 %v5462
  %5619 = vmatpush1.bf16.msra.mxu0 %v5461
  %5620 = vmatprep.subr.bf16.mxu0 %v5466
  %5621 = vmatpush1.bf16.msra.mxu0 %v5465
  %5622 = vmatprep.subr.bf16.mxu0 %v5470
  %5623 = vmatpush1.bf16.msra.mxu0 %v5469
  %5624 = vmatprep.subr.bf16.mxu0 %v5474
  %5625 = vmatpush1.bf16.msra.mxu0 %v5473
  %5626 = vmatprep.subr.bf16.mxu0 %v5478
  %5627 = vmatpush1.bf16.msra.mxu0 %v5477
  %5628 = vmatprep.subr.bf16.mxu0 %v5482
  %5629 = vmatpush1.bf16.msra.mxu0 %v5481
  %5630 = vmatprep.subr.bf16.mxu0 %v5486
  %5631 = vmatpush1.bf16.msra.mxu0 %v5485
  %5632 = vmatprep.subr.bf16.mxu0 %v5490
  %5633 = vmatpush1.bf16.msra.mxu0 %v5489
  %5634 = vmatprep.subr.bf16.mxu0 %v5494
  %5635 = vmatpush1.bf16.msra.mxu0 %v5493
  %5636 = vmatprep.subr.bf16.mxu0 %v5498
  %5637 = vmatpush1.bf16.msra.mxu0 %v5497
  %5638 = vmatprep.mubr.bf16.mxu0 %v2793
  %5639 = vmatmul.mubr.bf16.gmra.mrb[0].mxu0 %v2792
  %v5640 = vpop.f32.mrb[0].mxu0
  %v5641 = vadd.f32 0.0, %v5640
  %v5642 = vpop.f32.mrb[0].mxu0
  %v5643 = vadd.f32 0.0, %v5642
  %v5644 = vpop.f32.mrb[0].mxu0
  %v5645 = vadd.f32 0.0, %v5644
  %v5646 = vpop.f32.mrb[0].mxu0
  %v5647 = vadd.f32 0.0, %v5646
  %5648 = vdwg.mxu0
  %v5649 = vadd.f32 %v5170, %v5598
  %v5650 = vadd.f32 %v5171, %v5600
  %v5651 = vadd.f32 %v5172, %v5641
  %v5652 = vadd.f32 %v5173, %v5643
  %v5653 = vadd.f32 %v5174, %v5602
  %v5654 = vadd.f32 %v5175, %v5604
  %v5655 = vadd.f32 %v5176, %v5645
  %v5656 = vadd.f32 %v5177, %v5647
  %s5657 = scalar_lea.vmem %s7, 3072
  %v5658 = vld [vmem:[%s5657] sm:$0xff]
  %v5659 = vld [vmem:[%s5657 + $0x8] sm:$0xff]
  %v5660 = vld [vmem:[%s5657 + $0x10] sm:$0xff]
  %v5661 = vld [vmem:[%s5657 + $0x18] sm:$0xff]
  %v5662 = vld [vmem:[%s5657 + $0x20] sm:$0xff]
  %v5663 = vld [vmem:[%s5657 + $0x28] sm:$0xff]
  %v5664 = vld [vmem:[%s5657 + $0x30] sm:$0xff]
  %v5665 = vld [vmem:[%s5657 + $0x38] sm:$0xff]
  %v5666 = vld [vmem:[%s5657 + $0x40] sm:$0xff]
  %v5667 = vld [vmem:[%s5657 + $0x48] sm:$0xff]
  %v5668 = vld [vmem:[%s5657 + $0x50] sm:$0xff]
  %v5669 = vld [vmem:[%s5657 + $0x58] sm:$0xff]
  %v5670 = vld [vmem:[%s5657 + $0x60] sm:$0xff]
  %v5671 = vld [vmem:[%s5657 + $0x68] sm:$0xff]
  %v5672 = vld [vmem:[%s5657 + $0x70] sm:$0xff]
  %v5673 = vld [vmem:[%s5657 + $0x78] sm:$0xff]
  %v5674 = vld [vmem:[%s5657 + $0x80] sm:$0xff]
  %v5675 = vld [vmem:[%s5657 + $0x88] sm:$0xff]
  %v5676 = vld [vmem:[%s5657 + $0x90] sm:$0xff]
  %v5677 = vld [vmem:[%s5657 + $0x98] sm:$0xff]
  %v5678 = vld [vmem:[%s5657 + $0xa0] sm:$0xff]
  %v5679 = vld [vmem:[%s5657 + $0xa8] sm:$0xff]
  %v5680 = vld [vmem:[%s5657 + $0xb0] sm:$0xff]
  %v5681 = vld [vmem:[%s5657 + $0xb8] sm:$0xff]
  %v5682 = vld [vmem:[%s5657 + $0xc0] sm:$0xff]
  %v5683 = vld [vmem:[%s5657 + $0xc8] sm:$0xff]
  %v5684 = vld [vmem:[%s5657 + $0xd0] sm:$0xff]
  %v5685 = vld [vmem:[%s5657 + $0xd8] sm:$0xff]
  %v5686 = vld [vmem:[%s5657 + $0xe0] sm:$0xff]
  %v5687 = vld [vmem:[%s5657 + $0xe8] sm:$0xff]
  %v5688 = vld [vmem:[%s5657 + $0xf0] sm:$0xff]
  %v5689 = vld [vmem:[%s5657 + $0xf8] sm:$0xff]
  %v5690 = vld [vmem:[%s5657 + $0x100] sm:$0xff]
  %v5691 = vld [vmem:[%s5657 + $0x108] sm:$0xff]
  %v5692 = vld [vmem:[%s5657 + $0x110] sm:$0xff]
  %v5693 = vld [vmem:[%s5657 + $0x118] sm:$0xff]
  %v5694 = vld [vmem:[%s5657 + $0x120] sm:$0xff]
  %v5695 = vld [vmem:[%s5657 + $0x128] sm:$0xff]
  %v5696 = vld [vmem:[%s5657 + $0x130] sm:$0xff]
  %v5697 = vld [vmem:[%s5657 + $0x138] sm:$0xff]
  %v5698 = vld [vmem:[%s5657 + $0x140] sm:$0xff]
  %v5699 = vld [vmem:[%s5657 + $0x148] sm:$0xff]
  %v5700 = vld [vmem:[%s5657 + $0x150] sm:$0xff]
  %v5701 = vld [vmem:[%s5657 + $0x158] sm:$0xff]
  %v5702 = vld [vmem:[%s5657 + $0x160] sm:$0xff]
  %v5703 = vld [vmem:[%s5657 + $0x168] sm:$0xff]
  %v5704 = vld [vmem:[%s5657 + $0x170] sm:$0xff]
  %v5705 = vld [vmem:[%s5657 + $0x178] sm:$0xff]
  %v5706 = vld [vmem:[%s5657 + $0x180] sm:$0xff]
  %v5707 = vld [vmem:[%s5657 + $0x188] sm:$0xff]
  %v5708 = vld [vmem:[%s5657 + $0x190] sm:$0xff]
  %v5709 = vld [vmem:[%s5657 + $0x198] sm:$0xff]
  %v5710 = vld [vmem:[%s5657 + $0x1a0] sm:$0xff]
  %v5711 = vld [vmem:[%s5657 + $0x1a8] sm:$0xff]
  %v5712 = vld [vmem:[%s5657 + $0x1b0] sm:$0xff]
  %v5713 = vld [vmem:[%s5657 + $0x1b8] sm:$0xff]
  %v5714 = vld [vmem:[%s5657 + $0x1c0] sm:$0xff]
  %v5715 = vld [vmem:[%s5657 + $0x1c8] sm:$0xff]
  %v5716 = vld [vmem:[%s5657 + $0x1d0] sm:$0xff]
  %v5717 = vld [vmem:[%s5657 + $0x1d8] sm:$0xff]
  %v5718 = vld [vmem:[%s5657 + $0x1e0] sm:$0xff]
  %v5719 = vld [vmem:[%s5657 + $0x1e8] sm:$0xff]
  %v5720 = vld [vmem:[%s5657 + $0x1f0] sm:$0xff]
  %v5721 = vld [vmem:[%s5657 + $0x1f8] sm:$0xff]
  %v5786 = vunpack.c.l.b16 %v5658
  %v5787 = vunpack.c.h.b16 %v5658
  %v5788 = vunpack.c.l.b16 %v5659
  %v5789 = vunpack.c.h.b16 %v5659
  %v5790 = vunpack.c.l.b16 %v5660
  %v5791 = vunpack.c.h.b16 %v5660
  %v5792 = vunpack.c.l.b16 %v5661
  %v5793 = vunpack.c.h.b16 %v5661
  %v5794 = vunpack.c.l.b16 %v5662
  %v5795 = vunpack.c.h.b16 %v5662
  %v5796 = vunpack.c.l.b16 %v5663
  %v5797 = vunpack.c.h.b16 %v5663
  %v5798 = vunpack.c.l.b16 %v5664
  %v5799 = vunpack.c.h.b16 %v5664
  %v5800 = vunpack.c.l.b16 %v5665
  %v5801 = vunpack.c.h.b16 %v5665
  %v5802 = vunpack.c.l.b16 %v5666
  %v5803 = vunpack.c.h.b16 %v5666
  %v5804 = vunpack.c.l.b16 %v5667
  %v5805 = vunpack.c.h.b16 %v5667
  %v5806 = vunpack.c.l.b16 %v5668
  %v5807 = vunpack.c.h.b16 %v5668
  %v5808 = vunpack.c.l.b16 %v5669
  %v5809 = vunpack.c.h.b16 %v5669
  %v5810 = vunpack.c.l.b16 %v5670
  %v5811 = vunpack.c.h.b16 %v5670
  %v5812 = vunpack.c.l.b16 %v5671
  %v5813 = vunpack.c.h.b16 %v5671
  %v5814 = vunpack.c.l.b16 %v5672
  %v5815 = vunpack.c.h.b16 %v5672
  %v5816 = vunpack.c.l.b16 %v5673
  %v5817 = vunpack.c.h.b16 %v5673
  %v5818 = vunpack.c.l.b16 %v5674
  %v5819 = vunpack.c.h.b16 %v5674
  %v5820 = vunpack.c.l.b16 %v5675
  %v5821 = vunpack.c.h.b16 %v5675
  %v5822 = vunpack.c.l.b16 %v5676
  %v5823 = vunpack.c.h.b16 %v5676
  %v5824 = vunpack.c.l.b16 %v5677
  %v5825 = vunpack.c.h.b16 %v5677
  %v5826 = vunpack.c.l.b16 %v5678
  %v5827 = vunpack.c.h.b16 %v5678
  %v5828 = vunpack.c.l.b16 %v5679
  %v5829 = vunpack.c.h.b16 %v5679
  %v5830 = vunpack.c.l.b16 %v5680
  %v5831 = vunpack.c.h.b16 %v5680
  %v5832 = vunpack.c.l.b16 %v5681
  %v5833 = vunpack.c.h.b16 %v5681
  %v5834 = vunpack.c.l.b16 %v5682
  %v5835 = vunpack.c.h.b16 %v5682
  %v5836 = vunpack.c.l.b16 %v5683
  %v5837 = vunpack.c.h.b16 %v5683
  %v5838 = vunpack.c.l.b16 %v5684
  %v5839 = vunpack.c.h.b16 %v5684
  %v5840 = vunpack.c.l.b16 %v5685
  %v5841 = vunpack.c.h.b16 %v5685
  %v5842 = vunpack.c.l.b16 %v5686
  %v5843 = vunpack.c.h.b16 %v5686
  %v5844 = vunpack.c.l.b16 %v5687
  %v5845 = vunpack.c.h.b16 %v5687
  %v5846 = vunpack.c.l.b16 %v5688
  %v5847 = vunpack.c.h.b16 %v5688
  %v5848 = vunpack.c.l.b16 %v5689
  %v5849 = vunpack.c.h.b16 %v5689
  %v5850 = vunpack.c.l.b16 %v5690
  %v5851 = vunpack.c.h.b16 %v5690
  %v5852 = vunpack.c.l.b16 %v5691
  %v5853 = vunpack.c.h.b16 %v5691
  %v5854 = vunpack.c.l.b16 %v5692
  %v5855 = vunpack.c.h.b16 %v5692
  %v5856 = vunpack.c.l.b16 %v5693
  %v5857 = vunpack.c.h.b16 %v5693
  %v5858 = vunpack.c.l.b16 %v5694
  %v5859 = vunpack.c.h.b16 %v5694
  %v5860 = vunpack.c.l.b16 %v5695
  %v5861 = vunpack.c.h.b16 %v5695
  %v5862 = vunpack.c.l.b16 %v5696
  %v5863 = vunpack.c.h.b16 %v5696
  %v5864 = vunpack.c.l.b16 %v5697
  %v5865 = vunpack.c.h.b16 %v5697
  %v5866 = vunpack.c.l.b16 %v5698
  %v5867 = vunpack.c.h.b16 %v5698
  %v5868 = vunpack.c.l.b16 %v5699
  %v5869 = vunpack.c.h.b16 %v5699
  %v5870 = vunpack.c.l.b16 %v5700
  %v5871 = vunpack.c.h.b16 %v5700
  %v5872 = vunpack.c.l.b16 %v5701
  %v5873 = vunpack.c.h.b16 %v5701
  %v5874 = vunpack.c.l.b16 %v5702
  %v5875 = vunpack.c.h.b16 %v5702
  %v5876 = vunpack.c.l.b16 %v5703
  %v5877 = vunpack.c.h.b16 %v5703
  %v5878 = vunpack.c.l.b16 %v5704
  %v5879 = vunpack.c.h.b16 %v5704
  %v5880 = vunpack.c.l.b16 %v5705
  %v5881 = vunpack.c.h.b16 %v5705
  %v5882 = vunpack.c.l.b16 %v5706
  %v5883 = vunpack.c.h.b16 %v5706
  %v5884 = vunpack.c.l.b16 %v5707
  %v5885 = vunpack.c.h.b16 %v5707
  %v5886 = vunpack.c.l.b16 %v5708
  %v5887 = vunpack.c.h.b16 %v5708
  %v5888 = vunpack.c.l.b16 %v5709
  %v5889 = vunpack.c.h.b16 %v5709
  %v5890 = vunpack.c.l.b16 %v5710
  %v5891 = vunpack.c.h.b16 %v5710
  %v5892 = vunpack.c.l.b16 %v5711
  %v5893 = vunpack.c.h.b16 %v5711
  %v5894 = vunpack.c.l.b16 %v5712
  %v5895 = vunpack.c.h.b16 %v5712
  %v5896 = vunpack.c.l.b16 %v5713
  %v5897 = vunpack.c.h.b16 %v5713
  %v5898 = vunpack.c.l.b16 %v5714
  %v5899 = vunpack.c.h.b16 %v5714
  %v5900 = vunpack.c.l.b16 %v5715
  %v5901 = vunpack.c.h.b16 %v5715
  %v5902 = vunpack.c.l.b16 %v5716
  %v5903 = vunpack.c.h.b16 %v5716
  %v5904 = vunpack.c.l.b16 %v5717
  %v5905 = vunpack.c.h.b16 %v5717
  %v5906 = vunpack.c.l.b16 %v5718
  %v5907 = vunpack.c.h.b16 %v5718
  %v5908 = vunpack.c.l.b16 %v5719
  %v5909 = vunpack.c.h.b16 %v5719
  %v5910 = vunpack.c.l.b16 %v5720
  %v5911 = vunpack.c.h.b16 %v5720
  %v5912 = vunpack.c.l.b16 %v5721
  %v5913 = vunpack.c.h.b16 %v5721
  %v5914 = vpack.c.b16 %v5790, %v5786
  %v5915 = vpack.c.b16 %v5791, %v5787
  %v5916 = vpack.c.b16 %v5792, %v5788
  %v5917 = vpack.c.b16 %v5793, %v5789
  %v5918 = vpack.c.b16 %v5798, %v5794
  %v5919 = vpack.c.b16 %v5799, %v5795
  %v5920 = vpack.c.b16 %v5800, %v5796
  %v5921 = vpack.c.b16 %v5801, %v5797
  %v5922 = vpack.c.b16 %v5806, %v5802
  %v5923 = vpack.c.b16 %v5807, %v5803
  %v5924 = vpack.c.b16 %v5808, %v5804
  %v5925 = vpack.c.b16 %v5809, %v5805
  %v5926 = vpack.c.b16 %v5814, %v5810
  %v5927 = vpack.c.b16 %v5815, %v5811
  %v5928 = vpack.c.b16 %v5816, %v5812
  %v5929 = vpack.c.b16 %v5817, %v5813
  %v5930 = vpack.c.b16 %v5822, %v5818
  %v5931 = vpack.c.b16 %v5823, %v5819
  %v5932 = vpack.c.b16 %v5824, %v5820
  %v5933 = vpack.c.b16 %v5825, %v5821
  %v5934 = vpack.c.b16 %v5830, %v5826
  %v5935 = vpack.c.b16 %v5831, %v5827
  %v5936 = vpack.c.b16 %v5832, %v5828
  %v5937 = vpack.c.b16 %v5833, %v5829
  %v5938 = vpack.c.b16 %v5838, %v5834
  %v5939 = vpack.c.b16 %v5839, %v5835
  %v5940 = vpack.c.b16 %v5840, %v5836
  %v5941 = vpack.c.b16 %v5841, %v5837
  %v5942 = vpack.c.b16 %v5846, %v5842
  %v5943 = vpack.c.b16 %v5847, %v5843
  %v5944 = vpack.c.b16 %v5848, %v5844
  %v5945 = vpack.c.b16 %v5849, %v5845
  %v5946 = vpack.c.b16 %v5854, %v5850
  %v5947 = vpack.c.b16 %v5855, %v5851
  %v5948 = vpack.c.b16 %v5856, %v5852
  %v5949 = vpack.c.b16 %v5857, %v5853
  %v5950 = vpack.c.b16 %v5862, %v5858
  %v5951 = vpack.c.b16 %v5863, %v5859
  %v5952 = vpack.c.b16 %v5864, %v5860
  %v5953 = vpack.c.b16 %v5865, %v5861
  %v5954 = vpack.c.b16 %v5870, %v5866
  %v5955 = vpack.c.b16 %v5871, %v5867
  %v5956 = vpack.c.b16 %v5872, %v5868
  %v5957 = vpack.c.b16 %v5873, %v5869
  %v5958 = vpack.c.b16 %v5878, %v5874
  %v5959 = vpack.c.b16 %v5879, %v5875
  %v5960 = vpack.c.b16 %v5880, %v5876
  %v5961 = vpack.c.b16 %v5881, %v5877
  %v5962 = vpack.c.b16 %v5886, %v5882
  %v5963 = vpack.c.b16 %v5887, %v5883
  %v5964 = vpack.c.b16 %v5888, %v5884
  %v5965 = vpack.c.b16 %v5889, %v5885
  %v5966 = vpack.c.b16 %v5894, %v5890
  %v5967 = vpack.c.b16 %v5895, %v5891
  %v5968 = vpack.c.b16 %v5896, %v5892
  %v5969 = vpack.c.b16 %v5897, %v5893
  %v5970 = vpack.c.b16 %v5902, %v5898
  %v5971 = vpack.c.b16 %v5903, %v5899
  %v5972 = vpack.c.b16 %v5904, %v5900
  %v5973 = vpack.c.b16 %v5905, %v5901
  %v5974 = vpack.c.b16 %v5910, %v5906
  %v5975 = vpack.c.b16 %v5911, %v5907
  %v5976 = vpack.c.b16 %v5912, %v5908
  %v5977 = vpack.c.b16 %v5913, %v5909
  %6042 = vmatprep.subr.bf16.mxu0 %v5915
  %6043 = vmatpush1.bf16.msra.mxu0 %v5914
  %6044 = vmatprep.subr.bf16.mxu0 %v5919
  %6045 = vmatpush1.bf16.msra.mxu0 %v5918
  %6046 = vmatprep.subr.bf16.mxu0 %v5923
  %6047 = vmatpush1.bf16.msra.mxu0 %v5922
  %6048 = vmatprep.subr.bf16.mxu0 %v5927
  %6049 = vmatpush1.bf16.msra.mxu0 %v5926
  %6050 = vmatprep.subr.bf16.mxu0 %v5931
  %6051 = vmatpush1.bf16.msra.mxu0 %v5930
  %6052 = vmatprep.subr.bf16.mxu0 %v5935
  %6053 = vmatpush1.bf16.msra.mxu0 %v5934
  %6054 = vmatprep.subr.bf16.mxu0 %v5939
  %6055 = vmatpush1.bf16.msra.mxu0 %v5938
  %6056 = vmatprep.subr.bf16.mxu0 %v5943
  %6057 = vmatpush1.bf16.msra.mxu0 %v5942
  %6058 = vmatprep.subr.bf16.mxu0 %v5947
  %6059 = vmatpush1.bf16.msra.mxu0 %v5946
  %6060 = vmatprep.subr.bf16.mxu0 %v5951
  %6061 = vmatpush1.bf16.msra.mxu0 %v5950
  %6062 = vmatprep.subr.bf16.mxu0 %v5955
  %6063 = vmatpush1.bf16.msra.mxu0 %v5954
  %6064 = vmatprep.subr.bf16.mxu0 %v5959
  %6065 = vmatpush1.bf16.msra.mxu0 %v5958
  %6066 = vmatprep.subr.bf16.mxu0 %v5963
  %6067 = vmatpush1.bf16.msra.mxu0 %v5962
  %6068 = vmatprep.subr.bf16.mxu0 %v5967
  %6069 = vmatpush1.bf16.msra.mxu0 %v5966
  %6070 = vmatprep.subr.bf16.mxu0 %v5971
  %6071 = vmatpush1.bf16.msra.mxu0 %v5970
  %6072 = vmatprep.subr.bf16.mxu0 %v5975
  %6073 = vmatpush1.bf16.msra.mxu0 %v5974
  %6074 = vmatprep.mubr.bf16.mxu0 %v2795
  %6075 = vmatmul.mubr.bf16.gmra.mrb[0].mxu0 %v2794
  %v6076 = vpop.f32.mrb[0].mxu0
  %v6077 = vadd.f32 0.0, %v6076
  %v6078 = vpop.f32.mrb[0].mxu0
  %v6079 = vadd.f32 0.0, %v6078
  %v6080 = vpop.f32.mrb[0].mxu0
  %v6081 = vadd.f32 0.0, %v6080
  %v6082 = vpop.f32.mrb[0].mxu0
  %v6083 = vadd.f32 0.0, %v6082
  %6084 = vdwg.mxu0
  %6085 = vmatprep.subr.bf16.mxu0 %v5917
  %6086 = vmatpush1.bf16.msra.mxu0 %v5916
  %6087 = vmatprep.subr.bf16.mxu0 %v5921
  %6088 = vmatpush1.bf16.msra.mxu0 %v5920
  %6089 = vmatprep.subr.bf16.mxu0 %v5925
  %6090 = vmatpush1.bf16.msra.mxu0 %v5924
  %6091 = vmatprep.subr.bf16.mxu0 %v5929
  %6092 = vmatpush1.bf16.msra.mxu0 %v5928
  %6093 = vmatprep.subr.bf16.mxu0 %v5933
  %6094 = vmatpush1.bf16.msra.mxu0 %v5932
  %6095 = vmatprep.subr.bf16.mxu0 %v5937
  %6096 = vmatpush1.bf16.msra.mxu0 %v5936
  %6097 = vmatprep.subr.bf16.mxu0 %v5941
  %6098 = vmatpush1.bf16.msra.mxu0 %v5940
  %6099 = vmatprep.subr.bf16.mxu0 %v5945
  %6100 = vmatpush1.bf16.msra.mxu0 %v5944
  %6101 = vmatprep.subr.bf16.mxu0 %v5949
  %6102 = vmatpush1.bf16.msra.mxu0 %v5948
  %6103 = vmatprep.subr.bf16.mxu0 %v5953
  %6104 = vmatpush1.bf16.msra.mxu0 %v5952
  %6105 = vmatprep.subr.bf16.mxu0 %v5957
  %6106 = vmatpush1.bf16.msra.mxu0 %v5956
  %6107 = vmatprep.subr.bf16.mxu0 %v5961
  %6108 = vmatpush1.bf16.msra.mxu0 %v5960
  %6109 = vmatprep.subr.bf16.mxu0 %v5965
  %6110 = vmatpush1.bf16.msra.mxu0 %v5964
  %6111 = vmatprep.subr.bf16.mxu0 %v5969
  %6112 = vmatpush1.bf16.msra.mxu0 %v5968
  %6113 = vmatprep.subr.bf16.mxu0 %v5973
  %6114 = vmatpush1.bf16.msra.mxu0 %v5972
  %6115 = vmatprep.subr.bf16.mxu0 %v5977
  %6116 = vmatpush1.bf16.msra.mxu0 %v5976
  %6117 = vmatprep.mubr.bf16.mxu0 %v2795
  %6118 = vmatmul.mubr.bf16.gmra.mrb[0].mxu0 %v2794
  %v6119 = vpop.f32.mrb[0].mxu0
  %v6120 = vadd.f32 0.0, %v6119
  %v6121 = vpop.f32.mrb[0].mxu0
  %v6122 = vadd.f32 0.0, %v6121
  %v6123 = vpop.f32.mrb[0].mxu0
  %v6124 = vadd.f32 0.0, %v6123
  %v6125 = vpop.f32.mrb[0].mxu0
  %v6126 = vadd.f32 0.0, %v6125
  %6127 = vdwg.mxu0
  %v6128 = vadd.f32 %v5649, %v6077
  %v6129 = vadd.f32 %v5650, %v6079
  %v6130 = vadd.f32 %v5651, %v6120
  %v6131 = vadd.f32 %v5652, %v6122
  %v6132 = vadd.f32 %v5653, %v6081
  %v6133 = vadd.f32 %v5654, %v6083
  %v6134 = vadd.f32 %v5655, %v6124
  %v6135 = vadd.f32 %v5656, %v6126
  %s6136 = scalar_lea.vmem %s7, 3584
  %v6137 = vld [vmem:[%s6136] sm:$0xff]
  %v6138 = vld [vmem:[%s6136 + $0x8] sm:$0xff]
  %v6139 = vld [vmem:[%s6136 + $0x10] sm:$0xff]
  %v6140 = vld [vmem:[%s6136 + $0x18] sm:$0xff]
  %v6141 = vld [vmem:[%s6136 + $0x20] sm:$0xff]
  %v6142 = vld [vmem:[%s6136 + $0x28] sm:$0xff]
  %v6143 = vld [vmem:[%s6136 + $0x30] sm:$0xff]
  %v6144 = vld [vmem:[%s6136 + $0x38] sm:$0xff]
  %v6145 = vld [vmem:[%s6136 + $0x40] sm:$0xff]
  %v6146 = vld [vmem:[%s6136 + $0x48] sm:$0xff]
  %v6147 = vld [vmem:[%s6136 + $0x50] sm:$0xff]
  %v6148 = vld [vmem:[%s6136 + $0x58] sm:$0xff]
  %v6149 = vld [vmem:[%s6136 + $0x60] sm:$0xff]
  %v6150 = vld [vmem:[%s6136 + $0x68] sm:$0xff]
  %v6151 = vld [vmem:[%s6136 + $0x70] sm:$0xff]
  %v6152 = vld [vmem:[%s6136 + $0x78] sm:$0xff]
  %v6153 = vld [vmem:[%s6136 + $0x80] sm:$0xff]
  %v6154 = vld [vmem:[%s6136 + $0x88] sm:$0xff]
  %v6155 = vld [vmem:[%s6136 + $0x90] sm:$0xff]
  %v6156 = vld [vmem:[%s6136 + $0x98] sm:$0xff]
  %v6157 = vld [vmem:[%s6136 + $0xa0] sm:$0xff]
  %v6158 = vld [vmem:[%s6136 + $0xa8] sm:$0xff]
  %v6159 = vld [vmem:[%s6136 + $0xb0] sm:$0xff]
  %v6160 = vld [vmem:[%s6136 + $0xb8] sm:$0xff]
  %v6161 = vld [vmem:[%s6136 + $0xc0] sm:$0xff]
  %v6162 = vld [vmem:[%s6136 + $0xc8] sm:$0xff]
  %v6163 = vld [vmem:[%s6136 + $0xd0] sm:$0xff]
  %v6164 = vld [vmem:[%s6136 + $0xd8] sm:$0xff]
  %v6165 = vld [vmem:[%s6136 + $0xe0] sm:$0xff]
  %v6166 = vld [vmem:[%s6136 + $0xe8] sm:$0xff]
  %v6167 = vld [vmem:[%s6136 + $0xf0] sm:$0xff]
  %v6168 = vld [vmem:[%s6136 + $0xf8] sm:$0xff]
  %v6169 = vld [vmem:[%s6136 + $0x100] sm:$0xff]
  %v6170 = vld [vmem:[%s6136 + $0x108] sm:$0xff]
  %v6171 = vld [vmem:[%s6136 + $0x110] sm:$0xff]
  %v6172 = vld [vmem:[%s6136 + $0x118] sm:$0xff]
  %v6173 = vld [vmem:[%s6136 + $0x120] sm:$0xff]
  %v6174 = vld [vmem:[%s6136 + $0x128] sm:$0xff]
  %v6175 = vld [vmem:[%s6136 + $0x130] sm:$0xff]
  %v6176 = vld [vmem:[%s6136 + $0x138] sm:$0xff]
  %v6177 = vld [vmem:[%s6136 + $0x140] sm:$0xff]
  %v6178 = vld [vmem:[%s6136 + $0x148] sm:$0xff]
  %v6179 = vld [vmem:[%s6136 + $0x150] sm:$0xff]
  %v6180 = vld [vmem:[%s6136 + $0x158] sm:$0xff]
  %v6181 = vld [vmem:[%s6136 + $0x160] sm:$0xff]
  %v6182 = vld [vmem:[%s6136 + $0x168] sm:$0xff]
  %v6183 = vld [vmem:[%s6136 + $0x170] sm:$0xff]
  %v6184 = vld [vmem:[%s6136 + $0x178] sm:$0xff]
  %v6185 = vld [vmem:[%s6136 + $0x180] sm:$0xff]
  %v6186 = vld [vmem:[%s6136 + $0x188] sm:$0xff]
  %v6187 = vld [vmem:[%s6136 + $0x190] sm:$0xff]
  %v6188 = vld [vmem:[%s6136 + $0x198] sm:$0xff]
  %v6189 = vld [vmem:[%s6136 + $0x1a0] sm:$0xff]
  %v6190 = vld [vmem:[%s6136 + $0x1a8] sm:$0xff]
  %v6191 = vld [vmem:[%s6136 + $0x1b0] sm:$0xff]
  %v6192 = vld [vmem:[%s6136 + $0x1b8] sm:$0xff]
  %v6193 = vld [vmem:[%s6136 + $0x1c0] sm:$0xff]
  %v6194 = vld [vmem:[%s6136 + $0x1c8] sm:$0xff]
  %v6195 = vld [vmem:[%s6136 + $0x1d0] sm:$0xff]
  %v6196 = vld [vmem:[%s6136 + $0x1d8] sm:$0xff]
  %v6197 = vld [vmem:[%s6136 + $0x1e0] sm:$0xff]
  %v6198 = vld [vmem:[%s6136 + $0x1e8] sm:$0xff]
  %v6199 = vld [vmem:[%s6136 + $0x1f0] sm:$0xff]
  %v6200 = vld [vmem:[%s6136 + $0x1f8] sm:$0xff]
  %v6265 = vunpack.c.l.b16 %v6137
  %v6266 = vunpack.c.h.b16 %v6137
  %v6267 = vunpack.c.l.b16 %v6138
  %v6268 = vunpack.c.h.b16 %v6138
  %v6269 = vunpack.c.l.b16 %v6139
  %v6270 = vunpack.c.h.b16 %v6139
  %v6271 = vunpack.c.l.b16 %v6140
  %v6272 = vunpack.c.h.b16 %v6140
  %v6273 = vunpack.c.l.b16 %v6141
  %v6274 = vunpack.c.h.b16 %v6141
  %v6275 = vunpack.c.l.b16 %v6142
  %v6276 = vunpack.c.h.b16 %v6142
  %v6277 = vunpack.c.l.b16 %v6143
  %v6278 = vunpack.c.h.b16 %v6143
  %v6279 = vunpack.c.l.b16 %v6144
  %v6280 = vunpack.c.h.b16 %v6144
  %v6281 = vunpack.c.l.b16 %v6145
  %v6282 = vunpack.c.h.b16 %v6145
  %v6283 = vunpack.c.l.b16 %v6146
  %v6284 = vunpack.c.h.b16 %v6146
  %v6285 = vunpack.c.l.b16 %v6147
  %v6286 = vunpack.c.h.b16 %v6147
  %v6287 = vunpack.c.l.b16 %v6148
  %v6288 = vunpack.c.h.b16 %v6148
  %v6289 = vunpack.c.l.b16 %v6149
  %v6290 = vunpack.c.h.b16 %v6149
  %v6291 = vunpack.c.l.b16 %v6150
  %v6292 = vunpack.c.h.b16 %v6150
  %v6293 = vunpack.c.l.b16 %v6151
  %v6294 = vunpack.c.h.b16 %v6151
  %v6295 = vunpack.c.l.b16 %v6152
  %v6296 = vunpack.c.h.b16 %v6152
  %v6297 = vunpack.c.l.b16 %v6153
  %v6298 = vunpack.c.h.b16 %v6153
  %v6299 = vunpack.c.l.b16 %v6154
  %v6300 = vunpack.c.h.b16 %v6154
  %v6301 = vunpack.c.l.b16 %v6155
  %v6302 = vunpack.c.h.b16 %v6155
  %v6303 = vunpack.c.l.b16 %v6156
  %v6304 = vunpack.c.h.b16 %v6156
  %v6305 = vunpack.c.l.b16 %v6157
  %v6306 = vunpack.c.h.b16 %v6157
  %v6307 = vunpack.c.l.b16 %v6158
  %v6308 = vunpack.c.h.b16 %v6158
  %v6309 = vunpack.c.l.b16 %v6159
  %v6310 = vunpack.c.h.b16 %v6159
  %v6311 = vunpack.c.l.b16 %v6160
  %v6312 = vunpack.c.h.b16 %v6160
  %v6313 = vunpack.c.l.b16 %v6161
  %v6314 = vunpack.c.h.b16 %v6161
  %v6315 = vunpack.c.l.b16 %v6162
  %v6316 = vunpack.c.h.b16 %v6162
  %v6317 = vunpack.c.l.b16 %v6163
  %v6318 = vunpack.c.h.b16 %v6163
  %v6319 = vunpack.c.l.b16 %v6164
  %v6320 = vunpack.c.h.b16 %v6164
  %v6321 = vunpack.c.l.b16 %v6165
  %v6322 = vunpack.c.h.b16 %v6165
  %v6323 = vunpack.c.l.b16 %v6166
  %v6324 = vunpack.c.h.b16 %v6166
  %v6325 = vunpack.c.l.b16 %v6167
  %v6326 = vunpack.c.h.b16 %v6167
  %v6327 = vunpack.c.l.b16 %v6168
  %v6328 = vunpack.c.h.b16 %v6168
  %v6329 = vunpack.c.l.b16 %v6169
  %v6330 = vunpack.c.h.b16 %v6169
  %v6331 = vunpack.c.l.b16 %v6170
  %v6332 = vunpack.c.h.b16 %v6170
  %v6333 = vunpack.c.l.b16 %v6171
  %v6334 = vunpack.c.h.b16 %v6171
  %v6335 = vunpack.c.l.b16 %v6172
  %v6336 = vunpack.c.h.b16 %v6172
  %v6337 = vunpack.c.l.b16 %v6173
  %v6338 = vunpack.c.h.b16 %v6173
  %v6339 = vunpack.c.l.b16 %v6174
  %v6340 = vunpack.c.h.b16 %v6174
  %v6341 = vunpack.c.l.b16 %v6175
  %v6342 = vunpack.c.h.b16 %v6175
  %v6343 = vunpack.c.l.b16 %v6176
  %v6344 = vunpack.c.h.b16 %v6176
  %v6345 = vunpack.c.l.b16 %v6177
  %v6346 = vunpack.c.h.b16 %v6177
  %v6347 = vunpack.c.l.b16 %v6178
  %v6348 = vunpack.c.h.b16 %v6178
  %v6349 = vunpack.c.l.b16 %v6179
  %v6350 = vunpack.c.h.b16 %v6179
  %v6351 = vunpack.c.l.b16 %v6180
  %v6352 = vunpack.c.h.b16 %v6180
  %v6353 = vunpack.c.l.b16 %v6181
  %v6354 = vunpack.c.h.b16 %v6181
  %v6355 = vunpack.c.l.b16 %v6182
  %v6356 = vunpack.c.h.b16 %v6182
  %v6357 = vunpack.c.l.b16 %v6183
  %v6358 = vunpack.c.h.b16 %v6183
  %v6359 = vunpack.c.l.b16 %v6184
  %v6360 = vunpack.c.h.b16 %v6184
  %v6361 = vunpack.c.l.b16 %v6185
  %v6362 = vunpack.c.h.b16 %v6185
  %v6363 = vunpack.c.l.b16 %v6186
  %v6364 = vunpack.c.h.b16 %v6186
  %v6365 = vunpack.c.l.b16 %v6187
  %v6366 = vunpack.c.h.b16 %v6187
  %v6367 = vunpack.c.l.b16 %v6188
  %v6368 = vunpack.c.h.b16 %v6188
  %v6369 = vunpack.c.l.b16 %v6189
  %v6370 = vunpack.c.h.b16 %v6189
  %v6371 = vunpack.c.l.b16 %v6190
  %v6372 = vunpack.c.h.b16 %v6190
  %v6373 = vunpack.c.l.b16 %v6191
  %v6374 = vunpack.c.h.b16 %v6191
  %v6375 = vunpack.c.l.b16 %v6192
  %v6376 = vunpack.c.h.b16 %v6192
  %v6377 = vunpack.c.l.b16 %v6193
  %v6378 = vunpack.c.h.b16 %v6193
  %v6379 = vunpack.c.l.b16 %v6194
  %v6380 = vunpack.c.h.b16 %v6194
  %v6381 = vunpack.c.l.b16 %v6195
  %v6382 = vunpack.c.h.b16 %v6195
  %v6383 = vunpack.c.l.b16 %v6196
  %v6384 = vunpack.c.h.b16 %v6196
  %v6385 = vunpack.c.l.b16 %v6197
  %v6386 = vunpack.c.h.b16 %v6197
  %v6387 = vunpack.c.l.b16 %v6198
  %v6388 = vunpack.c.h.b16 %v6198
  %v6389 = vunpack.c.l.b16 %v6199
  %v6390 = vunpack.c.h.b16 %v6199
  %v6391 = vunpack.c.l.b16 %v6200
  %v6392 = vunpack.c.h.b16 %v6200
  %v6393 = vpack.c.b16 %v6269, %v6265
  %v6394 = vpack.c.b16 %v6270, %v6266
  %v6395 = vpack.c.b16 %v6271, %v6267
  %v6396 = vpack.c.b16 %v6272, %v6268
  %v6397 = vpack.c.b16 %v6277, %v6273
  %v6398 = vpack.c.b16 %v6278, %v6274
  %v6399 = vpack.c.b16 %v6279, %v6275
  %v6400 = vpack.c.b16 %v6280, %v6276
  %v6401 = vpack.c.b16 %v6285, %v6281
  %v6402 = vpack.c.b16 %v6286, %v6282
  %v6403 = vpack.c.b16 %v6287, %v6283
  %v6404 = vpack.c.b16 %v6288, %v6284
  %v6405 = vpack.c.b16 %v6293, %v6289
  %v6406 = vpack.c.b16 %v6294, %v6290
  %v6407 = vpack.c.b16 %v6295, %v6291
  %v6408 = vpack.c.b16 %v6296, %v6292
  %v6409 = vpack.c.b16 %v6301, %v6297
  %v6410 = vpack.c.b16 %v6302, %v6298
  %v6411 = vpack.c.b16 %v6303, %v6299
  %v6412 = vpack.c.b16 %v6304, %v6300
  %v6413 = vpack.c.b16 %v6309, %v6305
  %v6414 = vpack.c.b16 %v6310, %v6306
  %v6415 = vpack.c.b16 %v6311, %v6307
  %v6416 = vpack.c.b16 %v6312, %v6308
  %v6417 = vpack.c.b16 %v6317, %v6313
  %v6418 = vpack.c.b16 %v6318, %v6314
  %v6419 = vpack.c.b16 %v6319, %v6315
  %v6420 = vpack.c.b16 %v6320, %v6316
  %v6421 = vpack.c.b16 %v6325, %v6321
  %v6422 = vpack.c.b16 %v6326, %v6322
  %v6423 = vpack.c.b16 %v6327, %v6323
  %v6424 = vpack.c.b16 %v6328, %v6324
  %v6425 = vpack.c.b16 %v6333, %v6329
  %v6426 = vpack.c.b16 %v6334, %v6330
  %v6427 = vpack.c.b16 %v6335, %v6331
  %v6428 = vpack.c.b16 %v6336, %v6332
  %v6429 = vpack.c.b16 %v6341, %v6337
  %v6430 = vpack.c.b16 %v6342, %v6338
  %v6431 = vpack.c.b16 %v6343, %v6339
  %v6432 = vpack.c.b16 %v6344, %v6340
  %v6433 = vpack.c.b16 %v6349, %v6345
  %v6434 = vpack.c.b16 %v6350, %v6346
  %v6435 = vpack.c.b16 %v6351, %v6347
  %v6436 = vpack.c.b16 %v6352, %v6348
  %v6437 = vpack.c.b16 %v6357, %v6353
  %v6438 = vpack.c.b16 %v6358, %v6354
  %v6439 = vpack.c.b16 %v6359, %v6355
  %v6440 = vpack.c.b16 %v6360, %v6356
  %v6441 = vpack.c.b16 %v6365, %v6361
  %v6442 = vpack.c.b16 %v6366, %v6362
  %v6443 = vpack.c.b16 %v6367, %v6363
  %v6444 = vpack.c.b16 %v6368, %v6364
  %v6445 = vpack.c.b16 %v6373, %v6369
  %v6446 = vpack.c.b16 %v6374, %v6370
  %v6447 = vpack.c.b16 %v6375, %v6371
  %v6448 = vpack.c.b16 %v6376, %v6372
  %v6449 = vpack.c.b16 %v6381, %v6377
  %v6450 = vpack.c.b16 %v6382, %v6378
  %v6451 = vpack.c.b16 %v6383, %v6379
  %v6452 = vpack.c.b16 %v6384, %v6380
  %v6453 = vpack.c.b16 %v6389, %v6385
  %v6454 = vpack.c.b16 %v6390, %v6386
  %v6455 = vpack.c.b16 %v6391, %v6387
  %v6456 = vpack.c.b16 %v6392, %v6388
  %6521 = vmatprep.subr.bf16.mxu0 %v6394
  %6522 = vmatpush1.bf16.msra.mxu0 %v6393
  %6523 = vmatprep.subr.bf16.mxu0 %v6398
  %6524 = vmatpush1.bf16.msra.mxu0 %v6397
  %6525 = vmatprep.subr.bf16.mxu0 %v6402
  %6526 = vmatpush1.bf16.msra.mxu0 %v6401
  %6527 = vmatprep.subr.bf16.mxu0 %v6406
  %6528 = vmatpush1.bf16.msra.mxu0 %v6405
  %6529 = vmatprep.subr.bf16.mxu0 %v6410
  %6530 = vmatpush1.bf16.msra.mxu0 %v6409
  %6531 = vmatprep.subr.bf16.mxu0 %v6414
  %6532 = vmatpush1.bf16.msra.mxu0 %v6413
  %6533 = vmatprep.subr.bf16.mxu0 %v6418
  %6534 = vmatpush1.bf16.msra.mxu0 %v6417
  %6535 = vmatprep.subr.bf16.mxu0 %v6422
  %6536 = vmatpush1.bf16.msra.mxu0 %v6421
  %6537 = vmatprep.subr.bf16.mxu0 %v6426
  %6538 = vmatpush1.bf16.msra.mxu0 %v6425
  %6539 = vmatprep.subr.bf16.mxu0 %v6430
  %6540 = vmatpush1.bf16.msra.mxu0 %v6429
  %6541 = vmatprep.subr.bf16.mxu0 %v6434
  %6542 = vmatpush1.bf16.msra.mxu0 %v6433
  %6543 = vmatprep.subr.bf16.mxu0 %v6438
  %6544 = vmatpush1.bf16.msra.mxu0 %v6437
  %6545 = vmatprep.subr.bf16.mxu0 %v6442
  %6546 = vmatpush1.bf16.msra.mxu0 %v6441
  %6547 = vmatprep.subr.bf16.mxu0 %v6446
  %6548 = vmatpush1.bf16.msra.mxu0 %v6445
  %6549 = vmatprep.subr.bf16.mxu0 %v6450
  %6550 = vmatpush1.bf16.msra.mxu0 %v6449
  %6551 = vmatprep.subr.bf16.mxu0 %v6454
  %6552 = vmatpush1.bf16.msra.mxu0 %v6453
  %6553 = vmatprep.mubr.bf16.mxu0 %v2797
  %6554 = vmatmul.mubr.bf16.gmra.mrb[0].mxu0 %v2796
  %v6555 = vpop.f32.mrb[0].mxu0
  %v6556 = vadd.f32 0.0, %v6555
  %v6557 = vpop.f32.mrb[0].mxu0
  %v6558 = vadd.f32 0.0, %v6557
  %v6559 = vpop.f32.mrb[0].mxu0
  %v6560 = vadd.f32 0.0, %v6559
  %v6561 = vpop.f32.mrb[0].mxu0
  %v6562 = vadd.f32 0.0, %v6561
  %6563 = vdwg.mxu0
  %6564 = vmatprep.subr.bf16.mxu0 %v6396
  %6565 = vmatpush1.bf16.msra.mxu0 %v6395
  %6566 = vmatprep.subr.bf16.mxu0 %v6400
  %6567 = vmatpush1.bf16.msra.mxu0 %v6399
  %6568 = vmatprep.subr.bf16.mxu0 %v6404
  %6569 = vmatpush1.bf16.msra.mxu0 %v6403
  %6570 = vmatprep.subr.bf16.mxu0 %v6408
  %6571 = vmatpush1.bf16.msra.mxu0 %v6407
  %6572 = vmatprep.subr.bf16.mxu0 %v6412
  %6573 = vmatpush1.bf16.msra.mxu0 %v6411
  %6574 = vmatprep.subr.bf16.mxu0 %v6416
  %6575 = vmatpush1.bf16.msra.mxu0 %v6415
  %6576 = vmatprep.subr.bf16.mxu0 %v6420
  %6577 = vmatpush1.bf16.msra.mxu0 %v6419
  %6578 = vmatprep.subr.bf16.mxu0 %v6424
  %6579 = vmatpush1.bf16.msra.mxu0 %v6423
  %6580 = vmatprep.subr.bf16.mxu0 %v6428
  %6581 = vmatpush1.bf16.msra.mxu0 %v6427
  %6582 = vmatprep.subr.bf16.mxu0 %v6432
  %6583 = vmatpush1.bf16.msra.mxu0 %v6431
  %6584 = vmatprep.subr.bf16.mxu0 %v6436
  %6585 = vmatpush1.bf16.msra.mxu0 %v6435
  %6586 = vmatprep.subr.bf16.mxu0 %v6440
  %6587 = vmatpush1.bf16.msra.mxu0 %v6439
  %6588 = vmatprep.subr.bf16.mxu0 %v6444
  %6589 = vmatpush1.bf16.msra.mxu0 %v6443
  %6590 = vmatprep.subr.bf16.mxu0 %v6448
  %6591 = vmatpush1.bf16.msra.mxu0 %v6447
  %6592 = vmatprep.subr.bf16.mxu0 %v6452
  %6593 = vmatpush1.bf16.msra.mxu0 %v6451
  %6594 = vmatprep.subr.bf16.mxu0 %v6456
  %6595 = vmatpush1.bf16.msra.mxu0 %v6455
  %6596 = vmatprep.mubr.bf16.mxu0 %v2797
  %6597 = vmatmul.mubr.bf16.gmra.mrb[0].mxu0 %v2796
  %v6598 = vpop.f32.mrb[0].mxu0
  %v6599 = vadd.f32 0.0, %v6598
  %v6600 = vpop.f32.mrb[0].mxu0
  %v6601 = vadd.f32 0.0, %v6600
  %v6602 = vpop.f32.mrb[0].mxu0
  %v6603 = vadd.f32 0.0, %v6602
  %v6604 = vpop.f32.mrb[0].mxu0
  %v6605 = vadd.f32 0.0, %v6604
  %6606 = vdwg.mxu0
  %v6607 = vadd.f32 %v6128, %v6556
  %v6608 = vadd.f32 %v6129, %v6558
  %v6609 = vadd.f32 %v6130, %v6599
  %v6610 = vadd.f32 %v6131, %v6601
  %v6611 = vadd.f32 %v6132, %v6560
  %v6612 = vadd.f32 %v6133, %v6562
  %v6613 = vadd.f32 %v6134, %v6603
  %v6614 = vadd.f32 %v6135, %v6605
  %s6615 = scalar_lea.vmem %s7, 4096
  %v6616 = vld [vmem:[%s6615] sm:$0xff]
  %v6617 = vld [vmem:[%s6615 + $0x8] sm:$0xff]
  %v6618 = vld [vmem:[%s6615 + $0x10] sm:$0xff]
  %v6619 = vld [vmem:[%s6615 + $0x18] sm:$0xff]
  %v6620 = vld [vmem:[%s6615 + $0x20] sm:$0xff]
  %v6621 = vld [vmem:[%s6615 + $0x28] sm:$0xff]
  %v6622 = vld [vmem:[%s6615 + $0x30] sm:$0xff]
  %v6623 = vld [vmem:[%s6615 + $0x38] sm:$0xff]
  %v6624 = vld [vmem:[%s6615 + $0x40] sm:$0xff]
  %v6625 = vld [vmem:[%s6615 + $0x48] sm:$0xff]
  %v6626 = vld [vmem:[%s6615 + $0x50] sm:$0xff]
  %v6627 = vld [vmem:[%s6615 + $0x58] sm:$0xff]
  %v6628 = vld [vmem:[%s6615 + $0x60] sm:$0xff]
  %v6629 = vld [vmem:[%s6615 + $0x68] sm:$0xff]
  %v6630 = vld [vmem:[%s6615 + $0x70] sm:$0xff]
  %v6631 = vld [vmem:[%s6615 + $0x78] sm:$0xff]
  %v6632 = vld [vmem:[%s6615 + $0x80] sm:$0xff]
  %v6633 = vld [vmem:[%s6615 + $0x88] sm:$0xff]
  %v6634 = vld [vmem:[%s6615 + $0x90] sm:$0xff]
  %v6635 = vld [vmem:[%s6615 + $0x98] sm:$0xff]
  %v6636 = vld [vmem:[%s6615 + $0xa0] sm:$0xff]
  %v6637 = vld [vmem:[%s6615 + $0xa8] sm:$0xff]
  %v6638 = vld [vmem:[%s6615 + $0xb0] sm:$0xff]
  %v6639 = vld [vmem:[%s6615 + $0xb8] sm:$0xff]
  %v6640 = vld [vmem:[%s6615 + $0xc0] sm:$0xff]
  %v6641 = vld [vmem:[%s6615 + $0xc8] sm:$0xff]
  %v6642 = vld [vmem:[%s6615 + $0xd0] sm:$0xff]
  %v6643 = vld [vmem:[%s6615 + $0xd8] sm:$0xff]
  %v6644 = vld [vmem:[%s6615 + $0xe0] sm:$0xff]
  %v6645 = vld [vmem:[%s6615 + $0xe8] sm:$0xff]
  %v6646 = vld [vmem:[%s6615 + $0xf0] sm:$0xff]
  %v6647 = vld [vmem:[%s6615 + $0xf8] sm:$0xff]
  %v6648 = vld [vmem:[%s6615 + $0x100] sm:$0xff]
  %v6649 = vld [vmem:[%s6615 + $0x108] sm:$0xff]
  %v6650 = vld [vmem:[%s6615 + $0x110] sm:$0xff]
  %v6651 = vld [vmem:[%s6615 + $0x118] sm:$0xff]
  %v6652 = vld [vmem:[%s6615 + $0x120] sm:$0xff]
  %v6653 = vld [vmem:[%s6615 + $0x128] sm:$0xff]
  %v6654 = vld [vmem:[%s6615 + $0x130] sm:$0xff]
  %v6655 = vld [vmem:[%s6615 + $0x138] sm:$0xff]
  %v6656 = vld [vmem:[%s6615 + $0x140] sm:$0xff]
  %v6657 = vld [vmem:[%s6615 + $0x148] sm:$0xff]
  %v6658 = vld [vmem:[%s6615 + $0x150] sm:$0xff]
  %v6659 = vld [vmem:[%s6615 + $0x158] sm:$0xff]
  %v6660 = vld [vmem:[%s6615 + $0x160] sm:$0xff]
  %v6661 = vld [vmem:[%s6615 + $0x168] sm:$0xff]
  %v6662 = vld [vmem:[%s6615 + $0x170] sm:$0xff]
  %v6663 = vld [vmem:[%s6615 + $0x178] sm:$0xff]
  %v6664 = vld [vmem:[%s6615 + $0x180] sm:$0xff]
  %v6665 = vld [vmem:[%s6615 + $0x188] sm:$0xff]
  %v6666 = vld [vmem:[%s6615 + $0x190] sm:$0xff]
  %v6667 = vld [vmem:[%s6615 + $0x198] sm:$0xff]
  %v6668 = vld [vmem:[%s6615 + $0x1a0] sm:$0xff]
  %v6669 = vld [vmem:[%s6615 + $0x1a8] sm:$0xff]
  %v6670 = vld [vmem:[%s6615 + $0x1b0] sm:$0xff]
  %v6671 = vld [vmem:[%s6615 + $0x1b8] sm:$0xff]
  %v6672 = vld [vmem:[%s6615 + $0x1c0] sm:$0xff]
  %v6673 = vld [vmem:[%s6615 + $0x1c8] sm:$0xff]
  %v6674 = vld [vmem:[%s6615 + $0x1d0] sm:$0xff]
  %v6675 = vld [vmem:[%s6615 + $0x1d8] sm:$0xff]
  %v6676 = vld [vmem:[%s6615 + $0x1e0] sm:$0xff]
  %v6677 = vld [vmem:[%s6615 + $0x1e8] sm:$0xff]
  %v6678 = vld [vmem:[%s6615 + $0x1f0] sm:$0xff]
  %v6679 = vld [vmem:[%s6615 + $0x1f8] sm:$0xff]
  %v6744 = vunpack.c.l.b16 %v6616
  %v6745 = vunpack.c.h.b16 %v6616
  %v6746 = vunpack.c.l.b16 %v6617
  %v6747 = vunpack.c.h.b16 %v6617
  %v6748 = vunpack.c.l.b16 %v6618
  %v6749 = vunpack.c.h.b16 %v6618
  %v6750 = vunpack.c.l.b16 %v6619
  %v6751 = vunpack.c.h.b16 %v6619
  %v6752 = vunpack.c.l.b16 %v6620
  %v6753 = vunpack.c.h.b16 %v6620
  %v6754 = vunpack.c.l.b16 %v6621
  %v6755 = vunpack.c.h.b16 %v6621
  %v6756 = vunpack.c.l.b16 %v6622
  %v6757 = vunpack.c.h.b16 %v6622
  %v6758 = vunpack.c.l.b16 %v6623
  %v6759 = vunpack.c.h.b16 %v6623
  %v6760 = vunpack.c.l.b16 %v6624
  %v6761 = vunpack.c.h.b16 %v6624
  %v6762 = vunpack.c.l.b16 %v6625
  %v6763 = vunpack.c.h.b16 %v6625
  %v6764 = vunpack.c.l.b16 %v6626
  %v6765 = vunpack.c.h.b16 %v6626
  %v6766 = vunpack.c.l.b16 %v6627
  %v6767 = vunpack.c.h.b16 %v6627
  %v6768 = vunpack.c.l.b16 %v6628
  %v6769 = vunpack.c.h.b16 %v6628
  %v6770 = vunpack.c.l.b16 %v6629
  %v6771 = vunpack.c.h.b16 %v6629
  %v6772 = vunpack.c.l.b16 %v6630
  %v6773 = vunpack.c.h.b16 %v6630
  %v6774 = vunpack.c.l.b16 %v6631
  %v6775 = vunpack.c.h.b16 %v6631
  %v6776 = vunpack.c.l.b16 %v6632
  %v6777 = vunpack.c.h.b16 %v6632
  %v6778 = vunpack.c.l.b16 %v6633
  %v6779 = vunpack.c.h.b16 %v6633
  %v6780 = vunpack.c.l.b16 %v6634
  %v6781 = vunpack.c.h.b16 %v6634
  %v6782 = vunpack.c.l.b16 %v6635
  %v6783 = vunpack.c.h.b16 %v6635
  %v6784 = vunpack.c.l.b16 %v6636
  %v6785 = vunpack.c.h.b16 %v6636
  %v6786 = vunpack.c.l.b16 %v6637
  %v6787 = vunpack.c.h.b16 %v6637
  %v6788 = vunpack.c.l.b16 %v6638
  %v6789 = vunpack.c.h.b16 %v6638
  %v6790 = vunpack.c.l.b16 %v6639
  %v6791 = vunpack.c.h.b16 %v6639
  %v6792 = vunpack.c.l.b16 %v6640
  %v6793 = vunpack.c.h.b16 %v6640
  %v6794 = vunpack.c.l.b16 %v6641
  %v6795 = vunpack.c.h.b16 %v6641
  %v6796 = vunpack.c.l.b16 %v6642
  %v6797 = vunpack.c.h.b16 %v6642
  %v6798 = vunpack.c.l.b16 %v6643
  %v6799 = vunpack.c.h.b16 %v6643
  %v6800 = vunpack.c.l.b16 %v6644
  %v6801 = vunpack.c.h.b16 %v6644
  %v6802 = vunpack.c.l.b16 %v6645
  %v6803 = vunpack.c.h.b16 %v6645
  %v6804 = vunpack.c.l.b16 %v6646
  %v6805 = vunpack.c.h.b16 %v6646
  %v6806 = vunpack.c.l.b16 %v6647
  %v6807 = vunpack.c.h.b16 %v6647
  %v6808 = vunpack.c.l.b16 %v6648
  %v6809 = vunpack.c.h.b16 %v6648
  %v6810 = vunpack.c.l.b16 %v6649
  %v6811 = vunpack.c.h.b16 %v6649
  %v6812 = vunpack.c.l.b16 %v6650
  %v6813 = vunpack.c.h.b16 %v6650
  %v6814 = vunpack.c.l.b16 %v6651
  %v6815 = vunpack.c.h.b16 %v6651
  %v6816 = vunpack.c.l.b16 %v6652
  %v6817 = vunpack.c.h.b16 %v6652
  %v6818 = vunpack.c.l.b16 %v6653
  %v6819 = vunpack.c.h.b16 %v6653
  %v6820 = vunpack.c.l.b16 %v6654
  %v6821 = vunpack.c.h.b16 %v6654
  %v6822 = vunpack.c.l.b16 %v6655
  %v6823 = vunpack.c.h.b16 %v6655
  %v6824 = vunpack.c.l.b16 %v6656
  %v6825 = vunpack.c.h.b16 %v6656
  %v6826 = vunpack.c.l.b16 %v6657
  %v6827 = vunpack.c.h.b16 %v6657
  %v6828 = vunpack.c.l.b16 %v6658
  %v6829 = vunpack.c.h.b16 %v6658
  %v6830 = vunpack.c.l.b16 %v6659
  %v6831 = vunpack.c.h.b16 %v6659
  %v6832 = vunpack.c.l.b16 %v6660
  %v6833 = vunpack.c.h.b16 %v6660
  %v6834 = vunpack.c.l.b16 %v6661
  %v6835 = vunpack.c.h.b16 %v6661
  %v6836 = vunpack.c.l.b16 %v6662
  %v6837 = vunpack.c.h.b16 %v6662
  %v6838 = vunpack.c.l.b16 %v6663
  %v6839 = vunpack.c.h.b16 %v6663
  %v6840 = vunpack.c.l.b16 %v6664
  %v6841 = vunpack.c.h.b16 %v6664
  %v6842 = vunpack.c.l.b16 %v6665
  %v6843 = vunpack.c.h.b16 %v6665
  %v6844 = vunpack.c.l.b16 %v6666
  %v6845 = vunpack.c.h.b16 %v6666
  %v6846 = vunpack.c.l.b16 %v6667
  %v6847 = vunpack.c.h.b16 %v6667
  %v6848 = vunpack.c.l.b16 %v6668
  %v6849 = vunpack.c.h.b16 %v6668
  %v6850 = vunpack.c.l.b16 %v6669
  %v6851 = vunpack.c.h.b16 %v6669
  %v6852 = vunpack.c.l.b16 %v6670
  %v6853 = vunpack.c.h.b16 %v6670
  %v6854 = vunpack.c.l.b16 %v6671
  %v6855 = vunpack.c.h.b16 %v6671
  %v6856 = vunpack.c.l.b16 %v6672
  %v6857 = vunpack.c.h.b16 %v6672
  %v6858 = vunpack.c.l.b16 %v6673
  %v6859 = vunpack.c.h.b16 %v6673
  %v6860 = vunpack.c.l.b16 %v6674
  %v6861 = vunpack.c.h.b16 %v6674
  %v6862 = vunpack.c.l.b16 %v6675
  %v6863 = vunpack.c.h.b16 %v6675
  %v6864 = vunpack.c.l.b16 %v6676
  %v6865 = vunpack.c.h.b16 %v6676
  %v6866 = vunpack.c.l.b16 %v6677
  %v6867 = vunpack.c.h.b16 %v6677
  %v6868 = vunpack.c.l.b16 %v6678
  %v6869 = vunpack.c.h.b16 %v6678
  %v6870 = vunpack.c.l.b16 %v6679
  %v6871 = vunpack.c.h.b16 %v6679
  %v6872 = vpack.c.b16 %v6748, %v6744
  %v6873 = vpack.c.b16 %v6749, %v6745
  %v6874 = vpack.c.b16 %v6750, %v6746
  %v6875 = vpack.c.b16 %v6751, %v6747
  %v6876 = vpack.c.b16 %v6756, %v6752
  %v6877 = vpack.c.b16 %v6757, %v6753
  %v6878 = vpack.c.b16 %v6758, %v6754
  %v6879 = vpack.c.b16 %v6759, %v6755
  %v6880 = vpack.c.b16 %v6764, %v6760
  %v6881 = vpack.c.b16 %v6765, %v6761
  %v6882 = vpack.c.b16 %v6766, %v6762
  %v6883 = vpack.c.b16 %v6767, %v6763
  %v6884 = vpack.c.b16 %v6772, %v6768
  %v6885 = vpack.c.b16 %v6773, %v6769
  %v6886 = vpack.c.b16 %v6774, %v6770
  %v6887 = vpack.c.b16 %v6775, %v6771
  %v6888 = vpack.c.b16 %v6780, %v6776
  %v6889 = vpack.c.b16 %v6781, %v6777
  %v6890 = vpack.c.b16 %v6782, %v6778
  %v6891 = vpack.c.b16 %v6783, %v6779
  %v6892 = vpack.c.b16 %v6788, %v6784
  %v6893 = vpack.c.b16 %v6789, %v6785
  %v6894 = vpack.c.b16 %v6790, %v6786
  %v6895 = vpack.c.b16 %v6791, %v6787
  %v6896 = vpack.c.b16 %v6796, %v6792
  %v6897 = vpack.c.b16 %v6797, %v6793
  %v6898 = vpack.c.b16 %v6798, %v6794
  %v6899 = vpack.c.b16 %v6799, %v6795
  %v6900 = vpack.c.b16 %v6804, %v6800
  %v6901 = vpack.c.b16 %v6805, %v6801
  %v6902 = vpack.c.b16 %v6806, %v6802
  %v6903 = vpack.c.b16 %v6807, %v6803
  %v6904 = vpack.c.b16 %v6812, %v6808
  %v6905 = vpack.c.b16 %v6813, %v6809
  %v6906 = vpack.c.b16 %v6814, %v6810
  %v6907 = vpack.c.b16 %v6815, %v6811
  %v6908 = vpack.c.b16 %v6820, %v6816
  %v6909 = vpack.c.b16 %v6821, %v6817
  %v6910 = vpack.c.b16 %v6822, %v6818
  %v6911 = vpack.c.b16 %v6823, %v6819
  %v6912 = vpack.c.b16 %v6828, %v6824
  %v6913 = vpack.c.b16 %v6829, %v6825
  %v6914 = vpack.c.b16 %v6830, %v6826
  %v6915 = vpack.c.b16 %v6831, %v6827
  %v6916 = vpack.c.b16 %v6836, %v6832
  %v6917 = vpack.c.b16 %v6837, %v6833
  %v6918 = vpack.c.b16 %v6838, %v6834
  %v6919 = vpack.c.b16 %v6839, %v6835
  %v6920 = vpack.c.b16 %v6844, %v6840
  %v6921 = vpack.c.b16 %v6845, %v6841
  %v6922 = vpack.c.b16 %v6846, %v6842
  %v6923 = vpack.c.b16 %v6847, %v6843
  %v6924 = vpack.c.b16 %v6852, %v6848
  %v6925 = vpack.c.b16 %v6853, %v6849
  %v6926 = vpack.c.b16 %v6854, %v6850
  %v6927 = vpack.c.b16 %v6855, %v6851
  %v6928 = vpack.c.b16 %v6860, %v6856
  %v6929 = vpack.c.b16 %v6861, %v6857
  %v6930 = vpack.c.b16 %v6862, %v6858
  %v6931 = vpack.c.b16 %v6863, %v6859
  %v6932 = vpack.c.b16 %v6868, %v6864
  %v6933 = vpack.c.b16 %v6869, %v6865
  %v6934 = vpack.c.b16 %v6870, %v6866
  %v6935 = vpack.c.b16 %v6871, %v6867
  %7000 = vmatprep.subr.bf16.mxu0 %v6873
  %7001 = vmatpush1.bf16.msra.mxu0 %v6872
  %7002 = vmatprep.subr.bf16.mxu0 %v6877
  %7003 = vmatpush1.bf16.msra.mxu0 %v6876
  %7004 = vmatprep.subr.bf16.mxu0 %v6881
  %7005 = vmatpush1.bf16.msra.mxu0 %v6880
  %7006 = vmatprep.subr.bf16.mxu0 %v6885
  %7007 = vmatpush1.bf16.msra.mxu0 %v6884
  %7008 = vmatprep.subr.bf16.mxu0 %v6889
  %7009 = vmatpush1.bf16.msra.mxu0 %v6888
  %7010 = vmatprep.subr.bf16.mxu0 %v6893
  %7011 = vmatpush1.bf16.msra.mxu0 %v6892
  %7012 = vmatprep.subr.bf16.mxu0 %v6897
  %7013 = vmatpush1.bf16.msra.mxu0 %v6896
  %7014 = vmatprep.subr.bf16.mxu0 %v6901
  %7015 = vmatpush1.bf16.msra.mxu0 %v6900
  %7016 = vmatprep.subr.bf16.mxu0 %v6905
  %7017 = vmatpush1.bf16.msra.mxu0 %v6904
  %7018 = vmatprep.subr.bf16.mxu0 %v6909
  %7019 = vmatpush1.bf16.msra.mxu0 %v6908
  %7020 = vmatprep.subr.bf16.mxu0 %v6913
  %7021 = vmatpush1.bf16.msra.mxu0 %v6912
  %7022 = vmatprep.subr.bf16.mxu0 %v6917
  %7023 = vmatpush1.bf16.msra.mxu0 %v6916
  %7024 = vmatprep.subr.bf16.mxu0 %v6921
  %7025 = vmatpush1.bf16.msra.mxu0 %v6920
  %7026 = vmatprep.subr.bf16.mxu0 %v6925
  %7027 = vmatpush1.bf16.msra.mxu0 %v6924
  %7028 = vmatprep.subr.bf16.mxu0 %v6929
  %7029 = vmatpush1.bf16.msra.mxu0 %v6928
  %7030 = vmatprep.subr.bf16.mxu0 %v6933
  %7031 = vmatpush1.bf16.msra.mxu0 %v6932
  %7032 = vmatprep.mubr.bf16.mxu0 %v2799
  %7033 = vmatmul.mubr.bf16.gmra.mrb[0].mxu0 %v2798
  %v7034 = vpop.f32.mrb[0].mxu0
  %v7035 = vadd.f32 0.0, %v7034
  %v7036 = vpop.f32.mrb[0].mxu0
  %v7037 = vadd.f32 0.0, %v7036
  %v7038 = vpop.f32.mrb[0].mxu0
  %v7039 = vadd.f32 0.0, %v7038
  %v7040 = vpop.f32.mrb[0].mxu0
  %v7041 = vadd.f32 0.0, %v7040
  %7042 = vdwg.mxu0
  %7043 = vmatprep.subr.bf16.mxu0 %v6875
  %7044 = vmatpush1.bf16.msra.mxu0 %v6874
  %7045 = vmatprep.subr.bf16.mxu0 %v6879
  %7046 = vmatpush1.bf16.msra.mxu0 %v6878
  %7047 = vmatprep.subr.bf16.mxu0 %v6883
  %7048 = vmatpush1.bf16.msra.mxu0 %v6882
  %7049 = vmatprep.subr.bf16.mxu0 %v6887
  %7050 = vmatpush1.bf16.msra.mxu0 %v6886
  %7051 = vmatprep.subr.bf16.mxu0 %v6891
  %7052 = vmatpush1.bf16.msra.mxu0 %v6890
  %7053 = vmatprep.subr.bf16.mxu0 %v6895
  %7054 = vmatpush1.bf16.msra.mxu0 %v6894
  %7055 = vmatprep.subr.bf16.mxu0 %v6899
  %7056 = vmatpush1.bf16.msra.mxu0 %v6898
  %7057 = vmatprep.subr.bf16.mxu0 %v6903
  %7058 = vmatpush1.bf16.msra.mxu0 %v6902
  %7059 = vmatprep.subr.bf16.mxu0 %v6907
  %7060 = vmatpush1.bf16.msra.mxu0 %v6906
  %7061 = vmatprep.subr.bf16.mxu0 %v6911
  %7062 = vmatpush1.bf16.msra.mxu0 %v6910
  %7063 = vmatprep.subr.bf16.mxu0 %v6915
  %7064 = vmatpush1.bf16.msra.mxu0 %v6914
  %7065 = vmatprep.subr.bf16.mxu0 %v6919
  %7066 = vmatpush1.bf16.msra.mxu0 %v6918
  %7067 = vmatprep.subr.bf16.mxu0 %v6923
  %7068 = vmatpush1.bf16.msra.mxu0 %v6922
  %7069 = vmatprep.subr.bf16.mxu0 %v6927
  %7070 = vmatpush1.bf16.msra.mxu0 %v6926
  %7071 = vmatprep.subr.bf16.mxu0 %v6931
  %7072 = vmatpush1.bf16.msra.mxu0 %v6930
  %7073 = vmatprep.subr.bf16.mxu0 %v6935
  %7074 = vmatpush1.bf16.msra.mxu0 %v6934
  %7075 = vmatprep.mubr.bf16.mxu0 %v2799
  %7076 = vmatmul.mubr.bf16.gmra.mrb[0].mxu0 %v2798
  %v7077 = vpop.f32.mrb[0].mxu0
  %v7078 = vadd.f32 0.0, %v7077
  %v7079 = vpop.f32.mrb[0].mxu0
  %v7080 = vadd.f32 0.0, %v7079
  %v7081 = vpop.f32.mrb[0].mxu0
  %v7082 = vadd.f32 0.0, %v7081
  %v7083 = vpop.f32.mrb[0].mxu0
  %v7084 = vadd.f32 0.0, %v7083
  %7085 = vdwg.mxu0
  %v7086 = vadd.f32 %v6607, %v7035
  %v7087 = vadd.f32 %v6608, %v7037
  %v7088 = vadd.f32 %v6609, %v7078
  %v7089 = vadd.f32 %v6610, %v7080
  %v7090 = vadd.f32 %v6611, %v7039
  %v7091 = vadd.f32 %v6612, %v7041
  %v7092 = vadd.f32 %v6613, %v7082
  %v7093 = vadd.f32 %v6614, %v7084
  %v7094 = vld [vmem:[%s8] sm:$0xf]
  %v7096 = vlaneseq
  %v7097 = vshrl.u32 %v7096, 7
  %v7098 = vsub.s32 0, %v7097
  %v7099 = vrot.slane %v7094, %v7098
  %v7100 = vlaneseq
  %v7101 = vshrl.u32 %v7100, 7
  %v7102 = vsub.s32 1, %v7101
  %v7103 = vrot.slane %v7094, %v7102
  %v7104 = vlaneseq
  %v7105 = vshrl.u32 %v7104, 7
  %v7106 = vsub.s32 2, %v7105
  %v7107 = vrot.slane %v7094, %v7106
  %v7108 = vlaneseq
  %v7109 = vshrl.u32 %v7108, 7
  %v7110 = vsub.s32 3, %v7109
  %v7111 = vrot.slane %v7094, %v7110
  %v7116 = vadd.f32 %v7086, %v7099
  %v7117 = vadd.f32 %v7087, %v7103
  %v7118 = vadd.f32 %v7088, %v7107
  %v7119 = vadd.f32 %v7089, %v7111
  %v7120 = vadd.f32 %v7090, %v7099
  %v7121 = vadd.f32 %v7091, %v7103
  %v7122 = vadd.f32 %v7092, %v7107
  %v7123 = vadd.f32 %v7093, %v7111
  %v7124 = vmax.f32 %v7116, 0.0
  %v7125 = vmax.f32 %v7117, 0.0
  %v7126 = vmax.f32 %v7118, 0.0
  %v7127 = vmax.f32 %v7119, 0.0
  %v7128 = vmax.f32 %v7120, 0.0
  %v7129 = vmax.f32 %v7121, 0.0
  %v7130 = vmax.f32 %v7122, 0.0
  %v7131 = vmax.f32 %v7123, 0.0
  %v7132 = vpack.c.bf16 %v7128, %v7124
  %v7133 = vpack.c.bf16 %v7129, %v7125
  %v7134 = vpack.c.bf16 %v7130, %v7126
  %v7135 = vpack.c.bf16 %v7131, %v7127
  %v7137 = vshrl.u32 %v7132, 16
  %v7141 = vrot.slane %v7132, 1
  %v7143 = vrot.slane %v7137, 1
  %v7146 = vshrl.u32 %v7133, 16
  %v7149 = vrot.slane %v7133, 1
  %v7150 = vrot.slane %v7146, 1
  %v7152 = vshrl.u32 %v7134, 16
  %v7155 = vrot.slane %v7134, 1
  %v7156 = vrot.slane %v7152, 1
  %v7158 = vshrl.u32 %v7135, 16
  %v7161 = vrot.slane %v7135, 1
  %v7162 = vrot.slane %v7158, 1
  %v7163 = vshll.u32 %v7133, 16
  %v7166 = vshll.u32 %v7146, 16
  %v7169 = vshll.u32 %v7149, 16
  %v7172 = vshll.u32 %v7150, 16
  %v7178 = vrot.slane %v7134, 7
  %v7179 = vrot.slane %v7152, 7
  %v7180 = vrot.slane %v7155, 7
  %v7181 = vrot.slane %v7156, 7
  %v7182 = vshll.u32 %v7135, 16
  %v7184 = vrot.slane %v7182, 7
  %v7186 = vshll.u32 %v7158, 16
  %v7188 = vrot.slane %v7186, 7
  %v7190 = vshll.u32 %v7161, 16
  %v7192 = vrot.slane %v7190, 7
  %v7194 = vshll.u32 %v7162, 16
  %v7196 = vrot.slane %v7194, 7
  %vm7201 = vcmask 1040384
  %vm7202 = vsmask.f32 256
  %vm7203 = vmand %vm7201, %vm7202
  %v7204 = vsel %vm7203, %v7132, %v7163
  %v7205 = vsel %vm7203, %v7137, %v7166
  %v7206 = vsel %vm7203, %v7141, %v7169
  %v7207 = vsel %vm7203, %v7143, %v7172
  %vm7208 = vcmask 1040384
  %v7211 = vsel %vm7208, %v7204, %v7178
  %v7215 = vsel %vm7208, %v7205, %v7179
  %v7219 = vsel %vm7208, %v7206, %v7180
  %v7223 = vsel %vm7208, %v7207, %v7181
  %vm7225 = vcmask 1041408
  %vm7226 = vsmask.f32 1280
  %vm7227 = vmand %vm7225, %vm7226
  %v7228 = vsel %vm7227, %v7211, %v7184
  %v7229 = vsel %vm7227, %v7215, %v7188
  %v7230 = vsel %vm7227, %v7219, %v7192
  %v7231 = vsel %vm7227, %v7223, %v7196
  %v7232 = vld [vmem:[%s9] sm:$0xff]
  %v7233 = vld [vmem:[%s9 + $0x8] sm:$0xff]
  %v7234 = vld [vmem:[%s9 + $0x10] sm:$0xff]
  %v7235 = vld [vmem:[%s9 + $0x18] sm:$0xf]
  %v7236 = vld [vmem:[%s9 + $0x1c] sm:$0xff]
  %v7237 = vld [vmem:[%s9 + $0x24] sm:$0xff]
  %v7238 = vld [vmem:[%s9 + $0x2c] sm:$0xff]
  %v7239 = vld [vmem:[%s9 + $0x34] sm:$0xf]
  %v7240 = vld [vmem:[%s9 + $0x38] sm:$0xff]
  %v7241 = vld [vmem:[%s9 + $0x40] sm:$0xff]
  %v7242 = vld [vmem:[%s9 + $0x48] sm:$0xff]
  %v7243 = vld [vmem:[%s9 + $0x50] sm:$0xf]
  %v7244 = vld [vmem:[%s9 + $0x54] sm:$0xff]
  %v7245 = vld [vmem:[%s9 + $0x5c] sm:$0xff]
  %v7246 = vld [vmem:[%s9 + $0x64] sm:$0xff]
  %v7247 = vld [vmem:[%s9 + $0x6c] sm:$0xf]
  %v7248 = vld [vmem:[%s9 + $0x70] sm:$0xff]
  %v7249 = vld [vmem:[%s9 + $0x78] sm:$0xff]
  %v7250 = vld [vmem:[%s9 + $0x80] sm:$0xff]
  %v7251 = vld [vmem:[%s9 + $0x88] sm:$0xf]
  %v7252 = vld [vmem:[%s9 + $0x8c] sm:$0xff]
  %v7253 = vld [vmem:[%s9 + $0x94] sm:$0xff]
  %v7254 = vld [vmem:[%s9 + $0x9c] sm:$0xff]
  %v7255 = vld [vmem:[%s9 + $0xa4] sm:$0xf]
  %v7256 = vld [vmem:[%s9 + $0xa8] sm:$0xff]
  %v7257 = vld [vmem:[%s9 + $0xb0] sm:$0xff]
  %v7258 = vld [vmem:[%s9 + $0xb8] sm:$0xff]
  %v7259 = vld [vmem:[%s9 + $0xc0] sm:$0xf]
  %v7260 = vld [vmem:[%s9 + $0xc4] sm:$0xff]
  %v7261 = vld [vmem:[%s9 + $0xcc] sm:$0xff]
  %v7262 = vld [vmem:[%s9 + $0xd4] sm:$0xff]
  %v7263 = vld [vmem:[%s9 + $0xdc] sm:$0xf]
  %v7264 = vld [vmem:[%s9 + $0xe0] sm:$0xff]
  %v7265 = vld [vmem:[%s9 + $0xe8] sm:$0xff]
  %v7266 = vld [vmem:[%s9 + $0xf0] sm:$0xff]
  %v7267 = vld [vmem:[%s9 + $0xf8] sm:$0xf]
  %v7268 = vld [vmem:[%s9 + $0xfc] sm:$0xff]
  %v7269 = vld [vmem:[%s9 + $0x104] sm:$0xff]
  %v7270 = vld [vmem:[%s9 + $0x10c] sm:$0xff]
  %v7271 = vld [vmem:[%s9 + $0x114] sm:$0xf]
  %v7272 = vld [vmem:[%s9 + $0x118] sm:$0xff]
  %v7273 = vld [vmem:[%s9 + $0x120] sm:$0xff]
  %v7274 = vld [vmem:[%s9 + $0x128] sm:$0xff]
  %v7275 = vld [vmem:[%s9 + $0x130] sm:$0xf]
  %v7276 = vld [vmem:[%s9 + $0x134] sm:$0xff]
  %v7277 = vld [vmem:[%s9 + $0x13c] sm:$0xff]
  %v7278 = vld [vmem:[%s9 + $0x144] sm:$0xff]
  %v7279 = vld [vmem:[%s9 + $0x14c] sm:$0xf]
  %v7280 = vld [vmem:[%s9 + $0x150] sm:$0xff]
  %v7281 = vld [vmem:[%s9 + $0x158] sm:$0xff]
  %v7282 = vld [vmem:[%s9 + $0x160] sm:$0xff]
  %v7283 = vld [vmem:[%s9 + $0x168] sm:$0xf]
  %v7284 = vld [vmem:[%s9 + $0x16c] sm:$0xff]
  %v7285 = vld [vmem:[%s9 + $0x174] sm:$0xff]
  %v7286 = vld [vmem:[%s9 + $0x17c] sm:$0xff]
  %v7287 = vld [vmem:[%s9 + $0x184] sm:$0xf]
  %v7288 = vld [vmem:[%s9 + $0x188] sm:$0xff]
  %v7289 = vld [vmem:[%s9 + $0x190] sm:$0xff]
  %v7290 = vld [vmem:[%s9 + $0x198] sm:$0xff]
  %v7291 = vld [vmem:[%s9 + $0x1a0] sm:$0xf]
  %v7292 = vld [vmem:[%s9 + $0x1a4] sm:$0xff]
  %v7293 = vld [vmem:[%s9 + $0x1ac] sm:$0xff]
  %v7294 = vld [vmem:[%s9 + $0x1b4] sm:$0xff]
  %v7295 = vld [vmem:[%s9 + $0x1bc] sm:$0xf]
  %v7296 = vld [vmem:[%s9 + $0x1c0] sm:$0xff]
  %v7297 = vld [vmem:[%s9 + $0x1c8] sm:$0xff]
  %v7298 = vld [vmem:[%s9 + $0x1d0] sm:$0xff]
  %v7299 = vld [vmem:[%s9 + $0x1d8] sm:$0xf]
  %v7300 = vld [vmem:[%s9 + $0x1dc] sm:$0xff]
  %v7301 = vld [vmem:[%s9 + $0x1e4] sm:$0xff]
  %v7302 = vld [vmem:[%s9 + $0x1ec] sm:$0xff]
  %v7303 = vld [vmem:[%s9 + $0x1f4] sm:$0xf]
  %v7304 = vld [vmem:[%s9 + $0x1f8] sm:$0xff]
  %v7305 = vld [vmem:[%s9 + $0x200] sm:$0xff]
  %v7306 = vld [vmem:[%s9 + $0x208] sm:$0xff]
  %v7307 = vld [vmem:[%s9 + $0x210] sm:$0xf]
  %v7308 = vld [vmem:[%s9 + $0x214] sm:$0xff]
  %v7309 = vld [vmem:[%s9 + $0x21c] sm:$0xff]
  %v7310 = vld [vmem:[%s9 + $0x224] sm:$0xff]
  %v7311 = vld [vmem:[%s9 + $0x22c] sm:$0xf]
  %v7312 = vld [vmem:[%s9 + $0x230] sm:$0xff]
  %v7313 = vld [vmem:[%s9 + $0x238] sm:$0xff]
  %v7314 = vld [vmem:[%s9 + $0x240] sm:$0xff]
  %v7315 = vld [vmem:[%s9 + $0x248] sm:$0xf]
  %v7316 = vld [vmem:[%s9 + $0x24c] sm:$0xff]
  %v7317 = vld [vmem:[%s9 + $0x254] sm:$0xff]
  %v7318 = vld [vmem:[%s9 + $0x25c] sm:$0xff]
  %v7319 = vld [vmem:[%s9 + $0x264] sm:$0xf]
  %v7320 = vld [vmem:[%s9 + $0x268] sm:$0xff]
  %v7321 = vld [vmem:[%s9 + $0x270] sm:$0xff]
  %v7322 = vld [vmem:[%s9 + $0x278] sm:$0xff]
  %v7323 = vld [vmem:[%s9 + $0x280] sm:$0xf]
  %v7324 = vld [vmem:[%s9 + $0x284] sm:$0xff]
  %v7325 = vld [vmem:[%s9 + $0x28c] sm:$0xff]
  %v7326 = vld [vmem:[%s9 + $0x294] sm:$0xff]
  %v7327 = vld [vmem:[%s9 + $0x29c] sm:$0xf]
  %v7328 = vld [vmem:[%s9 + $0x2a0] sm:$0xff]
  %v7329 = vld [vmem:[%s9 + $0x2a8] sm:$0xff]
  %v7330 = vld [vmem:[%s9 + $0x2b0] sm:$0xff]
  %v7331 = vld [vmem:[%s9 + $0x2b8] sm:$0xf]
  %v7332 = vld [vmem:[%s9 + $0x2bc] sm:$0xff]
  %v7333 = vld [vmem:[%s9 + $0x2c4] sm:$0xff]
  %v7334 = vld [vmem:[%s9 + $0x2cc] sm:$0xff]
  %v7335 = vld [vmem:[%s9 + $0x2d4] sm:$0xf]
  %v7336 = vld [vmem:[%s9 + $0x2d8] sm:$0xff]
  %v7337 = vld [vmem:[%s9 + $0x2e0] sm:$0xff]
  %v7338 = vld [vmem:[%s9 + $0x2e8] sm:$0xff]
  %v7339 = vld [vmem:[%s9 + $0x2f0] sm:$0xf]
  %v7340 = vld [vmem:[%s9 + $0x2f4] sm:$0xff]
  %v7341 = vld [vmem:[%s9 + $0x2fc] sm:$0xff]
  %v7342 = vld [vmem:[%s9 + $0x304] sm:$0xff]
  %v7343 = vld [vmem:[%s9 + $0x30c] sm:$0xf]
  %v7344 = vld [vmem:[%s9 + $0x310] sm:$0xff]
  %v7345 = vld [vmem:[%s9 + $0x318] sm:$0xff]
  %v7346 = vld [vmem:[%s9 + $0x320] sm:$0xff]
  %v7347 = vld [vmem:[%s9 + $0x328] sm:$0xf]
  %v7348 = vld [vmem:[%s9 + $0x32c] sm:$0xff]
  %v7349 = vld [vmem:[%s9 + $0x334] sm:$0xff]
  %v7350 = vld [vmem:[%s9 + $0x33c] sm:$0xff]
  %v7351 = vld [vmem:[%s9 + $0x344] sm:$0xf]
  %v7352 = vld [vmem:[%s9 + $0x348] sm:$0xff]
  %v7353 = vld [vmem:[%s9 + $0x350] sm:$0xff]
  %v7354 = vld [vmem:[%s9 + $0x358] sm:$0xff]
  %v7355 = vld [vmem:[%s9 + $0x360] sm:$0xf]
  %v7356 = vld [vmem:[%s9 + $0x364] sm:$0xff]
  %v7357 = vld [vmem:[%s9 + $0x36c] sm:$0xff]
  %v7358 = vld [vmem:[%s9 + $0x374] sm:$0xff]
  %v7359 = vld [vmem:[%s9 + $0x37c] sm:$0xf]
  %v7360 = vld [vmem:[%s9 + $0x380] sm:$0xff]
  %v7361 = vld [vmem:[%s9 + $0x388] sm:$0xff]
  %v7362 = vld [vmem:[%s9 + $0x390] sm:$0xff]
  %v7363 = vld [vmem:[%s9 + $0x398] sm:$0xf]
  %v7364 = vld [vmem:[%s9 + $0x39c] sm:$0xff]
  %v7365 = vld [vmem:[%s9 + $0x3a4] sm:$0xff]
  %v7366 = vld [vmem:[%s9 + $0x3ac] sm:$0xff]
  %v7367 = vld [vmem:[%s9 + $0x3b4] sm:$0xf]
  %v7368 = vld [vmem:[%s9 + $0x3b8] sm:$0xff]
  %v7369 = vld [vmem:[%s9 + $0x3c0] sm:$0xff]
  %v7370 = vld [vmem:[%s9 + $0x3c8] sm:$0xff]
  %v7371 = vld [vmem:[%s9 + $0x3d0] sm:$0xf]
  %v7372 = vld [vmem:[%s9 + $0x3d4] sm:$0xff]
  %v7373 = vld [vmem:[%s9 + $0x3dc] sm:$0xff]
  %v7374 = vld [vmem:[%s9 + $0x3e4] sm:$0xff]
  %v7375 = vld [vmem:[%s9 + $0x3ec] sm:$0xf]
  %v7376 = vld [vmem:[%s9 + $0x3f0] sm:$0xff]
  %v7377 = vld [vmem:[%s9 + $0x3f8] sm:$0xff]
  %v7378 = vld [vmem:[%s9 + $0x400] sm:$0xff]
  %v7379 = vld [vmem:[%s9 + $0x408] sm:$0xf]
  %v7380 = vld [vmem:[%s9 + $0x40c] sm:$0xff]
  %v7381 = vld [vmem:[%s9 + $0x414] sm:$0xff]
  %v7382 = vld [vmem:[%s9 + $0x41c] sm:$0xff]
  %v7383 = vld [vmem:[%s9 + $0x424] sm:$0xf]
  %v7384 = vld [vmem:[%s9 + $0x428] sm:$0xff]
  %v7385 = vld [vmem:[%s9 + $0x430] sm:$0xff]
  %v7386 = vld [vmem:[%s9 + $0x438] sm:$0xff]
  %v7387 = vld [vmem:[%s9 + $0x440] sm:$0xf]
  %v7388 = vld [vmem:[%s9 + $0x444] sm:$0xff]
  %v7389 = vld [vmem:[%s9 + $0x44c] sm:$0xff]
  %v7390 = vld [vmem:[%s9 + $0x454] sm:$0xff]
  %v7391 = vld [vmem:[%s9 + $0x45c] sm:$0xf]
  %v7392 = vld [vmem:[%s9 + $0x460] sm:$0xff]
  %v7393 = vld [vmem:[%s9 + $0x468] sm:$0xff]
  %v7394 = vld [vmem:[%s9 + $0x470] sm:$0xff]
  %v7395 = vld [vmem:[%s9 + $0x478] sm:$0xf]
  %v7396 = vld [vmem:[%s9 + $0x47c] sm:$0xff]
  %v7397 = vld [vmem:[%s9 + $0x484] sm:$0xff]
  %v7398 = vld [vmem:[%s9 + $0x48c] sm:$0xff]
  %v7399 = vld [vmem:[%s9 + $0x494] sm:$0xf]
  %v7400 = vld [vmem:[%s9 + $0x498] sm:$0xff]
  %v7401 = vld [vmem:[%s9 + $0x4a0] sm:$0xff]
  %v7402 = vld [vmem:[%s9 + $0x4a8] sm:$0xff]
  %v7403 = vld [vmem:[%s9 + $0x4b0] sm:$0xf]
  %v7404 = vld [vmem:[%s9 + $0x4b4] sm:$0xff]
  %v7405 = vld [vmem:[%s9 + $0x4bc] sm:$0xff]
  %v7406 = vld [vmem:[%s9 + $0x4c4] sm:$0xff]
  %v7407 = vld [vmem:[%s9 + $0x4cc] sm:$0xf]
  %v7408 = vld [vmem:[%s9 + $0x4d0] sm:$0xff]
  %v7409 = vld [vmem:[%s9 + $0x4d8] sm:$0xff]
  %v7410 = vld [vmem:[%s9 + $0x4e0] sm:$0xff]
  %v7411 = vld [vmem:[%s9 + $0x4e8] sm:$0xf]
  %v7412 = vld [vmem:[%s9 + $0x4ec] sm:$0xff]
  %v7413 = vld [vmem:[%s9 + $0x4f4] sm:$0xff]
  %v7414 = vld [vmem:[%s9 + $0x4fc] sm:$0xff]
  %v7415 = vld [vmem:[%s9 + $0x504] sm:$0xf]
  %v7416 = vld [vmem:[%s9 + $0x508] sm:$0xff]
  %v7417 = vld [vmem:[%s9 + $0x510] sm:$0xff]
  %v7418 = vld [vmem:[%s9 + $0x518] sm:$0xff]
  %v7419 = vld [vmem:[%s9 + $0x520] sm:$0xf]
  %v7420 = vld [vmem:[%s9 + $0x524] sm:$0xff]
  %v7421 = vld [vmem:[%s9 + $0x52c] sm:$0xff]
  %v7422 = vld [vmem:[%s9 + $0x534] sm:$0xff]
  %v7423 = vld [vmem:[%s9 + $0x53c] sm:$0xf]
  %v7424 = vld [vmem:[%s9 + $0x540] sm:$0xff]
  %v7425 = vld [vmem:[%s9 + $0x548] sm:$0xff]
  %v7426 = vld [vmem:[%s9 + $0x550] sm:$0xff]
  %v7427 = vld [vmem:[%s9 + $0x558] sm:$0xf]
  %v7428 = vld [vmem:[%s9 + $0x55c] sm:$0xff]
  %v7429 = vld [vmem:[%s9 + $0x564] sm:$0xff]
  %v7430 = vld [vmem:[%s9 + $0x56c] sm:$0xff]
  %v7431 = vld [vmem:[%s9 + $0x574] sm:$0xf]
  %v7432 = vld [vmem:[%s9 + $0x578] sm:$0xff]
  %v7433 = vld [vmem:[%s9 + $0x580] sm:$0xff]
  %v7434 = vld [vmem:[%s9 + $0x588] sm:$0xff]
  %v7435 = vld [vmem:[%s9 + $0x590] sm:$0xf]
  %v7436 = vld [vmem:[%s9 + $0x594] sm:$0xff]
  %v7437 = vld [vmem:[%s9 + $0x59c] sm:$0xff]
  %v7438 = vld [vmem:[%s9 + $0x5a4] sm:$0xff]
  %v7439 = vld [vmem:[%s9 + $0x5ac] sm:$0xf]
  %v7440 = vld [vmem:[%s9 + $0x5b0] sm:$0xff]
  %v7441 = vld [vmem:[%s9 + $0x5b8] sm:$0xff]
  %v7442 = vld [vmem:[%s9 + $0x5c0] sm:$0xff]
  %v7443 = vld [vmem:[%s9 + $0x5c8] sm:$0xf]
  %v7444 = vld [vmem:[%s9 + $0x5cc] sm:$0xff]
  %v7445 = vld [vmem:[%s9 + $0x5d4] sm:$0xff]
  %v7446 = vld [vmem:[%s9 + $0x5dc] sm:$0xff]
  %v7447 = vld [vmem:[%s9 + $0x5e4] sm:$0xf]
  %v7448 = vld [vmem:[%s9 + $0x5e8] sm:$0xff]
  %v7449 = vld [vmem:[%s9 + $0x5f0] sm:$0xff]
  %v7450 = vld [vmem:[%s9 + $0x5f8] sm:$0xff]
  %v7451 = vld [vmem:[%s9 + $0x600] sm:$0xf]
  %v7452 = vld [vmem:[%s9 + $0x604] sm:$0xff]
  %v7453 = vld [vmem:[%s9 + $0x60c] sm:$0xff]
  %v7454 = vld [vmem:[%s9 + $0x614] sm:$0xff]
  %v7455 = vld [vmem:[%s9 + $0x61c] sm:$0xf]
  %v7456 = vld [vmem:[%s9 + $0x620] sm:$0xff]
  %v7457 = vld [vmem:[%s9 + $0x628] sm:$0xff]
  %v7458 = vld [vmem:[%s9 + $0x630] sm:$0xff]
  %v7459 = vld [vmem:[%s9 + $0x638] sm:$0xf]
  %v7460 = vld [vmem:[%s9 + $0x63c] sm:$0xff]
  %v7461 = vld [vmem:[%s9 + $0x644] sm:$0xff]
  %v7462 = vld [vmem:[%s9 + $0x64c] sm:$0xff]
  %v7463 = vld [vmem:[%s9 + $0x654] sm:$0xf]
  %v7464 = vld [vmem:[%s9 + $0x658] sm:$0xff]
  %v7465 = vld [vmem:[%s9 + $0x660] sm:$0xff]
  %v7466 = vld [vmem:[%s9 + $0x668] sm:$0xff]
  %v7467 = vld [vmem:[%s9 + $0x670] sm:$0xf]
  %v7468 = vld [vmem:[%s9 + $0x674] sm:$0xff]
  %v7469 = vld [vmem:[%s9 + $0x67c] sm:$0xff]
  %v7470 = vld [vmem:[%s9 + $0x684] sm:$0xff]
  %v7471 = vld [vmem:[%s9 + $0x68c] sm:$0xf]
  %v7472 = vld [vmem:[%s9 + $0x690] sm:$0xff]
  %v7473 = vld [vmem:[%s9 + $0x698] sm:$0xff]
  %v7474 = vld [vmem:[%s9 + $0x6a0] sm:$0xff]
  %v7475 = vld [vmem:[%s9 + $0x6a8] sm:$0xf]
  %v7476 = vld [vmem:[%s9 + $0x6ac] sm:$0xff]
  %v7477 = vld [vmem:[%s9 + $0x6b4] sm:$0xff]
  %v7478 = vld [vmem:[%s9 + $0x6bc] sm:$0xff]
  %v7479 = vld [vmem:[%s9 + $0x6c4] sm:$0xf]
  %v7480 = vld [vmem:[%s9 + $0x6c8] sm:$0xff]
  %v7481 = vld [vmem:[%s9 + $0x6d0] sm:$0xff]
  %v7482 = vld [vmem:[%s9 + $0x6d8] sm:$0xff]
  %v7483 = vld [vmem:[%s9 + $0x6e0] sm:$0xf]
  %v7484 = vld [vmem:[%s9 + $0x6e4] sm:$0xff]
  %v7485 = vld [vmem:[%s9 + $0x6ec] sm:$0xff]
  %v7486 = vld [vmem:[%s9 + $0x6f4] sm:$0xff]
  %v7487 = vld [vmem:[%s9 + $0x6fc] sm:$0xf]
  %v7488 = vld [vmem:[%s10] sm:$0x7f]
  %v7490 = vlaneseq
  %v7491 = vshrl.u32 %v7490, 7
  %v7492 = vsub.s32 0, %v7491
  %v7493 = vrot.slane %v7488, %v7492
  %v7494 = vlaneseq
  %v7495 = vshrl.u32 %v7494, 7
  %v7496 = vsub.s32 1, %v7495
  %v7497 = vrot.slane %v7488, %v7496
  %v7498 = vlaneseq
  %v7499 = vshrl.u32 %v7498, 7
  %v7500 = vsub.s32 2, %v7499
  %v7501 = vrot.slane %v7488, %v7500
  %v7502 = vlaneseq
  %v7503 = vshrl.u32 %v7502, 7
  %v7504 = vsub.s32 3, %v7503
  %v7505 = vrot.slane %v7488, %v7504
  %v7506 = vlaneseq
  %v7507 = vshrl.u32 %v7506, 7
  %v7508 = vsub.s32 4, %v7507
  %v7509 = vrot.slane %v7488, %v7508
  %v7510 = vlaneseq
  %v7511 = vshrl.u32 %v7510, 7
  %v7512 = vsub.s32 5, %v7511
  %v7513 = vrot.slane %v7488, %v7512
  %v7514 = vlaneseq
  %v7515 = vshrl.u32 %v7514, 7
  %v7516 = vsub.s32 6, %v7515
  %v7517 = vrot.slane %v7488, %v7516
  %v7781 = vunpack.c.l.b16 %v7232
  %v7782 = vunpack.c.h.b16 %v7232
  %v7783 = vunpack.c.l.b16 %v7233
  %v7784 = vunpack.c.h.b16 %v7233
  %v7785 = vunpack.c.l.b16 %v7234
  %v7786 = vunpack.c.h.b16 %v7234
  %v7787 = vunpack.c.l.b16 %v7235
  %v7788 = vunpack.c.l.b16 %v7236
  %v7789 = vunpack.c.h.b16 %v7236
  %v7790 = vunpack.c.l.b16 %v7237
  %v7791 = vunpack.c.h.b16 %v7237
  %v7792 = vunpack.c.l.b16 %v7238
  %v7793 = vunpack.c.h.b16 %v7238
  %v7794 = vunpack.c.l.b16 %v7239
  %v7795 = vunpack.c.l.b16 %v7240
  %v7796 = vunpack.c.h.b16 %v7240
  %v7797 = vunpack.c.l.b16 %v7241
  %v7798 = vunpack.c.h.b16 %v7241
  %v7799 = vunpack.c.l.b16 %v7242
  %v7800 = vunpack.c.h.b16 %v7242
  %v7801 = vunpack.c.l.b16 %v7243
  %v7802 = vunpack.c.l.b16 %v7244
  %v7803 = vunpack.c.h.b16 %v7244
  %v7804 = vunpack.c.l.b16 %v7245
  %v7805 = vunpack.c.h.b16 %v7245
  %v7806 = vunpack.c.l.b16 %v7246
  %v7807 = vunpack.c.h.b16 %v7246
  %v7808 = vunpack.c.l.b16 %v7247
  %v7809 = vunpack.c.l.b16 %v7248
  %v7810 = vunpack.c.h.b16 %v7248
  %v7811 = vunpack.c.l.b16 %v7249
  %v7812 = vunpack.c.h.b16 %v7249
  %v7813 = vunpack.c.l.b16 %v7250
  %v7814 = vunpack.c.h.b16 %v7250
  %v7815 = vunpack.c.l.b16 %v7251
  %v7816 = vunpack.c.l.b16 %v7252
  %v7817 = vunpack.c.h.b16 %v7252
  %v7818 = vunpack.c.l.b16 %v7253
  %v7819 = vunpack.c.h.b16 %v7253
  %v7820 = vunpack.c.l.b16 %v7254
  %v7821 = vunpack.c.h.b16 %v7254
  %v7822 = vunpack.c.l.b16 %v7255
  %v7823 = vunpack.c.l.b16 %v7256
  %v7824 = vunpack.c.h.b16 %v7256
  %v7825 = vunpack.c.l.b16 %v7257
  %v7826 = vunpack.c.h.b16 %v7257
  %v7827 = vunpack.c.l.b16 %v7258
  %v7828 = vunpack.c.h.b16 %v7258
  %v7829 = vunpack.c.l.b16 %v7259
  %v7830 = vunpack.c.l.b16 %v7260
  %v7831 = vunpack.c.h.b16 %v7260
  %v7832 = vunpack.c.l.b16 %v7261
  %v7833 = vunpack.c.h.b16 %v7261
  %v7834 = vunpack.c.l.b16 %v7262
  %v7835 = vunpack.c.h.b16 %v7262
  %v7836 = vunpack.c.l.b16 %v7263
  %v7837 = vunpack.c.l.b16 %v7264
  %v7838 = vunpack.c.h.b16 %v7264
  %v7839 = vunpack.c.l.b16 %v7265
  %v7840 = vunpack.c.h.b16 %v7265
  %v7841 = vunpack.c.l.b16 %v7266
  %v7842 = vunpack.c.h.b16 %v7266
  %v7843 = vunpack.c.l.b16 %v7267
  %v7844 = vunpack.c.l.b16 %v7268
  %v7845 = vunpack.c.h.b16 %v7268
  %v7846 = vunpack.c.l.b16 %v7269
  %v7847 = vunpack.c.h.b16 %v7269
  %v7848 = vunpack.c.l.b16 %v7270
  %v7849 = vunpack.c.h.b16 %v7270
  %v7850 = vunpack.c.l.b16 %v7271
  %v7851 = vunpack.c.l.b16 %v7272
  %v7852 = vunpack.c.h.b16 %v7272
  %v7853 = vunpack.c.l.b16 %v7273
  %v7854 = vunpack.c.h.b16 %v7273
  %v7855 = vunpack.c.l.b16 %v7274
  %v7856 = vunpack.c.h.b16 %v7274
  %v7857 = vunpack.c.l.b16 %v7275
  %v7858 = vunpack.c.l.b16 %v7276
  %v7859 = vunpack.c.h.b16 %v7276
  %v7860 = vunpack.c.l.b16 %v7277
  %v7861 = vunpack.c.h.b16 %v7277
  %v7862 = vunpack.c.l.b16 %v7278
  %v7863 = vunpack.c.h.b16 %v7278
  %v7864 = vunpack.c.l.b16 %v7279
  %v7865 = vunpack.c.l.b16 %v7280
  %v7866 = vunpack.c.h.b16 %v7280
  %v7867 = vunpack.c.l.b16 %v7281
  %v7868 = vunpack.c.h.b16 %v7281
  %v7869 = vunpack.c.l.b16 %v7282
  %v7870 = vunpack.c.h.b16 %v7282
  %v7871 = vunpack.c.l.b16 %v7283
  %v7872 = vunpack.c.l.b16 %v7284
  %v7873 = vunpack.c.h.b16 %v7284
  %v7874 = vunpack.c.l.b16 %v7285
  %v7875 = vunpack.c.h.b16 %v7285
  %v7876 = vunpack.c.l.b16 %v7286
  %v7877 = vunpack.c.h.b16 %v7286
  %v7878 = vunpack.c.l.b16 %v7287
  %v7879 = vunpack.c.l.b16 %v7288
  %v7880 = vunpack.c.h.b16 %v7288
  %v7881 = vunpack.c.l.b16 %v7289
  %v7882 = vunpack.c.h.b16 %v7289
  %v7883 = vunpack.c.l.b16 %v7290
  %v7884 = vunpack.c.h.b16 %v7290
  %v7885 = vunpack.c.l.b16 %v7291
  %v7886 = vunpack.c.l.b16 %v7292
  %v7887 = vunpack.c.h.b16 %v7292
  %v7888 = vunpack.c.l.b16 %v7293
  %v7889 = vunpack.c.h.b16 %v7293
  %v7890 = vunpack.c.l.b16 %v7294
  %v7891 = vunpack.c.h.b16 %v7294
  %v7892 = vunpack.c.l.b16 %v7295
  %v7893 = vunpack.c.l.b16 %v7296
  %v7894 = vunpack.c.h.b16 %v7296
  %v7895 = vunpack.c.l.b16 %v7297
  %v7896 = vunpack.c.h.b16 %v7297
  %v7897 = vunpack.c.l.b16 %v7298
  %v7898 = vunpack.c.h.b16 %v7298
  %v7899 = vunpack.c.l.b16 %v7299
  %v7900 = vunpack.c.l.b16 %v7300
  %v7901 = vunpack.c.h.b16 %v7300
  %v7902 = vunpack.c.l.b16 %v7301
  %v7903 = vunpack.c.h.b16 %v7301
  %v7904 = vunpack.c.l.b16 %v7302
  %v7905 = vunpack.c.h.b16 %v7302
  %v7906 = vunpack.c.l.b16 %v7303
  %v7907 = vunpack.c.l.b16 %v7304
  %v7908 = vunpack.c.h.b16 %v7304
  %v7909 = vunpack.c.l.b16 %v7305
  %v7910 = vunpack.c.h.b16 %v7305
  %v7911 = vunpack.c.l.b16 %v7306
  %v7912 = vunpack.c.h.b16 %v7306
  %v7913 = vunpack.c.l.b16 %v7307
  %v7914 = vunpack.c.l.b16 %v7308
  %v7915 = vunpack.c.h.b16 %v7308
  %v7916 = vunpack.c.l.b16 %v7309
  %v7917 = vunpack.c.h.b16 %v7309
  %v7918 = vunpack.c.l.b16 %v7310
  %v7919 = vunpack.c.h.b16 %v7310
  %v7920 = vunpack.c.l.b16 %v7311
  %v7921 = vunpack.c.l.b16 %v7312
  %v7922 = vunpack.c.h.b16 %v7312
  %v7923 = vunpack.c.l.b16 %v7313
  %v7924 = vunpack.c.h.b16 %v7313
  %v7925 = vunpack.c.l.b16 %v7314
  %v7926 = vunpack.c.h.b16 %v7314
  %v7927 = vunpack.c.l.b16 %v7315
  %v7928 = vunpack.c.l.b16 %v7316
  %v7929 = vunpack.c.h.b16 %v7316
  %v7930 = vunpack.c.l.b16 %v7317
  %v7931 = vunpack.c.h.b16 %v7317
  %v7932 = vunpack.c.l.b16 %v7318
  %v7933 = vunpack.c.h.b16 %v7318
  %v7934 = vunpack.c.l.b16 %v7319
  %v7935 = vunpack.c.l.b16 %v7320
  %v7936 = vunpack.c.h.b16 %v7320
  %v7937 = vunpack.c.l.b16 %v7321
  %v7938 = vunpack.c.h.b16 %v7321
  %v7939 = vunpack.c.l.b16 %v7322
  %v7940 = vunpack.c.h.b16 %v7322
  %v7941 = vunpack.c.l.b16 %v7323
  %v7942 = vunpack.c.l.b16 %v7324
  %v7943 = vunpack.c.h.b16 %v7324
  %v7944 = vunpack.c.l.b16 %v7325
  %v7945 = vunpack.c.h.b16 %v7325
  %v7946 = vunpack.c.l.b16 %v7326
  %v7947 = vunpack.c.h.b16 %v7326
  %v7948 = vunpack.c.l.b16 %v7327
  %v7949 = vunpack.c.l.b16 %v7328
  %v7950 = vunpack.c.h.b16 %v7328
  %v7951 = vunpack.c.l.b16 %v7329
  %v7952 = vunpack.c.h.b16 %v7329
  %v7953 = vunpack.c.l.b16 %v7330
  %v7954 = vunpack.c.h.b16 %v7330
  %v7955 = vunpack.c.l.b16 %v7331
  %v7956 = vunpack.c.l.b16 %v7332
  %v7957 = vunpack.c.h.b16 %v7332
  %v7958 = vunpack.c.l.b16 %v7333
  %v7959 = vunpack.c.h.b16 %v7333
  %v7960 = vunpack.c.l.b16 %v7334
  %v7961 = vunpack.c.h.b16 %v7334
  %v7962 = vunpack.c.l.b16 %v7335
  %v7963 = vunpack.c.l.b16 %v7336
  %v7964 = vunpack.c.h.b16 %v7336
  %v7965 = vunpack.c.l.b16 %v7337
  %v7966 = vunpack.c.h.b16 %v7337
  %v7967 = vunpack.c.l.b16 %v7338
  %v7968 = vunpack.c.h.b16 %v7338
  %v7969 = vunpack.c.l.b16 %v7339
  %v7970 = vunpack.c.l.b16 %v7340
  %v7971 = vunpack.c.h.b16 %v7340
  %v7972 = vunpack.c.l.b16 %v7341
  %v7973 = vunpack.c.h.b16 %v7341
  %v7974 = vunpack.c.l.b16 %v7342
  %v7975 = vunpack.c.h.b16 %v7342
  %v7976 = vunpack.c.l.b16 %v7343
  %v7977 = vunpack.c.l.b16 %v7344
  %v7978 = vunpack.c.h.b16 %v7344
  %v7979 = vunpack.c.l.b16 %v7345
  %v7980 = vunpack.c.h.b16 %v7345
  %v7981 = vunpack.c.l.b16 %v7346
  %v7982 = vunpack.c.h.b16 %v7346
  %v7983 = vunpack.c.l.b16 %v7347
  %v7984 = vunpack.c.l.b16 %v7348
  %v7985 = vunpack.c.h.b16 %v7348
  %v7986 = vunpack.c.l.b16 %v7349
  %v7987 = vunpack.c.h.b16 %v7349
  %v7988 = vunpack.c.l.b16 %v7350
  %v7989 = vunpack.c.h.b16 %v7350
  %v7990 = vunpack.c.l.b16 %v7351
  %v7991 = vunpack.c.l.b16 %v7352
  %v7992 = vunpack.c.h.b16 %v7352
  %v7993 = vunpack.c.l.b16 %v7353
  %v7994 = vunpack.c.h.b16 %v7353
  %v7995 = vunpack.c.l.b16 %v7354
  %v7996 = vunpack.c.h.b16 %v7354
  %v7997 = vunpack.c.l.b16 %v7355
  %v7998 = vunpack.c.l.b16 %v7356
  %v7999 = vunpack.c.h.b16 %v7356
  %v8000 = vunpack.c.l.b16 %v7357
  %v8001 = vunpack.c.h.b16 %v7357
  %v8002 = vunpack.c.l.b16 %v7358
  %v8003 = vunpack.c.h.b16 %v7358
  %v8004 = vunpack.c.l.b16 %v7359
  %v8005 = vunpack.c.l.b16 %v7360
  %v8006 = vunpack.c.h.b16 %v7360
  %v8007 = vunpack.c.l.b16 %v7361
  %v8008 = vunpack.c.h.b16 %v7361
  %v8009 = vunpack.c.l.b16 %v7362
  %v8010 = vunpack.c.h.b16 %v7362
  %v8011 = vunpack.c.l.b16 %v7363
  %v8012 = vunpack.c.l.b16 %v7364
  %v8013 = vunpack.c.h.b16 %v7364
  %v8014 = vunpack.c.l.b16 %v7365
  %v8015 = vunpack.c.h.b16 %v7365
  %v8016 = vunpack.c.l.b16 %v7366
  %v8017 = vunpack.c.h.b16 %v7366
  %v8018 = vunpack.c.l.b16 %v7367
  %v8019 = vunpack.c.l.b16 %v7368
  %v8020 = vunpack.c.h.b16 %v7368
  %v8021 = vunpack.c.l.b16 %v7369
  %v8022 = vunpack.c.h.b16 %v7369
  %v8023 = vunpack.c.l.b16 %v7370
  %v8024 = vunpack.c.h.b16 %v7370
  %v8025 = vunpack.c.l.b16 %v7371
  %v8026 = vunpack.c.l.b16 %v7372
  %v8027 = vunpack.c.h.b16 %v7372
  %v8028 = vunpack.c.l.b16 %v7373
  %v8029 = vunpack.c.h.b16 %v7373
  %v8030 = vunpack.c.l.b16 %v7374
  %v8031 = vunpack.c.h.b16 %v7374
  %v8032 = vunpack.c.l.b16 %v7375
  %v8033 = vunpack.c.l.b16 %v7376
  %v8034 = vunpack.c.h.b16 %v7376
  %v8035 = vunpack.c.l.b16 %v7377
  %v8036 = vunpack.c.h.b16 %v7377
  %v8037 = vunpack.c.l.b16 %v7378
  %v8038 = vunpack.c.h.b16 %v7378
  %v8039 = vunpack.c.l.b16 %v7379
  %v8040 = vunpack.c.l.b16 %v7380
  %v8041 = vunpack.c.h.b16 %v7380
  %v8042 = vunpack.c.l.b16 %v7381
  %v8043 = vunpack.c.h.b16 %v7381
  %v8044 = vunpack.c.l.b16 %v7382
  %v8045 = vunpack.c.h.b16 %v7382
  %v8046 = vunpack.c.l.b16 %v7383
  %v8047 = vunpack.c.l.b16 %v7384
  %v8048 = vunpack.c.h.b16 %v7384
  %v8049 = vunpack.c.l.b16 %v7385
  %v8050 = vunpack.c.h.b16 %v7385
  %v8051 = vunpack.c.l.b16 %v7386
  %v8052 = vunpack.c.h.b16 %v7386
  %v8053 = vunpack.c.l.b16 %v7387
  %v8054 = vunpack.c.l.b16 %v7388
  %v8055 = vunpack.c.h.b16 %v7388
  %v8056 = vunpack.c.l.b16 %v7389
  %v8057 = vunpack.c.h.b16 %v7389
  %v8058 = vunpack.c.l.b16 %v7390
  %v8059 = vunpack.c.h.b16 %v7390
  %v8060 = vunpack.c.l.b16 %v7391
  %v8061 = vunpack.c.l.b16 %v7392
  %v8062 = vunpack.c.h.b16 %v7392
  %v8063 = vunpack.c.l.b16 %v7393
  %v8064 = vunpack.c.h.b16 %v7393
  %v8065 = vunpack.c.l.b16 %v7394
  %v8066 = vunpack.c.h.b16 %v7394
  %v8067 = vunpack.c.l.b16 %v7395
  %v8068 = vunpack.c.l.b16 %v7396
  %v8069 = vunpack.c.h.b16 %v7396
  %v8070 = vunpack.c.l.b16 %v7397
  %v8071 = vunpack.c.h.b16 %v7397
  %v8072 = vunpack.c.l.b16 %v7398
  %v8073 = vunpack.c.h.b16 %v7398
  %v8074 = vunpack.c.l.b16 %v7399
  %v8075 = vunpack.c.l.b16 %v7400
  %v8076 = vunpack.c.h.b16 %v7400
  %v8077 = vunpack.c.l.b16 %v7401
  %v8078 = vunpack.c.h.b16 %v7401
  %v8079 = vunpack.c.l.b16 %v7402
  %v8080 = vunpack.c.h.b16 %v7402
  %v8081 = vunpack.c.l.b16 %v7403
  %v8082 = vunpack.c.l.b16 %v7404
  %v8083 = vunpack.c.h.b16 %v7404
  %v8084 = vunpack.c.l.b16 %v7405
  %v8085 = vunpack.c.h.b16 %v7405
  %v8086 = vunpack.c.l.b16 %v7406
  %v8087 = vunpack.c.h.b16 %v7406
  %v8088 = vunpack.c.l.b16 %v7407
  %v8089 = vunpack.c.l.b16 %v7408
  %v8090 = vunpack.c.h.b16 %v7408
  %v8091 = vunpack.c.l.b16 %v7409
  %v8092 = vunpack.c.h.b16 %v7409
  %v8093 = vunpack.c.l.b16 %v7410
  %v8094 = vunpack.c.h.b16 %v7410
  %v8095 = vunpack.c.l.b16 %v7411
  %v8096 = vunpack.c.l.b16 %v7412
  %v8097 = vunpack.c.h.b16 %v7412
  %v8098 = vunpack.c.l.b16 %v7413
  %v8099 = vunpack.c.h.b16 %v7413
  %v8100 = vunpack.c.l.b16 %v7414
  %v8101 = vunpack.c.h.b16 %v7414
  %v8102 = vunpack.c.l.b16 %v7415
  %v8103 = vunpack.c.l.b16 %v7416
  %v8104 = vunpack.c.h.b16 %v7416
  %v8105 = vunpack.c.l.b16 %v7417
  %v8106 = vunpack.c.h.b16 %v7417
  %v8107 = vunpack.c.l.b16 %v7418
  %v8108 = vunpack.c.h.b16 %v7418
  %v8109 = vunpack.c.l.b16 %v7419
  %v8110 = vunpack.c.l.b16 %v7420
  %v8111 = vunpack.c.h.b16 %v7420
  %v8112 = vunpack.c.l.b16 %v7421
  %v8113 = vunpack.c.h.b16 %v7421
  %v8114 = vunpack.c.l.b16 %v7422
  %v8115 = vunpack.c.h.b16 %v7422
  %v8116 = vunpack.c.l.b16 %v7423
  %v8117 = vunpack.c.l.b16 %v7424
  %v8118 = vunpack.c.h.b16 %v7424
  %v8119 = vunpack.c.l.b16 %v7425
  %v8120 = vunpack.c.h.b16 %v7425
  %v8121 = vunpack.c.l.b16 %v7426
  %v8122 = vunpack.c.h.b16 %v7426
  %v8123 = vunpack.c.l.b16 %v7427
  %v8124 = vunpack.c.l.b16 %v7428
  %v8125 = vunpack.c.h.b16 %v7428
  %v8126 = vunpack.c.l.b16 %v7429
  %v8127 = vunpack.c.h.b16 %v7429
  %v8128 = vunpack.c.l.b16 %v7430
  %v8129 = vunpack.c.h.b16 %v7430
  %v8130 = vunpack.c.l.b16 %v7431
  %v8131 = vunpack.c.l.b16 %v7432
  %v8132 = vunpack.c.h.b16 %v7432
  %v8133 = vunpack.c.l.b16 %v7433
  %v8134 = vunpack.c.h.b16 %v7433
  %v8135 = vunpack.c.l.b16 %v7434
  %v8136 = vunpack.c.h.b16 %v7434
  %v8137 = vunpack.c.l.b16 %v7435
  %v8138 = vunpack.c.l.b16 %v7436
  %v8139 = vunpack.c.h.b16 %v7436
  %v8140 = vunpack.c.l.b16 %v7437
  %v8141 = vunpack.c.h.b16 %v7437
  %v8142 = vunpack.c.l.b16 %v7438
  %v8143 = vunpack.c.h.b16 %v7438
  %v8144 = vunpack.c.l.b16 %v7439
  %v8145 = vunpack.c.l.b16 %v7440
  %v8146 = vunpack.c.h.b16 %v7440
  %v8147 = vunpack.c.l.b16 %v7441
  %v8148 = vunpack.c.h.b16 %v7441
  %v8149 = vunpack.c.l.b16 %v7442
  %v8150 = vunpack.c.h.b16 %v7442
  %v8151 = vunpack.c.l.b16 %v7443
  %v8152 = vunpack.c.l.b16 %v7444
  %v8153 = vunpack.c.h.b16 %v7444
  %v8154 = vunpack.c.l.b16 %v7445
  %v8155 = vunpack.c.h.b16 %v7445
  %v8156 = vunpack.c.l.b16 %v7446
  %v8157 = vunpack.c.h.b16 %v7446
  %v8158 = vunpack.c.l.b16 %v7447
  %v8159 = vunpack.c.l.b16 %v7448
  %v8160 = vunpack.c.h.b16 %v7448
  %v8161 = vunpack.c.l.b16 %v7449
  %v8162 = vunpack.c.h.b16 %v7449
  %v8163 = vunpack.c.l.b16 %v7450
  %v8164 = vunpack.c.h.b16 %v7450
  %v8165 = vunpack.c.l.b16 %v7451
  %v8166 = vunpack.c.l.b16 %v7452
  %v8167 = vunpack.c.h.b16 %v7452
  %v8168 = vunpack.c.l.b16 %v7453
  %v8169 = vunpack.c.h.b16 %v7453
  %v8170 = vunpack.c.l.b16 %v7454
  %v8171 = vunpack.c.h.b16 %v7454
  %v8172 = vunpack.c.l.b16 %v7455
  %v8173 = vunpack.c.l.b16 %v7456
  %v8174 = vunpack.c.h.b16 %v7456
  %v8175 = vunpack.c.l.b16 %v7457
  %v8176 = vunpack.c.h.b16 %v7457
  %v8177 = vunpack.c.l.b16 %v7458
  %v8178 = vunpack.c.h.b16 %v7458
  %v8179 = vunpack.c.l.b16 %v7459
  %v8180 = vunpack.c.l.b16 %v7460
  %v8181 = vunpack.c.h.b16 %v7460
  %v8182 = vunpack.c.l.b16 %v7461
  %v8183 = vunpack.c.h.b16 %v7461
  %v8184 = vunpack.c.l.b16 %v7462
  %v8185 = vunpack.c.h.b16 %v7462
  %v8186 = vunpack.c.l.b16 %v7463
  %v8187 = vunpack.c.l.b16 %v7464
  %v8188 = vunpack.c.h.b16 %v7464
  %v8189 = vunpack.c.l.b16 %v7465
  %v8190 = vunpack.c.h.b16 %v7465
  %v8191 = vunpack.c.l.b16 %v7466
  %v8192 = vunpack.c.h.b16 %v7466
  %v8193 = vunpack.c.l.b16 %v7467
  %v8194 = vunpack.c.l.b16 %v7468
  %v8195 = vunpack.c.h.b16 %v7468
  %v8196 = vunpack.c.l.b16 %v7469
  %v8197 = vunpack.c.h.b16 %v7469
  %v8198 = vunpack.c.l.b16 %v7470
  %v8199 = vunpack.c.h.b16 %v7470
  %v8200 = vunpack.c.l.b16 %v7471
  %v8201 = vunpack.c.l.b16 %v7472
  %v8202 = vunpack.c.h.b16 %v7472
  %v8203 = vunpack.c.l.b16 %v7473
  %v8204 = vunpack.c.h.b16 %v7473
  %v8205 = vunpack.c.l.b16 %v7474
  %v8206 = vunpack.c.h.b16 %v7474
  %v8207 = vunpack.c.l.b16 %v7475
  %v8208 = vunpack.c.l.b16 %v7476
  %v8209 = vunpack.c.h.b16 %v7476
  %v8210 = vunpack.c.l.b16 %v7477
  %v8211 = vunpack.c.h.b16 %v7477
  %v8212 = vunpack.c.l.b16 %v7478
  %v8213 = vunpack.c.h.b16 %v7478
  %v8214 = vunpack.c.l.b16 %v7479
  %v8215 = vunpack.c.l.b16 %v7480
  %v8216 = vunpack.c.h.b16 %v7480
  %v8217 = vunpack.c.l.b16 %v7481
  %v8218 = vunpack.c.h.b16 %v7481
  %v8219 = vunpack.c.l.b16 %v7482
  %v8220 = vunpack.c.h.b16 %v7482
  %v8221 = vunpack.c.l.b16 %v7483
  %v8222 = vunpack.c.l.b16 %v7484
  %v8223 = vunpack.c.h.b16 %v7484
  %v8224 = vunpack.c.l.b16 %v7485
  %v8225 = vunpack.c.h.b16 %v7485
  %v8226 = vunpack.c.l.b16 %v7486
  %v8227 = vunpack.c.h.b16 %v7486
  %v8228 = vunpack.c.l.b16 %v7487
  %v8229 = vpack.c.b16 %v7788, %v7781
  %v8230 = vpack.c.b16 %v7789, %v7782
  %v8231 = vpack.c.b16 %v7790, %v7783
  %v8232 = vpack.c.b16 %v7791, %v7784
  %v8233 = vpack.c.b16 %v7792, %v7785
  %v8234 = vpack.c.b16 %v7793, %v7786
  %v8235 = vpack.c.b16 %v7794, %v7787
  %v8236 = vpack.c.b16 %v7802, %v7795
  %v8237 = vpack.c.b16 %v7803, %v7796
  %v8238 = vpack.c.b16 %v7804, %v7797
  %v8239 = vpack.c.b16 %v7805, %v7798
  %v8240 = vpack.c.b16 %v7806, %v7799
  %v8241 = vpack.c.b16 %v7807, %v7800
  %v8242 = vpack.c.b16 %v7808, %v7801
  %v8243 = vpack.c.b16 %v7816, %v7809
  %v8244 = vpack.c.b16 %v7817, %v7810
  %v8245 = vpack.c.b16 %v7818, %v7811
  %v8246 = vpack.c.b16 %v7819, %v7812
  %v8247 = vpack.c.b16 %v7820, %v7813
  %v8248 = vpack.c.b16 %v7821, %v7814
  %v8249 = vpack.c.b16 %v7822, %v7815
  %v8250 = vpack.c.b16 %v7830, %v7823
  %v8251 = vpack.c.b16 %v7831, %v7824
  %v8252 = vpack.c.b16 %v7832, %v7825
  %v8253 = vpack.c.b16 %v7833, %v7826
  %v8254 = vpack.c.b16 %v7834, %v7827
  %v8255 = vpack.c.b16 %v7835, %v7828
  %v8256 = vpack.c.b16 %v7836, %v7829
  %v8257 = vpack.c.b16 %v7844, %v7837
  %v8258 = vpack.c.b16 %v7845, %v7838
  %v8259 = vpack.c.b16 %v7846, %v7839
  %v8260 = vpack.c.b16 %v7847, %v7840
  %v8261 = vpack.c.b16 %v7848, %v7841
  %v8262 = vpack.c.b16 %v7849, %v7842
  %v8263 = vpack.c.b16 %v7850, %v7843
  %v8264 = vpack.c.b16 %v7858, %v7851
  %v8265 = vpack.c.b16 %v7859, %v7852
  %v8266 = vpack.c.b16 %v7860, %v7853
  %v8267 = vpack.c.b16 %v7861, %v7854
  %v8268 = vpack.c.b16 %v7862, %v7855
  %v8269 = vpack.c.b16 %v7863, %v7856
  %v8270 = vpack.c.b16 %v7864, %v7857
  %v8271 = vpack.c.b16 %v7872, %v7865
  %v8272 = vpack.c.b16 %v7873, %v7866
  %v8273 = vpack.c.b16 %v7874, %v7867
  %v8274 = vpack.c.b16 %v7875, %v7868
  %v8275 = vpack.c.b16 %v7876, %v7869
  %v8276 = vpack.c.b16 %v7877, %v7870
  %v8277 = vpack.c.b16 %v7878, %v7871
  %v8278 = vpack.c.b16 %v7886, %v7879
  %v8279 = vpack.c.b16 %v7887, %v7880
  %v8280 = vpack.c.b16 %v7888, %v7881
  %v8281 = vpack.c.b16 %v7889, %v7882
  %v8282 = vpack.c.b16 %v7890, %v7883
  %v8283 = vpack.c.b16 %v7891, %v7884
  %v8284 = vpack.c.b16 %v7892, %v7885
  %v8285 = vpack.c.b16 %v7900, %v7893
  %v8286 = vpack.c.b16 %v7901, %v7894
  %v8287 = vpack.c.b16 %v7902, %v7895
  %v8288 = vpack.c.b16 %v7903, %v7896
  %v8289 = vpack.c.b16 %v7904, %v7897
  %v8290 = vpack.c.b16 %v7905, %v7898
  %v8291 = vpack.c.b16 %v7906, %v7899
  %v8292 = vpack.c.b16 %v7914, %v7907
  %v8293 = vpack.c.b16 %v7915, %v7908
  %v8294 = vpack.c.b16 %v7916, %v7909
  %v8295 = vpack.c.b16 %v7917, %v7910
  %v8296 = vpack.c.b16 %v7918, %v7911
  %v8297 = vpack.c.b16 %v7919, %v7912
  %v8298 = vpack.c.b16 %v7920, %v7913
  %v8299 = vpack.c.b16 %v7928, %v7921
  %v8300 = vpack.c.b16 %v7929, %v7922
  %v8301 = vpack.c.b16 %v7930, %v7923
  %v8302 = vpack.c.b16 %v7931, %v7924
  %v8303 = vpack.c.b16 %v7932, %v7925
  %v8304 = vpack.c.b16 %v7933, %v7926
  %v8305 = vpack.c.b16 %v7934, %v7927
  %v8306 = vpack.c.b16 %v7942, %v7935
  %v8307 = vpack.c.b16 %v7943, %v7936
  %v8308 = vpack.c.b16 %v7944, %v7937
  %v8309 = vpack.c.b16 %v7945, %v7938
  %v8310 = vpack.c.b16 %v7946, %v7939
  %v8311 = vpack.c.b16 %v7947, %v7940
  %v8312 = vpack.c.b16 %v7948, %v7941
  %v8313 = vpack.c.b16 %v7956, %v7949
  %v8314 = vpack.c.b16 %v7957, %v7950
  %v8315 = vpack.c.b16 %v7958, %v7951
  %v8316 = vpack.c.b16 %v7959, %v7952
  %v8317 = vpack.c.b16 %v7960, %v7953
  %v8318 = vpack.c.b16 %v7961, %v7954
  %v8319 = vpack.c.b16 %v7962, %v7955
  %v8320 = vpack.c.b16 %v7970, %v7963
  %v8321 = vpack.c.b16 %v7971, %v7964
  %v8322 = vpack.c.b16 %v7972, %v7965
  %v8323 = vpack.c.b16 %v7973, %v7966
  %v8324 = vpack.c.b16 %v7974, %v7967
  %v8325 = vpack.c.b16 %v7975, %v7968
  %v8326 = vpack.c.b16 %v7976, %v7969
  %v8327 = vpack.c.b16 %v7984, %v7977
  %v8328 = vpack.c.b16 %v7985, %v7978
  %v8329 = vpack.c.b16 %v7986, %v7979
  %v8330 = vpack.c.b16 %v7987, %v7980
  %v8331 = vpack.c.b16 %v7988, %v7981
  %v8332 = vpack.c.b16 %v7989, %v7982
  %v8333 = vpack.c.b16 %v7990, %v7983
  %v8334 = vpack.c.b16 %v7998, %v7991
  %v8335 = vpack.c.b16 %v7999, %v7992
  %v8336 = vpack.c.b16 %v8000, %v7993
  %v8337 = vpack.c.b16 %v8001, %v7994
  %v8338 = vpack.c.b16 %v8002, %v7995
  %v8339 = vpack.c.b16 %v8003, %v7996
  %v8340 = vpack.c.b16 %v8004, %v7997
  %v8341 = vpack.c.b16 %v8012, %v8005
  %v8342 = vpack.c.b16 %v8013, %v8006
  %v8343 = vpack.c.b16 %v8014, %v8007
  %v8344 = vpack.c.b16 %v8015, %v8008
  %v8345 = vpack.c.b16 %v8016, %v8009
  %v8346 = vpack.c.b16 %v8017, %v8010
  %v8347 = vpack.c.b16 %v8018, %v8011
  %v8348 = vpack.c.b16 %v8026, %v8019
  %v8349 = vpack.c.b16 %v8027, %v8020
  %v8350 = vpack.c.b16 %v8028, %v8021
  %v8351 = vpack.c.b16 %v8029, %v8022
  %v8352 = vpack.c.b16 %v8030, %v8023
  %v8353 = vpack.c.b16 %v8031, %v8024
  %v8354 = vpack.c.b16 %v8032, %v8025
  %v8355 = vpack.c.b16 %v8040, %v8033
  %v8356 = vpack.c.b16 %v8041, %v8034
  %v8357 = vpack.c.b16 %v8042, %v8035
  %v8358 = vpack.c.b16 %v8043, %v8036
  %v8359 = vpack.c.b16 %v8044, %v8037
  %v8360 = vpack.c.b16 %v8045, %v8038
  %v8361 = vpack.c.b16 %v8046, %v8039
  %v8362 = vpack.c.b16 %v8054, %v8047
  %v8363 = vpack.c.b16 %v8055, %v8048
  %v8364 = vpack.c.b16 %v8056, %v8049
  %v8365 = vpack.c.b16 %v8057, %v8050
  %v8366 = vpack.c.b16 %v8058, %v8051
  %v8367 = vpack.c.b16 %v8059, %v8052
  %v8368 = vpack.c.b16 %v8060, %v8053
  %v8369 = vpack.c.b16 %v8068, %v8061
  %v8370 = vpack.c.b16 %v8069, %v8062
  %v8371 = vpack.c.b16 %v8070, %v8063
  %v8372 = vpack.c.b16 %v8071, %v8064
  %v8373 = vpack.c.b16 %v8072, %v8065
  %v8374 = vpack.c.b16 %v8073, %v8066
  %v8375 = vpack.c.b16 %v8074, %v8067
  %v8376 = vpack.c.b16 %v8082, %v8075
  %v8377 = vpack.c.b16 %v8083, %v8076
  %v8378 = vpack.c.b16 %v8084, %v8077
  %v8379 = vpack.c.b16 %v8085, %v8078
  %v8380 = vpack.c.b16 %v8086, %v8079
  %v8381 = vpack.c.b16 %v8087, %v8080
  %v8382 = vpack.c.b16 %v8088, %v8081
  %v8383 = vpack.c.b16 %v8096, %v8089
  %v8384 = vpack.c.b16 %v8097, %v8090
  %v8385 = vpack.c.b16 %v8098, %v8091
  %v8386 = vpack.c.b16 %v8099, %v8092
  %v8387 = vpack.c.b16 %v8100, %v8093
  %v8388 = vpack.c.b16 %v8101, %v8094
  %v8389 = vpack.c.b16 %v8102, %v8095
  %v8390 = vpack.c.b16 %v8110, %v8103
  %v8391 = vpack.c.b16 %v8111, %v8104
  %v8392 = vpack.c.b16 %v8112, %v8105
  %v8393 = vpack.c.b16 %v8113, %v8106
  %v8394 = vpack.c.b16 %v8114, %v8107
  %v8395 = vpack.c.b16 %v8115, %v8108
  %v8396 = vpack.c.b16 %v8116, %v8109
  %v8397 = vpack.c.b16 %v8124, %v8117
  %v8398 = vpack.c.b16 %v8125, %v8118
  %v8399 = vpack.c.b16 %v8126, %v8119
  %v8400 = vpack.c.b16 %v8127, %v8120
  %v8401 = vpack.c.b16 %v8128, %v8121
  %v8402 = vpack.c.b16 %v8129, %v8122
  %v8403 = vpack.c.b16 %v8130, %v8123
  %v8404 = vpack.c.b16 %v8138, %v8131
  %v8405 = vpack.c.b16 %v8139, %v8132
  %v8406 = vpack.c.b16 %v8140, %v8133
  %v8407 = vpack.c.b16 %v8141, %v8134
  %v8408 = vpack.c.b16 %v8142, %v8135
  %v8409 = vpack.c.b16 %v8143, %v8136
  %v8410 = vpack.c.b16 %v8144, %v8137
  %v8411 = vpack.c.b16 %v8152, %v8145
  %v8412 = vpack.c.b16 %v8153, %v8146
  %v8413 = vpack.c.b16 %v8154, %v8147
  %v8414 = vpack.c.b16 %v8155, %v8148
  %v8415 = vpack.c.b16 %v8156, %v8149
  %v8416 = vpack.c.b16 %v8157, %v8150
  %v8417 = vpack.c.b16 %v8158, %v8151
  %v8418 = vpack.c.b16 %v8166, %v8159
  %v8419 = vpack.c.b16 %v8167, %v8160
  %v8420 = vpack.c.b16 %v8168, %v8161
  %v8421 = vpack.c.b16 %v8169, %v8162
  %v8422 = vpack.c.b16 %v8170, %v8163
  %v8423 = vpack.c.b16 %v8171, %v8164
  %v8424 = vpack.c.b16 %v8172, %v8165
  %v8425 = vpack.c.b16 %v8180, %v8173
  %v8426 = vpack.c.b16 %v8181, %v8174
  %v8427 = vpack.c.b16 %v8182, %v8175
  %v8428 = vpack.c.b16 %v8183, %v8176
  %v8429 = vpack.c.b16 %v8184, %v8177
  %v8430 = vpack.c.b16 %v8185, %v8178
  %v8431 = vpack.c.b16 %v8186, %v8179
  %v8432 = vpack.c.b16 %v8194, %v8187
  %v8433 = vpack.c.b16 %v8195, %v8188
  %v8434 = vpack.c.b16 %v8196, %v8189
  %v8435 = vpack.c.b16 %v8197, %v8190
  %v8436 = vpack.c.b16 %v8198, %v8191
  %v8437 = vpack.c.b16 %v8199, %v8192
  %v8438 = vpack.c.b16 %v8200, %v8193
  %v8439 = vpack.c.b16 %v8208, %v8201
  %v8440 = vpack.c.b16 %v8209, %v8202
  %v8441 = vpack.c.b16 %v8210, %v8203
  %v8442 = vpack.c.b16 %v8211, %v8204
  %v8443 = vpack.c.b16 %v8212, %v8205
  %v8444 = vpack.c.b16 %v8213, %v8206
  %v8445 = vpack.c.b16 %v8214, %v8207
  %v8446 = vpack.c.b16 %v8222, %v8215
  %v8447 = vpack.c.b16 %v8223, %v8216
  %v8448 = vpack.c.b16 %v8224, %v8217
  %v8449 = vpack.c.b16 %v8225, %v8218
  %v8450 = vpack.c.b16 %v8226, %v8219
  %v8451 = vpack.c.b16 %v8227, %v8220
  %v8452 = vpack.c.b16 %v8228, %v8221
  %8677 = vmatprep.subr.bf16.mxu0 %v8230
  %8678 = vmatpush1.bf16.msra.mxu0 %v8229
  %8679 = vmatprep.subr.bf16.mxu0 %v8237
  %8680 = vmatpush1.bf16.msra.mxu0 %v8236
  %8681 = vmatprep.subr.bf16.mxu0 %v8244
  %8682 = vmatpush1.bf16.msra.mxu0 %v8243
  %8683 = vmatprep.subr.bf16.mxu0 %v8251
  %8684 = vmatpush1.bf16.msra.mxu0 %v8250
  %8685 = vmatprep.subr.bf16.mxu0 %v8258
  %8686 = vmatpush1.bf16.msra.mxu0 %v8257
  %8687 = vmatprep.subr.bf16.mxu0 %v8265
  %8688 = vmatpush1.bf16.msra.mxu0 %v8264
  %8689 = vmatprep.subr.bf16.mxu0 %v8272
  %8690 = vmatpush1.bf16.msra.mxu0 %v8271
  %8691 = vmatprep.subr.bf16.mxu0 %v8279
  %8692 = vmatpush1.bf16.msra.mxu0 %v8278
  %8693 = vmatprep.subr.bf16.mxu0 %v8286
  %8694 = vmatpush1.bf16.msra.mxu0 %v8285
  %8695 = vmatprep.subr.bf16.mxu0 %v8293
  %8696 = vmatpush1.bf16.msra.mxu0 %v8292
  %8697 = vmatprep.subr.bf16.mxu0 %v8300
  %8698 = vmatpush1.bf16.msra.mxu0 %v8299
  %8699 = vmatprep.subr.bf16.mxu0 %v8307
  %8700 = vmatpush1.bf16.msra.mxu0 %v8306
  %8701 = vmatprep.subr.bf16.mxu0 %v8314
  %8702 = vmatpush1.bf16.msra.mxu0 %v8313
  %8703 = vmatprep.subr.bf16.mxu0 %v8321
  %8704 = vmatpush1.bf16.msra.mxu0 %v8320
  %8705 = vmatprep.subr.bf16.mxu0 %v8328
  %8706 = vmatpush1.bf16.msra.mxu0 %v8327
  %8707 = vmatprep.subr.bf16.mxu0 %v8335
  %8708 = vmatpush1.bf16.msra.mxu0 %v8334
  %8709 = vmatprep.mubr.bf16.mxu0 %v7229
  %8710 = vmatmul.mubr.bf16.gmra.mrb[0].mxu0 %v7228
  %v8711 = vpop.f32.mrb[0].mxu0
  %v8712 = vadd.f32 %v7493, %v8711
  %v8713 = vpop.f32.mrb[0].mxu0
  %v8714 = vadd.f32 %v7497, %v8713
  %v8715 = vpop.f32.mrb[0].mxu0
  %v8716 = vpop.f32.mrb[0].mxu0
  %8717 = vdwg.mxu0
  %8718 = vmatprep.subr.bf16.mxu0 %v8342
  %8719 = vmatpush1.bf16.msra.mxu0 %v8341
  %8720 = vmatprep.subr.bf16.mxu0 %v8349
  %8721 = vmatpush1.bf16.msra.mxu0 %v8348
  %8722 = vmatprep.subr.bf16.mxu0 %v8356
  %8723 = vmatpush1.bf16.msra.mxu0 %v8355
  %8724 = vmatprep.subr.bf16.mxu0 %v8363
  %8725 = vmatpush1.bf16.msra.mxu0 %v8362
  %8726 = vmatprep.subr.bf16.mxu0 %v8370
  %8727 = vmatpush1.bf16.msra.mxu0 %v8369
  %8728 = vmatprep.subr.bf16.mxu0 %v8377
  %8729 = vmatpush1.bf16.msra.mxu0 %v8376
  %8730 = vmatprep.subr.bf16.mxu0 %v8384
  %8731 = vmatpush1.bf16.msra.mxu0 %v8383
  %8732 = vmatprep.subr.bf16.mxu0 %v8391
  %8733 = vmatpush1.bf16.msra.mxu0 %v8390
  %8734 = vmatprep.subr.bf16.mxu0 %v8398
  %8735 = vmatpush1.bf16.msra.mxu0 %v8397
  %8736 = vmatprep.subr.bf16.mxu0 %v8405
  %8737 = vmatpush1.bf16.msra.mxu0 %v8404
  %8738 = vmatprep.subr.bf16.mxu0 %v8412
  %8739 = vmatpush1.bf16.msra.mxu0 %v8411
  %8740 = vmatprep.subr.bf16.mxu0 %v8419
  %8741 = vmatpush1.bf16.msra.mxu0 %v8418
  %8742 = vmatprep.subr.bf16.mxu0 %v8426
  %8743 = vmatpush1.bf16.msra.mxu0 %v8425
  %8744 = vmatprep.subr.bf16.mxu0 %v8433
  %8745 = vmatpush1.bf16.msra.mxu0 %v8432
  %8746 = vmatprep.subr.bf16.mxu0 %v8440
  %8747 = vmatpush1.bf16.msra.mxu0 %v8439
  %8748 = vmatprep.subr.bf16.mxu0 %v8447
  %8749 = vmatpush1.bf16.msra.mxu0 %v8446
  %8750 = vmatprep.mubr.bf16.mxu0 %v7231
  %8751 = vmatmul.mubr.bf16.gmra.mrb[0].mxu0 %v7230
  %v8752 = vpop.f32.mrb[0].mxu0
  %v8753 = vadd.f32 %v8712, %v8752
  %v8754 = vpop.f32.mrb[0].mxu0
  %v8755 = vadd.f32 %v8714, %v8754
  %v8756 = vpop.f32.mrb[0].mxu0
  %v8757 = vpop.f32.mrb[0].mxu0
  %8758 = vdwg.mxu0
  %8759 = vmatprep.subr.bf16.mxu0 %v8232
  %8760 = vmatpush1.bf16.msra.mxu0 %v8231
  %8761 = vmatprep.subr.bf16.mxu0 %v8239
  %8762 = vmatpush1.bf16.msra.mxu0 %v8238
  %8763 = vmatprep.subr.bf16.mxu0 %v8246
  %8764 = vmatpush1.bf16.msra.mxu0 %v8245
  %8765 = vmatprep.subr.bf16.mxu0 %v8253
  %8766 = vmatpush1.bf16.msra.mxu0 %v8252
  %8767 = vmatprep.subr.bf16.mxu0 %v8260
  %8768 = vmatpush1.bf16.msra.mxu0 %v8259
  %8769 = vmatprep.subr.bf16.mxu0 %v8267
  %8770 = vmatpush1.bf16.msra.mxu0 %v8266
  %8771 = vmatprep.subr.bf16.mxu0 %v8274
  %8772 = vmatpush1.bf16.msra.mxu0 %v8273
  %8773 = vmatprep.subr.bf16.mxu0 %v8281
  %8774 = vmatpush1.bf16.msra.mxu0 %v8280
  %8775 = vmatprep.subr.bf16.mxu0 %v8288
  %8776 = vmatpush1.bf16.msra.mxu0 %v8287
  %8777 = vmatprep.subr.bf16.mxu0 %v8295
  %8778 = vmatpush1.bf16.msra.mxu0 %v8294
  %8779 = vmatprep.subr.bf16.mxu0 %v8302
  %8780 = vmatpush1.bf16.msra.mxu0 %v8301
  %8781 = vmatprep.subr.bf16.mxu0 %v8309
  %8782 = vmatpush1.bf16.msra.mxu0 %v8308
  %8783 = vmatprep.subr.bf16.mxu0 %v8316
  %8784 = vmatpush1.bf16.msra.mxu0 %v8315
  %8785 = vmatprep.subr.bf16.mxu0 %v8323
  %8786 = vmatpush1.bf16.msra.mxu0 %v8322
  %8787 = vmatprep.subr.bf16.mxu0 %v8330
  %8788 = vmatpush1.bf16.msra.mxu0 %v8329
  %8789 = vmatprep.subr.bf16.mxu0 %v8337
  %8790 = vmatpush1.bf16.msra.mxu0 %v8336
  %8791 = vmatprep.mubr.bf16.mxu0 %v7229
  %8792 = vmatmul.mubr.bf16.gmra.mrb[0].mxu0 %v7228
  %v8793 = vpop.f32.mrb[0].mxu0
  %v8794 = vadd.f32 %v7501, %v8793
  %v8795 = vpop.f32.mrb[0].mxu0
  %v8796 = vadd.f32 %v7505, %v8795
  %v8797 = vpop.f32.mrb[0].mxu0
  %v8798 = vpop.f32.mrb[0].mxu0
  %8799 = vdwg.mxu0
  %8800 = vmatprep.subr.bf16.mxu0 %v8344
  %8801 = vmatpush1.bf16.msra.mxu0 %v8343
  %8802 = vmatprep.subr.bf16.mxu0 %v8351
  %8803 = vmatpush1.bf16.msra.mxu0 %v8350
  %8804 = vmatprep.subr.bf16.mxu0 %v8358
  %8805 = vmatpush1.bf16.msra.mxu0 %v8357
  %8806 = vmatprep.subr.bf16.mxu0 %v8365
  %8807 = vmatpush1.bf16.msra.mxu0 %v8364
  %8808 = vmatprep.subr.bf16.mxu0 %v8372
  %8809 = vmatpush1.bf16.msra.mxu0 %v8371
  %8810 = vmatprep.subr.bf16.mxu0 %v8379
  %8811 = vmatpush1.bf16.msra.mxu0 %v8378
  %8812 = vmatprep.subr.bf16.mxu0 %v8386
  %8813 = vmatpush1.bf16.msra.mxu0 %v8385
  %8814 = vmatprep.subr.bf16.mxu0 %v8393
  %8815 = vmatpush1.bf16.msra.mxu0 %v8392
  %8816 = vmatprep.subr.bf16.mxu0 %v8400
  %8817 = vmatpush1.bf16.msra.mxu0 %v8399
  %8818 = vmatprep.subr.bf16.mxu0 %v8407
  %8819 = vmatpush1.bf16.msra.mxu0 %v8406
  %8820 = vmatprep.subr.bf16.mxu0 %v8414
  %8821 = vmatpush1.bf16.msra.mxu0 %v8413
  %8822 = vmatprep.subr.bf16.mxu0 %v8421
  %8823 = vmatpush1.bf16.msra.mxu0 %v8420
  %8824 = vmatprep.subr.bf16.mxu0 %v8428
  %8825 = vmatpush1.bf16.msra.mxu0 %v8427
  %8826 = vmatprep.subr.bf16.mxu0 %v8435
  %8827 = vmatpush1.bf16.msra.mxu0 %v8434
  %8828 = vmatprep.subr.bf16.mxu0 %v8442
  %8829 = vmatpush1.bf16.msra.mxu0 %v8441
  %8830 = vmatprep.subr.bf16.mxu0 %v8449
  %8831 = vmatpush1.bf16.msra.mxu0 %v8448
  %8832 = vmatprep.mubr.bf16.mxu0 %v7231
  %8833 = vmatmul.mubr.bf16.gmra.mrb[0].mxu0 %v7230
  %v8834 = vpop.f32.mrb[0].mxu0
  %v8835 = vadd.f32 %v8794, %v8834
  %v8836 = vpop.f32.mrb[0].mxu0
  %v8837 = vadd.f32 %v8796, %v8836
  %v8838 = vpop.f32.mrb[0].mxu0
  %v8839 = vpop.f32.mrb[0].mxu0
  %8840 = vdwg.mxu0
  %8841 = vmatprep.subr.bf16.mxu0 %v8234
  %8842 = vmatpush1.bf16.msra.mxu0 %v8233
  %8843 = vmatprep.subr.bf16.mxu0 %v8241
  %8844 = vmatpush1.bf16.msra.mxu0 %v8240
  %8845 = vmatprep.subr.bf16.mxu0 %v8248
  %8846 = vmatpush1.bf16.msra.mxu0 %v8247
  %8847 = vmatprep.subr.bf16.mxu0 %v8255
  %8848 = vmatpush1.bf16.msra.mxu0 %v8254
  %8849 = vmatprep.subr.bf16.mxu0 %v8262
  %8850 = vmatpush1.bf16.msra.mxu0 %v8261
  %8851 = vmatprep.subr.bf16.mxu0 %v8269
  %8852 = vmatpush1.bf16.msra.mxu0 %v8268
  %8853 = vmatprep.subr.bf16.mxu0 %v8276
  %8854 = vmatpush1.bf16.msra.mxu0 %v8275
  %8855 = vmatprep.subr.bf16.mxu0 %v8283
  %8856 = vmatpush1.bf16.msra.mxu0 %v8282
  %8857 = vmatprep.subr.bf16.mxu0 %v8290
  %8858 = vmatpush1.bf16.msra.mxu0 %v8289
  %8859 = vmatprep.subr.bf16.mxu0 %v8297
  %8860 = vmatpush1.bf16.msra.mxu0 %v8296
  %8861 = vmatprep.subr.bf16.mxu0 %v8304
  %8862 = vmatpush1.bf16.msra.mxu0 %v8303
  %8863 = vmatprep.subr.bf16.mxu0 %v8311
  %8864 = vmatpush1.bf16.msra.mxu0 %v8310
  %8865 = vmatprep.subr.bf16.mxu0 %v8318
  %8866 = vmatpush1.bf16.msra.mxu0 %v8317
  %8867 = vmatprep.subr.bf16.mxu0 %v8325
  %8868 = vmatpush1.bf16.msra.mxu0 %v8324
  %8869 = vmatprep.subr.bf16.mxu0 %v8332
  %8870 = vmatpush1.bf16.msra.mxu0 %v8331
  %8871 = vmatprep.subr.bf16.mxu0 %v8339
  %8872 = vmatpush1.bf16.msra.mxu0 %v8338
  %8873 = vmatprep.mubr.bf16.mxu0 %v7229
  %8874 = vmatmul.mubr.bf16.gmra.mrb[0].mxu0 %v7228
  %v8875 = vpop.f32.mrb[0].mxu0
  %v8876 = vadd.f32 %v7509, %v8875
  %v8877 = vpop.f32.mrb[0].mxu0
  %v8878 = vadd.f32 %v7513, %v8877
  %v8879 = vpop.f32.mrb[0].mxu0
  %v8880 = vpop.f32.mrb[0].mxu0
  %8881 = vdwg.mxu0
  %8882 = vmatprep.subr.bf16.mxu0 %v8346
  %8883 = vmatpush1.bf16.msra.mxu0 %v8345
  %8884 = vmatprep.subr.bf16.mxu0 %v8353
  %8885 = vmatpush1.bf16.msra.mxu0 %v8352
  %8886 = vmatprep.subr.bf16.mxu0 %v8360
  %8887 = vmatpush1.bf16.msra.mxu0 %v8359
  %8888 = vmatprep.subr.bf16.mxu0 %v8367
  %8889 = vmatpush1.bf16.msra.mxu0 %v8366
  %8890 = vmatprep.subr.bf16.mxu0 %v8374
  %8891 = vmatpush1.bf16.msra.mxu0 %v8373
  %8892 = vmatprep.subr.bf16.mxu0 %v8381
  %8893 = vmatpush1.bf16.msra.mxu0 %v8380
  %8894 = vmatprep.subr.bf16.mxu0 %v8388
  %8895 = vmatpush1.bf16.msra.mxu0 %v8387
  %8896 = vmatprep.subr.bf16.mxu0 %v8395
  %8897 = vmatpush1.bf16.msra.mxu0 %v8394
  %8898 = vmatprep.subr.bf16.mxu0 %v8402
  %8899 = vmatpush1.bf16.msra.mxu0 %v8401
  %8900 = vmatprep.subr.bf16.mxu0 %v8409
  %8901 = vmatpush1.bf16.msra.mxu0 %v8408
  %8902 = vmatprep.subr.bf16.mxu0 %v8416
  %8903 = vmatpush1.bf16.msra.mxu0 %v8415
  %8904 = vmatprep.subr.bf16.mxu0 %v8423
  %8905 = vmatpush1.bf16.msra.mxu0 %v8422
  %8906 = vmatprep.subr.bf16.mxu0 %v8430
  %8907 = vmatpush1.bf16.msra.mxu0 %v8429
  %8908 = vmatprep.subr.bf16.mxu0 %v8437
  %8909 = vmatpush1.bf16.msra.mxu0 %v8436
  %8910 = vmatprep.subr.bf16.mxu0 %v8444
  %8911 = vmatpush1.bf16.msra.mxu0 %v8443
  %8912 = vmatprep.subr.bf16.mxu0 %v8451
  %8913 = vmatpush1.bf16.msra.mxu0 %v8450
  %8914 = vmatprep.mubr.bf16.mxu0 %v7231
  %8915 = vmatmul.mubr.bf16.gmra.mrb[0].mxu0 %v7230
  %v8916 = vpop.f32.mrb[0].mxu0
  %v8917 = vadd.f32 %v8876, %v8916
  %v8918 = vpop.f32.mrb[0].mxu0
  %v8919 = vadd.f32 %v8878, %v8918
  %v8920 = vpop.f32.mrb[0].mxu0
  %v8921 = vpop.f32.mrb[0].mxu0
  %8922 = vdwg.mxu0
  %8923 = vmatprep.subr.bf16.mxu0 0
  %8924 = vmatpush1.bf16.msra.mxu0 %v8235
  %8925 = vmatprep.subr.bf16.mxu0 0
  %8926 = vmatpush1.bf16.msra.mxu0 %v8242
  %8927 = vmatprep.subr.bf16.mxu0 0
  %8928 = vmatpush1.bf16.msra.mxu0 %v8249
  %8929 = vmatprep.subr.bf16.mxu0 0
  %8930 = vmatpush1.bf16.msra.mxu0 %v8256
  %8931 = vmatprep.subr.bf16.mxu0 0
  %8932 = vmatpush1.bf16.msra.mxu0 %v8263
  %8933 = vmatprep.subr.bf16.mxu0 0
  %8934 = vmatpush1.bf16.msra.mxu0 %v8270
  %8935 = vmatprep.subr.bf16.mxu0 0
  %8936 = vmatpush1.bf16.msra.mxu0 %v8277
  %8937 = vmatprep.subr.bf16.mxu0 0
  %8938 = vmatpush1.bf16.msra.mxu0 %v8284
  %8939 = vmatprep.subr.bf16.mxu0 0
  %8940 = vmatpush1.bf16.msra.mxu0 %v8291
  %8941 = vmatprep.subr.bf16.mxu0 0
  %8942 = vmatpush1.bf16.msra.mxu0 %v8298
  %8943 = vmatprep.subr.bf16.mxu0 0
  %8944 = vmatpush1.bf16.msra.mxu0 %v8305
  %8945 = vmatprep.subr.bf16.mxu0 0
  %8946 = vmatpush1.bf16.msra.mxu0 %v8312
  %8947 = vmatprep.subr.bf16.mxu0 0
  %8948 = vmatpush1.bf16.msra.mxu0 %v8319
  %8949 = vmatprep.subr.bf16.mxu0 0
  %8950 = vmatpush1.bf16.msra.mxu0 %v8326
  %8951 = vmatprep.subr.bf16.mxu0 0
  %8952 = vmatpush1.bf16.msra.mxu0 %v8333
  %8953 = vmatprep.subr.bf16.mxu0 0
  %8954 = vmatpush1.bf16.msra.mxu0 %v8340
  %8955 = vmatprep.mubr.bf16.mxu0 %v7229
  %8956 = vmatmul.mubr.bf16.gmra.mrb[0].mxu0 %v7228
  %v8957 = vpop.f32.mrb[0].mxu0
  %v8958 = vadd.f32 %v7517, %v8957
  %v8959 = vpop.f32.mrb[0].mxu0
  %v8960 = vpop.f32.mrb[0].mxu0
  %v8961 = vpop.f32.mrb[0].mxu0
  %8962 = vdwg.mxu0
  %8963 = vmatprep.subr.bf16.mxu0 0
  %8964 = vmatpush1.bf16.msra.mxu0 %v8347
  %8965 = vmatprep.subr.bf16.mxu0 0
  %8966 = vmatpush1.bf16.msra.mxu0 %v8354
  %8967 = vmatprep.subr.bf16.mxu0 0
  %8968 = vmatpush1.bf16.msra.mxu0 %v8361
  %8969 = vmatprep.subr.bf16.mxu0 0
  %8970 = vmatpush1.bf16.msra.mxu0 %v8368
  %8971 = vmatprep.subr.bf16.mxu0 0
  %8972 = vmatpush1.bf16.msra.mxu0 %v8375
  %8973 = vmatprep.subr.bf16.mxu0 0
  %8974 = vmatpush1.bf16.msra.mxu0 %v8382
  %8975 = vmatprep.subr.bf16.mxu0 0
  %8976 = vmatpush1.bf16.msra.mxu0 %v8389
  %8977 = vmatprep.subr.bf16.mxu0 0
  %8978 = vmatpush1.bf16.msra.mxu0 %v8396
  %8979 = vmatprep.subr.bf16.mxu0 0
  %8980 = vmatpush1.bf16.msra.mxu0 %v8403
  %8981 = vmatprep.subr.bf16.mxu0 0
  %8982 = vmatpush1.bf16.msra.mxu0 %v8410
  %8983 = vmatprep.subr.bf16.mxu0 0
  %8984 = vmatpush1.bf16.msra.mxu0 %v8417
  %8985 = vmatprep.subr.bf16.mxu0 0
  %8986 = vmatpush1.bf16.msra.mxu0 %v8424
  %8987 = vmatprep.subr.bf16.mxu0 0
  %8988 = vmatpush1.bf16.msra.mxu0 %v8431
  %8989 = vmatprep.subr.bf16.mxu0 0
  %8990 = vmatpush1.bf16.msra.mxu0 %v8438
  %8991 = vmatprep.subr.bf16.mxu0 0
  %8992 = vmatpush1.bf16.msra.mxu0 %v8445
  %8993 = vmatprep.subr.bf16.mxu0 0
  %8994 = vmatpush1.bf16.msra.mxu0 %v8452
  %8995 = vmatprep.mubr.bf16.mxu0 %v7231
  %8996 = vmatmul.mubr.bf16.gmra.mrb[0].mxu0 %v7230
  %v8997 = vpop.f32.mrb[0].mxu0
  %v8998 = vadd.f32 %v8958, %v8997
  %v8999 = vpop.f32.mrb[0].mxu0
  %v9000 = vpop.f32.mrb[0].mxu0
  %v9001 = vpop.f32.mrb[0].mxu0
  %9002 = vdwg.mxu0
  %v9003 = vmax.f32 %v8753, 0.0
  %v9004 = vmax.f32 %v8755, 0.0
  %v9005 = vmax.f32 %v8835, 0.0
  %v9006 = vmax.f32 %v8837, 0.0
  %v9007 = vmax.f32 %v8917, 0.0
  %v9008 = vmax.f32 %v8919, 0.0
  %v9009 = vmax.f32 %v8998, 0.0
  %v9010 = vpack.c.bf16 %v9003, %v9003
  %v9011 = vpack.c.bf16 %v9004, %v9004
  %v9012 = vpack.c.bf16 %v9005, %v9005
  %v9013 = vpack.c.bf16 %v9006, %v9006
  %v9014 = vpack.c.bf16 %v9007, %v9007
  %v9015 = vpack.c.bf16 %v9008, %v9008
  %v9016 = vpack.c.bf16 %v9009, %v9009
  %v9017 = vld [vmem:[%s11] sm:$0xf]
  %v9018 = vld [vmem:[%s11 + $0x4] sm:$0xf]
  %v9019 = vld [vmem:[%s11 + $0x8] sm:$0xf]
  %v9020 = vld [vmem:[%s11 + $0xc] sm:$0xf]
  %v9021 = vld [vmem:[%s11 + $0x10] sm:$0xf]
  %v9022 = vld [vmem:[%s11 + $0x14] sm:$0xf]
  %v9023 = vld [vmem:[%s11 + $0x18] sm:$0xf]
  %v9024 = vld [vmem:[%s11 + $0x1c] sm:$0xf]
  %v9025 = vld [vmem:[%s11 + $0x20] sm:$0xf]
  %v9026 = vld [vmem:[%s11 + $0x24] sm:$0xf]
  %v9027 = vld [vmem:[%s11 + $0x28] sm:$0xf]
  %v9028 = vld [vmem:[%s11 + $0x2c] sm:$0xf]
  %v9029 = vld [vmem:[%s11 + $0x30] sm:$0xf]
  %v9030 = vld [vmem:[%s11 + $0x34] sm:$0xf]
  %v9031 = vld [vmem:[%s11 + $0x38] sm:$0xf]
  %v9032 = vld [vmem:[%s11 + $0x3c] sm:$0xf]
  %v9033 = vld [vmem:[%s11 + $0x40] sm:$0xf]
  %v9034 = vld [vmem:[%s11 + $0x44] sm:$0xf]
  %v9035 = vld [vmem:[%s11 + $0x48] sm:$0xf]
  %v9036 = vld [vmem:[%s11 + $0x4c] sm:$0xf]
  %v9037 = vld [vmem:[%s11 + $0x50] sm:$0xf]
  %v9038 = vld [vmem:[%s11 + $0x54] sm:$0xf]
  %v9039 = vld [vmem:[%s11 + $0x58] sm:$0xf]
  %v9040 = vld [vmem:[%s11 + $0x5c] sm:$0xf]
  %v9041 = vld [vmem:[%s11 + $0x60] sm:$0xf]
  %v9042 = vld [vmem:[%s11 + $0x64] sm:$0xf]
  %v9043 = vld [vmem:[%s11 + $0x68] sm:$0xf]
  %v9044 = vld [vmem:[%s11 + $0x6c] sm:$0xf]
  %v9045 = vld [vmem:[%s11 + $0x70] sm:$0xf]
  %v9046 = vld [vmem:[%s11 + $0x74] sm:$0xf]
  %v9047 = vld [vmem:[%s11 + $0x78] sm:$0xf]
  %v9048 = vld [vmem:[%s11 + $0x7c] sm:$0xf]
  %v9049 = vld [vmem:[%s11 + $0x80] sm:$0xf]
  %v9050 = vld [vmem:[%s11 + $0x84] sm:$0xf]
  %v9051 = vld [vmem:[%s11 + $0x88] sm:$0xf]
  %v9052 = vld [vmem:[%s11 + $0x8c] sm:$0xf]
  %v9053 = vld [vmem:[%s11 + $0x90] sm:$0xf]
  %v9054 = vld [vmem:[%s11 + $0x94] sm:$0xf]
  %v9055 = vld [vmem:[%s11 + $0x98] sm:$0xf]
  %v9056 = vld [vmem:[%s11 + $0x9c] sm:$0xf]
  %v9057 = vld [vmem:[%s11 + $0xa0] sm:$0xf]
  %v9058 = vld [vmem:[%s11 + $0xa4] sm:$0xf]
  %v9059 = vld [vmem:[%s11 + $0xa8] sm:$0xf]
  %v9060 = vld [vmem:[%s11 + $0xac] sm:$0xf]
  %v9061 = vld [vmem:[%s11 + $0xb0] sm:$0xf]
  %v9062 = vld [vmem:[%s11 + $0xb4] sm:$0xf]
  %v9063 = vld [vmem:[%s11 + $0xb8] sm:$0xf]
  %v9064 = vld [vmem:[%s11 + $0xbc] sm:$0xf]
  %v9065 = vld [vmem:[%s11 + $0xc0] sm:$0xf]
  %v9066 = vld [vmem:[%s11 + $0xc4] sm:$0xf]
  %v9067 = vld [vmem:[%s11 + $0xc8] sm:$0xf]
  %v9068 = vld [vmem:[%s11 + $0xcc] sm:$0xf]
  %v9069 = vld [vmem:[%s11 + $0xd0] sm:$0xf]
  %v9070 = vld [vmem:[%s11 + $0xd4] sm:$0xf]
  %v9071 = vld [vmem:[%s11 + $0xd8] sm:$0xf]
  %v9072 = vld [vmem:[%s11 + $0xdc] sm:$0xf]
  %v9073 = vld [vmem:[%s11 + $0xe0] sm:$0xf]
  %v9074 = vld [vmem:[%s11 + $0xe4] sm:$0xf]
  %v9075 = vld [vmem:[%s11 + $0xe8] sm:$0xf]
  %v9076 = vld [vmem:[%s11 + $0xec] sm:$0xf]
  %v9077 = vld [vmem:[%s11 + $0xf0] sm:$0xf]
  %v9078 = vld [vmem:[%s11 + $0xf4] sm:$0xf]
  %v9079 = vld [vmem:[%s11 + $0xf8] sm:$0xf]
  %v9080 = vld [vmem:[%s11 + $0xfc] sm:$0xf]
  %v9081 = vld [vmem:[%s11 + $0x100] sm:$0xf]
  %v9082 = vld [vmem:[%s11 + $0x104] sm:$0xf]
  %v9083 = vld [vmem:[%s11 + $0x108] sm:$0xf]
  %v9084 = vld [vmem:[%s11 + $0x10c] sm:$0xf]
  %v9085 = vld [vmem:[%s11 + $0x110] sm:$0xf]
  %v9086 = vld [vmem:[%s11 + $0x114] sm:$0xf]
  %v9087 = vld [vmem:[%s11 + $0x118] sm:$0xf]
  %v9088 = vld [vmem:[%s11 + $0x11c] sm:$0xf]
  %v9089 = vld [vmem:[%s11 + $0x120] sm:$0xf]
  %v9090 = vld [vmem:[%s11 + $0x124] sm:$0xf]
  %v9091 = vld [vmem:[%s11 + $0x128] sm:$0xf]
  %v9092 = vld [vmem:[%s11 + $0x12c] sm:$0xf]
  %v9093 = vld [vmem:[%s11 + $0x130] sm:$0xf]
  %v9094 = vld [vmem:[%s11 + $0x134] sm:$0xf]
  %v9095 = vld [vmem:[%s11 + $0x138] sm:$0xf]
  %v9096 = vld [vmem:[%s11 + $0x13c] sm:$0xf]
  %v9097 = vld [vmem:[%s11 + $0x140] sm:$0xf]
  %v9098 = vld [vmem:[%s11 + $0x144] sm:$0xf]
  %v9099 = vld [vmem:[%s11 + $0x148] sm:$0xf]
  %v9100 = vld [vmem:[%s11 + $0x14c] sm:$0xf]
  %v9101 = vld [vmem:[%s11 + $0x150] sm:$0xf]
  %v9102 = vld [vmem:[%s11 + $0x154] sm:$0xf]
  %v9103 = vld [vmem:[%s11 + $0x158] sm:$0xf]
  %v9104 = vld [vmem:[%s11 + $0x15c] sm:$0xf]
  %v9105 = vld [vmem:[%s11 + $0x160] sm:$0xf]
  %v9106 = vld [vmem:[%s11 + $0x164] sm:$0xf]
  %v9107 = vld [vmem:[%s11 + $0x168] sm:$0xf]
  %v9108 = vld [vmem:[%s11 + $0x16c] sm:$0xf]
  %v9109 = vld [vmem:[%s11 + $0x170] sm:$0xf]
  %v9110 = vld [vmem:[%s11 + $0x174] sm:$0xf]
  %v9111 = vld [vmem:[%s11 + $0x178] sm:$0xf]
  %v9112 = vld [vmem:[%s11 + $0x17c] sm:$0xf]
  %v9113 = vld [vmem:[%s11 + $0x180] sm:$0xf]
  %v9114 = vld [vmem:[%s11 + $0x184] sm:$0xf]
  %v9115 = vld [vmem:[%s11 + $0x188] sm:$0xf]
  %v9116 = vld [vmem:[%s11 + $0x18c] sm:$0xf]
  %v9117 = vld [vmem:[%s12] sm:$0x1]
  %v9119 = vlaneseq
  %v9120 = vshrl.u32 %v9119, 7
  %v9121 = vsub.s32 0, %v9120
  %v9122 = vrot.slane %v9117, %v9121
  %v9224 = vunpack.c.l.b16 %v9017
  %v9225 = vunpack.c.l.b16 %v9018
  %v9226 = vunpack.c.l.b16 %v9019
  %v9227 = vunpack.c.l.b16 %v9020
  %v9228 = vunpack.c.l.b16 %v9021
  %v9229 = vunpack.c.l.b16 %v9022
  %v9230 = vunpack.c.l.b16 %v9023
  %v9231 = vunpack.c.l.b16 %v9024
  %v9232 = vunpack.c.l.b16 %v9025
  %v9233 = vunpack.c.l.b16 %v9026
  %v9234 = vunpack.c.l.b16 %v9027
  %v9235 = vunpack.c.l.b16 %v9028
  %v9236 = vunpack.c.l.b16 %v9029
  %v9237 = vunpack.c.l.b16 %v9030
  %v9238 = vunpack.c.l.b16 %v9031
  %v9239 = vunpack.c.l.b16 %v9032
  %v9240 = vunpack.c.l.b16 %v9033
  %v9241 = vunpack.c.l.b16 %v9034
  %v9242 = vunpack.c.l.b16 %v9035
  %v9243 = vunpack.c.l.b16 %v9036
  %v9244 = vunpack.c.l.b16 %v9037
  %v9245 = vunpack.c.l.b16 %v9038
  %v9246 = vunpack.c.l.b16 %v9039
  %v9247 = vunpack.c.l.b16 %v9040
  %v9248 = vunpack.c.l.b16 %v9041
  %v9249 = vunpack.c.l.b16 %v9042
  %v9250 = vunpack.c.l.b16 %v9043
  %v9251 = vunpack.c.l.b16 %v9044
  %v9252 = vunpack.c.l.b16 %v9045
  %v9253 = vunpack.c.l.b16 %v9046
  %v9254 = vunpack.c.l.b16 %v9047
  %v9255 = vunpack.c.l.b16 %v9048
  %v9256 = vunpack.c.l.b16 %v9049
  %v9257 = vunpack.c.l.b16 %v9050
  %v9258 = vunpack.c.l.b16 %v9051
  %v9259 = vunpack.c.l.b16 %v9052
  %v9260 = vunpack.c.l.b16 %v9053
  %v9261 = vunpack.c.l.b16 %v9054
  %v9262 = vunpack.c.l.b16 %v9055
  %v9263 = vunpack.c.l.b16 %v9056
  %v9264 = vunpack.c.l.b16 %v9057
  %v9265 = vunpack.c.l.b16 %v9058
  %v9266 = vunpack.c.l.b16 %v9059
  %v9267 = vunpack.c.l.b16 %v9060
  %v9268 = vunpack.c.l.b16 %v9061
  %v9269 = vunpack.c.l.b16 %v9062
  %v9270 = vunpack.c.l.b16 %v9063
  %v9271 = vunpack.c.l.b16 %v9064
  %v9272 = vunpack.c.l.b16 %v9065
  %v9273 = vunpack.c.l.b16 %v9066
  %v9274 = vunpack.c.l.b16 %v9067
  %v9275 = vunpack.c.l.b16 %v9068
  %v9276 = vunpack.c.l.b16 %v9069
  %v9277 = vunpack.c.l.b16 %v9070
  %v9278 = vunpack.c.l.b16 %v9071
  %v9279 = vunpack.c.l.b16 %v9072
  %v9280 = vunpack.c.l.b16 %v9073
  %v9281 = vunpack.c.l.b16 %v9074
  %v9282 = vunpack.c.l.b16 %v9075
  %v9283 = vunpack.c.l.b16 %v9076
  %v9284 = vunpack.c.l.b16 %v9077
  %v9285 = vunpack.c.l.b16 %v9078
  %v9286 = vunpack.c.l.b16 %v9079
  %v9287 = vunpack.c.l.b16 %v9080
  %v9288 = vunpack.c.l.b16 %v9081
  %v9289 = vunpack.c.l.b16 %v9082
  %v9290 = vunpack.c.l.b16 %v9083
  %v9291 = vunpack.c.l.b16 %v9084
  %v9292 = vunpack.c.l.b16 %v9085
  %v9293 = vunpack.c.l.b16 %v9086
  %v9294 = vunpack.c.l.b16 %v9087
  %v9295 = vunpack.c.l.b16 %v9088
  %v9296 = vunpack.c.l.b16 %v9089
  %v9297 = vunpack.c.l.b16 %v9090
  %v9298 = vunpack.c.l.b16 %v9091
  %v9299 = vunpack.c.l.b16 %v9092
  %v9300 = vunpack.c.l.b16 %v9093
  %v9301 = vunpack.c.l.b16 %v9094
  %v9302 = vunpack.c.l.b16 %v9095
  %v9303 = vunpack.c.l.b16 %v9096
  %v9304 = vunpack.c.l.b16 %v9097
  %v9305 = vunpack.c.l.b16 %v9098
  %v9306 = vunpack.c.l.b16 %v9099
  %v9307 = vunpack.c.l.b16 %v9100
  %v9308 = vunpack.c.l.b16 %v9101
  %v9309 = vunpack.c.l.b16 %v9102
  %v9310 = vunpack.c.l.b16 %v9103
  %v9311 = vunpack.c.l.b16 %v9104
  %v9312 = vunpack.c.l.b16 %v9105
  %v9313 = vunpack.c.l.b16 %v9106
  %v9314 = vunpack.c.l.b16 %v9107
  %v9315 = vunpack.c.l.b16 %v9108
  %v9316 = vunpack.c.l.b16 %v9109
  %v9317 = vunpack.c.l.b16 %v9110
  %v9318 = vunpack.c.l.b16 %v9111
  %v9319 = vunpack.c.l.b16 %v9112
  %v9320 = vunpack.c.l.b16 %v9113
  %v9321 = vunpack.c.l.b16 %v9114
  %v9322 = vunpack.c.l.b16 %v9115
  %v9323 = vunpack.c.l.b16 %v9116
  %v9324 = vpack.c.b16 %v9225, %v9224
  %v9325 = vpack.c.b16 %v9227, %v9226
  %v9326 = vpack.c.b16 %v9229, %v9228
  %v9327 = vpack.c.b16 %v9231, %v9230
  %v9328 = vpack.c.b16 %v9233, %v9232
  %v9329 = vpack.c.b16 %v9235, %v9234
  %v9330 = vpack.c.b16 %v9237, %v9236
  %v9331 = vpack.c.b16 %v9239, %v9238
  %v9332 = vpack.c.b16 %v9241, %v9240
  %v9333 = vpack.c.b16 %v9243, %v9242
  %v9334 = vpack.c.b16 %v9245, %v9244
  %v9335 = vpack.c.b16 %v9247, %v9246
  %v9336 = vpack.c.b16 %v9249, %v9248
  %v9337 = vpack.c.b16 %v9251, %v9250
  %v9338 = vpack.c.b16 %v9253, %v9252
  %v9339 = vpack.c.b16 %v9255, %v9254
  %v9340 = vpack.c.b16 %v9257, %v9256
  %v9341 = vpack.c.b16 %v9259, %v9258
  %v9342 = vpack.c.b16 %v9261, %v9260
  %v9343 = vpack.c.b16 %v9263, %v9262
  %v9344 = vpack.c.b16 %v9265, %v9264
  %v9345 = vpack.c.b16 %v9267, %v9266
  %v9346 = vpack.c.b16 %v9269, %v9268
  %v9347 = vpack.c.b16 %v9271, %v9270
  %v9348 = vpack.c.b16 %v9273, %v9272
  %v9349 = vpack.c.b16 %v9275, %v9274
  %v9350 = vpack.c.b16 %v9277, %v9276
  %v9351 = vpack.c.b16 %v9279, %v9278
  %v9352 = vpack.c.b16 %v9281, %v9280
  %v9353 = vpack.c.b16 %v9283, %v9282
  %v9354 = vpack.c.b16 %v9285, %v9284
  %v9355 = vpack.c.b16 %v9287, %v9286
  %v9356 = vpack.c.b16 %v9289, %v9288
  %v9357 = vpack.c.b16 %v9291, %v9290
  %v9358 = vpack.c.b16 %v9293, %v9292
  %v9359 = vpack.c.b16 %v9295, %v9294
  %v9360 = vpack.c.b16 %v9297, %v9296
  %v9361 = vpack.c.b16 %v9299, %v9298
  %v9362 = vpack.c.b16 %v9301, %v9300
  %v9363 = vpack.c.b16 %v9303, %v9302
  %v9364 = vpack.c.b16 %v9305, %v9304
  %v9365 = vpack.c.b16 %v9307, %v9306
  %v9366 = vpack.c.b16 %v9309, %v9308
  %v9367 = vpack.c.b16 %v9311, %v9310
  %v9368 = vpack.c.b16 %v9313, %v9312
  %v9369 = vpack.c.b16 %v9315, %v9314
  %v9370 = vpack.c.b16 %v9317, %v9316
  %v9371 = vpack.c.b16 %v9319, %v9318
  %v9372 = vpack.c.b16 %v9321, %v9320
  %v9373 = vpack.c.b16 %v9323, %v9322
  %vm9424 = vcmask 261120
  %v9426 = vsel %vm9424, %v9016, 0
  %9428 = vmatprep.subr.bf16.mxu0 0
  %9429 = vmatpush1.bf16.msra.mxu0 %v9324
  %9430 = vmatprep.subr.bf16.mxu0 0
  %9431 = vmatpush1.bf16.msra.mxu0 %v9325
  %9432 = vmatprep.subr.bf16.mxu0 0
  %9433 = vmatpush1.bf16.msra.mxu0 %v9326
  %9434 = vmatprep.subr.bf16.mxu0 0
  %9435 = vmatpush1.bf16.msra.mxu0 %v9327
  %9436 = vmatprep.subr.bf16.mxu0 0
  %9437 = vmatpush1.bf16.msra.mxu0 %v9328
  %9438 = vmatprep.subr.bf16.mxu0 0
  %9439 = vmatpush1.bf16.msra.mxu0 %v9329
  %9440 = vmatprep.subr.bf16.mxu0 0
  %9441 = vmatpush1.bf16.msra.mxu0 %v9330
  %9442 = vmatprep.subr.bf16.mxu0 0
  %9443 = vmatpush1.bf16.msra.mxu0 %v9331
  %9444 = vmatprep.subr.bf16.mxu0 0
  %9445 = vmatpush1.bf16.msra.mxu0 %v9332
  %9446 = vmatprep.subr.bf16.mxu0 0
  %9447 = vmatpush1.bf16.msra.mxu0 %v9333
  %9448 = vmatprep.subr.bf16.mxu0 0
  %9449 = vmatpush1.bf16.msra.mxu0 %v9334
  %9450 = vmatprep.subr.bf16.mxu0 0
  %9451 = vmatpush1.bf16.msra.mxu0 %v9335
  %9452 = vmatprep.subr.bf16.mxu0 0
  %9453 = vmatpush1.bf16.msra.mxu0 %v9336
  %9454 = vmatprep.subr.bf16.mxu0 0
  %9455 = vmatpush1.bf16.msra.mxu0 %v9337
  %9456 = vmatprep.subr.bf16.mxu0 0
  %9457 = vmatpush1.bf16.msra.mxu0 %v9338
  %9458 = vmatprep.subr.bf16.mxu0 0
  %9459 = vmatpush1.bf16.msra.mxu0 %v9339
  %9460 = vmatprep.mubr.bf16.mxu0 %v9011
  %9461 = vmatmul.mubr.bf16.gmra.mrb[0].mxu0 %v9010
  %v9462 = vpop.f32.mrb[0].mxu0
  %v9463 = vadd.f32 %v9122, %v9462
  %v9464 = vpop.f32.mrb[0].mxu0
  %v9465 = vpop.f32.mrb[0].mxu0
  %v9466 = vpop.f32.mrb[0].mxu0
  %9467 = vdwg.mxu0
  %9468 = vmatprep.subr.bf16.mxu0 0
  %9469 = vmatpush1.bf16.msra.mxu0 %v9340
  %9470 = vmatprep.subr.bf16.mxu0 0
  %9471 = vmatpush1.bf16.msra.mxu0 %v9341
  %9472 = vmatprep.subr.bf16.mxu0 0
  %9473 = vmatpush1.bf16.msra.mxu0 %v9342
  %9474 = vmatprep.subr.bf16.mxu0 0
  %9475 = vmatpush1.bf16.msra.mxu0 %v9343
  %9476 = vmatprep.subr.bf16.mxu0 0
  %9477 = vmatpush1.bf16.msra.mxu0 %v9344
  %9478 = vmatprep.subr.bf16.mxu0 0
  %9479 = vmatpush1.bf16.msra.mxu0 %v9345
  %9480 = vmatprep.subr.bf16.mxu0 0
  %9481 = vmatpush1.bf16.msra.mxu0 %v9346
  %9482 = vmatprep.subr.bf16.mxu0 0
  %9483 = vmatpush1.bf16.msra.mxu0 %v9347
  %9484 = vmatprep.subr.bf16.mxu0 0
  %9485 = vmatpush1.bf16.msra.mxu0 %v9348
  %9486 = vmatprep.subr.bf16.mxu0 0
  %9487 = vmatpush1.bf16.msra.mxu0 %v9349
  %9488 = vmatprep.subr.bf16.mxu0 0
  %9489 = vmatpush1.bf16.msra.mxu0 %v9350
  %9490 = vmatprep.subr.bf16.mxu0 0
  %9491 = vmatpush1.bf16.msra.mxu0 %v9351
  %9492 = vmatprep.subr.bf16.mxu0 0
  %9493 = vmatpush1.bf16.msra.mxu0 %v9352
  %9494 = vmatprep.subr.bf16.mxu0 0
  %9495 = vmatpush1.bf16.msra.mxu0 %v9353
  %9496 = vmatprep.subr.bf16.mxu0 0
  %9497 = vmatpush1.bf16.msra.mxu0 %v9354
  %9498 = vmatprep.subr.bf16.mxu0 0
  %9499 = vmatpush1.bf16.msra.mxu0 %v9355
  %9500 = vmatprep.mubr.bf16.mxu0 %v9013
  %9501 = vmatmul.mubr.bf16.gmra.mrb[0].mxu0 %v9012
  %v9502 = vpop.f32.mrb[0].mxu0
  %v9503 = vadd.f32 %v9463, %v9502
  %v9504 = vpop.f32.mrb[0].mxu0
  %v9505 = vpop.f32.mrb[0].mxu0
  %v9506 = vpop.f32.mrb[0].mxu0
  %9507 = vdwg.mxu0
  %9508 = vmatprep.subr.bf16.mxu0 0
  %9509 = vmatpush1.bf16.msra.mxu0 %v9356
  %9510 = vmatprep.subr.bf16.mxu0 0
  %9511 = vmatpush1.bf16.msra.mxu0 %v9357
  %9512 = vmatprep.subr.bf16.mxu0 0
  %9513 = vmatpush1.bf16.msra.mxu0 %v9358
  %9514 = vmatprep.subr.bf16.mxu0 0
  %9515 = vmatpush1.bf16.msra.mxu0 %v9359
  %9516 = vmatprep.subr.bf16.mxu0 0
  %9517 = vmatpush1.bf16.msra.mxu0 %v9360
  %9518 = vmatprep.subr.bf16.mxu0 0
  %9519 = vmatpush1.bf16.msra.mxu0 %v9361
  %9520 = vmatprep.subr.bf16.mxu0 0
  %9521 = vmatpush1.bf16.msra.mxu0 %v9362
  %9522 = vmatprep.subr.bf16.mxu0 0
  %9523 = vmatpush1.bf16.msra.mxu0 %v9363
  %9524 = vmatprep.subr.bf16.mxu0 0
  %9525 = vmatpush1.bf16.msra.mxu0 %v9364
  %9526 = vmatprep.subr.bf16.mxu0 0
  %9527 = vmatpush1.bf16.msra.mxu0 %v9365
  %9528 = vmatprep.subr.bf16.mxu0 0
  %9529 = vmatpush1.bf16.msra.mxu0 %v9366
  %9530 = vmatprep.subr.bf16.mxu0 0
  %9531 = vmatpush1.bf16.msra.mxu0 %v9367
  %9532 = vmatprep.subr.bf16.mxu0 0
  %9533 = vmatpush1.bf16.msra.mxu0 %v9368
  %9534 = vmatprep.subr.bf16.mxu0 0
  %9535 = vmatpush1.bf16.msra.mxu0 %v9369
  %9536 = vmatprep.subr.bf16.mxu0 0
  %9537 = vmatpush1.bf16.msra.mxu0 %v9370
  %9538 = vmatprep.subr.bf16.mxu0 0
  %9539 = vmatpush1.bf16.msra.mxu0 %v9371
  %9540 = vmatprep.mubr.bf16.mxu0 %v9015
  %9541 = vmatmul.mubr.bf16.gmra.mrb[0].mxu0 %v9014
  %v9542 = vpop.f32.mrb[0].mxu0
  %v9543 = vadd.f32 %v9503, %v9542
  %v9544 = vpop.f32.mrb[0].mxu0
  %v9545 = vpop.f32.mrb[0].mxu0
  %v9546 = vpop.f32.mrb[0].mxu0
  %9547 = vdwg.mxu0
  %9548 = vmatprep.subr.bf16.mxu0 0
  %9549 = vmatpush1.bf16.msra.mxu0 %v9372
  %9550 = vmatprep.subr.bf16.mxu0 0
  %9551 = vmatpush1.bf16.msra.mxu0 %v9373
  %9552 = vmatprep.subr.bf16.mxu0 0
  %9553 = vmatpush1.bf16.msra.mxu0 0
  %9554 = vmatprep.subr.bf16.mxu0 0
  %9555 = vmatpush1.bf16.msra.mxu0 0
  %9556 = vmatprep.subr.bf16.mxu0 0
  %9557 = vmatpush1.bf16.msra.mxu0 0
  %9558 = vmatprep.subr.bf16.mxu0 0
  %9559 = vmatpush1.bf16.msra.mxu0 0
  %9560 = vmatprep.subr.bf16.mxu0 0
  %9561 = vmatpush1.bf16.msra.mxu0 0
  %9562 = vmatprep.subr.bf16.mxu0 0
  %9563 = vmatpush1.bf16.msra.mxu0 0
  %9564 = vmatprep.subr.bf16.mxu0 0
  %9565 = vmatpush1.bf16.msra.mxu0 0
  %9566 = vmatprep.subr.bf16.mxu0 0
  %9567 = vmatpush1.bf16.msra.mxu0 0
  %9568 = vmatprep.subr.bf16.mxu0 0
  %9569 = vmatpush1.bf16.msra.mxu0 0
  %9570 = vmatprep.subr.bf16.mxu0 0
  %9571 = vmatpush1.bf16.msra.mxu0 0
  %9572 = vmatprep.subr.bf16.mxu0 0
  %9573 = vmatpush1.bf16.msra.mxu0 0
  %9574 = vmatprep.subr.bf16.mxu0 0
  %9575 = vmatpush1.bf16.msra.mxu0 0
  %9576 = vmatprep.subr.bf16.mxu0 0
  %9577 = vmatpush1.bf16.msra.mxu0 0
  %9578 = vmatprep.subr.bf16.mxu0 0
  %9579 = vmatpush1.bf16.msra.mxu0 0
  %9580 = vmatprep.mubr.bf16.mxu0 0
  %9581 = vmatmul.mubr.bf16.gmra.mrb[0].mxu0 %v9426
  %v9582 = vpop.f32.mrb[0].mxu0
  %v9583 = vadd.f32 %v9543, %v9582
  %v9584 = vpop.f32.mrb[0].mxu0
  %v9585 = vpop.f32.mrb[0].mxu0
  %v9586 = vpop.f32.mrb[0].mxu0
  %9587 = vdwg.mxu0
  %9588 = vst [vmem:[%s13] sm:$0xf] %v9583
  // Predicated region
  $region54: #{cnn_forward.1} parent=0 // pred_check
    _
  $region55: #{cnn_forward.1} parent=0 // pred_check_branch
    %9590 = sbr.rel (0) target = $region57
  $region56: #{cnn_forward.1} parent=0 // pred_region
    _
  $region57: #{cnn_forward.1} parent=0 // pred_fallthru
    _
  // Predicated region
  $region58: #{cnn_forward.1} parent=0 // pred_check
    _
  $region59: #{cnn_forward.1} parent=0 // pred_check_branch
    %9592 = sbr.rel (0) target = $region61
  $region60: #{cnn_forward.1} parent=0 // pred_region
    _
  $region61: #{cnn_forward.1} parent=0 // pred_fallthru
    _

</llo_original>
